<compile_context>
chip_gen: v5e
topology: v5e:2x2
jax: 0.10.0
libtpu: 0.0.40
codegen_flags: <defaults>
</compile_context>

<pallas_src>
import jax
import jax.numpy as jnp
from jax.experimental import pallas as pl
from jax.experimental.pallas import tpu as pltpu

HIDDEN = 32          # hidden_size
VOCAB = 32           # output_size
NUM_LAYERS = 2
NUM_DIRECT = 2       # bidirectional=True
BATCH = 8
SEQ_LEN = 17         # fixed by hidden_fc: hidden_size + 17 * output_size
REPEAT = NUM_LAYERS * NUM_DIRECT
FEAT = SEQ_LEN * VOCAB + HIDDEN      # 576
GATE_ORDER = [0, 1, 3, 2]            # PyTorch [i,f,g,o] -> kernel [i,f,o,g]


def decoder_kernel(cat_ref, hfc_wT_ref, hfc_b_ref,
                   w0x_ref, w0h_ref, b0_ref,
                   w1x_ref, w1h_ref, b1_ref,
                   fc_wT_ref, fc_b_ref,
                   out_ref, hN_ref, cN_ref):
    H, V, B = HIDDEN, VOCAB, BATCH
    H2 = 2 * H
    f32, bf16 = jnp.float32, jnp.bfloat16

    # hidden_fc once per batch row; reference feeds (hidden, hidden) to the LSTM
    # so both h and c of both layers start from it.
    h_init = (jnp.dot(cat_ref[...], hfc_wT_ref[...], preferred_element_type=f32)
              + hfc_b_ref[...])                                     # (B, H)
    h_init = jnp.concatenate([h_init, h_init], axis=-1)             # (B, 2H) [fwd|bwd]

    h0 = h_init; c0 = h_init          # layer-0 recurrent state (f32)
    h1 = h_init; c1 = h_init          # layer-1 recurrent state (f32)
    h0_bf = h_init.astype(bf16)       # cached MXU operands (cast once per step)
    h1_bf = h_init.astype(bf16)

    lane = jax.lax.broadcasted_iota(jnp.int32, (B, V), 1)
    onehot = (lane == 1).astype(bf16)  # SOS token id == 1, built directly in bf16

    # Broadcast (1, ...) biases ONCE; reused across all 17 unrolled steps.
    b0 = jnp.broadcast_to(b0_ref[...], (B, 8 * H))
    b1 = jnp.broadcast_to(b1_ref[...], (B, 8 * H))
    fcb = jnp.broadcast_to(fc_b_ref[...], (B, V))

    def cell(gates, c_prev):
        # gate columns [i | f | o | g], each 2H = [fwd|bwd] lanes.
        # sigmoid covers only the i|f|o block; tanh only the g block.
        s = jax.nn.sigmoid(gates[:, :3 * H2])
        g = jnp.tanh(gates[:, 3 * H2:])
        c_new = s[:, H2:2 * H2] * c_prev + s[:, :H2] * g
        h_new = s[:, 2 * H2:3 * H2] * jnp.tanh(c_new)
        return h_new, c_new

    for step in range(SEQ_LEN):
        # Dots with operands known at step start issue back-to-back; LLO can
        # hoist them under the previous step's fc/argmax tail.  The bias adds
        # ride on the off-chain operand of each gate sum.
        g0 = (jnp.dot(onehot, w0x_ref[...], preferred_element_type=f32)
              + (jnp.dot(h0_bf, w0h_ref[...], preferred_element_type=f32) + b0))
        g1h = jnp.dot(h1_bf, w1h_ref[...], preferred_element_type=f32) + b1

        h0, c0 = cell(g0, c0)
        h0_bf = h0.astype(bf16)

        g1 = jnp.dot(h0_bf, w1x_ref[...], preferred_element_type=f32) + g1h
        h1, c1 = cell(g1, c1)
        h1_bf = h1.astype(bf16)

        logits = (jnp.dot(h1_bf, fc_wT_ref[...], preferred_element_type=f32)
                  + fcb)                                            # (B, V)
        out_ref[:, step * V:(step + 1) * V] = logits                # lane-dense slab

        # Greedy argmax with a single cross-lane reduction: monotone int32 key
        # (order-preserving bitcast of the f32 logit) with the low 5 bits
        # replaced by (V-1-lane); max-reduce picks the first maximum, matching
        # torch.argmax tie-breaking (ties below ~2^-19 relative collapse).
        bits = pltpu.bitcast(logits, jnp.int32)
        key = bits ^ ((bits >> 31) & jnp.int32(0x7FFFFFFF))         # monotone in logit
        key = (key & jnp.int32(-32)) | (V - 1 - lane)
        kmax = jnp.max(key, axis=-1, keepdims=True)                 # one XLU reduce
        amax = (V - 1) - (kmax & 31)                                # (B, 1) argmax index
        onehot = (lane == amax).astype(bf16)                        # bf16 feedback

    hN_ref[...] = jnp.concatenate([h0, h1], axis=-1)                # (B, 4H) = (8, 128)
    cN_ref[...] = jnp.concatenate([c0, c1], axis=-1)


def _full_spec(shape):
    n = len(shape)
    return pl.BlockSpec(shape, lambda i, _n=n: (0,) * _n)


def _fuse_gate_cols(a_fwd, a_bwd):
    """(R, 4H) per direction (PyTorch gate order i,f,g,o) ->
    (R, 8H) with columns [i|f|o|g], each gate 2H = [fwd|bwd]."""
    r = a_fwd.shape[0]
    fw = a_fwd.reshape(r, 4, HIDDEN)[:, GATE_ORDER]
    bw = a_bwd.reshape(r, 4, HIDDEN)[:, GATE_ORDER]
    return jnp.stack([fw, bw], axis=2).reshape(r, 8 * HIDDEN)


def pack_params(params, weight_dtype=jnp.bfloat16):
    """Build the fused kernel operands from PyTorch-layout parameters."""
    H = HIDDEN
    emb = params["word_emb"]
    (wih00, whh00, bi00, bh00) = params["lstm"][0]   # layer 0, fwd
    (wih01, whh01, bi01, bh01) = params["lstm"][1]   # layer 0, bwd
    (wih10, whh10, bi10, bh10) = params["lstm"][2]   # layer 1, fwd
    (wih11, whh11, bi11, bh11) = params["lstm"][3]   # layer 1, bwd
    z = jnp.zeros((H, 4 * H), jnp.float32)

    # layer 0: embedding folded into the input weights (one-hot feeds the dot)
    w0x = _fuse_gate_cols(emb @ wih00.T, emb @ wih01.T)                  # (V, 8H)
    w0h = jnp.concatenate([_fuse_gate_cols(whh00.T, z),
                           _fuse_gate_cols(z, whh01.T)], axis=0)         # (2H, 8H)
    # layer 1
    w1x = _fuse_gate_cols(wih10.T, wih11.T)                              # (2H, 8H)
    w1h = jnp.concatenate([_fuse_gate_cols(whh10.T, z),
                           _fuse_gate_cols(z, whh11.T)], axis=0)         # (2H, 8H)

    b0 = _fuse_gate_cols((bi00 + bh00).reshape(1, 4 * H),
                         (bi01 + bh01).reshape(1, 4 * H))                # (1, 8H)
    b1 = _fuse_gate_cols((bi10 + bh10).reshape(1, 4 * H),
                         (bi11 + bh11).reshape(1, 4 * H))

    return dict(
        hfc_wT=params["hfc_w"].T.astype(jnp.float32),                    # (F, H)
        hfc_b=params["hfc_b"].reshape(1, HIDDEN).astype(jnp.float32),    # (1, H)
        w0x=w0x.astype(weight_dtype), w0h=w0h.astype(weight_dtype),
        w1x=w1x.astype(weight_dtype), w1h=w1h.astype(weight_dtype),
        b0=b0.astype(jnp.float32), b1=b1.astype(jnp.float32),            # (1, 8H)
        fc_wT=params["fc_w"].T.astype(weight_dtype),                     # (2H, V)
        fc_b=params["fc_b"].reshape(1, VOCAB).astype(jnp.float32),       # (1, V)
    )


def vae_decoder_forward(latent, cond, params):
    """Equivalent of VAE_Decoder.forward(latent, cond, e_input=None, tf_flag=False)."""
    B, H, V = BATCH, HIDDEN, VOCAB
    kp = pack_params(params)

    # --- glue: init_hidden (embedding lookup + reshape/concat; replicas deduped) ---
    cond_e = params["cond_emb"][cond.reshape(B)]                          # (B, H)
    lat = jnp.transpose(latent, (1, 0, 2)).reshape(B, SEQ_LEN * V)        # (B, 17V)
    cat0 = jnp.concatenate([lat, cond_e], axis=-1).astype(jnp.float32)    # (B, F)

    inputs = (cat0, kp["hfc_wT"], kp["hfc_b"],
              kp["w0x"], kp["w0h"], kp["b0"],
              kp["w1x"], kp["w1h"], kp["b1"],
              kp["fc_wT"], kp["fc_b"])

    out_shapes = (
        jax.ShapeDtypeStruct((B, SEQ_LEN * V), jnp.float32),              # logits (8, 544)
        jax.ShapeDtypeStruct((B, REPEAT * H), jnp.float32),               # h_n packed (8, 128)
        jax.ShapeDtypeStruct((B, REPEAT * H), jnp.float32),               # c_n packed (8, 128)
    )
    grid_spec = pltpu.PrefetchScalarGridSpec(
        num_scalar_prefetch=0,
        grid=(1,),
        in_specs=[_full_spec(x.shape) for x in inputs],
        out_specs=[_full_spec(s.shape) for s in out_shapes],
    )
    out_flat, h_pack, c_pack = pl.pallas_call(
        decoder_kernel,
        out_shape=out_shapes,
        grid_spec=grid_spec,
        compiler_params=pltpu.CompilerParams(dimension_semantics=("arbitrary",)),
    )(*inputs)

    # (B, 17V) -> (17, B, V);  (B, 4H) packed [L0f|L0b|L1f|L1b] -> (4, B, H)
    out = jnp.transpose(out_flat.reshape(B, SEQ_LEN, V), (1, 0, 2))
    h_n = jnp.transpose(h_pack.reshape(B, REPEAT, H), (1, 0, 2))
    c_n = jnp.transpose(c_pack.reshape(B, REPEAT, H), (1, 0, 2))
    loss = None  # e_input is None in this forward path
    return out, (h_n, c_n), loss


def make_params(key):
    """Parameters in PyTorch layout (Embedding tables, Linear (out,in), LSTM gate order i,f,g,o)."""
    H, V, F = HIDDEN, VOCAB, FEAT
    ks = iter(jax.random.split(key, 6 + 4 * NUM_LAYERS * NUM_DIRECT))

    word_emb = jax.random.normal(next(ks), (V, H), jnp.float32)   # Embedding(output, hidden)
    cond_emb = jax.random.normal(next(ks), (4, H), jnp.float32)   # Embedding(4, hidden)

    s_f = float(F) ** -0.5
    hfc_w = jax.random.uniform(next(ks), (H, F), jnp.float32, -s_f, s_f)
    hfc_b = jax.random.uniform(next(ks), (H,), jnp.float32, -s_f, s_f)

    s_2h = float(2 * H) ** -0.5
    fc_w = jax.random.uniform(next(ks), (V, 2 * H), jnp.float32, -s_2h, s_2h)
    fc_b = jax.random.uniform(next(ks), (V,), jnp.float32, -s_2h, s_2h)

    s_h = float(H) ** -0.5
    lstm = []
    for layer in range(NUM_LAYERS):
        in_size = H if layer == 0 else NUM_DIRECT * H
        for _d in range(NUM_DIRECT):
            w_ih = jax.random.uniform(next(ks), (4 * H, in_size), jnp.float32, -s_h, s_h)
            w_hh = jax.random.uniform(next(ks), (4 * H, H), jnp.float32, -s_h, s_h)
            b_ih = jax.random.uniform(next(ks), (4 * H,), jnp.float32, -s_h, s_h)
            b_hh = jax.random.uniform(next(ks), (4 * H,), jnp.float32, -s_h, s_h)
            lstm.append((w_ih, w_hh, b_ih, b_hh))

    return dict(word_emb=word_emb, cond_emb=cond_emb,
                hfc_w=hfc_w, hfc_b=hfc_b, fc_w=fc_w, fc_b=fc_b, lstm=lstm)


if __name__ == "__main__":
    key = jax.random.PRNGKey(0)
    k_p, k_lat, k_cond = jax.random.split(key, 3)

    params = make_params(k_p)
    latent = jax.random.normal(k_lat, (SEQ_LEN, BATCH, VOCAB), jnp.float32)
    cond = jax.random.randint(k_cond, (BATCH, 1), 0, 4, jnp.int32)

    out, (h_n, c_n), loss = vae_decoder_forward(latent, cond, params)
    jax.block_until_ready((out, h_n, c_n))

    assert out.shape == (SEQ_LEN, BATCH, VOCAB)
    assert h_n.shape == (REPEAT, BATCH, HIDDEN)
    assert c_n.shape == (REPEAT, BATCH, HIDDEN)
    assert loss is None
    print("KERNEL_OK")
</pallas_src>

<mosaic_0001>
module attributes {stable_mosaic.version = 11 : i64} {
  func.func @decoder_kernel(%arg0: i32, %arg1: memref<8x576xf32, #tpu.memory_space<vmem>>, %arg2: memref<576x32xf32, #tpu.memory_space<vmem>>, %arg3: memref<1x32xf32, #tpu.memory_space<vmem>>, %arg4: memref<32x256xbf16, #tpu.memory_space<vmem>>, %arg5: memref<64x256xbf16, #tpu.memory_space<vmem>>, %arg6: memref<1x256xf32, #tpu.memory_space<vmem>>, %arg7: memref<64x256xbf16, #tpu.memory_space<vmem>>, %arg8: memref<64x256xbf16, #tpu.memory_space<vmem>>, %arg9: memref<1x256xf32, #tpu.memory_space<vmem>>, %arg10: memref<64x32xbf16, #tpu.memory_space<vmem>>, %arg11: memref<1x32xf32, #tpu.memory_space<vmem>>, %arg12: memref<8x544xf32, #tpu.memory_space<vmem>>, %arg13: memref<8x128xf32, #tpu.memory_space<vmem>>, %arg14: memref<8x128xf32, #tpu.memory_space<vmem>>) attributes {dimension_semantics = [#tpu.dimension_semantics<arbitrary>], iteration_bounds = array<i64: 1>, scalar_prefetch = 0 : i64, scratch_operands = 0 : i64, tpu.core_type = #tpu.core_type<tc>, window_params = [{pipeline_mode = #tpu.pipeline_mode<synchronous>, transform_indices = @transform_0, window_bounds = array<i64: 8, 576>}, {pipeline_mode = #tpu.pipeline_mode<synchronous>, transform_indices = @transform_1, window_bounds = array<i64: 576, 32>}, {pipeline_mode = #tpu.pipeline_mode<synchronous>, transform_indices = @transform_2, window_bounds = array<i64: 1, 32>}, {pipeline_mode = #tpu.pipeline_mode<synchronous>, transform_indices = @transform_3, window_bounds = array<i64: 32, 256>}, {pipeline_mode = #tpu.pipeline_mode<synchronous>, transform_indices = @transform_4, window_bounds = array<i64: 64, 256>}, {pipeline_mode = #tpu.pipeline_mode<synchronous>, transform_indices = @transform_5, window_bounds = array<i64: 1, 256>}, {pipeline_mode = #tpu.pipeline_mode<synchronous>, transform_indices = @transform_6, window_bounds = array<i64: 64, 256>}, {pipeline_mode = #tpu.pipeline_mode<synchronous>, transform_indices = @transform_7, window_bounds = array<i64: 64, 256>}, {pipeline_mode = #tpu.pipeline_mode<synchronous>, transform_indices = @transform_8, window_bounds = array<i64: 1, 256>}, {pipeline_mode = #tpu.pipeline_mode<synchronous>, transform_indices = @transform_9, window_bounds = array<i64: 64, 32>}, {pipeline_mode = #tpu.pipeline_mode<synchronous>, transform_indices = @transform_10, window_bounds = array<i64: 1, 32>}, {pipeline_mode = #tpu.pipeline_mode<synchronous>, transform_indices = @transform_11, window_bounds = array<i64: 8, 544>}, {pipeline_mode = #tpu.pipeline_mode<synchronous>, transform_indices = @transform_12, window_bounds = array<i64: 8, 128>}, {pipeline_mode = #tpu.pipeline_mode<synchronous>, transform_indices = @transform_13, window_bounds = array<i64: 8, 128>}]} {
    %c0 = arith.constant 0 : index
    %c0_0 = arith.constant 0 : index
    %0 = vector.load %arg1[%c0, %c0_0] : memref<8x576xf32, #tpu.memory_space<vmem>>, vector<8x576xf32>
    %c0_1 = arith.constant 0 : index
    %c0_2 = arith.constant 0 : index
    %1 = vector.load %arg2[%c0_1, %c0_2] : memref<576x32xf32, #tpu.memory_space<vmem>>, vector<576x32xf32>
    %cst = arith.constant dense<0.000000e+00> : vector<8x32xf32>
    %2 = tpu.matmul %0, %1, %cst {dimension_numbers = #tpu.dot_dimension_numbers<[1], [0], [0], [1], [0, 0, 1, 1], [], []>} : vector<8x576xf32>, vector<576x32xf32>, vector<8x32xf32> -> vector<8x32xf32>
    %c0_3 = arith.constant 0 : index
    %c0_4 = arith.constant 0 : index
    %3 = vector.load %arg3[%c0_3, %c0_4] : memref<1x32xf32, #tpu.memory_space<vmem>>, vector<1x32xf32>
    %4 = vector.broadcast %3 : vector<1x32xf32> to vector<8x32xf32>
    %5 = arith.addf %2, %4 : vector<8x32xf32>
    %6 = tpu.concatenate %5, %5 in 1 : vector<8x32xf32>, vector<8x32xf32> -> vector<8x64xf32>
    %7 = arith.truncf %6 : vector<8x64xf32> to vector<8x64xbf16>
    %8 = arith.truncf %6 : vector<8x64xf32> to vector<8x64xbf16>
    %9 = tpu.iota {dimensions = array<i32: 1>} : vector<8x32xi32>
    %c1_i32 = arith.constant 1 : i32
    %10 = vector.broadcast %c1_i32 : i32 to vector<8x32xi32>
    %11 = arith.cmpi eq, %9, %10 : vector<8x32xi32>
    %12 = arith.extui %11 : vector<8x32xi1> to vector<8x32xi32>
    %13 = arith.sitofp %12 : vector<8x32xi32> to vector<8x32xf32>
    %14 = arith.truncf %13 : vector<8x32xf32> to vector<8x32xbf16>
    %c0_5 = arith.constant 0 : index
    %c0_6 = arith.constant 0 : index
    %15 = vector.load %arg6[%c0_5, %c0_6] : memref<1x256xf32, #tpu.memory_space<vmem>>, vector<1x256xf32>
    %16 = vector.shape_cast %15 : vector<1x256xf32> to vector<1x256xf32>
    %17 = vector.broadcast %16 : vector<1x256xf32> to vector<8x256xf32>
    %c0_7 = arith.constant 0 : index
    %c0_8 = arith.constant 0 : index
    %18 = vector.load %arg9[%c0_7, %c0_8] : memref<1x256xf32, #tpu.memory_space<vmem>>, vector<1x256xf32>
    %19 = vector.shape_cast %18 : vector<1x256xf32> to vector<1x256xf32>
    %20 = vector.broadcast %19 : vector<1x256xf32> to vector<8x256xf32>
    %c0_9 = arith.constant 0 : index
    %c0_10 = arith.constant 0 : index
    %21 = vector.load %arg11[%c0_9, %c0_10] : memref<1x32xf32, #tpu.memory_space<vmem>>, vector<1x32xf32>
    %22 = vector.shape_cast %21 : vector<1x32xf32> to vector<1x32xf32>
    %23 = vector.broadcast %22 : vector<1x32xf32> to vector<8x32xf32>
    %c0_11 = arith.constant 0 : index
    %c0_12 = arith.constant 0 : index
    %24 = vector.load %arg4[%c0_11, %c0_12] : memref<32x256xbf16, #tpu.memory_space<vmem>>, vector<32x256xbf16>
    %cst_13 = arith.constant dense<0.000000e+00> : vector<8x256xf32>
    %25 = tpu.matmul %14, %24, %cst_13 {dimension_numbers = #tpu.dot_dimension_numbers<[1], [0], [0], [1], [0, 0, 1, 1], [], []>} : vector<8x32xbf16>, vector<32x256xbf16>, vector<8x256xf32> -> vector<8x256xf32>
    %c0_14 = arith.constant 0 : index
    %c0_15 = arith.constant 0 : index
    %26 = vector.load %arg5[%c0_14, %c0_15] : memref<64x256xbf16, #tpu.memory_space<vmem>>, vector<64x256xbf16>
    %cst_16 = arith.constant dense<0.000000e+00> : vector<8x256xf32>
    %27 = tpu.matmul %7, %26, %cst_16 {dimension_numbers = #tpu.dot_dimension_numbers<[1], [0], [0], [1], [0, 0, 1, 1], [], []>} : vector<8x64xbf16>, vector<64x256xbf16>, vector<8x256xf32> -> vector<8x256xf32>
    %28 = arith.addf %27, %17 : vector<8x256xf32>
    %29 = arith.addf %25, %28 : vector<8x256xf32>
    %c0_17 = arith.constant 0 : index
    %c0_18 = arith.constant 0 : index
    %30 = vector.load %arg8[%c0_17, %c0_18] : memref<64x256xbf16, #tpu.memory_space<vmem>>, vector<64x256xbf16>
    %cst_19 = arith.constant dense<0.000000e+00> : vector<8x256xf32>
    %31 = tpu.matmul %8, %30, %cst_19 {dimension_numbers = #tpu.dot_dimension_numbers<[1], [0], [0], [1], [0, 0, 1, 1], [], []>} : vector<8x64xbf16>, vector<64x256xbf16>, vector<8x256xf32> -> vector<8x256xf32>
    %32 = arith.addf %31, %20 : vector<8x256xf32>
    %33 = vector.extract_strided_slice %29 {offsets = [0, 0], sizes = [8, 192], strides = [1, 1]} : vector<8x256xf32> to vector<8x192xf32>
    %34 = arith.negf %33 : vector<8x192xf32>
    %35 = math.exp %34 : vector<8x192xf32>
    %cst_20 = arith.constant 1.000000e+00 : f32
    %36 = vector.broadcast %cst_20 : f32 to vector<8x192xf32>
    %37 = arith.addf %36, %35 : vector<8x192xf32>
    %38 = arith.divf %36, %37 : vector<8x192xf32>
    %39 = vector.extract_strided_slice %29 {offsets = [0, 192], sizes = [8, 64], strides = [1, 1]} : vector<8x256xf32> to vector<8x64xf32>
    %40 = math.tanh %39 : vector<8x64xf32>
    %41 = vector.extract_strided_slice %38 {offsets = [0, 64], sizes = [8, 64], strides = [1, 1]} : vector<8x192xf32> to vector<8x64xf32>
    %42 = arith.mulf %41, %6 : vector<8x64xf32>
    %43 = vector.extract_strided_slice %38 {offsets = [0, 0], sizes = [8, 64], strides = [1, 1]} : vector<8x192xf32> to vector<8x64xf32>
    %44 = arith.mulf %43, %40 : vector<8x64xf32>
    %45 = arith.addf %42, %44 : vector<8x64xf32>
    %46 = vector.extract_strided_slice %38 {offsets = [0, 128], sizes = [8, 64], strides = [1, 1]} : vector<8x192xf32> to vector<8x64xf32>
    %47 = math.tanh %45 : vector<8x64xf32>
    %48 = arith.mulf %46, %47 : vector<8x64xf32>
    %49 = arith.truncf %48 : vector<8x64xf32> to vector<8x64xbf16>
    %c0_21 = arith.constant 0 : index
    %c0_22 = arith.constant 0 : index
    %50 = vector.load %arg7[%c0_21, %c0_22] : memref<64x256xbf16, #tpu.memory_space<vmem>>, vector<64x256xbf16>
    %cst_23 = arith.constant dense<0.000000e+00> : vector<8x256xf32>
    %51 = tpu.matmul %49, %50, %cst_23 {dimension_numbers = #tpu.dot_dimension_numbers<[1], [0], [0], [1], [0, 0, 1, 1], [], []>} : vector<8x64xbf16>, vector<64x256xbf16>, vector<8x256xf32> -> vector<8x256xf32>
    %52 = arith.addf %51, %32 : vector<8x256xf32>
    %53 = vector.extract_strided_slice %52 {offsets = [0, 0], sizes = [8, 192], strides = [1, 1]} : vector<8x256xf32> to vector<8x192xf32>
    %54 = arith.negf %53 : vector<8x192xf32>
    %55 = math.exp %54 : vector<8x192xf32>
    %cst_24 = arith.constant 1.000000e+00 : f32
    %56 = vector.broadcast %cst_24 : f32 to vector<8x192xf32>
    %57 = arith.addf %56, %55 : vector<8x192xf32>
    %58 = arith.divf %56, %57 : vector<8x192xf32>
    %59 = vector.extract_strided_slice %52 {offsets = [0, 192], sizes = [8, 64], strides = [1, 1]} : vector<8x256xf32> to vector<8x64xf32>
    %60 = math.tanh %59 : vector<8x64xf32>
    %61 = vector.extract_strided_slice %58 {offsets = [0, 64], sizes = [8, 64], strides = [1, 1]} : vector<8x192xf32> to vector<8x64xf32>
    %62 = arith.mulf %61, %6 : vector<8x64xf32>
    %63 = vector.extract_strided_slice %58 {offsets = [0, 0], sizes = [8, 64], strides = [1, 1]} : vector<8x192xf32> to vector<8x64xf32>
    %64 = arith.mulf %63, %60 : vector<8x64xf32>
    %65 = arith.addf %62, %64 : vector<8x64xf32>
    %66 = vector.extract_strided_slice %58 {offsets = [0, 128], sizes = [8, 64], strides = [1, 1]} : vector<8x192xf32> to vector<8x64xf32>
    %67 = math.tanh %65 : vector<8x64xf32>
    %68 = arith.mulf %66, %67 : vector<8x64xf32>
    %69 = arith.truncf %68 : vector<8x64xf32> to vector<8x64xbf16>
    %c0_25 = arith.constant 0 : index
    %c0_26 = arith.constant 0 : index
    %70 = vector.load %arg10[%c0_25, %c0_26] : memref<64x32xbf16, #tpu.memory_space<vmem>>, vector<64x32xbf16>
    %cst_27 = arith.constant dense<0.000000e+00> : vector<8x32xf32>
    %71 = tpu.matmul %69, %70, %cst_27 {dimension_numbers = #tpu.dot_dimension_numbers<[1], [0], [0], [1], [0, 0, 1, 1], [], []>} : vector<8x64xbf16>, vector<64x32xbf16>, vector<8x32xf32> -> vector<8x32xf32>
    %72 = arith.addf %71, %23 : vector<8x32xf32>
    %c0_28 = arith.constant 0 : index
    %c0_29 = arith.constant 0 : index
    %73 = vector.load %arg12[%c0_28, %c0_29] : memref<8x544xf32, #tpu.memory_space<vmem>>, vector<8x32xf32>
    tpu.vector_store %arg12[%c0_28, %c0_29], %72 {strides = array<i32>} : memref<8x544xf32, #tpu.memory_space<vmem>>, vector<8x32xf32>,
    %74 = tpu.bitcast %72 : vector<8x32xf32> -> vector<8x32xi32>
    %c31_i32 = arith.constant 31 : i32
    %75 = vector.broadcast %c31_i32 : i32 to vector<8x32xi32>
    %76 = arith.shrsi %74, %75 : vector<8x32xi32>
    %c2147483647_i32 = arith.constant 2147483647 : i32
    %77 = vector.broadcast %c2147483647_i32 : i32 to vector<8x32xi32>
    %78 = arith.andi %76, %77 : vector<8x32xi32>
    %79 = arith.xori %74, %78 : vector<8x32xi32>
    %c-32_i32 = arith.constant -32 : i32
    %80 = vector.broadcast %c-32_i32 : i32 to vector<8x32xi32>
    %81 = arith.andi %79, %80 : vector<8x32xi32>
    %c31_i32_30 = arith.constant 31 : i32
    %82 = vector.broadcast %c31_i32_30 : i32 to vector<8x32xi32>
    %83 = arith.subi %82, %9 : vector<8x32xi32>
    %84 = arith.ori %81, %83 : vector<8x32xi32>
    %cst_31 = arith.constant dense<-2147483648> : vector<8xi32>
    %85 = vector.multi_reduction <maxsi>, %84, %cst_31 [1] : vector<8x32xi32> to vector<8xi32>
    %86 = vector.shape_cast %85 : vector<8xi32> to vector<8x1xi32>
    %c31_i32_32 = arith.constant 31 : i32
    %87 = vector.broadcast %c31_i32_32 : i32 to vector<8x1xi32>
    %88 = arith.andi %86, %87 : vector<8x1xi32>
    %c31_i32_33 = arith.constant 31 : i32
    %89 = vector.broadcast %c31_i32_33 : i32 to vector<8x1xi32>
    %90 = arith.subi %89, %88 : vector<8x1xi32>
    %91 = vector.broadcast %90 : vector<8x1xi32> to vector<8x32xi32>
    %92 = arith.cmpi eq, %9, %91 : vector<8x32xi32>
    %93 = arith.extui %92 : vector<8x32xi1> to vector<8x32xi32>
    %94 = arith.sitofp %93 : vector<8x32xi32> to vector<8x32xf32>
    %95 = arith.truncf %94 : vector<8x32xf32> to vector<8x32xbf16>
    %c0_34 = arith.constant 0 : index
    %c0_35 = arith.constant 0 : index
    %96 = vector.load %arg4[%c0_34, %c0_35] : memref<32x256xbf16, #tpu.memory_space<vmem>>, vector<32x256xbf16>
    %cst_36 = arith.constant dense<0.000000e+00> : vector<8x256xf32>
    %97 = tpu.matmul %95, %96, %cst_36 {dimension_numbers = #tpu.dot_dimension_numbers<[1], [0], [0], [1], [0, 0, 1, 1], [], []>} : vector<8x32xbf16>, vector<32x256xbf16>, vector<8x256xf32> -> vector<8x256xf32>
    %c0_37 = arith.constant 0 : index
    %c0_38 = arith.constant 0 : index
    %98 = vector.load %arg5[%c0_37, %c0_38] : memref<64x256xbf16, #tpu.memory_space<vmem>>, vector<64x256xbf16>
    %cst_39 = arith.constant dense<0.000000e+00> : vector<8x256xf32>
    %99 = tpu.matmul %49, %98, %cst_39 {dimension_numbers = #tpu.dot_dimension_numbers<[1], [0], [0], [1], [0, 0, 1, 1], [], []>} : vector<8x64xbf16>, vector<64x256xbf16>, vector<8x256xf32> -> vector<8x256xf32>
    %100 = arith.addf %99, %17 : vector<8x256xf32>
    %101 = arith.addf %97, %100 : vector<8x256xf32>
    %c0_40 = arith.constant 0 : index
    %c0_41 = arith.constant 0 : index
    %102 = vector.load %arg8[%c0_40, %c0_41] : memref<64x256xbf16, #tpu.memory_space<vmem>>, vector<64x256xbf16>
    %cst_42 = arith.constant dense<0.000000e+00> : vector<8x256xf32>
    %103 = tpu.matmul %69, %102, %cst_42 {dimension_numbers = #tpu.dot_dimension_numbers<[1], [0], [0], [1], [0, 0, 1, 1], [], []>} : vector<8x64xbf16>, vector<64x256xbf16>, vector<8x256xf32> -> vector<8x256xf32>
    %104 = arith.addf %103, %20 : vector<8x256xf32>
    %105 = vector.extract_strided_slice %101 {offsets = [0, 0], sizes = [8, 192], strides = [1, 1]} : vector<8x256xf32> to vector<8x192xf32>
    %106 = arith.negf %105 : vector<8x192xf32>
    %107 = math.exp %106 : vector<8x192xf32>
    %cst_43 = arith.constant 1.000000e+00 : f32
    %108 = vector.broadcast %cst_43 : f32 to vector<8x192xf32>
    %109 = arith.addf %108, %107 : vector<8x192xf32>
    %110 = arith.divf %108, %109 : vector<8x192xf32>
    %111 = vector.extract_strided_slice %101 {offsets = [0, 192], sizes = [8, 64], strides = [1, 1]} : vector<8x256xf32> to vector<8x64xf32>
    %112 = math.tanh %111 : vector<8x64xf32>
    %113 = vector.extract_strided_slice %110 {offsets = [0, 64], sizes = [8, 64], strides = [1, 1]} : vector<8x192xf32> to vector<8x64xf32>
    %114 = arith.mulf %113, %45 : vector<8x64xf32>
    %115 = vector.extract_strided_slice %110 {offsets = [0, 0], sizes = [8, 64], strides = [1, 1]} : vector<8x192xf32> to vector<8x64xf32>
    %116 = arith.mulf %115, %112 : vector<8x64xf32>
    %117 = arith.addf %114, %116 : vector<8x64xf32>
    %118 = vector.extract_strided_slice %110 {offsets = [0, 128], sizes = [8, 64], strides = [1, 1]} : vector<8x192xf32> to vector<8x64xf32>
    %119 = math.tanh %117 : vector<8x64xf32>
    %120 = arith.mulf %118, %119 : vector<8x64xf32>
    %121 = arith.truncf %120 : vector<8x64xf32> to vector<8x64xbf16>
    %c0_44 = arith.constant 0 : index
    %c0_45 = arith.constant 0 : index
    %122 = vector.load %arg7[%c0_44, %c0_45] : memref<64x256xbf16, #tpu.memory_space<vmem>>, vector<64x256xbf16>
    %cst_46 = arith.constant dense<0.000000e+00> : vector<8x256xf32>
    %123 = tpu.matmul %121, %122, %cst_46 {dimension_numbers = #tpu.dot_dimension_numbers<[1], [0], [0], [1], [0, 0, 1, 1], [], []>} : vector<8x64xbf16>, vector<64x256xbf16>, vector<8x256xf32> -> vector<8x256xf32>
    %124 = arith.addf %123, %104 : vector<8x256xf32>
    %125 = vector.extract_strided_slice %124 {offsets = [0, 0], sizes = [8, 192], strides = [1, 1]} : vector<8x256xf32> to vector<8x192xf32>
    %126 = arith.negf %125 : vector<8x192xf32>
    %127 = math.exp %126 : vector<8x192xf32>
    %cst_47 = arith.constant 1.000000e+00 : f32
    %128 = vector.broadcast %cst_47 : f32 to vector<8x192xf32>
    %129 = arith.addf %128, %127 : vector<8x192xf32>
    %130 = arith.divf %128, %129 : vector<8x192xf32>
    %131 = vector.extract_strided_slice %124 {offsets = [0, 192], sizes = [8, 64], strides = [1, 1]} : vector<8x256xf32> to vector<8x64xf32>
    %132 = math.tanh %131 : vector<8x64xf32>
    %133 = vector.extract_strided_slice %130 {offsets = [0, 64], sizes = [8, 64], strides = [1, 1]} : vector<8x192xf32> to vector<8x64xf32>
    %134 = arith.mulf %133, %65 : vector<8x64xf32>
    %135 = vector.extract_strided_slice %130 {offsets = [0, 0], sizes = [8, 64], strides = [1, 1]} : vector<8x192xf32> to vector<8x64xf32>
    %136 = arith.mulf %135, %132 : vector<8x64xf32>
    %137 = arith.addf %134, %136 : vector<8x64xf32>
    %138 = vector.extract_strided_slice %130 {offsets = [0, 128], sizes = [8, 64], strides = [1, 1]} : vector<8x192xf32> to vector<8x64xf32>
    %139 = math.tanh %137 : vector<8x64xf32>
    %140 = arith.mulf %138, %139 : vector<8x64xf32>
    %141 = arith.truncf %140 : vector<8x64xf32> to vector<8x64xbf16>
    %c0_48 = arith.constant 0 : index
    %c0_49 = arith.constant 0 : index
    %142 = vector.load %arg10[%c0_48, %c0_49] : memref<64x32xbf16, #tpu.memory_space<vmem>>, vector<64x32xbf16>
    %cst_50 = arith.constant dense<0.000000e+00> : vector<8x32xf32>
    %143 = tpu.matmul %141, %142, %cst_50 {dimension_numbers = #tpu.dot_dimension_numbers<[1], [0], [0], [1], [0, 0, 1, 1], [], []>} : vector<8x64xbf16>, vector<64x32xbf16>, vector<8x32xf32> -> vector<8x32xf32>
    %144 = arith.addf %143, %23 : vector<8x32xf32>
    %c0_51 = arith.constant 0 : index
    %c32 = arith.constant 32 : index
    %145 = vector.load %arg12[%c0_51, %c32] : memref<8x544xf32, #tpu.memory_space<vmem>>, vector<8x32xf32>
    tpu.vector_store %arg12[%c0_51, %c32], %144 {strides = array<i32>} : memref<8x544xf32, #tpu.memory_space<vmem>>, vector<8x32xf32>,
    %146 = tpu.bitcast %144 : vector<8x32xf32> -> vector<8x32xi32>
    %c31_i32_52 = arith.constant 31 : i32
    %147 = vector.broadcast %c31_i32_52 : i32 to vector<8x32xi32>
    %148 = arith.shrsi %146, %147 : vector<8x32xi32>
    %c2147483647_i32_53 = arith.constant 2147483647 : i32
    %149 = vector.broadcast %c2147483647_i32_53 : i32 to vector<8x32xi32>
    %150 = arith.andi %148, %149 : vector<8x32xi32>
    %151 = arith.xori %146, %150 : vector<8x32xi32>
    %c-32_i32_54 = arith.constant -32 : i32
    %152 = vector.broadcast %c-32_i32_54 : i32 to vector<8x32xi32>
    %153 = arith.andi %151, %152 : vector<8x32xi32>
    %c31_i32_55 = arith.constant 31 : i32
    %154 = vector.broadcast %c31_i32_55 : i32 to vector<8x32xi32>
    %155 = arith.subi %154, %9 : vector<8x32xi32>
    %156 = arith.ori %153, %155 : vector<8x32xi32>
    %cst_56 = arith.constant dense<-2147483648> : vector<8xi32>
    %157 = vector.multi_reduction <maxsi>, %156, %cst_56 [1] : vector<8x32xi32> to vector<8xi32>
    %158 = vector.shape_cast %157 : vector<8xi32> to vector<8x1xi32>
    %c31_i32_57 = arith.constant 31 : i32
    %159 = vector.broadcast %c31_i32_57 : i32 to vector<8x1xi32>
    %160 = arith.andi %158, %159 : vector<8x1xi32>
    %c31_i32_58 = arith.constant 31 : i32
    %161 = vector.broadcast %c31_i32_58 : i32 to vector<8x1xi32>
    %162 = arith.subi %161, %160 : vector<8x1xi32>
    %163 = vector.broadcast %162 : vector<8x1xi32> to vector<8x32xi32>
    %164 = arith.cmpi eq, %9, %163 : vector<8x32xi32>
    %165 = arith.extui %164 : vector<8x32xi1> to vector<8x32xi32>
    %166 = arith.sitofp %165 : vector<8x32xi32> to vector<8x32xf32>
    %167 = arith.truncf %166 : vector<8x32xf32> to vector<8x32xbf16>
    %c0_59 = arith.constant 0 : index
    %c0_60 = arith.constant 0 : index
    %168 = vector.load %arg4[%c0_59, %c0_60] : memref<32x256xbf16, #tpu.memory_space<vmem>>, vector<32x256xbf16>
    %cst_61 = arith.constant dense<0.000000e+00> : vector<8x256xf32>
    %169 = tpu.matmul %167, %168, %cst_61 {dimension_numbers = #tpu.dot_dimension_numbers<[1], [0], [0], [1], [0, 0, 1, 1], [], []>} : vector<8x32xbf16>, vector<32x256xbf16>, vector<8x256xf32> -> vector<8x256xf32>
    %c0_62 = arith.constant 0 : index
    %c0_63 = arith.constant 0 : index
    %170 = vector.load %arg5[%c0_62, %c0_63] : memref<64x256xbf16, #tpu.memory_space<vmem>>, vector<64x256xbf16>
    %cst_64 = arith.constant dense<0.000000e+00> : vector<8x256xf32>
    %171 = tpu.matmul %121, %170, %cst_64 {dimension_numbers = #tpu.dot_dimension_numbers<[1], [0], [0], [1], [0, 0, 1, 1], [], []>} : vector<8x64xbf16>, vector<64x256xbf16>, vector<8x256xf32> -> vector<8x256xf32>
    %172 = arith.addf %171, %17 : vector<8x256xf32>
    %173 = arith.addf %169, %172 : vector<8x256xf32>
    %c0_65 = arith.constant 0 : index
    %c0_66 = arith.constant 0 : index
    %174 = vector.load %arg8[%c0_65, %c0_66] : memref<64x256xbf16, #tpu.memory_space<vmem>>, vector<64x256xbf16>
    %cst_67 = arith.constant dense<0.000000e+00> : vector<8x256xf32>
    %175 = tpu.matmul %141, %174, %cst_67 {dimension_numbers = #tpu.dot_dimension_numbers<[1], [0], [0], [1], [0, 0, 1, 1], [], []>} : vector<8x64xbf16>, vector<64x256xbf16>, vector<8x256xf32> -> vector<8x256xf32>
    %176 = arith.addf %175, %20 : vector<8x256xf32>
    %177 = vector.extract_strided_slice %173 {offsets = [0, 0], sizes = [8, 192], strides = [1, 1]} : vector<8x256xf32> to vector<8x192xf32>
    %178 = arith.negf %177 : vector<8x192xf32>
    %179 = math.exp %178 : vector<8x192xf32>
    %cst_68 = arith.constant 1.000000e+00 : f32
    %180 = vector.broadcast %cst_68 : f32 to vector<8x192xf32>
    %181 = arith.addf %180, %179 : vector<8x192xf32>
    %182 = arith.divf %180, %181 : vector<8x192xf32>
    %183 = vector.extract_strided_slice %173 {offsets = [0, 192], sizes = [8, 64], strides = [1, 1]} : vector<8x256xf32> to vector<8x64xf32>
    %184 = math.tanh %183 : vector<8x64xf32>
    %185 = vector.extract_strided_slice %182 {offsets = [0, 64], sizes = [8, 64], strides = [1, 1]} : vector<8x192xf32> to vector<8x64xf32>
    %186 = arith.mulf %185, %117 : vector<8x64xf32>
    %187 = vector.extract_strided_slice %182 {offsets = [0, 0], sizes = [8, 64], strides = [1, 1]} : vector<8x192xf32> to vector<8x64xf32>
    %188 = arith.mulf %187, %184 : vector<8x64xf32>
    %189 = arith.addf %186, %188 : vector<8x64xf32>
    %190 = vector.extract_strided_slice %182 {offsets = [0, 128], sizes = [8, 64], strides = [1, 1]} : vector<8x192xf32> to vector<8x64xf32>
    %191 = math.tanh %189 : vector<8x64xf32>
    %192 = arith.mulf %190, %191 : vector<8x64xf32>
    %193 = arith.truncf %192 : vector<8x64xf32> to vector<8x64xbf16>
    %c0_69 = arith.constant 0 : index
    %c0_70 = arith.constant 0 : index
    %194 = vector.load %arg7[%c0_69, %c0_70] : memref<64x256xbf16, #tpu.memory_space<vmem>>, vector<64x256xbf16>
    %cst_71 = arith.constant dense<0.000000e+00> : vector<8x256xf32>
    %195 = tpu.matmul %193, %194, %cst_71 {dimension_numbers = #tpu.dot_dimension_numbers<[1], [0], [0], [1], [0, 0, 1, 1], [], []>} : vector<8x64xbf16>, vector<64x256xbf16>, vector<8x256xf32> -> vector<8x256xf32>
    %196 = arith.addf %195, %176 : vector<8x256xf32>
    %197 = vector.extract_strided_slice %196 {offsets = [0, 0], sizes = [8, 192], strides = [1, 1]} : vector<8x256xf32> to vector<8x192xf32>
    %198 = arith.negf %197 : vector<8x192xf32>
    %199 = math.exp %198 : vector<8x192xf32>
    %cst_72 = arith.constant 1.000000e+00 : f32
    %200 = vector.broadcast %cst_72 : f32 to vector<8x192xf32>
    %201 = arith.addf %200, %199 : vector<8x192xf32>
    %202 = arith.divf %200, %201 : vector<8x192xf32>
    %203 = vector.extract_strided_slice %196 {offsets = [0, 192], sizes = [8, 64], strides = [1, 1]} : vector<8x256xf32> to vector<8x64xf32>
    %204 = math.tanh %203 : vector<8x64xf32>
    %205 = vector.extract_strided_slice %202 {offsets = [0, 64], sizes = [8, 64], strides = [1, 1]} : vector<8x192xf32> to vector<8x64xf32>
    %206 = arith.mulf %205, %137 : vector<8x64xf32>
    %207 = vector.extract_strided_slice %202 {offsets = [0, 0], sizes = [8, 64], strides = [1, 1]} : vector<8x192xf32> to vector<8x64xf32>
    %208 = arith.mulf %207, %204 : vector<8x64xf32>
    %209 = arith.addf %206, %208 : vector<8x64xf32>
    %210 = vector.extract_strided_slice %202 {offsets = [0, 128], sizes = [8, 64], strides = [1, 1]} : vector<8x192xf32> to vector<8x64xf32>
    %211 = math.tanh %209 : vector<8x64xf32>
    %212 = arith.mulf %210, %211 : vector<8x64xf32>
    %213 = arith.truncf %212 : vector<8x64xf32> to vector<8x64xbf16>
    %c0_73 = arith.constant 0 : index
    %c0_74 = arith.constant 0 : index
    %214 = vector.load %arg10[%c0_73, %c0_74] : memref<64x32xbf16, #tpu.memory_space<vmem>>, vector<64x32xbf16>
    %cst_75 = arith.constant dense<0.000000e+00> : vector<8x32xf32>
    %215 = tpu.matmul %213, %214, %cst_75 {dimension_numbers = #tpu.dot_dimension_numbers<[1], [0], [0], [1], [0, 0, 1, 1], [], []>} : vector<8x64xbf16>, vector<64x32xbf16>, vector<8x32xf32> -> vector<8x32xf32>
    %216 = arith.addf %215, %23 : vector<8x32xf32>
    %c0_76 = arith.constant 0 : index
    %c64 = arith.constant 64 : index
    %217 = vector.load %arg12[%c0_76, %c64] : memref<8x544xf32, #tpu.memory_space<vmem>>, vector<8x32xf32>
    tpu.vector_store %arg12[%c0_76, %c64], %216 {strides = array<i32>} : memref<8x544xf32, #tpu.memory_space<vmem>>, vector<8x32xf32>,
    %218 = tpu.bitcast %216 : vector<8x32xf32> -> vector<8x32xi32>
    %c31_i32_77 = arith.constant 31 : i32
    %219 = vector.broadcast %c31_i32_77 : i32 to vector<8x32xi32>
    %220 = arith.shrsi %218, %219 : vector<8x32xi32>
    %c2147483647_i32_78 = arith.constant 2147483647 : i32
    %221 = vector.broadcast %c2147483647_i32_78 : i32 to vector<8x32xi32>
    %222 = arith.andi %220, %221 : vector<8x32xi32>
    %223 = arith.xori %218, %222 : vector<8x32xi32>
    %c-32_i32_79 = arith.constant -32 : i32
    %224 = vector.broadcast %c-32_i32_79 : i32 to vector<8x32xi32>
    %225 = arith.andi %223, %224 : vector<8x32xi32>
    %c31_i32_80 = arith.constant 31 : i32
    %226 = vector.broadcast %c31_i32_80 : i32 to vector<8x32xi32>
    %227 = arith.subi %226, %9 : vector<8x32xi32>
    %228 = arith.ori %225, %227 : vector<8x32xi32>
    %cst_81 = arith.constant dense<-2147483648> : vector<8xi32>
    %229 = vector.multi_reduction <maxsi>, %228, %cst_81 [1] : vector<8x32xi32> to vector<8xi32>
    %230 = vector.shape_cast %229 : vector<8xi32> to vector<8x1xi32>
    %c31_i32_82 = arith.constant 31 : i32
    %231 = vector.broadcast %c31_i32_82 : i32 to vector<8x1xi32>
    %232 = arith.andi %230, %231 : vector<8x1xi32>
    %c31_i32_83 = arith.constant 31 : i32
    %233 = vector.broadcast %c31_i32_83 : i32 to vector<8x1xi32>
    %234 = arith.subi %233, %232 : vector<8x1xi32>
    %235 = vector.broadcast %234 : vector<8x1xi32> to vector<8x32xi32>
    %236 = arith.cmpi eq, %9, %235 : vector<8x32xi32>
    %237 = arith.extui %236 : vector<8x32xi1> to vector<8x32xi32>
    %238 = arith.sitofp %237 : vector<8x32xi32> to vector<8x32xf32>
    %239 = arith.truncf %238 : vector<8x32xf32> to vector<8x32xbf16>
    %c0_84 = arith.constant 0 : index
    %c0_85 = arith.constant 0 : index
    %240 = vector.load %arg4[%c0_84, %c0_85] : memref<32x256xbf16, #tpu.memory_space<vmem>>, vector<32x256xbf16>
    %cst_86 = arith.constant dense<0.000000e+00> : vector<8x256xf32>
    %241 = tpu.matmul %239, %240, %cst_86 {dimension_numbers = #tpu.dot_dimension_numbers<[1], [0], [0], [1], [0, 0, 1, 1], [], []>} : vector<8x32xbf16>, vector<32x256xbf16>, vector<8x256xf32> -> vector<8x256xf32>
    %c0_87 = arith.constant 0 : index
    %c0_88 = arith.constant 0 : index
    %242 = vector.load %arg5[%c0_87, %c0_88] : memref<64x256xbf16, #tpu.memory_space<vmem>>, vector<64x256xbf16>
    %cst_89 = arith.constant dense<0.000000e+00> : vector<8x256xf32>
    %243 = tpu.matmul %193, %242, %cst_89 {dimension_numbers = #tpu.dot_dimension_numbers<[1], [0], [0], [1], [0, 0, 1, 1], [], []>} : vector<8x64xbf16>, vector<64x256xbf16>, vector<8x256xf32> -> vector<8x256xf32>
    %244 = arith.addf %243, %17 : vector<8x256xf32>
    %245 = arith.addf %241, %244 : vector<8x256xf32>
    %c0_90 = arith.constant 0 : index
    %c0_91 = arith.constant 0 : index
    %246 = vector.load %arg8[%c0_90, %c0_91] : memref<64x256xbf16, #tpu.memory_space<vmem>>, vector<64x256xbf16>
    %cst_92 = arith.constant dense<0.000000e+00> : vector<8x256xf32>
    %247 = tpu.matmul %213, %246, %cst_92 {dimension_numbers = #tpu.dot_dimension_numbers<[1], [0], [0], [1], [0, 0, 1, 1], [], []>} : vector<8x64xbf16>, vector<64x256xbf16>, vector<8x256xf32> -> vector<8x256xf32>
    %248 = arith.addf %247, %20 : vector<8x256xf32>
    %249 = vector.extract_strided_slice %245 {offsets = [0, 0], sizes = [8, 192], strides = [1, 1]} : vector<8x256xf32> to vector<8x192xf32>
    %250 = arith.negf %249 : vector<8x192xf32>
    %251 = math.exp %250 : vector<8x192xf32>
    %cst_93 = arith.constant 1.000000e+00 : f32
    %252 = vector.broadcast %cst_93 : f32 to vector<8x192xf32>
    %253 = arith.addf %252, %251 : vector<8x192xf32>
    %254 = arith.divf %252, %253 : vector<8x192xf32>
    %255 = vector.extract_strided_slice %245 {offsets = [0, 192], sizes = [8, 64], strides = [1, 1]} : vector<8x256xf32> to vector<8x64xf32>
    %256 = math.tanh %255 : vector<8x64xf32>
    %257 = vector.extract_strided_slice %254 {offsets = [0, 64], sizes = [8, 64], strides = [1, 1]} : vector<8x192xf32> to vector<8x64xf32>
    %258 = arith.mulf %257, %189 : vector<8x64xf32>
    %259 = vector.extract_strided_slice %254 {offsets = [0, 0], sizes = [8, 64], strides = [1, 1]} : vector<8x192xf32> to vector<8x64xf32>
    %260 = arith.mulf %259, %256 : vector<8x64xf32>
    %261 = arith.addf %258, %260 : vector<8x64xf32>
    %262 = vector.extract_strided_slice %254 {offsets = [0, 128], sizes = [8, 64], strides = [1, 1]} : vector<8x192xf32> to vector<8x64xf32>
    %263 = math.tanh %261 : vector<8x64xf32>
    %264 = arith.mulf %262, %263 : vector<8x64xf32>
    %265 = arith.truncf %264 : vector<8x64xf32> to vector<8x64xbf16>
    %c0_94 = arith.constant 0 : index
    %c0_95 = arith.constant 0 : index
    %266 = vector.load %arg7[%c0_94, %c0_95] : memref<64x256xbf16, #tpu.memory_space<vmem>>, vector<64x256xbf16>
    %cst_96 = arith.constant dense<0.000000e+00> : vector<8x256xf32>
    %267 = tpu.matmul %265, %266, %cst_96 {dimension_numbers = #tpu.dot_dimension_numbers<[1], [0], [0], [1], [0, 0, 1, 1], [], []>} : vector<8x64xbf16>, vector<64x256xbf16>, vector<8x256xf32> -> vector<8x256xf32>
    %268 = arith.addf %267, %248 : vector<8x256xf32>
    %269 = vector.extract_strided_slice %268 {offsets = [0, 0], sizes = [8, 192], strides = [1, 1]} : vector<8x256xf32> to vector<8x192xf32>
    %270 = arith.negf %269 : vector<8x192xf32>
    %271 = math.exp %270 : vector<8x192xf32>
    %cst_97 = arith.constant 1.000000e+00 : f32
    %272 = vector.broadcast %cst_97 : f32 to vector<8x192xf32>
    %273 = arith.addf %272, %271 : vector<8x192xf32>
    %274 = arith.divf %272, %273 : vector<8x192xf32>
    %275 = vector.extract_strided_slice %268 {offsets = [0, 192], sizes = [8, 64], strides = [1, 1]} : vector<8x256xf32> to vector<8x64xf32>
    %276 = math.tanh %275 : vector<8x64xf32>
    %277 = vector.extract_strided_slice %274 {offsets = [0, 64], sizes = [8, 64], strides = [1, 1]} : vector<8x192xf32> to vector<8x64xf32>
    %278 = arith.mulf %277, %209 : vector<8x64xf32>
    %279 = vector.extract_strided_slice %274 {offsets = [0, 0], sizes = [8, 64], strides = [1, 1]} : vector<8x192xf32> to vector<8x64xf32>
    %280 = arith.mulf %279, %276 : vector<8x64xf32>
    %281 = arith.addf %278, %280 : vector<8x64xf32>
    %282 = vector.extract_strided_slice %274 {offsets = [0, 128], sizes = [8, 64], strides = [1, 1]} : vector<8x192xf32> to vector<8x64xf32>
    %283 = math.tanh %281 : vector<8x64xf32>
    %284 = arith.mulf %282, %283 : vector<8x64xf32>
    %285 = arith.truncf %284 : vector<8x64xf32> to vector<8x64xbf16>
    %c0_98 = arith.constant 0 : index
    %c0_99 = arith.constant 0 : index
    %286 = vector.load %arg10[%c0_98, %c0_99] : memref<64x32xbf16, #tpu.memory_space<vmem>>, vector<64x32xbf16>
    %cst_100 = arith.constant dense<0.000000e+00> : vector<8x32xf32>
    %287 = tpu.matmul %285, %286, %cst_100 {dimension_numbers = #tpu.dot_dimension_numbers<[1], [0], [0], [1], [0, 0, 1, 1], [], []>} : vector<8x64xbf16>, vector<64x32xbf16>, vector<8x32xf32> -> vector<8x32xf32>
    %288 = arith.addf %287, %23 : vector<8x32xf32>
    %c0_101 = arith.constant 0 : index
    %c96 = arith.constant 96 : index
    %289 = vector.load %arg12[%c0_101, %c96] : memref<8x544xf32, #tpu.memory_space<vmem>>, vector<8x32xf32>
    tpu.vector_store %arg12[%c0_101, %c96], %288 {strides = array<i32>} : memref<8x544xf32, #tpu.memory_space<vmem>>, vector<8x32xf32>,
    %290 = tpu.bitcast %288 : vector<8x32xf32> -> vector<8x32xi32>
    %c31_i32_102 = arith.constant 31 : i32
    %291 = vector.broadcast %c31_i32_102 : i32 to vector<8x32xi32>
    %292 = arith.shrsi %290, %291 : vector<8x32xi32>
    %c2147483647_i32_103 = arith.constant 2147483647 : i32
    %293 = vector.broadcast %c2147483647_i32_103 : i32 to vector<8x32xi32>
    %294 = arith.andi %292, %293 : vector<8x32xi32>
    %295 = arith.xori %290, %294 : vector<8x32xi32>
    %c-32_i32_104 = arith.constant -32 : i32
    %296 = vector.broadcast %c-32_i32_104 : i32 to vector<8x32xi32>
    %297 = arith.andi %295, %296 : vector<8x32xi32>
    %c31_i32_105 = arith.constant 31 : i32
    %298 = vector.broadcast %c31_i32_105 : i32 to vector<8x32xi32>
    %299 = arith.subi %298, %9 : vector<8x32xi32>
    %300 = arith.ori %297, %299 : vector<8x32xi32>
    %cst_106 = arith.constant dense<-2147483648> : vector<8xi32>
    %301 = vector.multi_reduction <maxsi>, %300, %cst_106 [1] : vector<8x32xi32> to vector<8xi32>
    %302 = vector.shape_cast %301 : vector<8xi32> to vector<8x1xi32>
    %c31_i32_107 = arith.constant 31 : i32
    %303 = vector.broadcast %c31_i32_107 : i32 to vector<8x1xi32>
    %304 = arith.andi %302, %303 : vector<8x1xi32>
    %c31_i32_108 = arith.constant 31 : i32
    %305 = vector.broadcast %c31_i32_108 : i32 to vector<8x1xi32>
    %306 = arith.subi %305, %304 : vector<8x1xi32>
    %307 = vector.broadcast %306 : vector<8x1xi32> to vector<8x32xi32>
    %308 = arith.cmpi eq, %9, %307 : vector<8x32xi32>
    %309 = arith.extui %308 : vector<8x32xi1> to vector<8x32xi32>
    %310 = arith.sitofp %309 : vector<8x32xi32> to vector<8x32xf32>
    %311 = arith.truncf %310 : vector<8x32xf32> to vector<8x32xbf16>
    %c0_109 = arith.constant 0 : index
    %c0_110 = arith.constant 0 : index
    %312 = vector.load %arg4[%c0_109, %c0_110] : memref<32x256xbf16, #tpu.memory_space<vmem>>, vector<32x256xbf16>
    %cst_111 = arith.constant dense<0.000000e+00> : vector<8x256xf32>
    %313 = tpu.matmul %311, %312, %cst_111 {dimension_numbers = #tpu.dot_dimension_numbers<[1], [0], [0], [1], [0, 0, 1, 1], [], []>} : vector<8x32xbf16>, vector<32x256xbf16>, vector<8x256xf32> -> vector<8x256xf32>
    %c0_112 = arith.constant 0 : index
    %c0_113 = arith.constant 0 : index
    %314 = vector.load %arg5[%c0_112, %c0_113] : memref<64x256xbf16, #tpu.memory_space<vmem>>, vector<64x256xbf16>
    %cst_114 = arith.constant dense<0.000000e+00> : vector<8x256xf32>
    %315 = tpu.matmul %265, %314, %cst_114 {dimension_numbers = #tpu.dot_dimension_numbers<[1], [0], [0], [1], [0, 0, 1, 1], [], []>} : vector<8x64xbf16>, vector<64x256xbf16>, vector<8x256xf32> -> vector<8x256xf32>
    %316 = arith.addf %315, %17 : vector<8x256xf32>
    %317 = arith.addf %313, %316 : vector<8x256xf32>
    %c0_115 = arith.constant 0 : index
    %c0_116 = arith.constant 0 : index
    %318 = vector.load %arg8[%c0_115, %c0_116] : memref<64x256xbf16, #tpu.memory_space<vmem>>, vector<64x256xbf16>
    %cst_117 = arith.constant dense<0.000000e+00> : vector<8x256xf32>
    %319 = tpu.matmul %285, %318, %cst_117 {dimension_numbers = #tpu.dot_dimension_numbers<[1], [0], [0], [1], [0, 0, 1, 1], [], []>} : vector<8x64xbf16>, vector<64x256xbf16>, vector<8x256xf32> -> vector<8x256xf32>
    %320 = arith.addf %319, %20 : vector<8x256xf32>
    %321 = vector.extract_strided_slice %317 {offsets = [0, 0], sizes = [8, 192], strides = [1, 1]} : vector<8x256xf32> to vector<8x192xf32>
    %322 = arith.negf %321 : vector<8x192xf32>
    %323 = math.exp %322 : vector<8x192xf32>
    %cst_118 = arith.constant 1.000000e+00 : f32
    %324 = vector.broadcast %cst_118 : f32 to vector<8x192xf32>
    %325 = arith.addf %324, %323 : vector<8x192xf32>
    %326 = arith.divf %324, %325 : vector<8x192xf32>
    %327 = vector.extract_strided_slice %317 {offsets = [0, 192], sizes = [8, 64], strides = [1, 1]} : vector<8x256xf32> to vector<8x64xf32>
    %328 = math.tanh %327 : vector<8x64xf32>
    %329 = vector.extract_strided_slice %326 {offsets = [0, 64], sizes = [8, 64], strides = [1, 1]} : vector<8x192xf32> to vector<8x64xf32>
    %330 = arith.mulf %329, %261 : vector<8x64xf32>
    %331 = vector.extract_strided_slice %326 {offsets = [0, 0], sizes = [8, 64], strides = [1, 1]} : vector<8x192xf32> to vector<8x64xf32>
    %332 = arith.mulf %331, %328 : vector<8x64xf32>
    %333 = arith.addf %330, %332 : vector<8x64xf32>
    %334 = vector.extract_strided_slice %326 {offsets = [0, 128], sizes = [8, 64], strides = [1, 1]} : vector<8x192xf32> to vector<8x64xf32>
    %335 = math.tanh %333 : vector<8x64xf32>
    %336 = arith.mulf %334, %335 : vector<8x64xf32>
    %337 = arith.truncf %336 : vector<8x64xf32> to vector<8x64xbf16>
    %c0_119 = arith.constant 0 : index
    %c0_120 = arith.constant 0 : index
    %338 = vector.load %arg7[%c0_119, %c0_120] : memref<64x256xbf16, #tpu.memory_space<vmem>>, vector<64x256xbf16>
    %cst_121 = arith.constant dense<0.000000e+00> : vector<8x256xf32>
    %339 = tpu.matmul %337, %338, %cst_121 {dimension_numbers = #tpu.dot_dimension_numbers<[1], [0], [0], [1], [0, 0, 1, 1], [], []>} : vector<8x64xbf16>, vector<64x256xbf16>, vector<8x256xf32> -> vector<8x256xf32>
    %340 = arith.addf %339, %320 : vector<8x256xf32>
    %341 = vector.extract_strided_slice %340 {offsets = [0, 0], sizes = [8, 192], strides = [1, 1]} : vector<8x256xf32> to vector<8x192xf32>
    %342 = arith.negf %341 : vector<8x192xf32>
    %343 = math.exp %342 : vector<8x192xf32>
    %cst_122 = arith.constant 1.000000e+00 : f32
    %344 = vector.broadcast %cst_122 : f32 to vector<8x192xf32>
    %345 = arith.addf %344, %343 : vector<8x192xf32>
    %346 = arith.divf %344, %345 : vector<8x192xf32>
    %347 = vector.extract_strided_slice %340 {offsets = [0, 192], sizes = [8, 64], strides = [1, 1]} : vector<8x256xf32> to vector<8x64xf32>
    %348 = math.tanh %347 : vector<8x64xf32>
    %349 = vector.extract_strided_slice %346 {offsets = [0, 64], sizes = [8, 64], strides = [1, 1]} : vector<8x192xf32> to vector<8x64xf32>
    %350 = arith.mulf %349, %281 : vector<8x64xf32>
    %351 = vector.extract_strided_slice %346 {offsets = [0, 0], sizes = [8, 64], strides = [1, 1]} : vector<8x192xf32> to vector<8x64xf32>
    %352 = arith.mulf %351, %348 : vector<8x64xf32>
    %353 = arith.addf %350, %352 : vector<8x64xf32>
    %354 = vector.extract_strided_slice %346 {offsets = [0, 128], sizes = [8, 64], strides = [1, 1]} : vector<8x192xf32> to vector<8x64xf32>
    %355 = math.tanh %353 : vector<8x64xf32>
    %356 = arith.mulf %354, %355 : vector<8x64xf32>
    %357 = arith.truncf %356 : vector<8x64xf32> to vector<8x64xbf16>
    %c0_123 = arith.constant 0 : index
    %c0_124 = arith.constant 0 : index
    %358 = vector.load %arg10[%c0_123, %c0_124] : memref<64x32xbf16, #tpu.memory_space<vmem>>, vector<64x32xbf16>
    %cst_125 = arith.constant dense<0.000000e+00> : vector<8x32xf32>
    %359 = tpu.matmul %357, %358, %cst_125 {dimension_numbers = #tpu.dot_dimension_numbers<[1], [0], [0], [1], [0, 0, 1, 1], [], []>} : vector<8x64xbf16>, vector<64x32xbf16>, vector<8x32xf32> -> vector<8x32xf32>
    %360 = arith.addf %359, %23 : vector<8x32xf32>
    %c0_126 = arith.constant 0 : index
    %c128 = arith.constant 128 : index
    %361 = vector.load %arg12[%c0_126, %c128] : memref<8x544xf32, #tpu.memory_space<vmem>>, vector<8x32xf32>
    tpu.vector_store %arg12[%c0_126, %c128], %360 {strides = array<i32>} : memref<8x544xf32, #tpu.memory_space<vmem>>, vector<8x32xf32>,
    %362 = tpu.bitcast %360 : vector<8x32xf32> -> vector<8x32xi32>
    %c31_i32_127 = arith.constant 31 : i32
    %363 = vector.broadcast %c31_i32_127 : i32 to vector<8x32xi32>
    %364 = arith.shrsi %362, %363 : vector<8x32xi32>
    %c2147483647_i32_128 = arith.constant 2147483647 : i32
    %365 = vector.broadcast %c2147483647_i32_128 : i32 to vector<8x32xi32>
    %366 = arith.andi %364, %365 : vector<8x32xi32>
    %367 = arith.xori %362, %366 : vector<8x32xi32>
    %c-32_i32_129 = arith.constant -32 : i32
    %368 = vector.broadcast %c-32_i32_129 : i32 to vector<8x32xi32>
    %369 = arith.andi %367, %368 : vector<8x32xi32>
    %c31_i32_130 = arith.constant 31 : i32
    %370 = vector.broadcast %c31_i32_130 : i32 to vector<8x32xi32>
    %371 = arith.subi %370, %9 : vector<8x32xi32>
    %372 = arith.ori %369, %371 : vector<8x32xi32>
    %cst_131 = arith.constant dense<-2147483648> : vector<8xi32>
    %373 = vector.multi_reduction <maxsi>, %372, %cst_131 [1] : vector<8x32xi32> to vector<8xi32>
    %374 = vector.shape_cast %373 : vector<8xi32> to vector<8x1xi32>
    %c31_i32_132 = arith.constant 31 : i32
    %375 = vector.broadcast %c31_i32_132 : i32 to vector<8x1xi32>
    %376 = arith.andi %374, %375 : vector<8x1xi32>
    %c31_i32_133 = arith.constant 31 : i32
    %377 = vector.broadcast %c31_i32_133 : i32 to vector<8x1xi32>
    %378 = arith.subi %377, %376 : vector<8x1xi32>
    %379 = vector.broadcast %378 : vector<8x1xi32> to vector<8x32xi32>
    %380 = arith.cmpi eq, %9, %379 : vector<8x32xi32>
    %381 = arith.extui %380 : vector<8x32xi1> to vector<8x32xi32>
    %382 = arith.sitofp %381 : vector<8x32xi32> to vector<8x32xf32>
    %383 = arith.truncf %382 : vector<8x32xf32> to vector<8x32xbf16>
    %c0_134 = arith.constant 0 : index
    %c0_135 = arith.constant 0 : index
    %384 = vector.load %arg4[%c0_134, %c0_135] : memref<32x256xbf16, #tpu.memory_space<vmem>>, vector<32x256xbf16>
    %cst_136 = arith.constant dense<0.000000e+00> : vector<8x256xf32>
    %385 = tpu.matmul %383, %384, %cst_136 {dimension_numbers = #tpu.dot_dimension_numbers<[1], [0], [0], [1], [0, 0, 1, 1], [], []>} : vector<8x32xbf16>, vector<32x256xbf16>, vector<8x256xf32> -> vector<8x256xf32>
    %c0_137 = arith.constant 0 : index
    %c0_138 = arith.constant 0 : index
    %386 = vector.load %arg5[%c0_137, %c0_138] : memref<64x256xbf16, #tpu.memory_space<vmem>>, vector<64x256xbf16>
    %cst_139 = arith.constant dense<0.000000e+00> : vector<8x256xf32>
    %387 = tpu.matmul %337, %386, %cst_139 {dimension_numbers = #tpu.dot_dimension_numbers<[1], [0], [0], [1], [0, 0, 1, 1], [], []>} : vector<8x64xbf16>, vector<64x256xbf16>, vector<8x256xf32> -> vector<8x256xf32>
    %388 = arith.addf %387, %17 : vector<8x256xf32>
    %389 = arith.addf %385, %388 : vector<8x256xf32>
    %c0_140 = arith.constant 0 : index
    %c0_141 = arith.constant 0 : index
    %390 = vector.load %arg8[%c0_140, %c0_141] : memref<64x256xbf16, #tpu.memory_space<vmem>>, vector<64x256xbf16>
    %cst_142 = arith.constant dense<0.000000e+00> : vector<8x256xf32>
    %391 = tpu.matmul %357, %390, %cst_142 {dimension_numbers = #tpu.dot_dimension_numbers<[1], [0], [0], [1], [0, 0, 1, 1], [], []>} : vector<8x64xbf16>, vector<64x256xbf16>, vector<8x256xf32> -> vector<8x256xf32>
    %392 = arith.addf %391, %20 : vector<8x256xf32>
    %393 = vector.extract_strided_slice %389 {offsets = [0, 0], sizes = [8, 192], strides = [1, 1]} : vector<8x256xf32> to vector<8x192xf32>
    %394 = arith.negf %393 : vector<8x192xf32>
    %395 = math.exp %394 : vector<8x192xf32>
    %cst_143 = arith.constant 1.000000e+00 : f32
    %396 = vector.broadcast %cst_143 : f32 to vector<8x192xf32>
    %397 = arith.addf %396, %395 : vector<8x192xf32>
    %398 = arith.divf %396, %397 : vector<8x192xf32>
    %399 = vector.extract_strided_slice %389 {offsets = [0, 192], sizes = [8, 64], strides = [1, 1]} : vector<8x256xf32> to vector<8x64xf32>
    %400 = math.tanh %399 : vector<8x64xf32>
    %401 = vector.extract_strided_slice %398 {offsets = [0, 64], sizes = [8, 64], strides = [1, 1]} : vector<8x192xf32> to vector<8x64xf32>
    %402 = arith.mulf %401, %333 : vector<8x64xf32>
    %403 = vector.extract_strided_slice %398 {offsets = [0, 0], sizes = [8, 64], strides = [1, 1]} : vector<8x192xf32> to vector<8x64xf32>
    %404 = arith.mulf %403, %400 : vector<8x64xf32>
    %405 = arith.addf %402, %404 : vector<8x64xf32>
    %406 = vector.extract_strided_slice %398 {offsets = [0, 128], sizes = [8, 64], strides = [1, 1]} : vector<8x192xf32> to vector<8x64xf32>
    %407 = math.tanh %405 : vector<8x64xf32>
    %408 = arith.mulf %406, %407 : vector<8x64xf32>
    %409 = arith.truncf %408 : vector<8x64xf32> to vector<8x64xbf16>
    %c0_144 = arith.constant 0 : index
    %c0_145 = arith.constant 0 : index
    %410 = vector.load %arg7[%c0_144, %c0_145] : memref<64x256xbf16, #tpu.memory_space<vmem>>, vector<64x256xbf16>
    %cst_146 = arith.constant dense<0.000000e+00> : vector<8x256xf32>
    %411 = tpu.matmul %409, %410, %cst_146 {dimension_numbers = #tpu.dot_dimension_numbers<[1], [0], [0], [1], [0, 0, 1, 1], [], []>} : vector<8x64xbf16>, vector<64x256xbf16>, vector<8x256xf32> -> vector<8x256xf32>
    %412 = arith.addf %411, %392 : vector<8x256xf32>
    %413 = vector.extract_strided_slice %412 {offsets = [0, 0], sizes = [8, 192], strides = [1, 1]} : vector<8x256xf32> to vector<8x192xf32>
    %414 = arith.negf %413 : vector<8x192xf32>
    %415 = math.exp %414 : vector<8x192xf32>
    %cst_147 = arith.constant 1.000000e+00 : f32
    %416 = vector.broadcast %cst_147 : f32 to vector<8x192xf32>
    %417 = arith.addf %416, %415 : vector<8x192xf32>
    %418 = arith.divf %416, %417 : vector<8x192xf32>
    %419 = vector.extract_strided_slice %412 {offsets = [0, 192], sizes = [8, 64], strides = [1, 1]} : vector<8x256xf32> to vector<8x64xf32>
    %420 = math.tanh %419 : vector<8x64xf32>
    %421 = vector.extract_strided_slice %418 {offsets = [0, 64], sizes = [8, 64], strides = [1, 1]} : vector<8x192xf32> to vector<8x64xf32>
    %422 = arith.mulf %421, %353 : vector<8x64xf32>
    %423 = vector.extract_strided_slice %418 {offsets = [0, 0], sizes = [8, 64], strides = [1, 1]} : vector<8x192xf32> to vector<8x64xf32>
    %424 = arith.mulf %423, %420 : vector<8x64xf32>
    %425 = arith.addf %422, %424 : vector<8x64xf32>
    %426 = vector.extract_strided_slice %418 {offsets = [0, 128], sizes = [8, 64], strides = [1, 1]} : vector<8x192xf32> to vector<8x64xf32>
    %427 = math.tanh %425 : vector<8x64xf32>
    %428 = arith.mulf %426, %427 : vector<8x64xf32>
    %429 = arith.truncf %428 : vector<8x64xf32> to vector<8x64xbf16>
    %c0_148 = arith.constant 0 : index
    %c0_149 = arith.constant 0 : index
    %430 = vector.load %arg10[%c0_148, %c0_149] : memref<64x32xbf16, #tpu.memory_space<vmem>>, vector<64x32xbf16>
    %cst_150 = arith.constant dense<0.000000e+00> : vector<8x32xf32>
    %431 = tpu.matmul %429, %430, %cst_150 {dimension_numbers = #tpu.dot_dimension_numbers<[1], [0], [0], [1], [0, 0, 1, 1], [], []>} : vector<8x64xbf16>, vector<64x32xbf16>, vector<8x32xf32> -> vector<8x32xf32>
    %432 = arith.addf %431, %23 : vector<8x32xf32>
    %c0_151 = arith.constant 0 : index
    %c160 = arith.constant 160 : index
    %433 = vector.load %arg12[%c0_151, %c160] : memref<8x544xf32, #tpu.memory_space<vmem>>, vector<8x32xf32>
    tpu.vector_store %arg12[%c0_151, %c160], %432 {strides = array<i32>} : memref<8x544xf32, #tpu.memory_space<vmem>>, vector<8x32xf32>,
    %434 = tpu.bitcast %432 : vector<8x32xf32> -> vector<8x32xi32>
    %c31_i32_152 = arith.constant 31 : i32
    %435 = vector.broadcast %c31_i32_152 : i32 to vector<8x32xi32>
    %436 = arith.shrsi %434, %435 : vector<8x32xi32>
    %c2147483647_i32_153 = arith.constant 2147483647 : i32
    %437 = vector.broadcast %c2147483647_i32_153 : i32 to vector<8x32xi32>
    %438 = arith.andi %436, %437 : vector<8x32xi32>
    %439 = arith.xori %434, %438 : vector<8x32xi32>
    %c-32_i32_154 = arith.constant -32 : i32
    %440 = vector.broadcast %c-32_i32_154 : i32 to vector<8x32xi32>
    %441 = arith.andi %439, %440 : vector<8x32xi32>
    %c31_i32_155 = arith.constant 31 : i32
    %442 = vector.broadcast %c31_i32_155 : i32 to vector<8x32xi32>
    %443 = arith.subi %442, %9 : vector<8x32xi32>
    %444 = arith.ori %441, %443 : vector<8x32xi32>
    %cst_156 = arith.constant dense<-2147483648> : vector<8xi32>
    %445 = vector.multi_reduction <maxsi>, %444, %cst_156 [1] : vector<8x32xi32> to vector<8xi32>
    %446 = vector.shape_cast %445 : vector<8xi32> to vector<8x1xi32>
    %c31_i32_157 = arith.constant 31 : i32
    %447 = vector.broadcast %c31_i32_157 : i32 to vector<8x1xi32>
    %448 = arith.andi %446, %447 : vector<8x1xi32>
    %c31_i32_158 = arith.constant 31 : i32
    %449 = vector.broadcast %c31_i32_158 : i32 to vector<8x1xi32>
    %450 = arith.subi %449, %448 : vector<8x1xi32>
    %451 = vector.broadcast %450 : vector<8x1xi32> to vector<8x32xi32>
    %452 = arith.cmpi eq, %9, %451 : vector<8x32xi32>
    %453 = arith.extui %452 : vector<8x32xi1> to vector<8x32xi32>
    %454 = arith.sitofp %453 : vector<8x32xi32> to vector<8x32xf32>
    %455 = arith.truncf %454 : vector<8x32xf32> to vector<8x32xbf16>
    %c0_159 = arith.constant 0 : index
    %c0_160 = arith.constant 0 : index
    %456 = vector.load %arg4[%c0_159, %c0_160] : memref<32x256xbf16, #tpu.memory_space<vmem>>, vector<32x256xbf16>
    %cst_161 = arith.constant dense<0.000000e+00> : vector<8x256xf32>
    %457 = tpu.matmul %455, %456, %cst_161 {dimension_numbers = #tpu.dot_dimension_numbers<[1], [0], [0], [1], [0, 0, 1, 1], [], []>} : vector<8x32xbf16>, vector<32x256xbf16>, vector<8x256xf32> -> vector<8x256xf32>
    %c0_162 = arith.constant 0 : index
    %c0_163 = arith.constant 0 : index
    %458 = vector.load %arg5[%c0_162, %c0_163] : memref<64x256xbf16, #tpu.memory_space<vmem>>, vector<64x256xbf16>
    %cst_164 = arith.constant dense<0.000000e+00> : vector<8x256xf32>
    %459 = tpu.matmul %409, %458, %cst_164 {dimension_numbers = #tpu.dot_dimension_numbers<[1], [0], [0], [1], [0, 0, 1, 1], [], []>} : vector<8x64xbf16>, vector<64x256xbf16>, vector<8x256xf32> -> vector<8x256xf32>
    %460 = arith.addf %459, %17 : vector<8x256xf32>
    %461 = arith.addf %457, %460 : vector<8x256xf32>
    %c0_165 = arith.constant 0 : index
    %c0_166 = arith.constant 0 : index
    %462 = vector.load %arg8[%c0_165, %c0_166] : memref<64x256xbf16, #tpu.memory_space<vmem>>, vector<64x256xbf16>
    %cst_167 = arith.constant dense<0.000000e+00> : vector<8x256xf32>
    %463 = tpu.matmul %429, %462, %cst_167 {dimension_numbers = #tpu.dot_dimension_numbers<[1], [0], [0], [1], [0, 0, 1, 1], [], []>} : vector<8x64xbf16>, vector<64x256xbf16>, vector<8x256xf32> -> vector<8x256xf32>
    %464 = arith.addf %463, %20 : vector<8x256xf32>
    %465 = vector.extract_strided_slice %461 {offsets = [0, 0], sizes = [8, 192], strides = [1, 1]} : vector<8x256xf32> to vector<8x192xf32>
    %466 = arith.negf %465 : vector<8x192xf32>
    %467 = math.exp %466 : vector<8x192xf32>
    %cst_168 = arith.constant 1.000000e+00 : f32
    %468 = vector.broadcast %cst_168 : f32 to vector<8x192xf32>
    %469 = arith.addf %468, %467 : vector<8x192xf32>
    %470 = arith.divf %468, %469 : vector<8x192xf32>
    %471 = vector.extract_strided_slice %461 {offsets = [0, 192], sizes = [8, 64], strides = [1, 1]} : vector<8x256xf32> to vector<8x64xf32>
    %472 = math.tanh %471 : vector<8x64xf32>
    %473 = vector.extract_strided_slice %470 {offsets = [0, 64], sizes = [8, 64], strides = [1, 1]} : vector<8x192xf32> to vector<8x64xf32>
    %474 = arith.mulf %473, %405 : vector<8x64xf32>
    %475 = vector.extract_strided_slice %470 {offsets = [0, 0], sizes = [8, 64], strides = [1, 1]} : vector<8x192xf32> to vector<8x64xf32>
    %476 = arith.mulf %475, %472 : vector<8x64xf32>
    %477 = arith.addf %474, %476 : vector<8x64xf32>
    %478 = vector.extract_strided_slice %470 {offsets = [0, 128], sizes = [8, 64], strides = [1, 1]} : vector<8x192xf32> to vector<8x64xf32>
    %479 = math.tanh %477 : vector<8x64xf32>
    %480 = arith.mulf %478, %479 : vector<8x64xf32>
    %481 = arith.truncf %480 : vector<8x64xf32> to vector<8x64xbf16>
    %c0_169 = arith.constant 0 : index
    %c0_170 = arith.constant 0 : index
    %482 = vector.load %arg7[%c0_169, %c0_170] : memref<64x256xbf16, #tpu.memory_space<vmem>>, vector<64x256xbf16>
    %cst_171 = arith.constant dense<0.000000e+00> : vector<8x256xf32>
    %483 = tpu.matmul %481, %482, %cst_171 {dimension_numbers = #tpu.dot_dimension_numbers<[1], [0], [0], [1], [0, 0, 1, 1], [], []>} : vector<8x64xbf16>, vector<64x256xbf16>, vector<8x256xf32> -> vector<8x256xf32>
    %484 = arith.addf %483, %464 : vector<8x256xf32>
    %485 = vector.extract_strided_slice %484 {offsets = [0, 0], sizes = [8, 192], strides = [1, 1]} : vector<8x256xf32> to vector<8x192xf32>
    %486 = arith.negf %485 : vector<8x192xf32>
    %487 = math.exp %486 : vector<8x192xf32>
    %cst_172 = arith.constant 1.000000e+00 : f32
    %488 = vector.broadcast %cst_172 : f32 to vector<8x192xf32>
    %489 = arith.addf %488, %487 : vector<8x192xf32>
    %490 = arith.divf %488, %489 : vector<8x192xf32>
    %491 = vector.extract_strided_slice %484 {offsets = [0, 192], sizes = [8, 64], strides = [1, 1]} : vector<8x256xf32> to vector<8x64xf32>
    %492 = math.tanh %491 : vector<8x64xf32>
    %493 = vector.extract_strided_slice %490 {offsets = [0, 64], sizes = [8, 64], strides = [1, 1]} : vector<8x192xf32> to vector<8x64xf32>
    %494 = arith.mulf %493, %425 : vector<8x64xf32>
    %495 = vector.extract_strided_slice %490 {offsets = [0, 0], sizes = [8, 64], strides = [1, 1]} : vector<8x192xf32> to vector<8x64xf32>
    %496 = arith.mulf %495, %492 : vector<8x64xf32>
    %497 = arith.addf %494, %496 : vector<8x64xf32>
    %498 = vector.extract_strided_slice %490 {offsets = [0, 128], sizes = [8, 64], strides = [1, 1]} : vector<8x192xf32> to vector<8x64xf32>
    %499 = math.tanh %497 : vector<8x64xf32>
    %500 = arith.mulf %498, %499 : vector<8x64xf32>
    %501 = arith.truncf %500 : vector<8x64xf32> to vector<8x64xbf16>
    %c0_173 = arith.constant 0 : index
    %c0_174 = arith.constant 0 : index
    %502 = vector.load %arg10[%c0_173, %c0_174] : memref<64x32xbf16, #tpu.memory_space<vmem>>, vector<64x32xbf16>
    %cst_175 = arith.constant dense<0.000000e+00> : vector<8x32xf32>
    %503 = tpu.matmul %501, %502, %cst_175 {dimension_numbers = #tpu.dot_dimension_numbers<[1], [0], [0], [1], [0, 0, 1, 1], [], []>} : vector<8x64xbf16>, vector<64x32xbf16>, vector<8x32xf32> -> vector<8x32xf32>
    %504 = arith.addf %503, %23 : vector<8x32xf32>
    %c0_176 = arith.constant 0 : index
    %c192 = arith.constant 192 : index
    %505 = vector.load %arg12[%c0_176, %c192] : memref<8x544xf32, #tpu.memory_space<vmem>>, vector<8x32xf32>
    tpu.vector_store %arg12[%c0_176, %c192], %504 {strides = array<i32>} : memref<8x544xf32, #tpu.memory_space<vmem>>, vector<8x32xf32>,
    %506 = tpu.bitcast %504 : vector<8x32xf32> -> vector<8x32xi32>
    %c31_i32_177 = arith.constant 31 : i32
    %507 = vector.broadcast %c31_i32_177 : i32 to vector<8x32xi32>
    %508 = arith.shrsi %506, %507 : vector<8x32xi32>
    %c2147483647_i32_178 = arith.constant 2147483647 : i32
    %509 = vector.broadcast %c2147483647_i32_178 : i32 to vector<8x32xi32>
    %510 = arith.andi %508, %509 : vector<8x32xi32>
    %511 = arith.xori %506, %510 : vector<8x32xi32>
    %c-32_i32_179 = arith.constant -32 : i32
    %512 = vector.broadcast %c-32_i32_179 : i32 to vector<8x32xi32>
    %513 = arith.andi %511, %512 : vector<8x32xi32>
    %c31_i32_180 = arith.constant 31 : i32
    %514 = vector.broadcast %c31_i32_180 : i32 to vector<8x32xi32>
    %515 = arith.subi %514, %9 : vector<8x32xi32>
    %516 = arith.ori %513, %515 : vector<8x32xi32>
    %cst_181 = arith.constant dense<-2147483648> : vector<8xi32>
    %517 = vector.multi_reduction <maxsi>, %516, %cst_181 [1] : vector<8x32xi32> to vector<8xi32>
    %518 = vector.shape_cast %517 : vector<8xi32> to vector<8x1xi32>
    %c31_i32_182 = arith.constant 31 : i32
    %519 = vector.broadcast %c31_i32_182 : i32 to vector<8x1xi32>
    %520 = arith.andi %518, %519 : vector<8x1xi32>
    %c31_i32_183 = arith.constant 31 : i32
    %521 = vector.broadcast %c31_i32_183 : i32 to vector<8x1xi32>
    %522 = arith.subi %521, %520 : vector<8x1xi32>
    %523 = vector.broadcast %522 : vector<8x1xi32> to vector<8x32xi32>
    %524 = arith.cmpi eq, %9, %523 : vector<8x32xi32>
    %525 = arith.extui %524 : vector<8x32xi1> to vector<8x32xi32>
    %526 = arith.sitofp %525 : vector<8x32xi32> to vector<8x32xf32>
    %527 = arith.truncf %526 : vector<8x32xf32> to vector<8x32xbf16>
    %c0_184 = arith.constant 0 : index
    %c0_185 = arith.constant 0 : index
    %528 = vector.load %arg4[%c0_184, %c0_185] : memref<32x256xbf16, #tpu.memory_space<vmem>>, vector<32x256xbf16>
    %cst_186 = arith.constant dense<0.000000e+00> : vector<8x256xf32>
    %529 = tpu.matmul %527, %528, %cst_186 {dimension_numbers = #tpu.dot_dimension_numbers<[1], [0], [0], [1], [0, 0, 1, 1], [], []>} : vector<8x32xbf16>, vector<32x256xbf16>, vector<8x256xf32> -> vector<8x256xf32>
    %c0_187 = arith.constant 0 : index
    %c0_188 = arith.constant 0 : index
    %530 = vector.load %arg5[%c0_187, %c0_188] : memref<64x256xbf16, #tpu.memory_space<vmem>>, vector<64x256xbf16>
    %cst_189 = arith.constant dense<0.000000e+00> : vector<8x256xf32>
    %531 = tpu.matmul %481, %530, %cst_189 {dimension_numbers = #tpu.dot_dimension_numbers<[1], [0], [0], [1], [0, 0, 1, 1], [], []>} : vector<8x64xbf16>, vector<64x256xbf16>, vector<8x256xf32> -> vector<8x256xf32>
    %532 = arith.addf %531, %17 : vector<8x256xf32>
    %533 = arith.addf %529, %532 : vector<8x256xf32>
    %c0_190 = arith.constant 0 : index
    %c0_191 = arith.constant 0 : index
    %534 = vector.load %arg8[%c0_190, %c0_191] : memref<64x256xbf16, #tpu.memory_space<vmem>>, vector<64x256xbf16>
    %cst_192 = arith.constant dense<0.000000e+00> : vector<8x256xf32>
    %535 = tpu.matmul %501, %534, %cst_192 {dimension_numbers = #tpu.dot_dimension_numbers<[1], [0], [0], [1], [0, 0, 1, 1], [], []>} : vector<8x64xbf16>, vector<64x256xbf16>, vector<8x256xf32> -> vector<8x256xf32>
    %536 = arith.addf %535, %20 : vector<8x256xf32>
    %537 = vector.extract_strided_slice %533 {offsets = [0, 0], sizes = [8, 192], strides = [1, 1]} : vector<8x256xf32> to vector<8x192xf32>
    %538 = arith.negf %537 : vector<8x192xf32>
    %539 = math.exp %538 : vector<8x192xf32>
    %cst_193 = arith.constant 1.000000e+00 : f32
    %540 = vector.broadcast %cst_193 : f32 to vector<8x192xf32>
    %541 = arith.addf %540, %539 : vector<8x192xf32>
    %542 = arith.divf %540, %541 : vector<8x192xf32>
    %543 = vector.extract_strided_slice %533 {offsets = [0, 192], sizes = [8, 64], strides = [1, 1]} : vector<8x256xf32> to vector<8x64xf32>
    %544 = math.tanh %543 : vector<8x64xf32>
    %545 = vector.extract_strided_slice %542 {offsets = [0, 64], sizes = [8, 64], strides = [1, 1]} : vector<8x192xf32> to vector<8x64xf32>
    %546 = arith.mulf %545, %477 : vector<8x64xf32>
    %547 = vector.extract_strided_slice %542 {offsets = [0, 0], sizes = [8, 64], strides = [1, 1]} : vector<8x192xf32> to vector<8x64xf32>
    %548 = arith.mulf %547, %544 : vector<8x64xf32>
    %549 = arith.addf %546, %548 : vector<8x64xf32>
    %550 = vector.extract_strided_slice %542 {offsets = [0, 128], sizes = [8, 64], strides = [1, 1]} : vector<8x192xf32> to vector<8x64xf32>
    %551 = math.tanh %549 : vector<8x64xf32>
    %552 = arith.mulf %550, %551 : vector<8x64xf32>
    %553 = arith.truncf %552 : vector<8x64xf32> to vector<8x64xbf16>
    %c0_194 = arith.constant 0 : index
    %c0_195 = arith.constant 0 : index
    %554 = vector.load %arg7[%c0_194, %c0_195] : memref<64x256xbf16, #tpu.memory_space<vmem>>, vector<64x256xbf16>
    %cst_196 = arith.constant dense<0.000000e+00> : vector<8x256xf32>
    %555 = tpu.matmul %553, %554, %cst_196 {dimension_numbers = #tpu.dot_dimension_numbers<[1], [0], [0], [1], [0, 0, 1, 1], [], []>} : vector<8x64xbf16>, vector<64x256xbf16>, vector<8x256xf32> -> vector<8x256xf32>
    %556 = arith.addf %555, %536 : vector<8x256xf32>
    %557 = vector.extract_strided_slice %556 {offsets = [0, 0], sizes = [8, 192], strides = [1, 1]} : vector<8x256xf32> to vector<8x192xf32>
    %558 = arith.negf %557 : vector<8x192xf32>
    %559 = math.exp %558 : vector<8x192xf32>
    %cst_197 = arith.constant 1.000000e+00 : f32
    %560 = vector.broadcast %cst_197 : f32 to vector<8x192xf32>
    %561 = arith.addf %560, %559 : vector<8x192xf32>
    %562 = arith.divf %560, %561 : vector<8x192xf32>
    %563 = vector.extract_strided_slice %556 {offsets = [0, 192], sizes = [8, 64], strides = [1, 1]} : vector<8x256xf32> to vector<8x64xf32>
    %564 = math.tanh %563 : vector<8x64xf32>
    %565 = vector.extract_strided_slice %562 {offsets = [0, 64], sizes = [8, 64], strides = [1, 1]} : vector<8x192xf32> to vector<8x64xf32>
    %566 = arith.mulf %565, %497 : vector<8x64xf32>
    %567 = vector.extract_strided_slice %562 {offsets = [0, 0], sizes = [8, 64], strides = [1, 1]} : vector<8x192xf32> to vector<8x64xf32>
    %568 = arith.mulf %567, %564 : vector<8x64xf32>
    %569 = arith.addf %566, %568 : vector<8x64xf32>
    %570 = vector.extract_strided_slice %562 {offsets = [0, 128], sizes = [8, 64], strides = [1, 1]} : vector<8x192xf32> to vector<8x64xf32>
    %571 = math.tanh %569 : vector<8x64xf32>
    %572 = arith.mulf %570, %571 : vector<8x64xf32>
    %573 = arith.truncf %572 : vector<8x64xf32> to vector<8x64xbf16>
    %c0_198 = arith.constant 0 : index
    %c0_199 = arith.constant 0 : index
    %574 = vector.load %arg10[%c0_198, %c0_199] : memref<64x32xbf16, #tpu.memory_space<vmem>>, vector<64x32xbf16>
    %cst_200 = arith.constant dense<0.000000e+00> : vector<8x32xf32>
    %575 = tpu.matmul %573, %574, %cst_200 {dimension_numbers = #tpu.dot_dimension_numbers<[1], [0], [0], [1], [0, 0, 1, 1], [], []>} : vector<8x64xbf16>, vector<64x32xbf16>, vector<8x32xf32> -> vector<8x32xf32>
    %576 = arith.addf %575, %23 : vector<8x32xf32>
    %c0_201 = arith.constant 0 : index
    %c224 = arith.constant 224 : index
    %577 = vector.load %arg12[%c0_201, %c224] : memref<8x544xf32, #tpu.memory_space<vmem>>, vector<8x32xf32>
    tpu.vector_store %arg12[%c0_201, %c224], %576 {strides = array<i32>} : memref<8x544xf32, #tpu.memory_space<vmem>>, vector<8x32xf32>,
    %578 = tpu.bitcast %576 : vector<8x32xf32> -> vector<8x32xi32>
    %c31_i32_202 = arith.constant 31 : i32
    %579 = vector.broadcast %c31_i32_202 : i32 to vector<8x32xi32>
    %580 = arith.shrsi %578, %579 : vector<8x32xi32>
    %c2147483647_i32_203 = arith.constant 2147483647 : i32
    %581 = vector.broadcast %c2147483647_i32_203 : i32 to vector<8x32xi32>
    %582 = arith.andi %580, %581 : vector<8x32xi32>
    %583 = arith.xori %578, %582 : vector<8x32xi32>
    %c-32_i32_204 = arith.constant -32 : i32
    %584 = vector.broadcast %c-32_i32_204 : i32 to vector<8x32xi32>
    %585 = arith.andi %583, %584 : vector<8x32xi32>
    %c31_i32_205 = arith.constant 31 : i32
    %586 = vector.broadcast %c31_i32_205 : i32 to vector<8x32xi32>
    %587 = arith.subi %586, %9 : vector<8x32xi32>
    %588 = arith.ori %585, %587 : vector<8x32xi32>
    %cst_206 = arith.constant dense<-2147483648> : vector<8xi32>
    %589 = vector.multi_reduction <maxsi>, %588, %cst_206 [1] : vector<8x32xi32> to vector<8xi32>
    %590 = vector.shape_cast %589 : vector<8xi32> to vector<8x1xi32>
    %c31_i32_207 = arith.constant 31 : i32
    %591 = vector.broadcast %c31_i32_207 : i32 to vector<8x1xi32>
    %592 = arith.andi %590, %591 : vector<8x1xi32>
    %c31_i32_208 = arith.constant 31 : i32
    %593 = vector.broadcast %c31_i32_208 : i32 to vector<8x1xi32>
    %594 = arith.subi %593, %592 : vector<8x1xi32>
    %595 = vector.broadcast %594 : vector<8x1xi32> to vector<8x32xi32>
    %596 = arith.cmpi eq, %9, %595 : vector<8x32xi32>
    %597 = arith.extui %596 : vector<8x32xi1> to vector<8x32xi32>
    %598 = arith.sitofp %597 : vector<8x32xi32> to vector<8x32xf32>
    %599 = arith.truncf %598 : vector<8x32xf32> to vector<8x32xbf16>
    %c0_209 = arith.constant 0 : index
    %c0_210 = arith.constant 0 : index
    %600 = vector.load %arg4[%c0_209, %c0_210] : memref<32x256xbf16, #tpu.memory_space<vmem>>, vector<32x256xbf16>
    %cst_211 = arith.constant dense<0.000000e+00> : vector<8x256xf32>
    %601 = tpu.matmul %599, %600, %cst_211 {dimension_numbers = #tpu.dot_dimension_numbers<[1], [0], [0], [1], [0, 0, 1, 1], [], []>} : vector<8x32xbf16>, vector<32x256xbf16>, vector<8x256xf32> -> vector<8x256xf32>
    %c0_212 = arith.constant 0 : index
    %c0_213 = arith.constant 0 : index
    %602 = vector.load %arg5[%c0_212, %c0_213] : memref<64x256xbf16, #tpu.memory_space<vmem>>, vector<64x256xbf16>
    %cst_214 = arith.constant dense<0.000000e+00> : vector<8x256xf32>
    %603 = tpu.matmul %553, %602, %cst_214 {dimension_numbers = #tpu.dot_dimension_numbers<[1], [0], [0], [1], [0, 0, 1, 1], [], []>} : vector<8x64xbf16>, vector<64x256xbf16>, vector<8x256xf32> -> vector<8x256xf32>
    %604 = arith.addf %603, %17 : vector<8x256xf32>
    %605 = arith.addf %601, %604 : vector<8x256xf32>
    %c0_215 = arith.constant 0 : index
    %c0_216 = arith.constant 0 : index
    %606 = vector.load %arg8[%c0_215, %c0_216] : memref<64x256xbf16, #tpu.memory_space<vmem>>, vector<64x256xbf16>
    %cst_217 = arith.constant dense<0.000000e+00> : vector<8x256xf32>
    %607 = tpu.matmul %573, %606, %cst_217 {dimension_numbers = #tpu.dot_dimension_numbers<[1], [0], [0], [1], [0, 0, 1, 1], [], []>} : vector<8x64xbf16>, vector<64x256xbf16>, vector<8x256xf32> -> vector<8x256xf32>
    %608 = arith.addf %607, %20 : vector<8x256xf32>
    %609 = vector.extract_strided_slice %605 {offsets = [0, 0], sizes = [8, 192], strides = [1, 1]} : vector<8x256xf32> to vector<8x192xf32>
    %610 = arith.negf %609 : vector<8x192xf32>
    %611 = math.exp %610 : vector<8x192xf32>
    %cst_218 = arith.constant 1.000000e+00 : f32
    %612 = vector.broadcast %cst_218 : f32 to vector<8x192xf32>
    %613 = arith.addf %612, %611 : vector<8x192xf32>
    %614 = arith.divf %612, %613 : vector<8x192xf32>
    %615 = vector.extract_strided_slice %605 {offsets = [0, 192], sizes = [8, 64], strides = [1, 1]} : vector<8x256xf32> to vector<8x64xf32>
    %616 = math.tanh %615 : vector<8x64xf32>
    %617 = vector.extract_strided_slice %614 {offsets = [0, 64], sizes = [8, 64], strides = [1, 1]} : vector<8x192xf32> to vector<8x64xf32>
    %618 = arith.mulf %617, %549 : vector<8x64xf32>
    %619 = vector.extract_strided_slice %614 {offsets = [0, 0], sizes = [8, 64], strides = [1, 1]} : vector<8x192xf32> to vector<8x64xf32>
    %620 = arith.mulf %619, %616 : vector<8x64xf32>
    %621 = arith.addf %618, %620 : vector<8x64xf32>
    %622 = vector.extract_strided_slice %614 {offsets = [0, 128], sizes = [8, 64], strides = [1, 1]} : vector<8x192xf32> to vector<8x64xf32>
    %623 = math.tanh %621 : vector<8x64xf32>
    %624 = arith.mulf %622, %623 : vector<8x64xf32>
    %625 = arith.truncf %624 : vector<8x64xf32> to vector<8x64xbf16>
    %c0_219 = arith.constant 0 : index
    %c0_220 = arith.constant 0 : index
    %626 = vector.load %arg7[%c0_219, %c0_220] : memref<64x256xbf16, #tpu.memory_space<vmem>>, vector<64x256xbf16>
    %cst_221 = arith.constant dense<0.000000e+00> : vector<8x256xf32>
    %627 = tpu.matmul %625, %626, %cst_221 {dimension_numbers = #tpu.dot_dimension_numbers<[1], [0], [0], [1], [0, 0, 1, 1], [], []>} : vector<8x64xbf16>, vector<64x256xbf16>, vector<8x256xf32> -> vector<8x256xf32>
    %628 = arith.addf %627, %608 : vector<8x256xf32>
    %629 = vector.extract_strided_slice %628 {offsets = [0, 0], sizes = [8, 192], strides = [1, 1]} : vector<8x256xf32> to vector<8x192xf32>
    %630 = arith.negf %629 : vector<8x192xf32>
    %631 = math.exp %630 : vector<8x192xf32>
    %cst_222 = arith.constant 1.000000e+00 : f32
    %632 = vector.broadcast %cst_222 : f32 to vector<8x192xf32>
    %633 = arith.addf %632, %631 : vector<8x192xf32>
    %634 = arith.divf %632, %633 : vector<8x192xf32>
    %635 = vector.extract_strided_slice %628 {offsets = [0, 192], sizes = [8, 64], strides = [1, 1]} : vector<8x256xf32> to vector<8x64xf32>
    %636 = math.tanh %635 : vector<8x64xf32>
    %637 = vector.extract_strided_slice %634 {offsets = [0, 64], sizes = [8, 64], strides = [1, 1]} : vector<8x192xf32> to vector<8x64xf32>
    %638 = arith.mulf %637, %569 : vector<8x64xf32>
    %639 = vector.extract_strided_slice %634 {offsets = [0, 0], sizes = [8, 64], strides = [1, 1]} : vector<8x192xf32> to vector<8x64xf32>
    %640 = arith.mulf %639, %636 : vector<8x64xf32>
    %641 = arith.addf %638, %640 : vector<8x64xf32>
    %642 = vector.extract_strided_slice %634 {offsets = [0, 128], sizes = [8, 64], strides = [1, 1]} : vector<8x192xf32> to vector<8x64xf32>
    %643 = math.tanh %641 : vector<8x64xf32>
    %644 = arith.mulf %642, %643 : vector<8x64xf32>
    %645 = arith.truncf %644 : vector<8x64xf32> to vector<8x64xbf16>
    %c0_223 = arith.constant 0 : index
    %c0_224 = arith.constant 0 : index
    %646 = vector.load %arg10[%c0_223, %c0_224] : memref<64x32xbf16, #tpu.memory_space<vmem>>, vector<64x32xbf16>
    %cst_225 = arith.constant dense<0.000000e+00> : vector<8x32xf32>
    %647 = tpu.matmul %645, %646, %cst_225 {dimension_numbers = #tpu.dot_dimension_numbers<[1], [0], [0], [1], [0, 0, 1, 1], [], []>} : vector<8x64xbf16>, vector<64x32xbf16>, vector<8x32xf32> -> vector<8x32xf32>
    %648 = arith.addf %647, %23 : vector<8x32xf32>
    %c0_226 = arith.constant 0 : index
    %c256 = arith.constant 256 : index
    %649 = vector.load %arg12[%c0_226, %c256] : memref<8x544xf32, #tpu.memory_space<vmem>>, vector<8x32xf32>
    tpu.vector_store %arg12[%c0_226, %c256], %648 {strides = array<i32>} : memref<8x544xf32, #tpu.memory_space<vmem>>, vector<8x32xf32>,
    %650 = tpu.bitcast %648 : vector<8x32xf32> -> vector<8x32xi32>
    %c31_i32_227 = arith.constant 31 : i32
    %651 = vector.broadcast %c31_i32_227 : i32 to vector<8x32xi32>
    %652 = arith.shrsi %650, %651 : vector<8x32xi32>
    %c2147483647_i32_228 = arith.constant 2147483647 : i32
    %653 = vector.broadcast %c2147483647_i32_228 : i32 to vector<8x32xi32>
    %654 = arith.andi %652, %653 : vector<8x32xi32>
    %655 = arith.xori %650, %654 : vector<8x32xi32>
    %c-32_i32_229 = arith.constant -32 : i32
    %656 = vector.broadcast %c-32_i32_229 : i32 to vector<8x32xi32>
    %657 = arith.andi %655, %656 : vector<8x32xi32>
    %c31_i32_230 = arith.constant 31 : i32
    %658 = vector.broadcast %c31_i32_230 : i32 to vector<8x32xi32>
    %659 = arith.subi %658, %9 : vector<8x32xi32>
    %660 = arith.ori %657, %659 : vector<8x32xi32>
    %cst_231 = arith.constant dense<-2147483648> : vector<8xi32>
    %661 = vector.multi_reduction <maxsi>, %660, %cst_231 [1] : vector<8x32xi32> to vector<8xi32>
    %662 = vector.shape_cast %661 : vector<8xi32> to vector<8x1xi32>
    %c31_i32_232 = arith.constant 31 : i32
    %663 = vector.broadcast %c31_i32_232 : i32 to vector<8x1xi32>
    %664 = arith.andi %662, %663 : vector<8x1xi32>
    %c31_i32_233 = arith.constant 31 : i32
    %665 = vector.broadcast %c31_i32_233 : i32 to vector<8x1xi32>
    %666 = arith.subi %665, %664 : vector<8x1xi32>
    %667 = vector.broadcast %666 : vector<8x1xi32> to vector<8x32xi32>
    %668 = arith.cmpi eq, %9, %667 : vector<8x32xi32>
    %669 = arith.extui %668 : vector<8x32xi1> to vector<8x32xi32>
    %670 = arith.sitofp %669 : vector<8x32xi32> to vector<8x32xf32>
    %671 = arith.truncf %670 : vector<8x32xf32> to vector<8x32xbf16>
    %c0_234 = arith.constant 0 : index
    %c0_235 = arith.constant 0 : index
    %672 = vector.load %arg4[%c0_234, %c0_235] : memref<32x256xbf16, #tpu.memory_space<vmem>>, vector<32x256xbf16>
    %cst_236 = arith.constant dense<0.000000e+00> : vector<8x256xf32>
    %673 = tpu.matmul %671, %672, %cst_236 {dimension_numbers = #tpu.dot_dimension_numbers<[1], [0], [0], [1], [0, 0, 1, 1], [], []>} : vector<8x32xbf16>, vector<32x256xbf16>, vector<8x256xf32> -> vector<8x256xf32>
    %c0_237 = arith.constant 0 : index
    %c0_238 = arith.constant 0 : index
    %674 = vector.load %arg5[%c0_237, %c0_238] : memref<64x256xbf16, #tpu.memory_space<vmem>>, vector<64x256xbf16>
    %cst_239 = arith.constant dense<0.000000e+00> : vector<8x256xf32>
    %675 = tpu.matmul %625, %674, %cst_239 {dimension_numbers = #tpu.dot_dimension_numbers<[1], [0], [0], [1], [0, 0, 1, 1], [], []>} : vector<8x64xbf16>, vector<64x256xbf16>, vector<8x256xf32> -> vector<8x256xf32>
    %676 = arith.addf %675, %17 : vector<8x256xf32>
    %677 = arith.addf %673, %676 : vector<8x256xf32>
    %c0_240 = arith.constant 0 : index
    %c0_241 = arith.constant 0 : index
    %678 = vector.load %arg8[%c0_240, %c0_241] : memref<64x256xbf16, #tpu.memory_space<vmem>>, vector<64x256xbf16>
    %cst_242 = arith.constant dense<0.000000e+00> : vector<8x256xf32>
    %679 = tpu.matmul %645, %678, %cst_242 {dimension_numbers = #tpu.dot_dimension_numbers<[1], [0], [0], [1], [0, 0, 1, 1], [], []>} : vector<8x64xbf16>, vector<64x256xbf16>, vector<8x256xf32> -> vector<8x256xf32>
    %680 = arith.addf %679, %20 : vector<8x256xf32>
    %681 = vector.extract_strided_slice %677 {offsets = [0, 0], sizes = [8, 192], strides = [1, 1]} : vector<8x256xf32> to vector<8x192xf32>
    %682 = arith.negf %681 : vector<8x192xf32>
    %683 = math.exp %682 : vector<8x192xf32>
    %cst_243 = arith.constant 1.000000e+00 : f32
    %684 = vector.broadcast %cst_243 : f32 to vector<8x192xf32>
    %685 = arith.addf %684, %683 : vector<8x192xf32>
    %686 = arith.divf %684, %685 : vector<8x192xf32>
    %687 = vector.extract_strided_slice %677 {offsets = [0, 192], sizes = [8, 64], strides = [1, 1]} : vector<8x256xf32> to vector<8x64xf32>
    %688 = math.tanh %687 : vector<8x64xf32>
    %689 = vector.extract_strided_slice %686 {offsets = [0, 64], sizes = [8, 64], strides = [1, 1]} : vector<8x192xf32> to vector<8x64xf32>
    %690 = arith.mulf %689, %621 : vector<8x64xf32>
    %691 = vector.extract_strided_slice %686 {offsets = [0, 0], sizes = [8, 64], strides = [1, 1]} : vector<8x192xf32> to vector<8x64xf32>
    %692 = arith.mulf %691, %688 : vector<8x64xf32>
    %693 = arith.addf %690, %692 : vector<8x64xf32>
    %694 = vector.extract_strided_slice %686 {offsets = [0, 128], sizes = [8, 64], strides = [1, 1]} : vector<8x192xf32> to vector<8x64xf32>
    %695 = math.tanh %693 : vector<8x64xf32>
    %696 = arith.mulf %694, %695 : vector<8x64xf32>
    %697 = arith.truncf %696 : vector<8x64xf32> to vector<8x64xbf16>
    %c0_244 = arith.constant 0 : index
    %c0_245 = arith.constant 0 : index
    %698 = vector.load %arg7[%c0_244, %c0_245] : memref<64x256xbf16, #tpu.memory_space<vmem>>, vector<64x256xbf16>
    %cst_246 = arith.constant dense<0.000000e+00> : vector<8x256xf32>
    %699 = tpu.matmul %697, %698, %cst_246 {dimension_numbers = #tpu.dot_dimension_numbers<[1], [0], [0], [1], [0, 0, 1, 1], [], []>} : vector<8x64xbf16>, vector<64x256xbf16>, vector<8x256xf32> -> vector<8x256xf32>
    %700 = arith.addf %699, %680 : vector<8x256xf32>
    %701 = vector.extract_strided_slice %700 {offsets = [0, 0], sizes = [8, 192], strides = [1, 1]} : vector<8x256xf32> to vector<8x192xf32>
    %702 = arith.negf %701 : vector<8x192xf32>
    %703 = math.exp %702 : vector<8x192xf32>
    %cst_247 = arith.constant 1.000000e+00 : f32
    %704 = vector.broadcast %cst_247 : f32 to vector<8x192xf32>
    %705 = arith.addf %704, %703 : vector<8x192xf32>
    %706 = arith.divf %704, %705 : vector<8x192xf32>
    %707 = vector.extract_strided_slice %700 {offsets = [0, 192], sizes = [8, 64], strides = [1, 1]} : vector<8x256xf32> to vector<8x64xf32>
    %708 = math.tanh %707 : vector<8x64xf32>
    %709 = vector.extract_strided_slice %706 {offsets = [0, 64], sizes = [8, 64], strides = [1, 1]} : vector<8x192xf32> to vector<8x64xf32>
    %710 = arith.mulf %709, %641 : vector<8x64xf32>
    %711 = vector.extract_strided_slice %706 {offsets = [0, 0], sizes = [8, 64], strides = [1, 1]} : vector<8x192xf32> to vector<8x64xf32>
    %712 = arith.mulf %711, %708 : vector<8x64xf32>
    %713 = arith.addf %710, %712 : vector<8x64xf32>
    %714 = vector.extract_strided_slice %706 {offsets = [0, 128], sizes = [8, 64], strides = [1, 1]} : vector<8x192xf32> to vector<8x64xf32>
    %715 = math.tanh %713 : vector<8x64xf32>
    %716 = arith.mulf %714, %715 : vector<8x64xf32>
    %717 = arith.truncf %716 : vector<8x64xf32> to vector<8x64xbf16>
    %c0_248 = arith.constant 0 : index
    %c0_249 = arith.constant 0 : index
    %718 = vector.load %arg10[%c0_248, %c0_249] : memref<64x32xbf16, #tpu.memory_space<vmem>>, vector<64x32xbf16>
    %cst_250 = arith.constant dense<0.000000e+00> : vector<8x32xf32>
    %719 = tpu.matmul %717, %718, %cst_250 {dimension_numbers = #tpu.dot_dimension_numbers<[1], [0], [0], [1], [0, 0, 1, 1], [], []>} : vector<8x64xbf16>, vector<64x32xbf16>, vector<8x32xf32> -> vector<8x32xf32>
    %720 = arith.addf %719, %23 : vector<8x32xf32>
    %c0_251 = arith.constant 0 : index
    %c288 = arith.constant 288 : index
    %721 = vector.load %arg12[%c0_251, %c288] : memref<8x544xf32, #tpu.memory_space<vmem>>, vector<8x32xf32>
    tpu.vector_store %arg12[%c0_251, %c288], %720 {strides = array<i32>} : memref<8x544xf32, #tpu.memory_space<vmem>>, vector<8x32xf32>,
    %722 = tpu.bitcast %720 : vector<8x32xf32> -> vector<8x32xi32>
    %c31_i32_252 = arith.constant 31 : i32
    %723 = vector.broadcast %c31_i32_252 : i32 to vector<8x32xi32>
    %724 = arith.shrsi %722, %723 : vector<8x32xi32>
    %c2147483647_i32_253 = arith.constant 2147483647 : i32
    %725 = vector.broadcast %c2147483647_i32_253 : i32 to vector<8x32xi32>
    %726 = arith.andi %724, %725 : vector<8x32xi32>
    %727 = arith.xori %722, %726 : vector<8x32xi32>
    %c-32_i32_254 = arith.constant -32 : i32
    %728 = vector.broadcast %c-32_i32_254 : i32 to vector<8x32xi32>
    %729 = arith.andi %727, %728 : vector<8x32xi32>
    %c31_i32_255 = arith.constant 31 : i32
    %730 = vector.broadcast %c31_i32_255 : i32 to vector<8x32xi32>
    %731 = arith.subi %730, %9 : vector<8x32xi32>
    %732 = arith.ori %729, %731 : vector<8x32xi32>
    %cst_256 = arith.constant dense<-2147483648> : vector<8xi32>
    %733 = vector.multi_reduction <maxsi>, %732, %cst_256 [1] : vector<8x32xi32> to vector<8xi32>
    %734 = vector.shape_cast %733 : vector<8xi32> to vector<8x1xi32>
    %c31_i32_257 = arith.constant 31 : i32
    %735 = vector.broadcast %c31_i32_257 : i32 to vector<8x1xi32>
    %736 = arith.andi %734, %735 : vector<8x1xi32>
    %c31_i32_258 = arith.constant 31 : i32
    %737 = vector.broadcast %c31_i32_258 : i32 to vector<8x1xi32>
    %738 = arith.subi %737, %736 : vector<8x1xi32>
    %739 = vector.broadcast %738 : vector<8x1xi32> to vector<8x32xi32>
    %740 = arith.cmpi eq, %9, %739 : vector<8x32xi32>
    %741 = arith.extui %740 : vector<8x32xi1> to vector<8x32xi32>
    %742 = arith.sitofp %741 : vector<8x32xi32> to vector<8x32xf32>
    %743 = arith.truncf %742 : vector<8x32xf32> to vector<8x32xbf16>
    %c0_259 = arith.constant 0 : index
    %c0_260 = arith.constant 0 : index
    %744 = vector.load %arg4[%c0_259, %c0_260] : memref<32x256xbf16, #tpu.memory_space<vmem>>, vector<32x256xbf16>
    %cst_261 = arith.constant dense<0.000000e+00> : vector<8x256xf32>
    %745 = tpu.matmul %743, %744, %cst_261 {dimension_numbers = #tpu.dot_dimension_numbers<[1], [0], [0], [1], [0, 0, 1, 1], [], []>} : vector<8x32xbf16>, vector<32x256xbf16>, vector<8x256xf32> -> vector<8x256xf32>
    %c0_262 = arith.constant 0 : index
    %c0_263 = arith.constant 0 : index
    %746 = vector.load %arg5[%c0_262, %c0_263] : memref<64x256xbf16, #tpu.memory_space<vmem>>, vector<64x256xbf16>
    %cst_264 = arith.constant dense<0.000000e+00> : vector<8x256xf32>
    %747 = tpu.matmul %697, %746, %cst_264 {dimension_numbers = #tpu.dot_dimension_numbers<[1], [0], [0], [1], [0, 0, 1, 1], [], []>} : vector<8x64xbf16>, vector<64x256xbf16>, vector<8x256xf32> -> vector<8x256xf32>
    %748 = arith.addf %747, %17 : vector<8x256xf32>
    %749 = arith.addf %745, %748 : vector<8x256xf32>
    %c0_265 = arith.constant 0 : index
    %c0_266 = arith.constant 0 : index
    %750 = vector.load %arg8[%c0_265, %c0_266] : memref<64x256xbf16, #tpu.memory_space<vmem>>, vector<64x256xbf16>
    %cst_267 = arith.constant dense<0.000000e+00> : vector<8x256xf32>
    %751 = tpu.matmul %717, %750, %cst_267 {dimension_numbers = #tpu.dot_dimension_numbers<[1], [0], [0], [1], [0, 0, 1, 1], [], []>} : vector<8x64xbf16>, vector<64x256xbf16>, vector<8x256xf32> -> vector<8x256xf32>
    %752 = arith.addf %751, %20 : vector<8x256xf32>
    %753 = vector.extract_strided_slice %749 {offsets = [0, 0], sizes = [8, 192], strides = [1, 1]} : vector<8x256xf32> to vector<8x192xf32>
    %754 = arith.negf %753 : vector<8x192xf32>
    %755 = math.exp %754 : vector<8x192xf32>
    %cst_268 = arith.constant 1.000000e+00 : f32
    %756 = vector.broadcast %cst_268 : f32 to vector<8x192xf32>
    %757 = arith.addf %756, %755 : vector<8x192xf32>
    %758 = arith.divf %756, %757 : vector<8x192xf32>
    %759 = vector.extract_strided_slice %749 {offsets = [0, 192], sizes = [8, 64], strides = [1, 1]} : vector<8x256xf32> to vector<8x64xf32>
    %760 = math.tanh %759 : vector<8x64xf32>
    %761 = vector.extract_strided_slice %758 {offsets = [0, 64], sizes = [8, 64], strides = [1, 1]} : vector<8x192xf32> to vector<8x64xf32>
    %762 = arith.mulf %761, %693 : vector<8x64xf32>
    %763 = vector.extract_strided_slice %758 {offsets = [0, 0], sizes = [8, 64], strides = [1, 1]} : vector<8x192xf32> to vector<8x64xf32>
    %764 = arith.mulf %763, %760 : vector<8x64xf32>
    %765 = arith.addf %762, %764 : vector<8x64xf32>
    %766 = vector.extract_strided_slice %758 {offsets = [0, 128], sizes = [8, 64], strides = [1, 1]} : vector<8x192xf32> to vector<8x64xf32>
    %767 = math.tanh %765 : vector<8x64xf32>
    %768 = arith.mulf %766, %767 : vector<8x64xf32>
    %769 = arith.truncf %768 : vector<8x64xf32> to vector<8x64xbf16>
    %c0_269 = arith.constant 0 : index
    %c0_270 = arith.constant 0 : index
    %770 = vector.load %arg7[%c0_269, %c0_270] : memref<64x256xbf16, #tpu.memory_space<vmem>>, vector<64x256xbf16>
    %cst_271 = arith.constant dense<0.000000e+00> : vector<8x256xf32>
    %771 = tpu.matmul %769, %770, %cst_271 {dimension_numbers = #tpu.dot_dimension_numbers<[1], [0], [0], [1], [0, 0, 1, 1], [], []>} : vector<8x64xbf16>, vector<64x256xbf16>, vector<8x256xf32> -> vector<8x256xf32>
    %772 = arith.addf %771, %752 : vector<8x256xf32>
    %773 = vector.extract_strided_slice %772 {offsets = [0, 0], sizes = [8, 192], strides = [1, 1]} : vector<8x256xf32> to vector<8x192xf32>
    %774 = arith.negf %773 : vector<8x192xf32>
    %775 = math.exp %774 : vector<8x192xf32>
    %cst_272 = arith.constant 1.000000e+00 : f32
    %776 = vector.broadcast %cst_272 : f32 to vector<8x192xf32>
    %777 = arith.addf %776, %775 : vector<8x192xf32>
    %778 = arith.divf %776, %777 : vector<8x192xf32>
    %779 = vector.extract_strided_slice %772 {offsets = [0, 192], sizes = [8, 64], strides = [1, 1]} : vector<8x256xf32> to vector<8x64xf32>
    %780 = math.tanh %779 : vector<8x64xf32>
    %781 = vector.extract_strided_slice %778 {offsets = [0, 64], sizes = [8, 64], strides = [1, 1]} : vector<8x192xf32> to vector<8x64xf32>
    %782 = arith.mulf %781, %713 : vector<8x64xf32>
    %783 = vector.extract_strided_slice %778 {offsets = [0, 0], sizes = [8, 64], strides = [1, 1]} : vector<8x192xf32> to vector<8x64xf32>
    %784 = arith.mulf %783, %780 : vector<8x64xf32>
    %785 = arith.addf %782, %784 : vector<8x64xf32>
    %786 = vector.extract_strided_slice %778 {offsets = [0, 128], sizes = [8, 64], strides = [1, 1]} : vector<8x192xf32> to vector<8x64xf32>
    %787 = math.tanh %785 : vector<8x64xf32>
    %788 = arith.mulf %786, %787 : vector<8x64xf32>
    %789 = arith.truncf %788 : vector<8x64xf32> to vector<8x64xbf16>
    %c0_273 = arith.constant 0 : index
    %c0_274 = arith.constant 0 : index
    %790 = vector.load %arg10[%c0_273, %c0_274] : memref<64x32xbf16, #tpu.memory_space<vmem>>, vector<64x32xbf16>
    %cst_275 = arith.constant dense<0.000000e+00> : vector<8x32xf32>
    %791 = tpu.matmul %789, %790, %cst_275 {dimension_numbers = #tpu.dot_dimension_numbers<[1], [0], [0], [1], [0, 0, 1, 1], [], []>} : vector<8x64xbf16>, vector<64x32xbf16>, vector<8x32xf32> -> vector<8x32xf32>
    %792 = arith.addf %791, %23 : vector<8x32xf32>
    %c0_276 = arith.constant 0 : index
    %c320 = arith.constant 320 : index
    %793 = vector.load %arg12[%c0_276, %c320] : memref<8x544xf32, #tpu.memory_space<vmem>>, vector<8x32xf32>
    tpu.vector_store %arg12[%c0_276, %c320], %792 {strides = array<i32>} : memref<8x544xf32, #tpu.memory_space<vmem>>, vector<8x32xf32>,
    %794 = tpu.bitcast %792 : vector<8x32xf32> -> vector<8x32xi32>
    %c31_i32_277 = arith.constant 31 : i32
    %795 = vector.broadcast %c31_i32_277 : i32 to vector<8x32xi32>
    %796 = arith.shrsi %794, %795 : vector<8x32xi32>
    %c2147483647_i32_278 = arith.constant 2147483647 : i32
    %797 = vector.broadcast %c2147483647_i32_278 : i32 to vector<8x32xi32>
    %798 = arith.andi %796, %797 : vector<8x32xi32>
    %799 = arith.xori %794, %798 : vector<8x32xi32>
    %c-32_i32_279 = arith.constant -32 : i32
    %800 = vector.broadcast %c-32_i32_279 : i32 to vector<8x32xi32>
    %801 = arith.andi %799, %800 : vector<8x32xi32>
    %c31_i32_280 = arith.constant 31 : i32
    %802 = vector.broadcast %c31_i32_280 : i32 to vector<8x32xi32>
    %803 = arith.subi %802, %9 : vector<8x32xi32>
    %804 = arith.ori %801, %803 : vector<8x32xi32>
    %cst_281 = arith.constant dense<-2147483648> : vector<8xi32>
    %805 = vector.multi_reduction <maxsi>, %804, %cst_281 [1] : vector<8x32xi32> to vector<8xi32>
    %806 = vector.shape_cast %805 : vector<8xi32> to vector<8x1xi32>
    %c31_i32_282 = arith.constant 31 : i32
    %807 = vector.broadcast %c31_i32_282 : i32 to vector<8x1xi32>
    %808 = arith.andi %806, %807 : vector<8x1xi32>
    %c31_i32_283 = arith.constant 31 : i32
    %809 = vector.broadcast %c31_i32_283 : i32 to vector<8x1xi32>
    %810 = arith.subi %809, %808 : vector<8x1xi32>
    %811 = vector.broadcast %810 : vector<8x1xi32> to vector<8x32xi32>
    %812 = arith.cmpi eq, %9, %811 : vector<8x32xi32>
    %813 = arith.extui %812 : vector<8x32xi1> to vector<8x32xi32>
    %814 = arith.sitofp %813 : vector<8x32xi32> to vector<8x32xf32>
    %815 = arith.truncf %814 : vector<8x32xf32> to vector<8x32xbf16>
    %c0_284 = arith.constant 0 : index
    %c0_285 = arith.constant 0 : index
    %816 = vector.load %arg4[%c0_284, %c0_285] : memref<32x256xbf16, #tpu.memory_space<vmem>>, vector<32x256xbf16>
    %cst_286 = arith.constant dense<0.000000e+00> : vector<8x256xf32>
    %817 = tpu.matmul %815, %816, %cst_286 {dimension_numbers = #tpu.dot_dimension_numbers<[1], [0], [0], [1], [0, 0, 1, 1], [], []>} : vector<8x32xbf16>, vector<32x256xbf16>, vector<8x256xf32> -> vector<8x256xf32>
    %c0_287 = arith.constant 0 : index
    %c0_288 = arith.constant 0 : index
    %818 = vector.load %arg5[%c0_287, %c0_288] : memref<64x256xbf16, #tpu.memory_space<vmem>>, vector<64x256xbf16>
    %cst_289 = arith.constant dense<0.000000e+00> : vector<8x256xf32>
    %819 = tpu.matmul %769, %818, %cst_289 {dimension_numbers = #tpu.dot_dimension_numbers<[1], [0], [0], [1], [0, 0, 1, 1], [], []>} : vector<8x64xbf16>, vector<64x256xbf16>, vector<8x256xf32> -> vector<8x256xf32>
    %820 = arith.addf %819, %17 : vector<8x256xf32>
    %821 = arith.addf %817, %820 : vector<8x256xf32>
    %c0_290 = arith.constant 0 : index
    %c0_291 = arith.constant 0 : index
    %822 = vector.load %arg8[%c0_290, %c0_291] : memref<64x256xbf16, #tpu.memory_space<vmem>>, vector<64x256xbf16>
    %cst_292 = arith.constant dense<0.000000e+00> : vector<8x256xf32>
    %823 = tpu.matmul %789, %822, %cst_292 {dimension_numbers = #tpu.dot_dimension_numbers<[1], [0], [0], [1], [0, 0, 1, 1], [], []>} : vector<8x64xbf16>, vector<64x256xbf16>, vector<8x256xf32> -> vector<8x256xf32>
    %824 = arith.addf %823, %20 : vector<8x256xf32>
    %825 = vector.extract_strided_slice %821 {offsets = [0, 0], sizes = [8, 192], strides = [1, 1]} : vector<8x256xf32> to vector<8x192xf32>
    %826 = arith.negf %825 : vector<8x192xf32>
    %827 = math.exp %826 : vector<8x192xf32>
    %cst_293 = arith.constant 1.000000e+00 : f32
    %828 = vector.broadcast %cst_293 : f32 to vector<8x192xf32>
    %829 = arith.addf %828, %827 : vector<8x192xf32>
    %830 = arith.divf %828, %829 : vector<8x192xf32>
    %831 = vector.extract_strided_slice %821 {offsets = [0, 192], sizes = [8, 64], strides = [1, 1]} : vector<8x256xf32> to vector<8x64xf32>
    %832 = math.tanh %831 : vector<8x64xf32>
    %833 = vector.extract_strided_slice %830 {offsets = [0, 64], sizes = [8, 64], strides = [1, 1]} : vector<8x192xf32> to vector<8x64xf32>
    %834 = arith.mulf %833, %765 : vector<8x64xf32>
    %835 = vector.extract_strided_slice %830 {offsets = [0, 0], sizes = [8, 64], strides = [1, 1]} : vector<8x192xf32> to vector<8x64xf32>
    %836 = arith.mulf %835, %832 : vector<8x64xf32>
    %837 = arith.addf %834, %836 : vector<8x64xf32>
    %838 = vector.extract_strided_slice %830 {offsets = [0, 128], sizes = [8, 64], strides = [1, 1]} : vector<8x192xf32> to vector<8x64xf32>
    %839 = math.tanh %837 : vector<8x64xf32>
    %840 = arith.mulf %838, %839 : vector<8x64xf32>
    %841 = arith.truncf %840 : vector<8x64xf32> to vector<8x64xbf16>
    %c0_294 = arith.constant 0 : index
    %c0_295 = arith.constant 0 : index
    %842 = vector.load %arg7[%c0_294, %c0_295] : memref<64x256xbf16, #tpu.memory_space<vmem>>, vector<64x256xbf16>
    %cst_296 = arith.constant dense<0.000000e+00> : vector<8x256xf32>
    %843 = tpu.matmul %841, %842, %cst_296 {dimension_numbers = #tpu.dot_dimension_numbers<[1], [0], [0], [1], [0, 0, 1, 1], [], []>} : vector<8x64xbf16>, vector<64x256xbf16>, vector<8x256xf32> -> vector<8x256xf32>
    %844 = arith.addf %843, %824 : vector<8x256xf32>
    %845 = vector.extract_strided_slice %844 {offsets = [0, 0], sizes = [8, 192], strides = [1, 1]} : vector<8x256xf32> to vector<8x192xf32>
    %846 = arith.negf %845 : vector<8x192xf32>
    %847 = math.exp %846 : vector<8x192xf32>
    %cst_297 = arith.constant 1.000000e+00 : f32
    %848 = vector.broadcast %cst_297 : f32 to vector<8x192xf32>
    %849 = arith.addf %848, %847 : vector<8x192xf32>
    %850 = arith.divf %848, %849 : vector<8x192xf32>
    %851 = vector.extract_strided_slice %844 {offsets = [0, 192], sizes = [8, 64], strides = [1, 1]} : vector<8x256xf32> to vector<8x64xf32>
    %852 = math.tanh %851 : vector<8x64xf32>
    %853 = vector.extract_strided_slice %850 {offsets = [0, 64], sizes = [8, 64], strides = [1, 1]} : vector<8x192xf32> to vector<8x64xf32>
    %854 = arith.mulf %853, %785 : vector<8x64xf32>
    %855 = vector.extract_strided_slice %850 {offsets = [0, 0], sizes = [8, 64], strides = [1, 1]} : vector<8x192xf32> to vector<8x64xf32>
    %856 = arith.mulf %855, %852 : vector<8x64xf32>
    %857 = arith.addf %854, %856 : vector<8x64xf32>
    %858 = vector.extract_strided_slice %850 {offsets = [0, 128], sizes = [8, 64], strides = [1, 1]} : vector<8x192xf32> to vector<8x64xf32>
    %859 = math.tanh %857 : vector<8x64xf32>
    %860 = arith.mulf %858, %859 : vector<8x64xf32>
    %861 = arith.truncf %860 : vector<8x64xf32> to vector<8x64xbf16>
    %c0_298 = arith.constant 0 : index
    %c0_299 = arith.constant 0 : index
    %862 = vector.load %arg10[%c0_298, %c0_299] : memref<64x32xbf16, #tpu.memory_space<vmem>>, vector<64x32xbf16>
    %cst_300 = arith.constant dense<0.000000e+00> : vector<8x32xf32>
    %863 = tpu.matmul %861, %862, %cst_300 {dimension_numbers = #tpu.dot_dimension_numbers<[1], [0], [0], [1], [0, 0, 1, 1], [], []>} : vector<8x64xbf16>, vector<64x32xbf16>, vector<8x32xf32> -> vector<8x32xf32>
    %864 = arith.addf %863, %23 : vector<8x32xf32>
    %c0_301 = arith.constant 0 : index
    %c352 = arith.constant 352 : index
    %865 = vector.load %arg12[%c0_301, %c352] : memref<8x544xf32, #tpu.memory_space<vmem>>, vector<8x32xf32>
    tpu.vector_store %arg12[%c0_301, %c352], %864 {strides = array<i32>} : memref<8x544xf32, #tpu.memory_space<vmem>>, vector<8x32xf32>,
    %866 = tpu.bitcast %864 : vector<8x32xf32> -> vector<8x32xi32>
    %c31_i32_302 = arith.constant 31 : i32
    %867 = vector.broadcast %c31_i32_302 : i32 to vector<8x32xi32>
    %868 = arith.shrsi %866, %867 : vector<8x32xi32>
    %c2147483647_i32_303 = arith.constant 2147483647 : i32
    %869 = vector.broadcast %c2147483647_i32_303 : i32 to vector<8x32xi32>
    %870 = arith.andi %868, %869 : vector<8x32xi32>
    %871 = arith.xori %866, %870 : vector<8x32xi32>
    %c-32_i32_304 = arith.constant -32 : i32
    %872 = vector.broadcast %c-32_i32_304 : i32 to vector<8x32xi32>
    %873 = arith.andi %871, %872 : vector<8x32xi32>
    %c31_i32_305 = arith.constant 31 : i32
    %874 = vector.broadcast %c31_i32_305 : i32 to vector<8x32xi32>
    %875 = arith.subi %874, %9 : vector<8x32xi32>
    %876 = arith.ori %873, %875 : vector<8x32xi32>
    %cst_306 = arith.constant dense<-2147483648> : vector<8xi32>
    %877 = vector.multi_reduction <maxsi>, %876, %cst_306 [1] : vector<8x32xi32> to vector<8xi32>
    %878 = vector.shape_cast %877 : vector<8xi32> to vector<8x1xi32>
    %c31_i32_307 = arith.constant 31 : i32
    %879 = vector.broadcast %c31_i32_307 : i32 to vector<8x1xi32>
    %880 = arith.andi %878, %879 : vector<8x1xi32>
    %c31_i32_308 = arith.constant 31 : i32
    %881 = vector.broadcast %c31_i32_308 : i32 to vector<8x1xi32>
    %882 = arith.subi %881, %880 : vector<8x1xi32>
    %883 = vector.broadcast %882 : vector<8x1xi32> to vector<8x32xi32>
    %884 = arith.cmpi eq, %9, %883 : vector<8x32xi32>
    %885 = arith.extui %884 : vector<8x32xi1> to vector<8x32xi32>
    %886 = arith.sitofp %885 : vector<8x32xi32> to vector<8x32xf32>
    %887 = arith.truncf %886 : vector<8x32xf32> to vector<8x32xbf16>
    %c0_309 = arith.constant 0 : index
    %c0_310 = arith.constant 0 : index
    %888 = vector.load %arg4[%c0_309, %c0_310] : memref<32x256xbf16, #tpu.memory_space<vmem>>, vector<32x256xbf16>
    %cst_311 = arith.constant dense<0.000000e+00> : vector<8x256xf32>
    %889 = tpu.matmul %887, %888, %cst_311 {dimension_numbers = #tpu.dot_dimension_numbers<[1], [0], [0], [1], [0, 0, 1, 1], [], []>} : vector<8x32xbf16>, vector<32x256xbf16>, vector<8x256xf32> -> vector<8x256xf32>
    %c0_312 = arith.constant 0 : index
    %c0_313 = arith.constant 0 : index
    %890 = vector.load %arg5[%c0_312, %c0_313] : memref<64x256xbf16, #tpu.memory_space<vmem>>, vector<64x256xbf16>
    %cst_314 = arith.constant dense<0.000000e+00> : vector<8x256xf32>
    %891 = tpu.matmul %841, %890, %cst_314 {dimension_numbers = #tpu.dot_dimension_numbers<[1], [0], [0], [1], [0, 0, 1, 1], [], []>} : vector<8x64xbf16>, vector<64x256xbf16>, vector<8x256xf32> -> vector<8x256xf32>
    %892 = arith.addf %891, %17 : vector<8x256xf32>
    %893 = arith.addf %889, %892 : vector<8x256xf32>
    %c0_315 = arith.constant 0 : index
    %c0_316 = arith.constant 0 : index
    %894 = vector.load %arg8[%c0_315, %c0_316] : memref<64x256xbf16, #tpu.memory_space<vmem>>, vector<64x256xbf16>
    %cst_317 = arith.constant dense<0.000000e+00> : vector<8x256xf32>
    %895 = tpu.matmul %861, %894, %cst_317 {dimension_numbers = #tpu.dot_dimension_numbers<[1], [0], [0], [1], [0, 0, 1, 1], [], []>} : vector<8x64xbf16>, vector<64x256xbf16>, vector<8x256xf32> -> vector<8x256xf32>
    %896 = arith.addf %895, %20 : vector<8x256xf32>
    %897 = vector.extract_strided_slice %893 {offsets = [0, 0], sizes = [8, 192], strides = [1, 1]} : vector<8x256xf32> to vector<8x192xf32>
    %898 = arith.negf %897 : vector<8x192xf32>
    %899 = math.exp %898 : vector<8x192xf32>
    %cst_318 = arith.constant 1.000000e+00 : f32
    %900 = vector.broadcast %cst_318 : f32 to vector<8x192xf32>
    %901 = arith.addf %900, %899 : vector<8x192xf32>
    %902 = arith.divf %900, %901 : vector<8x192xf32>
    %903 = vector.extract_strided_slice %893 {offsets = [0, 192], sizes = [8, 64], strides = [1, 1]} : vector<8x256xf32> to vector<8x64xf32>
    %904 = math.tanh %903 : vector<8x64xf32>
    %905 = vector.extract_strided_slice %902 {offsets = [0, 64], sizes = [8, 64], strides = [1, 1]} : vector<8x192xf32> to vector<8x64xf32>
    %906 = arith.mulf %905, %837 : vector<8x64xf32>
    %907 = vector.extract_strided_slice %902 {offsets = [0, 0], sizes = [8, 64], strides = [1, 1]} : vector<8x192xf32> to vector<8x64xf32>
    %908 = arith.mulf %907, %904 : vector<8x64xf32>
    %909 = arith.addf %906, %908 : vector<8x64xf32>
    %910 = vector.extract_strided_slice %902 {offsets = [0, 128], sizes = [8, 64], strides = [1, 1]} : vector<8x192xf32> to vector<8x64xf32>
    %911 = math.tanh %909 : vector<8x64xf32>
    %912 = arith.mulf %910, %911 : vector<8x64xf32>
    %913 = arith.truncf %912 : vector<8x64xf32> to vector<8x64xbf16>
    %c0_319 = arith.constant 0 : index
    %c0_320 = arith.constant 0 : index
    %914 = vector.load %arg7[%c0_319, %c0_320] : memref<64x256xbf16, #tpu.memory_space<vmem>>, vector<64x256xbf16>
    %cst_321 = arith.constant dense<0.000000e+00> : vector<8x256xf32>
    %915 = tpu.matmul %913, %914, %cst_321 {dimension_numbers = #tpu.dot_dimension_numbers<[1], [0], [0], [1], [0, 0, 1, 1], [], []>} : vector<8x64xbf16>, vector<64x256xbf16>, vector<8x256xf32> -> vector<8x256xf32>
    %916 = arith.addf %915, %896 : vector<8x256xf32>
    %917 = vector.extract_strided_slice %916 {offsets = [0, 0], sizes = [8, 192], strides = [1, 1]} : vector<8x256xf32> to vector<8x192xf32>
    %918 = arith.negf %917 : vector<8x192xf32>
    %919 = math.exp %918 : vector<8x192xf32>
    %cst_322 = arith.constant 1.000000e+00 : f32
    %920 = vector.broadcast %cst_322 : f32 to vector<8x192xf32>
    %921 = arith.addf %920, %919 : vector<8x192xf32>
    %922 = arith.divf %920, %921 : vector<8x192xf32>
    %923 = vector.extract_strided_slice %916 {offsets = [0, 192], sizes = [8, 64], strides = [1, 1]} : vector<8x256xf32> to vector<8x64xf32>
    %924 = math.tanh %923 : vector<8x64xf32>
    %925 = vector.extract_strided_slice %922 {offsets = [0, 64], sizes = [8, 64], strides = [1, 1]} : vector<8x192xf32> to vector<8x64xf32>
    %926 = arith.mulf %925, %857 : vector<8x64xf32>
    %927 = vector.extract_strided_slice %922 {offsets = [0, 0], sizes = [8, 64], strides = [1, 1]} : vector<8x192xf32> to vector<8x64xf32>
    %928 = arith.mulf %927, %924 : vector<8x64xf32>
    %929 = arith.addf %926, %928 : vector<8x64xf32>
    %930 = vector.extract_strided_slice %922 {offsets = [0, 128], sizes = [8, 64], strides = [1, 1]} : vector<8x192xf32> to vector<8x64xf32>
    %931 = math.tanh %929 : vector<8x64xf32>
    %932 = arith.mulf %930, %931 : vector<8x64xf32>
    %933 = arith.truncf %932 : vector<8x64xf32> to vector<8x64xbf16>
    %c0_323 = arith.constant 0 : index
    %c0_324 = arith.constant 0 : index
    %934 = vector.load %arg10[%c0_323, %c0_324] : memref<64x32xbf16, #tpu.memory_space<vmem>>, vector<64x32xbf16>
    %cst_325 = arith.constant dense<0.000000e+00> : vector<8x32xf32>
    %935 = tpu.matmul %933, %934, %cst_325 {dimension_numbers = #tpu.dot_dimension_numbers<[1], [0], [0], [1], [0, 0, 1, 1], [], []>} : vector<8x64xbf16>, vector<64x32xbf16>, vector<8x32xf32> -> vector<8x32xf32>
    %936 = arith.addf %935, %23 : vector<8x32xf32>
    %c0_326 = arith.constant 0 : index
    %c384 = arith.constant 384 : index
    %937 = vector.load %arg12[%c0_326, %c384] : memref<8x544xf32, #tpu.memory_space<vmem>>, vector<8x32xf32>
    tpu.vector_store %arg12[%c0_326, %c384], %936 {strides = array<i32>} : memref<8x544xf32, #tpu.memory_space<vmem>>, vector<8x32xf32>,
    %938 = tpu.bitcast %936 : vector<8x32xf32> -> vector<8x32xi32>
    %c31_i32_327 = arith.constant 31 : i32
    %939 = vector.broadcast %c31_i32_327 : i32 to vector<8x32xi32>
    %940 = arith.shrsi %938, %939 : vector<8x32xi32>
    %c2147483647_i32_328 = arith.constant 2147483647 : i32
    %941 = vector.broadcast %c2147483647_i32_328 : i32 to vector<8x32xi32>
    %942 = arith.andi %940, %941 : vector<8x32xi32>
    %943 = arith.xori %938, %942 : vector<8x32xi32>
    %c-32_i32_329 = arith.constant -32 : i32
    %944 = vector.broadcast %c-32_i32_329 : i32 to vector<8x32xi32>
    %945 = arith.andi %943, %944 : vector<8x32xi32>
    %c31_i32_330 = arith.constant 31 : i32
    %946 = vector.broadcast %c31_i32_330 : i32 to vector<8x32xi32>
    %947 = arith.subi %946, %9 : vector<8x32xi32>
    %948 = arith.ori %945, %947 : vector<8x32xi32>
    %cst_331 = arith.constant dense<-2147483648> : vector<8xi32>
    %949 = vector.multi_reduction <maxsi>, %948, %cst_331 [1] : vector<8x32xi32> to vector<8xi32>
    %950 = vector.shape_cast %949 : vector<8xi32> to vector<8x1xi32>
    %c31_i32_332 = arith.constant 31 : i32
    %951 = vector.broadcast %c31_i32_332 : i32 to vector<8x1xi32>
    %952 = arith.andi %950, %951 : vector<8x1xi32>
    %c31_i32_333 = arith.constant 31 : i32
    %953 = vector.broadcast %c31_i32_333 : i32 to vector<8x1xi32>
    %954 = arith.subi %953, %952 : vector<8x1xi32>
    %955 = vector.broadcast %954 : vector<8x1xi32> to vector<8x32xi32>
    %956 = arith.cmpi eq, %9, %955 : vector<8x32xi32>
    %957 = arith.extui %956 : vector<8x32xi1> to vector<8x32xi32>
    %958 = arith.sitofp %957 : vector<8x32xi32> to vector<8x32xf32>
    %959 = arith.truncf %958 : vector<8x32xf32> to vector<8x32xbf16>
    %c0_334 = arith.constant 0 : index
    %c0_335 = arith.constant 0 : index
    %960 = vector.load %arg4[%c0_334, %c0_335] : memref<32x256xbf16, #tpu.memory_space<vmem>>, vector<32x256xbf16>
    %cst_336 = arith.constant dense<0.000000e+00> : vector<8x256xf32>
    %961 = tpu.matmul %959, %960, %cst_336 {dimension_numbers = #tpu.dot_dimension_numbers<[1], [0], [0], [1], [0, 0, 1, 1], [], []>} : vector<8x32xbf16>, vector<32x256xbf16>, vector<8x256xf32> -> vector<8x256xf32>
    %c0_337 = arith.constant 0 : index
    %c0_338 = arith.constant 0 : index
    %962 = vector.load %arg5[%c0_337, %c0_338] : memref<64x256xbf16, #tpu.memory_space<vmem>>, vector<64x256xbf16>
    %cst_339 = arith.constant dense<0.000000e+00> : vector<8x256xf32>
    %963 = tpu.matmul %913, %962, %cst_339 {dimension_numbers = #tpu.dot_dimension_numbers<[1], [0], [0], [1], [0, 0, 1, 1], [], []>} : vector<8x64xbf16>, vector<64x256xbf16>, vector<8x256xf32> -> vector<8x256xf32>
    %964 = arith.addf %963, %17 : vector<8x256xf32>
    %965 = arith.addf %961, %964 : vector<8x256xf32>
    %c0_340 = arith.constant 0 : index
    %c0_341 = arith.constant 0 : index
    %966 = vector.load %arg8[%c0_340, %c0_341] : memref<64x256xbf16, #tpu.memory_space<vmem>>, vector<64x256xbf16>
    %cst_342 = arith.constant dense<0.000000e+00> : vector<8x256xf32>
    %967 = tpu.matmul %933, %966, %cst_342 {dimension_numbers = #tpu.dot_dimension_numbers<[1], [0], [0], [1], [0, 0, 1, 1], [], []>} : vector<8x64xbf16>, vector<64x256xbf16>, vector<8x256xf32> -> vector<8x256xf32>
    %968 = arith.addf %967, %20 : vector<8x256xf32>
    %969 = vector.extract_strided_slice %965 {offsets = [0, 0], sizes = [8, 192], strides = [1, 1]} : vector<8x256xf32> to vector<8x192xf32>
    %970 = arith.negf %969 : vector<8x192xf32>
    %971 = math.exp %970 : vector<8x192xf32>
    %cst_343 = arith.constant 1.000000e+00 : f32
    %972 = vector.broadcast %cst_343 : f32 to vector<8x192xf32>
    %973 = arith.addf %972, %971 : vector<8x192xf32>
    %974 = arith.divf %972, %973 : vector<8x192xf32>
    %975 = vector.extract_strided_slice %965 {offsets = [0, 192], sizes = [8, 64], strides = [1, 1]} : vector<8x256xf32> to vector<8x64xf32>
    %976 = math.tanh %975 : vector<8x64xf32>
    %977 = vector.extract_strided_slice %974 {offsets = [0, 64], sizes = [8, 64], strides = [1, 1]} : vector<8x192xf32> to vector<8x64xf32>
    %978 = arith.mulf %977, %909 : vector<8x64xf32>
    %979 = vector.extract_strided_slice %974 {offsets = [0, 0], sizes = [8, 64], strides = [1, 1]} : vector<8x192xf32> to vector<8x64xf32>
    %980 = arith.mulf %979, %976 : vector<8x64xf32>
    %981 = arith.addf %978, %980 : vector<8x64xf32>
    %982 = vector.extract_strided_slice %974 {offsets = [0, 128], sizes = [8, 64], strides = [1, 1]} : vector<8x192xf32> to vector<8x64xf32>
    %983 = math.tanh %981 : vector<8x64xf32>
    %984 = arith.mulf %982, %983 : vector<8x64xf32>
    %985 = arith.truncf %984 : vector<8x64xf32> to vector<8x64xbf16>
    %c0_344 = arith.constant 0 : index
    %c0_345 = arith.constant 0 : index
    %986 = vector.load %arg7[%c0_344, %c0_345] : memref<64x256xbf16, #tpu.memory_space<vmem>>, vector<64x256xbf16>
    %cst_346 = arith.constant dense<0.000000e+00> : vector<8x256xf32>
    %987 = tpu.matmul %985, %986, %cst_346 {dimension_numbers = #tpu.dot_dimension_numbers<[1], [0], [0], [1], [0, 0, 1, 1], [], []>} : vector<8x64xbf16>, vector<64x256xbf16>, vector<8x256xf32> -> vector<8x256xf32>
    %988 = arith.addf %987, %968 : vector<8x256xf32>
    %989 = vector.extract_strided_slice %988 {offsets = [0, 0], sizes = [8, 192], strides = [1, 1]} : vector<8x256xf32> to vector<8x192xf32>
    %990 = arith.negf %989 : vector<8x192xf32>
    %991 = math.exp %990 : vector<8x192xf32>
    %cst_347 = arith.constant 1.000000e+00 : f32
    %992 = vector.broadcast %cst_347 : f32 to vector<8x192xf32>
    %993 = arith.addf %992, %991 : vector<8x192xf32>
    %994 = arith.divf %992, %993 : vector<8x192xf32>
    %995 = vector.extract_strided_slice %988 {offsets = [0, 192], sizes = [8, 64], strides = [1, 1]} : vector<8x256xf32> to vector<8x64xf32>
    %996 = math.tanh %995 : vector<8x64xf32>
    %997 = vector.extract_strided_slice %994 {offsets = [0, 64], sizes = [8, 64], strides = [1, 1]} : vector<8x192xf32> to vector<8x64xf32>
    %998 = arith.mulf %997, %929 : vector<8x64xf32>
    %999 = vector.extract_strided_slice %994 {offsets = [0, 0], sizes = [8, 64], strides = [1, 1]} : vector<8x192xf32> to vector<8x64xf32>
    %1000 = arith.mulf %999, %996 : vector<8x64xf32>
    %1001 = arith.addf %998, %1000 : vector<8x64xf32>
    %1002 = vector.extract_strided_slice %994 {offsets = [0, 128], sizes = [8, 64], strides = [1, 1]} : vector<8x192xf32> to vector<8x64xf32>
    %1003 = math.tanh %1001 : vector<8x64xf32>
    %1004 = arith.mulf %1002, %1003 : vector<8x64xf32>
    %1005 = arith.truncf %1004 : vector<8x64xf32> to vector<8x64xbf16>
    %c0_348 = arith.constant 0 : index
    %c0_349 = arith.constant 0 : index
    %1006 = vector.load %arg10[%c0_348, %c0_349] : memref<64x32xbf16, #tpu.memory_space<vmem>>, vector<64x32xbf16>
    %cst_350 = arith.constant dense<0.000000e+00> : vector<8x32xf32>
    %1007 = tpu.matmul %1005, %1006, %cst_350 {dimension_numbers = #tpu.dot_dimension_numbers<[1], [0], [0], [1], [0, 0, 1, 1], [], []>} : vector<8x64xbf16>, vector<64x32xbf16>, vector<8x32xf32> -> vector<8x32xf32>
    %1008 = arith.addf %1007, %23 : vector<8x32xf32>
    %c0_351 = arith.constant 0 : index
    %c416 = arith.constant 416 : index
    %1009 = vector.load %arg12[%c0_351, %c416] : memref<8x544xf32, #tpu.memory_space<vmem>>, vector<8x32xf32>
    tpu.vector_store %arg12[%c0_351, %c416], %1008 {strides = array<i32>} : memref<8x544xf32, #tpu.memory_space<vmem>>, vector<8x32xf32>,
    %1010 = tpu.bitcast %1008 : vector<8x32xf32> -> vector<8x32xi32>
    %c31_i32_352 = arith.constant 31 : i32
    %1011 = vector.broadcast %c31_i32_352 : i32 to vector<8x32xi32>
    %1012 = arith.shrsi %1010, %1011 : vector<8x32xi32>
    %c2147483647_i32_353 = arith.constant 2147483647 : i32
    %1013 = vector.broadcast %c2147483647_i32_353 : i32 to vector<8x32xi32>
    %1014 = arith.andi %1012, %1013 : vector<8x32xi32>
    %1015 = arith.xori %1010, %1014 : vector<8x32xi32>
    %c-32_i32_354 = arith.constant -32 : i32
    %1016 = vector.broadcast %c-32_i32_354 : i32 to vector<8x32xi32>
    %1017 = arith.andi %1015, %1016 : vector<8x32xi32>
    %c31_i32_355 = arith.constant 31 : i32
    %1018 = vector.broadcast %c31_i32_355 : i32 to vector<8x32xi32>
    %1019 = arith.subi %1018, %9 : vector<8x32xi32>
    %1020 = arith.ori %1017, %1019 : vector<8x32xi32>
    %cst_356 = arith.constant dense<-2147483648> : vector<8xi32>
    %1021 = vector.multi_reduction <maxsi>, %1020, %cst_356 [1] : vector<8x32xi32> to vector<8xi32>
    %1022 = vector.shape_cast %1021 : vector<8xi32> to vector<8x1xi32>
    %c31_i32_357 = arith.constant 31 : i32
    %1023 = vector.broadcast %c31_i32_357 : i32 to vector<8x1xi32>
    %1024 = arith.andi %1022, %1023 : vector<8x1xi32>
    %c31_i32_358 = arith.constant 31 : i32
    %1025 = vector.broadcast %c31_i32_358 : i32 to vector<8x1xi32>
    %1026 = arith.subi %1025, %1024 : vector<8x1xi32>
    %1027 = vector.broadcast %1026 : vector<8x1xi32> to vector<8x32xi32>
    %1028 = arith.cmpi eq, %9, %1027 : vector<8x32xi32>
    %1029 = arith.extui %1028 : vector<8x32xi1> to vector<8x32xi32>
    %1030 = arith.sitofp %1029 : vector<8x32xi32> to vector<8x32xf32>
    %1031 = arith.truncf %1030 : vector<8x32xf32> to vector<8x32xbf16>
    %c0_359 = arith.constant 0 : index
    %c0_360 = arith.constant 0 : index
    %1032 = vector.load %arg4[%c0_359, %c0_360] : memref<32x256xbf16, #tpu.memory_space<vmem>>, vector<32x256xbf16>
    %cst_361 = arith.constant dense<0.000000e+00> : vector<8x256xf32>
    %1033 = tpu.matmul %1031, %1032, %cst_361 {dimension_numbers = #tpu.dot_dimension_numbers<[1], [0], [0], [1], [0, 0, 1, 1], [], []>} : vector<8x32xbf16>, vector<32x256xbf16>, vector<8x256xf32> -> vector<8x256xf32>
    %c0_362 = arith.constant 0 : index
    %c0_363 = arith.constant 0 : index
    %1034 = vector.load %arg5[%c0_362, %c0_363] : memref<64x256xbf16, #tpu.memory_space<vmem>>, vector<64x256xbf16>
    %cst_364 = arith.constant dense<0.000000e+00> : vector<8x256xf32>
    %1035 = tpu.matmul %985, %1034, %cst_364 {dimension_numbers = #tpu.dot_dimension_numbers<[1], [0], [0], [1], [0, 0, 1, 1], [], []>} : vector<8x64xbf16>, vector<64x256xbf16>, vector<8x256xf32> -> vector<8x256xf32>
    %1036 = arith.addf %1035, %17 : vector<8x256xf32>
    %1037 = arith.addf %1033, %1036 : vector<8x256xf32>
    %c0_365 = arith.constant 0 : index
    %c0_366 = arith.constant 0 : index
    %1038 = vector.load %arg8[%c0_365, %c0_366] : memref<64x256xbf16, #tpu.memory_space<vmem>>, vector<64x256xbf16>
    %cst_367 = arith.constant dense<0.000000e+00> : vector<8x256xf32>
    %1039 = tpu.matmul %1005, %1038, %cst_367 {dimension_numbers = #tpu.dot_dimension_numbers<[1], [0], [0], [1], [0, 0, 1, 1], [], []>} : vector<8x64xbf16>, vector<64x256xbf16>, vector<8x256xf32> -> vector<8x256xf32>
    %1040 = arith.addf %1039, %20 : vector<8x256xf32>
    %1041 = vector.extract_strided_slice %1037 {offsets = [0, 0], sizes = [8, 192], strides = [1, 1]} : vector<8x256xf32> to vector<8x192xf32>
    %1042 = arith.negf %1041 : vector<8x192xf32>
    %1043 = math.exp %1042 : vector<8x192xf32>
    %cst_368 = arith.constant 1.000000e+00 : f32
    %1044 = vector.broadcast %cst_368 : f32 to vector<8x192xf32>
    %1045 = arith.addf %1044, %1043 : vector<8x192xf32>
    %1046 = arith.divf %1044, %1045 : vector<8x192xf32>
    %1047 = vector.extract_strided_slice %1037 {offsets = [0, 192], sizes = [8, 64], strides = [1, 1]} : vector<8x256xf32> to vector<8x64xf32>
    %1048 = math.tanh %1047 : vector<8x64xf32>
    %1049 = vector.extract_strided_slice %1046 {offsets = [0, 64], sizes = [8, 64], strides = [1, 1]} : vector<8x192xf32> to vector<8x64xf32>
    %1050 = arith.mulf %1049, %981 : vector<8x64xf32>
    %1051 = vector.extract_strided_slice %1046 {offsets = [0, 0], sizes = [8, 64], strides = [1, 1]} : vector<8x192xf32> to vector<8x64xf32>
    %1052 = arith.mulf %1051, %1048 : vector<8x64xf32>
    %1053 = arith.addf %1050, %1052 : vector<8x64xf32>
    %1054 = vector.extract_strided_slice %1046 {offsets = [0, 128], sizes = [8, 64], strides = [1, 1]} : vector<8x192xf32> to vector<8x64xf32>
    %1055 = math.tanh %1053 : vector<8x64xf32>
    %1056 = arith.mulf %1054, %1055 : vector<8x64xf32>
    %1057 = arith.truncf %1056 : vector<8x64xf32> to vector<8x64xbf16>
    %c0_369 = arith.constant 0 : index
    %c0_370 = arith.constant 0 : index
    %1058 = vector.load %arg7[%c0_369, %c0_370] : memref<64x256xbf16, #tpu.memory_space<vmem>>, vector<64x256xbf16>
    %cst_371 = arith.constant dense<0.000000e+00> : vector<8x256xf32>
    %1059 = tpu.matmul %1057, %1058, %cst_371 {dimension_numbers = #tpu.dot_dimension_numbers<[1], [0], [0], [1], [0, 0, 1, 1], [], []>} : vector<8x64xbf16>, vector<64x256xbf16>, vector<8x256xf32> -> vector<8x256xf32>
    %1060 = arith.addf %1059, %1040 : vector<8x256xf32>
    %1061 = vector.extract_strided_slice %1060 {offsets = [0, 0], sizes = [8, 192], strides = [1, 1]} : vector<8x256xf32> to vector<8x192xf32>
    %1062 = arith.negf %1061 : vector<8x192xf32>
    %1063 = math.exp %1062 : vector<8x192xf32>
    %cst_372 = arith.constant 1.000000e+00 : f32
    %1064 = vector.broadcast %cst_372 : f32 to vector<8x192xf32>
    %1065 = arith.addf %1064, %1063 : vector<8x192xf32>
    %1066 = arith.divf %1064, %1065 : vector<8x192xf32>
    %1067 = vector.extract_strided_slice %1060 {offsets = [0, 192], sizes = [8, 64], strides = [1, 1]} : vector<8x256xf32> to vector<8x64xf32>
    %1068 = math.tanh %1067 : vector<8x64xf32>
    %1069 = vector.extract_strided_slice %1066 {offsets = [0, 64], sizes = [8, 64], strides = [1, 1]} : vector<8x192xf32> to vector<8x64xf32>
    %1070 = arith.mulf %1069, %1001 : vector<8x64xf32>
    %1071 = vector.extract_strided_slice %1066 {offsets = [0, 0], sizes = [8, 64], strides = [1, 1]} : vector<8x192xf32> to vector<8x64xf32>
    %1072 = arith.mulf %1071, %1068 : vector<8x64xf32>
    %1073 = arith.addf %1070, %1072 : vector<8x64xf32>
    %1074 = vector.extract_strided_slice %1066 {offsets = [0, 128], sizes = [8, 64], strides = [1, 1]} : vector<8x192xf32> to vector<8x64xf32>
    %1075 = math.tanh %1073 : vector<8x64xf32>
    %1076 = arith.mulf %1074, %1075 : vector<8x64xf32>
    %1077 = arith.truncf %1076 : vector<8x64xf32> to vector<8x64xbf16>
    %c0_373 = arith.constant 0 : index
    %c0_374 = arith.constant 0 : index
    %1078 = vector.load %arg10[%c0_373, %c0_374] : memref<64x32xbf16, #tpu.memory_space<vmem>>, vector<64x32xbf16>
    %cst_375 = arith.constant dense<0.000000e+00> : vector<8x32xf32>
    %1079 = tpu.matmul %1077, %1078, %cst_375 {dimension_numbers = #tpu.dot_dimension_numbers<[1], [0], [0], [1], [0, 0, 1, 1], [], []>} : vector<8x64xbf16>, vector<64x32xbf16>, vector<8x32xf32> -> vector<8x32xf32>
    %1080 = arith.addf %1079, %23 : vector<8x32xf32>
    %c0_376 = arith.constant 0 : index
    %c448 = arith.constant 448 : index
    %1081 = vector.load %arg12[%c0_376, %c448] : memref<8x544xf32, #tpu.memory_space<vmem>>, vector<8x32xf32>
    tpu.vector_store %arg12[%c0_376, %c448], %1080 {strides = array<i32>} : memref<8x544xf32, #tpu.memory_space<vmem>>, vector<8x32xf32>,
    %1082 = tpu.bitcast %1080 : vector<8x32xf32> -> vector<8x32xi32>
    %c31_i32_377 = arith.constant 31 : i32
    %1083 = vector.broadcast %c31_i32_377 : i32 to vector<8x32xi32>
    %1084 = arith.shrsi %1082, %1083 : vector<8x32xi32>
    %c2147483647_i32_378 = arith.constant 2147483647 : i32
    %1085 = vector.broadcast %c2147483647_i32_378 : i32 to vector<8x32xi32>
    %1086 = arith.andi %1084, %1085 : vector<8x32xi32>
    %1087 = arith.xori %1082, %1086 : vector<8x32xi32>
    %c-32_i32_379 = arith.constant -32 : i32
    %1088 = vector.broadcast %c-32_i32_379 : i32 to vector<8x32xi32>
    %1089 = arith.andi %1087, %1088 : vector<8x32xi32>
    %c31_i32_380 = arith.constant 31 : i32
    %1090 = vector.broadcast %c31_i32_380 : i32 to vector<8x32xi32>
    %1091 = arith.subi %1090, %9 : vector<8x32xi32>
    %1092 = arith.ori %1089, %1091 : vector<8x32xi32>
    %cst_381 = arith.constant dense<-2147483648> : vector<8xi32>
    %1093 = vector.multi_reduction <maxsi>, %1092, %cst_381 [1] : vector<8x32xi32> to vector<8xi32>
    %1094 = vector.shape_cast %1093 : vector<8xi32> to vector<8x1xi32>
    %c31_i32_382 = arith.constant 31 : i32
    %1095 = vector.broadcast %c31_i32_382 : i32 to vector<8x1xi32>
    %1096 = arith.andi %1094, %1095 : vector<8x1xi32>
    %c31_i32_383 = arith.constant 31 : i32
    %1097 = vector.broadcast %c31_i32_383 : i32 to vector<8x1xi32>
    %1098 = arith.subi %1097, %1096 : vector<8x1xi32>
    %1099 = vector.broadcast %1098 : vector<8x1xi32> to vector<8x32xi32>
    %1100 = arith.cmpi eq, %9, %1099 : vector<8x32xi32>
    %1101 = arith.extui %1100 : vector<8x32xi1> to vector<8x32xi32>
    %1102 = arith.sitofp %1101 : vector<8x32xi32> to vector<8x32xf32>
    %1103 = arith.truncf %1102 : vector<8x32xf32> to vector<8x32xbf16>
    %c0_384 = arith.constant 0 : index
    %c0_385 = arith.constant 0 : index
    %1104 = vector.load %arg4[%c0_384, %c0_385] : memref<32x256xbf16, #tpu.memory_space<vmem>>, vector<32x256xbf16>
    %cst_386 = arith.constant dense<0.000000e+00> : vector<8x256xf32>
    %1105 = tpu.matmul %1103, %1104, %cst_386 {dimension_numbers = #tpu.dot_dimension_numbers<[1], [0], [0], [1], [0, 0, 1, 1], [], []>} : vector<8x32xbf16>, vector<32x256xbf16>, vector<8x256xf32> -> vector<8x256xf32>
    %c0_387 = arith.constant 0 : index
    %c0_388 = arith.constant 0 : index
    %1106 = vector.load %arg5[%c0_387, %c0_388] : memref<64x256xbf16, #tpu.memory_space<vmem>>, vector<64x256xbf16>
    %cst_389 = arith.constant dense<0.000000e+00> : vector<8x256xf32>
    %1107 = tpu.matmul %1057, %1106, %cst_389 {dimension_numbers = #tpu.dot_dimension_numbers<[1], [0], [0], [1], [0, 0, 1, 1], [], []>} : vector<8x64xbf16>, vector<64x256xbf16>, vector<8x256xf32> -> vector<8x256xf32>
    %1108 = arith.addf %1107, %17 : vector<8x256xf32>
    %1109 = arith.addf %1105, %1108 : vector<8x256xf32>
    %c0_390 = arith.constant 0 : index
    %c0_391 = arith.constant 0 : index
    %1110 = vector.load %arg8[%c0_390, %c0_391] : memref<64x256xbf16, #tpu.memory_space<vmem>>, vector<64x256xbf16>
    %cst_392 = arith.constant dense<0.000000e+00> : vector<8x256xf32>
    %1111 = tpu.matmul %1077, %1110, %cst_392 {dimension_numbers = #tpu.dot_dimension_numbers<[1], [0], [0], [1], [0, 0, 1, 1], [], []>} : vector<8x64xbf16>, vector<64x256xbf16>, vector<8x256xf32> -> vector<8x256xf32>
    %1112 = arith.addf %1111, %20 : vector<8x256xf32>
    %1113 = vector.extract_strided_slice %1109 {offsets = [0, 0], sizes = [8, 192], strides = [1, 1]} : vector<8x256xf32> to vector<8x192xf32>
    %1114 = arith.negf %1113 : vector<8x192xf32>
    %1115 = math.exp %1114 : vector<8x192xf32>
    %cst_393 = arith.constant 1.000000e+00 : f32
    %1116 = vector.broadcast %cst_393 : f32 to vector<8x192xf32>
    %1117 = arith.addf %1116, %1115 : vector<8x192xf32>
    %1118 = arith.divf %1116, %1117 : vector<8x192xf32>
    %1119 = vector.extract_strided_slice %1109 {offsets = [0, 192], sizes = [8, 64], strides = [1, 1]} : vector<8x256xf32> to vector<8x64xf32>
    %1120 = math.tanh %1119 : vector<8x64xf32>
    %1121 = vector.extract_strided_slice %1118 {offsets = [0, 64], sizes = [8, 64], strides = [1, 1]} : vector<8x192xf32> to vector<8x64xf32>
    %1122 = arith.mulf %1121, %1053 : vector<8x64xf32>
    %1123 = vector.extract_strided_slice %1118 {offsets = [0, 0], sizes = [8, 64], strides = [1, 1]} : vector<8x192xf32> to vector<8x64xf32>
    %1124 = arith.mulf %1123, %1120 : vector<8x64xf32>
    %1125 = arith.addf %1122, %1124 : vector<8x64xf32>
    %1126 = vector.extract_strided_slice %1118 {offsets = [0, 128], sizes = [8, 64], strides = [1, 1]} : vector<8x192xf32> to vector<8x64xf32>
    %1127 = math.tanh %1125 : vector<8x64xf32>
    %1128 = arith.mulf %1126, %1127 : vector<8x64xf32>
    %1129 = arith.truncf %1128 : vector<8x64xf32> to vector<8x64xbf16>
    %c0_394 = arith.constant 0 : index
    %c0_395 = arith.constant 0 : index
    %1130 = vector.load %arg7[%c0_394, %c0_395] : memref<64x256xbf16, #tpu.memory_space<vmem>>, vector<64x256xbf16>
    %cst_396 = arith.constant dense<0.000000e+00> : vector<8x256xf32>
    %1131 = tpu.matmul %1129, %1130, %cst_396 {dimension_numbers = #tpu.dot_dimension_numbers<[1], [0], [0], [1], [0, 0, 1, 1], [], []>} : vector<8x64xbf16>, vector<64x256xbf16>, vector<8x256xf32> -> vector<8x256xf32>
    %1132 = arith.addf %1131, %1112 : vector<8x256xf32>
    %1133 = vector.extract_strided_slice %1132 {offsets = [0, 0], sizes = [8, 192], strides = [1, 1]} : vector<8x256xf32> to vector<8x192xf32>
    %1134 = arith.negf %1133 : vector<8x192xf32>
    %1135 = math.exp %1134 : vector<8x192xf32>
    %cst_397 = arith.constant 1.000000e+00 : f32
    %1136 = vector.broadcast %cst_397 : f32 to vector<8x192xf32>
    %1137 = arith.addf %1136, %1135 : vector<8x192xf32>
    %1138 = arith.divf %1136, %1137 : vector<8x192xf32>
    %1139 = vector.extract_strided_slice %1132 {offsets = [0, 192], sizes = [8, 64], strides = [1, 1]} : vector<8x256xf32> to vector<8x64xf32>
    %1140 = math.tanh %1139 : vector<8x64xf32>
    %1141 = vector.extract_strided_slice %1138 {offsets = [0, 64], sizes = [8, 64], strides = [1, 1]} : vector<8x192xf32> to vector<8x64xf32>
    %1142 = arith.mulf %1141, %1073 : vector<8x64xf32>
    %1143 = vector.extract_strided_slice %1138 {offsets = [0, 0], sizes = [8, 64], strides = [1, 1]} : vector<8x192xf32> to vector<8x64xf32>
    %1144 = arith.mulf %1143, %1140 : vector<8x64xf32>
    %1145 = arith.addf %1142, %1144 : vector<8x64xf32>
    %1146 = vector.extract_strided_slice %1138 {offsets = [0, 128], sizes = [8, 64], strides = [1, 1]} : vector<8x192xf32> to vector<8x64xf32>
    %1147 = math.tanh %1145 : vector<8x64xf32>
    %1148 = arith.mulf %1146, %1147 : vector<8x64xf32>
    %1149 = arith.truncf %1148 : vector<8x64xf32> to vector<8x64xbf16>
    %c0_398 = arith.constant 0 : index
    %c0_399 = arith.constant 0 : index
    %1150 = vector.load %arg10[%c0_398, %c0_399] : memref<64x32xbf16, #tpu.memory_space<vmem>>, vector<64x32xbf16>
    %cst_400 = arith.constant dense<0.000000e+00> : vector<8x32xf32>
    %1151 = tpu.matmul %1149, %1150, %cst_400 {dimension_numbers = #tpu.dot_dimension_numbers<[1], [0], [0], [1], [0, 0, 1, 1], [], []>} : vector<8x64xbf16>, vector<64x32xbf16>, vector<8x32xf32> -> vector<8x32xf32>
    %1152 = arith.addf %1151, %23 : vector<8x32xf32>
    %c0_401 = arith.constant 0 : index
    %c480 = arith.constant 480 : index
    %1153 = vector.load %arg12[%c0_401, %c480] : memref<8x544xf32, #tpu.memory_space<vmem>>, vector<8x32xf32>
    tpu.vector_store %arg12[%c0_401, %c480], %1152 {strides = array<i32>} : memref<8x544xf32, #tpu.memory_space<vmem>>, vector<8x32xf32>,
    %1154 = tpu.bitcast %1152 : vector<8x32xf32> -> vector<8x32xi32>
    %c31_i32_402 = arith.constant 31 : i32
    %1155 = vector.broadcast %c31_i32_402 : i32 to vector<8x32xi32>
    %1156 = arith.shrsi %1154, %1155 : vector<8x32xi32>
    %c2147483647_i32_403 = arith.constant 2147483647 : i32
    %1157 = vector.broadcast %c2147483647_i32_403 : i32 to vector<8x32xi32>
    %1158 = arith.andi %1156, %1157 : vector<8x32xi32>
    %1159 = arith.xori %1154, %1158 : vector<8x32xi32>
    %c-32_i32_404 = arith.constant -32 : i32
    %1160 = vector.broadcast %c-32_i32_404 : i32 to vector<8x32xi32>
    %1161 = arith.andi %1159, %1160 : vector<8x32xi32>
    %c31_i32_405 = arith.constant 31 : i32
    %1162 = vector.broadcast %c31_i32_405 : i32 to vector<8x32xi32>
    %1163 = arith.subi %1162, %9 : vector<8x32xi32>
    %1164 = arith.ori %1161, %1163 : vector<8x32xi32>
    %cst_406 = arith.constant dense<-2147483648> : vector<8xi32>
    %1165 = vector.multi_reduction <maxsi>, %1164, %cst_406 [1] : vector<8x32xi32> to vector<8xi32>
    %1166 = vector.shape_cast %1165 : vector<8xi32> to vector<8x1xi32>
    %c31_i32_407 = arith.constant 31 : i32
    %1167 = vector.broadcast %c31_i32_407 : i32 to vector<8x1xi32>
    %1168 = arith.andi %1166, %1167 : vector<8x1xi32>
    %c31_i32_408 = arith.constant 31 : i32
    %1169 = vector.broadcast %c31_i32_408 : i32 to vector<8x1xi32>
    %1170 = arith.subi %1169, %1168 : vector<8x1xi32>
    %1171 = vector.broadcast %1170 : vector<8x1xi32> to vector<8x32xi32>
    %1172 = arith.cmpi eq, %9, %1171 : vector<8x32xi32>
    %1173 = arith.extui %1172 : vector<8x32xi1> to vector<8x32xi32>
    %1174 = arith.sitofp %1173 : vector<8x32xi32> to vector<8x32xf32>
    %1175 = arith.truncf %1174 : vector<8x32xf32> to vector<8x32xbf16>
    %c0_409 = arith.constant 0 : index
    %c0_410 = arith.constant 0 : index
    %1176 = vector.load %arg4[%c0_409, %c0_410] : memref<32x256xbf16, #tpu.memory_space<vmem>>, vector<32x256xbf16>
    %cst_411 = arith.constant dense<0.000000e+00> : vector<8x256xf32>
    %1177 = tpu.matmul %1175, %1176, %cst_411 {dimension_numbers = #tpu.dot_dimension_numbers<[1], [0], [0], [1], [0, 0, 1, 1], [], []>} : vector<8x32xbf16>, vector<32x256xbf16>, vector<8x256xf32> -> vector<8x256xf32>
    %c0_412 = arith.constant 0 : index
    %c0_413 = arith.constant 0 : index
    %1178 = vector.load %arg5[%c0_412, %c0_413] : memref<64x256xbf16, #tpu.memory_space<vmem>>, vector<64x256xbf16>
    %cst_414 = arith.constant dense<0.000000e+00> : vector<8x256xf32>
    %1179 = tpu.matmul %1129, %1178, %cst_414 {dimension_numbers = #tpu.dot_dimension_numbers<[1], [0], [0], [1], [0, 0, 1, 1], [], []>} : vector<8x64xbf16>, vector<64x256xbf16>, vector<8x256xf32> -> vector<8x256xf32>
    %1180 = arith.addf %1179, %17 : vector<8x256xf32>
    %1181 = arith.addf %1177, %1180 : vector<8x256xf32>
    %c0_415 = arith.constant 0 : index
    %c0_416 = arith.constant 0 : index
    %1182 = vector.load %arg8[%c0_415, %c0_416] : memref<64x256xbf16, #tpu.memory_space<vmem>>, vector<64x256xbf16>
    %cst_417 = arith.constant dense<0.000000e+00> : vector<8x256xf32>
    %1183 = tpu.matmul %1149, %1182, %cst_417 {dimension_numbers = #tpu.dot_dimension_numbers<[1], [0], [0], [1], [0, 0, 1, 1], [], []>} : vector<8x64xbf16>, vector<64x256xbf16>, vector<8x256xf32> -> vector<8x256xf32>
    %1184 = arith.addf %1183, %20 : vector<8x256xf32>
    %1185 = vector.extract_strided_slice %1181 {offsets = [0, 0], sizes = [8, 192], strides = [1, 1]} : vector<8x256xf32> to vector<8x192xf32>
    %1186 = arith.negf %1185 : vector<8x192xf32>
    %1187 = math.exp %1186 : vector<8x192xf32>
    %cst_418 = arith.constant 1.000000e+00 : f32
    %1188 = vector.broadcast %cst_418 : f32 to vector<8x192xf32>
    %1189 = arith.addf %1188, %1187 : vector<8x192xf32>
    %1190 = arith.divf %1188, %1189 : vector<8x192xf32>
    %1191 = vector.extract_strided_slice %1181 {offsets = [0, 192], sizes = [8, 64], strides = [1, 1]} : vector<8x256xf32> to vector<8x64xf32>
    %1192 = math.tanh %1191 : vector<8x64xf32>
    %1193 = vector.extract_strided_slice %1190 {offsets = [0, 64], sizes = [8, 64], strides = [1, 1]} : vector<8x192xf32> to vector<8x64xf32>
    %1194 = arith.mulf %1193, %1125 : vector<8x64xf32>
    %1195 = vector.extract_strided_slice %1190 {offsets = [0, 0], sizes = [8, 64], strides = [1, 1]} : vector<8x192xf32> to vector<8x64xf32>
    %1196 = arith.mulf %1195, %1192 : vector<8x64xf32>
    %1197 = arith.addf %1194, %1196 : vector<8x64xf32>
    %1198 = vector.extract_strided_slice %1190 {offsets = [0, 128], sizes = [8, 64], strides = [1, 1]} : vector<8x192xf32> to vector<8x64xf32>
    %1199 = math.tanh %1197 : vector<8x64xf32>
    %1200 = arith.mulf %1198, %1199 : vector<8x64xf32>
    %1201 = arith.truncf %1200 : vector<8x64xf32> to vector<8x64xbf16>
    %c0_419 = arith.constant 0 : index
    %c0_420 = arith.constant 0 : index
    %1202 = vector.load %arg7[%c0_419, %c0_420] : memref<64x256xbf16, #tpu.memory_space<vmem>>, vector<64x256xbf16>
    %cst_421 = arith.constant dense<0.000000e+00> : vector<8x256xf32>
    %1203 = tpu.matmul %1201, %1202, %cst_421 {dimension_numbers = #tpu.dot_dimension_numbers<[1], [0], [0], [1], [0, 0, 1, 1], [], []>} : vector<8x64xbf16>, vector<64x256xbf16>, vector<8x256xf32> -> vector<8x256xf32>
    %1204 = arith.addf %1203, %1184 : vector<8x256xf32>
    %1205 = vector.extract_strided_slice %1204 {offsets = [0, 0], sizes = [8, 192], strides = [1, 1]} : vector<8x256xf32> to vector<8x192xf32>
    %1206 = arith.negf %1205 : vector<8x192xf32>
    %1207 = math.exp %1206 : vector<8x192xf32>
    %cst_422 = arith.constant 1.000000e+00 : f32
    %1208 = vector.broadcast %cst_422 : f32 to vector<8x192xf32>
    %1209 = arith.addf %1208, %1207 : vector<8x192xf32>
    %1210 = arith.divf %1208, %1209 : vector<8x192xf32>
    %1211 = vector.extract_strided_slice %1204 {offsets = [0, 192], sizes = [8, 64], strides = [1, 1]} : vector<8x256xf32> to vector<8x64xf32>
    %1212 = math.tanh %1211 : vector<8x64xf32>
    %1213 = vector.extract_strided_slice %1210 {offsets = [0, 64], sizes = [8, 64], strides = [1, 1]} : vector<8x192xf32> to vector<8x64xf32>
    %1214 = arith.mulf %1213, %1145 : vector<8x64xf32>
    %1215 = vector.extract_strided_slice %1210 {offsets = [0, 0], sizes = [8, 64], strides = [1, 1]} : vector<8x192xf32> to vector<8x64xf32>
    %1216 = arith.mulf %1215, %1212 : vector<8x64xf32>
    %1217 = arith.addf %1214, %1216 : vector<8x64xf32>
    %1218 = vector.extract_strided_slice %1210 {offsets = [0, 128], sizes = [8, 64], strides = [1, 1]} : vector<8x192xf32> to vector<8x64xf32>
    %1219 = math.tanh %1217 : vector<8x64xf32>
    %1220 = arith.mulf %1218, %1219 : vector<8x64xf32>
    %1221 = arith.truncf %1220 : vector<8x64xf32> to vector<8x64xbf16>
    %c0_423 = arith.constant 0 : index
    %c0_424 = arith.constant 0 : index
    %1222 = vector.load %arg10[%c0_423, %c0_424] : memref<64x32xbf16, #tpu.memory_space<vmem>>, vector<64x32xbf16>
    %cst_425 = arith.constant dense<0.000000e+00> : vector<8x32xf32>
    %1223 = tpu.matmul %1221, %1222, %cst_425 {dimension_numbers = #tpu.dot_dimension_numbers<[1], [0], [0], [1], [0, 0, 1, 1], [], []>} : vector<8x64xbf16>, vector<64x32xbf16>, vector<8x32xf32> -> vector<8x32xf32>
    %1224 = arith.addf %1223, %23 : vector<8x32xf32>
    %c0_426 = arith.constant 0 : index
    %c512 = arith.constant 512 : index
    %1225 = vector.load %arg12[%c0_426, %c512] : memref<8x544xf32, #tpu.memory_space<vmem>>, vector<8x32xf32>
    tpu.vector_store %arg12[%c0_426, %c512], %1224 {strides = array<i32>} : memref<8x544xf32, #tpu.memory_space<vmem>>, vector<8x32xf32>,
    %1226 = tpu.concatenate %1200, %1220 in 1 : vector<8x64xf32>, vector<8x64xf32> -> vector<8x128xf32>
    %c0_427 = arith.constant 0 : index
    %c0_428 = arith.constant 0 : index
    %1227 = vector.load %arg13[%c0_427, %c0_428] : memref<8x128xf32, #tpu.memory_space<vmem>>, vector<8x128xf32>
    tpu.vector_store %arg13[%c0_427, %c0_428], %1226 {strides = array<i32>} : memref<8x128xf32, #tpu.memory_space<vmem>>, vector<8x128xf32>,
    %1228 = tpu.concatenate %1197, %1217 in 1 : vector<8x64xf32>, vector<8x64xf32> -> vector<8x128xf32>
    %c0_429 = arith.constant 0 : index
    %c0_430 = arith.constant 0 : index
    %1229 = vector.load %arg14[%c0_429, %c0_430] : memref<8x128xf32, #tpu.memory_space<vmem>>, vector<8x128xf32>
    tpu.vector_store %arg14[%c0_429, %c0_430], %1228 {strides = array<i32>} : memref<8x128xf32, #tpu.memory_space<vmem>>, vector<8x128xf32>,
    return
  }
  func.func @transform_0(%arg0: i32) -> (i32, i32) {
    %c0_i32 = arith.constant 0 : i32
    %c0_i32_0 = arith.constant 0 : i32
    %c0_i32_1 = arith.constant 0 : i32
    return %c0_i32, %c0_i32_0 : i32, i32
  }
  func.func @transform_1(%arg0: i32) -> (i32, i32) {
    %c0_i32 = arith.constant 0 : i32
    %c0_i32_0 = arith.constant 0 : i32
    %c0_i32_1 = arith.constant 0 : i32
    return %c0_i32, %c0_i32_0 : i32, i32
  }
  func.func @transform_2(%arg0: i32) -> (i32, i32) {
    %c0_i32 = arith.constant 0 : i32
    %c0_i32_0 = arith.constant 0 : i32
    %c0_i32_1 = arith.constant 0 : i32
    return %c0_i32, %c0_i32_0 : i32, i32
  }
  func.func @transform_3(%arg0: i32) -> (i32, i32) {
    %c0_i32 = arith.constant 0 : i32
    %c0_i32_0 = arith.constant 0 : i32
    %c0_i32_1 = arith.constant 0 : i32
    return %c0_i32, %c0_i32_0 : i32, i32
  }
  func.func @transform_4(%arg0: i32) -> (i32, i32) {
    %c0_i32 = arith.constant 0 : i32
    %c0_i32_0 = arith.constant 0 : i32
    %c0_i32_1 = arith.constant 0 : i32
    return %c0_i32, %c0_i32_0 : i32, i32
  }
  func.func @transform_5(%arg0: i32) -> (i32, i32) {
    %c0_i32 = arith.constant 0 : i32
    %c0_i32_0 = arith.constant 0 : i32
    %c0_i32_1 = arith.constant 0 : i32
    return %c0_i32, %c0_i32_0 : i32, i32
  }
  func.func @transform_6(%arg0: i32) -> (i32, i32) {
    %c0_i32 = arith.constant 0 : i32
    %c0_i32_0 = arith.constant 0 : i32
    %c0_i32_1 = arith.constant 0 : i32
    return %c0_i32, %c0_i32_0 : i32, i32
  }
  func.func @transform_7(%arg0: i32) -> (i32, i32) {
    %c0_i32 = arith.constant 0 : i32
    %c0_i32_0 = arith.constant 0 : i32
    %c0_i32_1 = arith.constant 0 : i32
    return %c0_i32, %c0_i32_0 : i32, i32
  }
  func.func @transform_8(%arg0: i32) -> (i32, i32) {
    %c0_i32 = arith.constant 0 : i32
    %c0_i32_0 = arith.constant 0 : i32
    %c0_i32_1 = arith.constant 0 : i32
    return %c0_i32, %c0_i32_0 : i32, i32
  }
  func.func @transform_9(%arg0: i32) -> (i32, i32) {
    %c0_i32 = arith.constant 0 : i32
    %c0_i32_0 = arith.constant 0 : i32
    %c0_i32_1 = arith.constant 0 : i32
    return %c0_i32, %c0_i32_0 : i32, i32
  }
  func.func @transform_10(%arg0: i32) -> (i32, i32) {
    %c0_i32 = arith.constant 0 : i32
    %c0_i32_0 = arith.constant 0 : i32
    %c0_i32_1 = arith.constant 0 : i32
    return %c0_i32, %c0_i32_0 : i32, i32
  }
  func.func @transform_11(%arg0: i32) -> (i32, i32) {
    %c0_i32 = arith.constant 0 : i32
    %c0_i32_0 = arith.constant 0 : i32
    %c0_i32_1 = arith.constant 0 : i32
    return %c0_i32, %c0_i32_0 : i32, i32
  }
  func.func @transform_12(%arg0: i32) -> (i32, i32) {
    %c0_i32 = arith.constant 0 : i32
    %c0_i32_0 = arith.constant 0 : i32
    %c0_i32_1 = arith.constant 0 : i32
    return %c0_i32, %c0_i32_0 : i32, i32
  }
  func.func @transform_13(%arg0: i32) -> (i32, i32) {
    %c0_i32 = arith.constant 0 : i32
    %c0_i32_0 = arith.constant 0 : i32
    %c0_i32_1 = arith.constant 0 : i32
    return %c0_i32, %c0_i32_0 : i32, i32
  }
}

</mosaic_0001>

<llo_original>
// kernel: tpu_custom_call.1
$region0: #{tpu_custom_call.1}
  #allocation0 [shape = 'u32[]', space=smem, size = 0x4, offset = 0x4, fixed_abs, tag = 'smem constant byte address 0x4 - core index']
  #allocation1 [shape = 'u32[72,128]{1,0:T(1,128)}', space=vmem, size = 0x9000, scoped, tag = 'internal scratch']
  %s0 = inlined_call_operand.vmem [shape: f32[8,576], index: 0, kind: input, shape index: {}]
  %s1 = inlined_call_operand.vmem [shape: f32[576,32], index: 1, kind: input, shape index: {}]
  %s2 = inlined_call_operand.vmem [shape: f32[1,32], index: 2, kind: input, shape index: {}]
  %s3 = inlined_call_operand.vmem [shape: bf16[32,256], index: 3, kind: input, shape index: {}]
  %s4 = inlined_call_operand.vmem [shape: bf16[64,256], index: 4, kind: input, shape index: {}]
  %s5 = inlined_call_operand.vmem [shape: f32[1,256], index: 5, kind: input, shape index: {}]
  %s6 = inlined_call_operand.vmem [shape: bf16[64,256], index: 6, kind: input, shape index: {}]
  %s7 = inlined_call_operand.vmem [shape: bf16[64,256], index: 7, kind: input, shape index: {}]
  %s8 = inlined_call_operand.vmem [shape: f32[1,256], index: 8, kind: input, shape index: {}]
  %s9 = inlined_call_operand.vmem [shape: bf16[64,32], index: 9, kind: input, shape index: {}]
  %s10 = inlined_call_operand.vmem [shape: f32[1,32], index: 10, kind: input, shape index: {}]
  %s11 = inlined_call_operand.hbm [shape: f32[8,544], index: 11, kind: output, shape index: {0}]
  %s12 = inlined_call_operand.hbm [shape: f32[8,128], index: 12, kind: output, shape index: {1}]
  %s13 = inlined_call_operand.hbm [shape: f32[8,128], index: 13, kind: output, shape index: {2}]
  %14 = xla_tuple %s11, %s12, %s13
  %s15 = sld [smem:[#allocation0]]
  $region70: #{tpu_custom_call.1} parent=0
    _
  %s17 = ssub.s32 1, %s15
  %s18 = scalar_select 0, %s17, %s15
  $region1: #{tpu_custom_call.1} parent=0
    #allocation2 [shape = 'u8[20480]{0}', space=vmem, size = 0x5000, scoped, tag = 'output window, operand 0, single buffered']
    #allocation3 [shape = 's32[1]{0}', space=sflag, size = 0x4, scoped, tag = 'scoped memory for tpu_custom_call.1']
    #allocation4 [shape = 'u8[4096]{0}', space=vmem, size = 0x1000, scoped, tag = 'output window, operand 1, single buffered']
    #allocation5 [shape = 's32[1]{0}', space=sflag, size = 0x4, scoped, tag = 'scoped memory for tpu_custom_call.1']
    #allocation6 [shape = 'u8[4096]{0}', space=vmem, size = 0x1000, scoped, tag = 'output window, operand 2, single buffered']
    %19 = vsyncpa [#allocation3], 0
    %20 = vsyncpa [#allocation5], 0
    // Predicated region
    $region2: #{tpu_custom_call.1} parent=1 // pred_check
      _
    $region3: #{tpu_custom_call.1} parent=1 // pred_check_branch
      %22 = sbr.rel (0) target = $region5
    $region4: #{tpu_custom_call.1} parent=1 // pred_region
      _
    $region5: #{tpu_custom_call.1} parent=1 // pred_fallthru
      _
    // Predicated region
    $region6: #{tpu_custom_call.1} parent=1 // pred_check
      _
    $region7: #{tpu_custom_call.1} parent=1 // pred_check_branch
      %24 = sbr.rel (0) target = $region9
    $region8: #{tpu_custom_call.1} parent=1 // pred_region
      _
    $region9: #{tpu_custom_call.1} parent=1 // pred_fallthru
      _
    // Predicated region
    $region10: #{tpu_custom_call.1} parent=1 // pred_check
      _
    $region11: #{tpu_custom_call.1} parent=1 // pred_check_branch
      %26 = sbr.rel (0) target = $region13
    $region12: #{tpu_custom_call.1} parent=1 // pred_region
      _
    $region13: #{tpu_custom_call.1} parent=1 // pred_fallthru
      _
    // Predicated region
    $region14: #{tpu_custom_call.1} parent=1 // pred_check
      _
    $region15: #{tpu_custom_call.1} parent=1 // pred_check_branch
      %28 = sbr.rel (0) target = $region17
    $region16: #{tpu_custom_call.1} parent=1 // pred_region
      _
    $region17: #{tpu_custom_call.1} parent=1 // pred_fallthru
      _
    // Predicated region
    $region18: #{tpu_custom_call.1} parent=1 // pred_check
      _
    $region19: #{tpu_custom_call.1} parent=1 // pred_check_branch
      %30 = sbr.rel (0) target = $region21
    $region20: #{tpu_custom_call.1} parent=1 // pred_region
      _
    $region21: #{tpu_custom_call.1} parent=1 // pred_fallthru
      _
    // Predicated region
    $region22: #{tpu_custom_call.1} parent=1 // pred_check
      _
    $region23: #{tpu_custom_call.1} parent=1 // pred_check_branch
      %32 = sbr.rel (0) target = $region25
    $region24: #{tpu_custom_call.1} parent=1 // pred_region
      _
    $region25: #{tpu_custom_call.1} parent=1 // pred_fallthru
      _
    // Predicated region
    $region26: #{tpu_custom_call.1} parent=1 // pred_check
      _
    $region27: #{tpu_custom_call.1} parent=1 // pred_check_branch
      %34 = sbr.rel (0) target = $region29
    $region28: #{tpu_custom_call.1} parent=1 // pred_region
      _
    $region29: #{tpu_custom_call.1} parent=1 // pred_fallthru
      _
    // Predicated region
    $region30: #{tpu_custom_call.1} parent=1 // pred_check
      _
    $region31: #{tpu_custom_call.1} parent=1 // pred_check_branch
      %36 = sbr.rel (0) target = $region33
    $region32: #{tpu_custom_call.1} parent=1 // pred_region
      _
    $region33: #{tpu_custom_call.1} parent=1 // pred_fallthru
      _
    // Predicated region
    $region34: #{tpu_custom_call.1} parent=1 // pred_check
      _
    $region35: #{tpu_custom_call.1} parent=1 // pred_check_branch
      %38 = sbr.rel (0) target = $region37
    $region36: #{tpu_custom_call.1} parent=1 // pred_region
      _
    $region37: #{tpu_custom_call.1} parent=1 // pred_fallthru
      _
    // Predicated region
    $region38: #{tpu_custom_call.1} parent=1 // pred_check
      _
    $region39: #{tpu_custom_call.1} parent=1 // pred_check_branch
      %40 = sbr.rel (0) target = $region41
    $region40: #{tpu_custom_call.1} parent=1 // pred_region
      _
    $region41: #{tpu_custom_call.1} parent=1 // pred_fallthru
      _
    // Predicated region
    $region42: #{tpu_custom_call.1} parent=1 // pred_check
      _
    $region43: #{tpu_custom_call.1} parent=1 // pred_check_branch
      %42 = sbr.rel (0) target = $region45
    $region44: #{tpu_custom_call.1} parent=1 // pred_region
      _
    $region45: #{tpu_custom_call.1} parent=1 // pred_fallthru
      _
    %v44 = vld [vmem:[%s0] sm:$0xff]
    %v45 = vld [vmem:[%s0 + $0x8] sm:$0xff]
    %v46 = vld [vmem:[%s0 + $0x10] sm:$0xff]
    %v47 = vld [vmem:[%s0 + $0x18] sm:$0xff]
    %v48 = vld [vmem:[%s0 + $0x20] sm:$0xff]
    %v49 = vld [vmem:[%s1] sm:$0xff]
    %v50 = vld [vmem:[%s1 + $0x8] sm:$0xff]
    %v51 = vld [vmem:[%s1 + $0x10] sm:$0xff]
    %v52 = vld [vmem:[%s1 + $0x18] sm:$0xff]
    %v53 = vld [vmem:[%s1 + $0x20] sm:$0xff]
    %v54 = vld [vmem:[%s1 + $0x28] sm:$0xff]
    %v55 = vld [vmem:[%s1 + $0x30] sm:$0xff]
    %v56 = vld [vmem:[%s1 + $0x38] sm:$0xff]
    %v57 = vld [vmem:[%s1 + $0x40] sm:$0xff]
    %v58 = vld [vmem:[%s1 + $0x48] sm:$0xff]
    %v59 = vld [vmem:[%s1 + $0x50] sm:$0xff]
    %v60 = vld [vmem:[%s1 + $0x58] sm:$0xff]
    %v61 = vld [vmem:[%s1 + $0x60] sm:$0xff]
    %v62 = vld [vmem:[%s1 + $0x68] sm:$0xff]
    %v63 = vld [vmem:[%s1 + $0x70] sm:$0xff]
    %v64 = vld [vmem:[%s1 + $0x78] sm:$0xff]
    %v65 = vld [vmem:[%s1 + $0x80] sm:$0xff]
    %v66 = vld [vmem:[%s1 + $0x88] sm:$0xff]
    %v67 = vld [vmem:[%s1 + $0x90] sm:$0xff]
    %v68 = vld [vmem:[%s1 + $0x98] sm:$0xff]
    %v69 = vld [vmem:[%s1 + $0xa0] sm:$0xff]
    %v70 = vld [vmem:[%s1 + $0xa8] sm:$0xff]
    %v71 = vld [vmem:[%s1 + $0xb0] sm:$0xff]
    %v72 = vld [vmem:[%s1 + $0xb8] sm:$0xff]
    %v73 = vld [vmem:[%s1 + $0xc0] sm:$0xff]
    %v74 = vld [vmem:[%s1 + $0xc8] sm:$0xff]
    %v75 = vld [vmem:[%s1 + $0xd0] sm:$0xff]
    %v76 = vld [vmem:[%s1 + $0xd8] sm:$0xff]
    %v77 = vld [vmem:[%s1 + $0xe0] sm:$0xff]
    %v78 = vld [vmem:[%s1 + $0xe8] sm:$0xff]
    %v79 = vld [vmem:[%s1 + $0xf0] sm:$0xff]
    %v80 = vld [vmem:[%s1 + $0xf8] sm:$0xff]
    %v81 = vld [vmem:[%s1 + $0x100] sm:$0xff]
    %v82 = vld [vmem:[%s1 + $0x108] sm:$0xff]
    %v83 = vld [vmem:[%s1 + $0x110] sm:$0xff]
    %v84 = vld [vmem:[%s1 + $0x118] sm:$0xff]
    %v85 = vld [vmem:[%s1 + $0x120] sm:$0xff]
    %v86 = vld [vmem:[%s1 + $0x128] sm:$0xff]
    %v87 = vld [vmem:[%s1 + $0x130] sm:$0xff]
    %v88 = vld [vmem:[%s1 + $0x138] sm:$0xff]
    %v89 = vld [vmem:[%s1 + $0x140] sm:$0xff]
    %v90 = vld [vmem:[%s1 + $0x148] sm:$0xff]
    %v91 = vld [vmem:[%s1 + $0x150] sm:$0xff]
    %v92 = vld [vmem:[%s1 + $0x158] sm:$0xff]
    %v93 = vld [vmem:[%s1 + $0x160] sm:$0xff]
    %v94 = vld [vmem:[%s1 + $0x168] sm:$0xff]
    %v95 = vld [vmem:[%s1 + $0x170] sm:$0xff]
    %v96 = vld [vmem:[%s1 + $0x178] sm:$0xff]
    %v97 = vld [vmem:[%s1 + $0x180] sm:$0xff]
    %v98 = vld [vmem:[%s1 + $0x188] sm:$0xff]
    %v99 = vld [vmem:[%s1 + $0x190] sm:$0xff]
    %v100 = vld [vmem:[%s1 + $0x198] sm:$0xff]
    %v101 = vld [vmem:[%s1 + $0x1a0] sm:$0xff]
    %v102 = vld [vmem:[%s1 + $0x1a8] sm:$0xff]
    %v103 = vld [vmem:[%s1 + $0x1b0] sm:$0xff]
    %v104 = vld [vmem:[%s1 + $0x1b8] sm:$0xff]
    %v105 = vld [vmem:[%s1 + $0x1c0] sm:$0xff]
    %v106 = vld [vmem:[%s1 + $0x1c8] sm:$0xff]
    %v107 = vld [vmem:[%s1 + $0x1d0] sm:$0xff]
    %v108 = vld [vmem:[%s1 + $0x1d8] sm:$0xff]
    %v109 = vld [vmem:[%s1 + $0x1e0] sm:$0xff]
    %v110 = vld [vmem:[%s1 + $0x1e8] sm:$0xff]
    %v111 = vld [vmem:[%s1 + $0x1f0] sm:$0xff]
    %v112 = vld [vmem:[%s1 + $0x1f8] sm:$0xff]
    %v113 = vld [vmem:[%s1 + $0x200] sm:$0xff]
    %v114 = vld [vmem:[%s1 + $0x208] sm:$0xff]
    %v115 = vld [vmem:[%s1 + $0x210] sm:$0xff]
    %v116 = vld [vmem:[%s1 + $0x218] sm:$0xff]
    %v117 = vld [vmem:[%s1 + $0x220] sm:$0xff]
    %v118 = vld [vmem:[%s1 + $0x228] sm:$0xff]
    %v119 = vld [vmem:[%s1 + $0x230] sm:$0xff]
    %v120 = vld [vmem:[%s1 + $0x238] sm:$0xff]
    %v121 = vld [vmem:[%s2] sm:$0x1]
    %v123 = vperm.slane %v121, 0
    %vm125 = vcmask 523264
    %v127 = vsel %vm125, %v48, 0
    %129 = vmatpush.msra.mxu0 %v64
    %130 = vmatpush.msra.mxu0 %v63
    %131 = vmatpush.msra.mxu0 %v62
    %132 = vmatpush.msra.mxu0 %v61
    %133 = vmatpush.msra.mxu0 %v60
    %134 = vmatpush.msra.mxu0 %v59
    %135 = vmatpush.msra.mxu0 %v58
    %136 = vmatpush.msra.mxu0 %v57
    %137 = vmatpush.msra.mxu0 %v56
    %138 = vmatpush.msra.mxu0 %v55
    %139 = vmatpush.msra.mxu0 %v54
    %140 = vmatpush.msra.mxu0 %v53
    %141 = vmatpush.msra.mxu0 %v52
    %142 = vmatpush.msra.mxu0 %v51
    %143 = vmatpush.msra.mxu0 %v50
    %144 = vmatpush.msra.mxu0 %v49
    %145 = vmatmul.f32.gmra.mxu0 %v44
    %v146 = vpop.f32.mrf.mxu0
    %v147 = vadd.f32 %v123, %v146
    %148 = vdwg.mxu0
    %149 = vmatpush.msra.mxu0 %v80
    %150 = vmatpush.msra.mxu0 %v79
    %151 = vmatpush.msra.mxu0 %v78
    %152 = vmatpush.msra.mxu0 %v77
    %153 = vmatpush.msra.mxu0 %v76
    %154 = vmatpush.msra.mxu0 %v75
    %155 = vmatpush.msra.mxu0 %v74
    %156 = vmatpush.msra.mxu0 %v73
    %157 = vmatpush.msra.mxu0 %v72
    %158 = vmatpush.msra.mxu0 %v71
    %159 = vmatpush.msra.mxu0 %v70
    %160 = vmatpush.msra.mxu0 %v69
    %161 = vmatpush.msra.mxu0 %v68
    %162 = vmatpush.msra.mxu0 %v67
    %163 = vmatpush.msra.mxu0 %v66
    %164 = vmatpush.msra.mxu0 %v65
    %165 = vmatmul.f32.gmra.mxu0 %v45
    %v166 = vpop.f32.mrf.mxu0
    %v167 = vadd.f32 %v147, %v166
    %168 = vdwg.mxu0
    %169 = vmatpush.msra.mxu0 %v96
    %170 = vmatpush.msra.mxu0 %v95
    %171 = vmatpush.msra.mxu0 %v94
    %172 = vmatpush.msra.mxu0 %v93
    %173 = vmatpush.msra.mxu0 %v92
    %174 = vmatpush.msra.mxu0 %v91
    %175 = vmatpush.msra.mxu0 %v90
    %176 = vmatpush.msra.mxu0 %v89
    %177 = vmatpush.msra.mxu0 %v88
    %178 = vmatpush.msra.mxu0 %v87
    %179 = vmatpush.msra.mxu0 %v86
    %180 = vmatpush.msra.mxu0 %v85
    %181 = vmatpush.msra.mxu0 %v84
    %182 = vmatpush.msra.mxu0 %v83
    %183 = vmatpush.msra.mxu0 %v82
    %184 = vmatpush.msra.mxu0 %v81
    %185 = vmatmul.f32.gmra.mxu0 %v46
    %v186 = vpop.f32.mrf.mxu0
    %v187 = vadd.f32 %v167, %v186
    %188 = vdwg.mxu0
    %189 = vmatpush.msra.mxu0 %v112
    %190 = vmatpush.msra.mxu0 %v111
    %191 = vmatpush.msra.mxu0 %v110
    %192 = vmatpush.msra.mxu0 %v109
    %193 = vmatpush.msra.mxu0 %v108
    %194 = vmatpush.msra.mxu0 %v107
    %195 = vmatpush.msra.mxu0 %v106
    %196 = vmatpush.msra.mxu0 %v105
    %197 = vmatpush.msra.mxu0 %v104
    %198 = vmatpush.msra.mxu0 %v103
    %199 = vmatpush.msra.mxu0 %v102
    %200 = vmatpush.msra.mxu0 %v101
    %201 = vmatpush.msra.mxu0 %v100
    %202 = vmatpush.msra.mxu0 %v99
    %203 = vmatpush.msra.mxu0 %v98
    %204 = vmatpush.msra.mxu0 %v97
    %205 = vmatmul.f32.gmra.mxu0 %v47
    %v206 = vpop.f32.mrf.mxu0
    %v207 = vadd.f32 %v187, %v206
    %208 = vdwg.mxu0
    %209 = vmatpush.msra.mxu0 0.0
    %210 = vmatpush.msra.mxu0 0.0
    %211 = vmatpush.msra.mxu0 0.0
    %212 = vmatpush.msra.mxu0 0.0
    %213 = vmatpush.msra.mxu0 0.0
    %214 = vmatpush.msra.mxu0 0.0
    %215 = vmatpush.msra.mxu0 0.0
    %216 = vmatpush.msra.mxu0 0.0
    %217 = vmatpush.msra.mxu0 %v120
    %218 = vmatpush.msra.mxu0 %v119
    %219 = vmatpush.msra.mxu0 %v118
    %220 = vmatpush.msra.mxu0 %v117
    %221 = vmatpush.msra.mxu0 %v116
    %222 = vmatpush.msra.mxu0 %v115
    %223 = vmatpush.msra.mxu0 %v114
    %224 = vmatpush.msra.mxu0 %v113
    %225 = vmatmul.f32.gmra.mxu0 %v127
    %v226 = vpop.f32.mrf.mxu0
    %v227 = vadd.f32 %v207, %v226
    %228 = vdwg.mxu0
    %230 = vrot.lane.b32.xlu0 %v227, 32
    %v231 = vpop.permute.xlu0 %230
    %vm233 = vcmask 261120
    %v234 = vsel %vm233, %v227, %v231
    %v235 = vpack.c.bf16 %v234, %v234
    %v236 = vlaneseq
    %v237 = vand.u32 %v236, 127
    %vm238 = vcmp.eq.s32.totalorder %v237, 1
    %v239 = vsel %vm238, 1, 0
    %v240 = vcvt.s32.f32 %v239
    %v241 = vpack.c.bf16 %v240, %v240
    %v242 = vld [vmem:[%s5] sm:$0x3]
    %v244 = vperm.slane %v242, 0
    %v245 = vperm.slane %v242, 1
    %v248 = vld [vmem:[%s8] sm:$0x3]
    %v250 = vperm.slane %v248, 0
    %v251 = vperm.slane %v248, 1
    %v254 = vld [vmem:[%s10] sm:$0x1]
    %v256 = vperm.slane %v254, 0
    %v258 = vld [vmem:[%s3] sm:$0xff]
    %v259 = vld [vmem:[%s3 + $0x8] sm:$0xff]
    %v260 = vld [vmem:[%s3 + $0x10] sm:$0xff]
    %v261 = vld [vmem:[%s3 + $0x18] sm:$0xff]
    %v262 = vld [vmem:[%s4] sm:$0xff]
    %v263 = vld [vmem:[%s4 + $0x8] sm:$0xff]
    %v264 = vld [vmem:[%s4 + $0x10] sm:$0xff]
    %v265 = vld [vmem:[%s4 + $0x18] sm:$0xff]
    %v266 = vld [vmem:[%s4 + $0x20] sm:$0xff]
    %v267 = vld [vmem:[%s4 + $0x28] sm:$0xff]
    %v268 = vld [vmem:[%s4 + $0x30] sm:$0xff]
    %v269 = vld [vmem:[%s4 + $0x38] sm:$0xff]
    %v278 = vunpack.c.l.b16 %v262
    %v279 = vunpack.c.h.b16 %v262
    %v280 = vunpack.c.l.b16 %v263
    %v281 = vunpack.c.h.b16 %v263
    %v282 = vunpack.c.l.b16 %v264
    %v283 = vunpack.c.h.b16 %v264
    %v284 = vunpack.c.l.b16 %v265
    %v285 = vunpack.c.h.b16 %v265
    %v286 = vunpack.c.l.b16 %v266
    %v287 = vunpack.c.h.b16 %v266
    %v288 = vunpack.c.l.b16 %v267
    %v289 = vunpack.c.h.b16 %v267
    %v290 = vunpack.c.l.b16 %v268
    %v291 = vunpack.c.h.b16 %v268
    %v292 = vunpack.c.l.b16 %v269
    %v293 = vunpack.c.h.b16 %v269
    %v294 = vpack.c.b16 %v280, %v278
    %v295 = vpack.c.b16 %v281, %v279
    %v296 = vpack.c.b16 %v284, %v282
    %v297 = vpack.c.b16 %v285, %v283
    %v298 = vpack.c.b16 %v288, %v286
    %v299 = vpack.c.b16 %v289, %v287
    %v300 = vpack.c.b16 %v292, %v290
    %v301 = vpack.c.b16 %v293, %v291
    %v311 = vsel %vm125, %v235, 0
    %313 = vmatpush.bf16.msra.mxu0 0
    %314 = vmatpush.bf16.msra.mxu0 0
    %315 = vmatpush.bf16.msra.mxu0 0
    %316 = vmatpush.bf16.msra.mxu0 0
    %317 = vmatpush.bf16.msra.mxu0 %v300
    %318 = vmatpush.bf16.msra.mxu0 %v298
    %319 = vmatpush.bf16.msra.mxu0 %v296
    %320 = vmatpush.bf16.msra.mxu0 %v294
    %321 = vmatmul.bf16.gmra.mxu0 %v311
    %v322 = vpop.f32.mrf.mxu0
    %v323 = vadd.f32 %v244, %v322
    %v324 = vpop.f32.mrf.mxu0
    %325 = vdwg.mxu0
    %326 = vmatpush.bf16.msra.mxu0 0
    %327 = vmatpush.bf16.msra.mxu0 0
    %328 = vmatpush.bf16.msra.mxu0 0
    %329 = vmatpush.bf16.msra.mxu0 0
    %330 = vmatpush.bf16.msra.mxu0 %v301
    %331 = vmatpush.bf16.msra.mxu0 %v299
    %332 = vmatpush.bf16.msra.mxu0 %v297
    %333 = vmatpush.bf16.msra.mxu0 %v295
    %334 = vmatmul.bf16.gmra.mxu0 %v311
    %v335 = vpop.f32.mrf.mxu0
    %v336 = vadd.f32 %v245, %v335
    %v337 = vpop.f32.mrf.mxu0
    %338 = vdwg.mxu0
    %v343 = vunpack.c.l.b16 %v258
    %v344 = vunpack.c.h.b16 %v258
    %v345 = vunpack.c.l.b16 %v259
    %v346 = vunpack.c.h.b16 %v259
    %v347 = vunpack.c.l.b16 %v260
    %v348 = vunpack.c.h.b16 %v260
    %v349 = vunpack.c.l.b16 %v261
    %v350 = vunpack.c.h.b16 %v261
    %v351 = vpack.c.b16 %v345, %v343
    %v352 = vpack.c.b16 %v346, %v344
    %v353 = vpack.c.b16 %v349, %v347
    %v354 = vpack.c.b16 %v350, %v348
    %v360 = vsel %vm233, %v241, 0
    %362 = vmatpush.bf16.msra.mxu0 0
    %363 = vmatpush.bf16.msra.mxu0 0
    %364 = vmatpush.bf16.msra.mxu0 0
    %365 = vmatpush.bf16.msra.mxu0 0
    %366 = vmatpush.bf16.msra.mxu0 0
    %367 = vmatpush.bf16.msra.mxu0 0
    %368 = vmatpush.bf16.msra.mxu0 %v353
    %369 = vmatpush.bf16.msra.mxu0 %v351
    %370 = vmatmul.bf16.gmra.mxu0 %v360
    %v371 = vpop.f32.mrf.mxu0
    %v372 = vadd.f32 %v323, %v371
    %v373 = vpop.f32.mrf.mxu0
    %374 = vdwg.mxu0
    %375 = vmatpush.bf16.msra.mxu0 0
    %376 = vmatpush.bf16.msra.mxu0 0
    %377 = vmatpush.bf16.msra.mxu0 0
    %378 = vmatpush.bf16.msra.mxu0 0
    %379 = vmatpush.bf16.msra.mxu0 0
    %380 = vmatpush.bf16.msra.mxu0 0
    %381 = vmatpush.bf16.msra.mxu0 %v354
    %382 = vmatpush.bf16.msra.mxu0 %v352
    %383 = vmatmul.bf16.gmra.mxu0 %v360
    %v384 = vpop.f32.mrf.mxu0
    %v385 = vadd.f32 %v336, %v384
    %v386 = vpop.f32.mrf.mxu0
    %387 = vdwg.mxu0
    %v388 = vld [vmem:[%s7] sm:$0xff]
    %v389 = vld [vmem:[%s7 + $0x8] sm:$0xff]
    %v390 = vld [vmem:[%s7 + $0x10] sm:$0xff]
    %v391 = vld [vmem:[%s7 + $0x18] sm:$0xff]
    %v392 = vld [vmem:[%s7 + $0x20] sm:$0xff]
    %v393 = vld [vmem:[%s7 + $0x28] sm:$0xff]
    %v394 = vld [vmem:[%s7 + $0x30] sm:$0xff]
    %v395 = vld [vmem:[%s7 + $0x38] sm:$0xff]
    %v404 = vunpack.c.l.b16 %v388
    %v405 = vunpack.c.h.b16 %v388
    %v406 = vunpack.c.l.b16 %v389
    %v407 = vunpack.c.h.b16 %v389
    %v408 = vunpack.c.l.b16 %v390
    %v409 = vunpack.c.h.b16 %v390
    %v410 = vunpack.c.l.b16 %v391
    %v411 = vunpack.c.h.b16 %v391
    %v412 = vunpack.c.l.b16 %v392
    %v413 = vunpack.c.h.b16 %v392
    %v414 = vunpack.c.l.b16 %v393
    %v415 = vunpack.c.h.b16 %v393
    %v416 = vunpack.c.l.b16 %v394
    %v417 = vunpack.c.h.b16 %v394
    %v418 = vunpack.c.l.b16 %v395
    %v419 = vunpack.c.h.b16 %v395
    %v420 = vpack.c.b16 %v406, %v404
    %v421 = vpack.c.b16 %v407, %v405
    %v422 = vpack.c.b16 %v410, %v408
    %v423 = vpack.c.b16 %v411, %v409
    %v424 = vpack.c.b16 %v414, %v412
    %v425 = vpack.c.b16 %v415, %v413
    %v426 = vpack.c.b16 %v418, %v416
    %v427 = vpack.c.b16 %v419, %v417
    %436 = vmatpush.bf16.msra.mxu0 0
    %437 = vmatpush.bf16.msra.mxu0 0
    %438 = vmatpush.bf16.msra.mxu0 0
    %439 = vmatpush.bf16.msra.mxu0 0
    %440 = vmatpush.bf16.msra.mxu0 %v426
    %441 = vmatpush.bf16.msra.mxu0 %v424
    %442 = vmatpush.bf16.msra.mxu0 %v422
    %443 = vmatpush.bf16.msra.mxu0 %v420
    %444 = vmatmul.bf16.gmra.mxu0 %v311
    %v445 = vpop.f32.mrf.mxu0
    %v446 = vadd.f32 %v250, %v445
    %v447 = vpop.f32.mrf.mxu0
    %448 = vdwg.mxu0
    %449 = vmatpush.bf16.msra.mxu0 0
    %450 = vmatpush.bf16.msra.mxu0 0
    %451 = vmatpush.bf16.msra.mxu0 0
    %452 = vmatpush.bf16.msra.mxu0 0
    %453 = vmatpush.bf16.msra.mxu0 %v427
    %454 = vmatpush.bf16.msra.mxu0 %v425
    %455 = vmatpush.bf16.msra.mxu0 %v423
    %456 = vmatpush.bf16.msra.mxu0 %v421
    %457 = vmatmul.bf16.gmra.mxu0 %v311
    %v458 = vpop.f32.mrf.mxu0
    %v459 = vadd.f32 %v251, %v458
    %v460 = vpop.f32.mrf.mxu0
    %461 = vdwg.mxu0
    %v462 = vxor.u32 %v372, 2147483648
    %v463 = vxor.u32 %v385, 2147483648
    %v464 = vmul.f32 %v462, 1.442695
    %v465 = vpow.pop %v464
    %v466 = vmul.f32 %v463, 1.442695
    %v467 = vpow.pop %v466
    %v468 = vadd.f32 %v465, 1.0
    %v469 = vadd.f32 %v467, 1.0
    %v470 = vrcp.pop %v468
    %v471 = vmul.f32 %v468, %v470
    %v472 = vsub.f32 1.0, %v471
    %v473 = vmul.f32 %v470, %v472
    %v474 = vadd.f32 %v470, %v473
    %vm475 = vweird.f32 %v468
    %vm476 = vweird.f32 %v470
    %vm477 = vmor %vm475, %vm476
    %v478 = vsel %vm477, %v470, %v474
    %v479 = vand.u32 2147483647, %v468
    %vm480 = vcmp.eq.f32.partialorder %v479, 8.507059e+37
    %v481 = vand.u32 %v468, 2147483648
    %v482 = vor.u32 1.1754944e-38, %v481
    %v483 = vsel %vm480, %v482, %v478
    %v484 = vmul.f32 1.0, %v483
    %v485 = vrcp.pop %v469
    %v486 = vmul.f32 %v469, %v485
    %v487 = vsub.f32 1.0, %v486
    %v488 = vmul.f32 %v485, %v487
    %v489 = vadd.f32 %v485, %v488
    %vm490 = vweird.f32 %v469
    %vm491 = vweird.f32 %v485
    %vm492 = vmor %vm490, %vm491
    %v493 = vsel %vm492, %v485, %v489
    %v494 = vand.u32 2147483647, %v469
    %vm495 = vcmp.eq.f32.partialorder %v494, 8.507059e+37
    %v496 = vand.u32 %v469, 2147483648
    %v497 = vor.u32 1.1754944e-38, %v496
    %v498 = vsel %vm495, %v497, %v493
    %v499 = vmul.f32 1.0, %v498
    %v500 = vtanh.pop %v385
    %502 = vrot.lane.b32.xlu0 %v234, 64
    %v503 = vpop.permute.xlu0 %502
    %v505 = vmul.f32 %v484, %v503
    %507 = vrot.lane.b32.xlu0 %v500, 64
    %v508 = vpop.permute.xlu0 %507
    %v510 = vmul.f32 %v484, %v508
    %512 = vrot.lane.b32.xlu0 %v510, 64
    %v513 = vpop.permute.xlu0 %512
    %v515 = vadd.f32 %v505, %v513
    %v516 = vtanh.pop %v515
    %518 = vrot.lane.b32.xlu0 %v516, 64
    %v519 = vpop.permute.xlu0 %518
    %v521 = vmul.f32 %v499, %v519
    %v522 = vpack.c.bf16 %v521, %v521
    %v523 = vld [vmem:[%s6] sm:$0xff]
    %v524 = vld [vmem:[%s6 + $0x8] sm:$0xff]
    %v525 = vld [vmem:[%s6 + $0x10] sm:$0xff]
    %v526 = vld [vmem:[%s6 + $0x18] sm:$0xff]
    %v527 = vld [vmem:[%s6 + $0x20] sm:$0xff]
    %v528 = vld [vmem:[%s6 + $0x28] sm:$0xff]
    %v529 = vld [vmem:[%s6 + $0x30] sm:$0xff]
    %v530 = vld [vmem:[%s6 + $0x38] sm:$0xff]
    %v539 = vunpack.c.l.b16 %v523
    %v540 = vunpack.c.h.b16 %v523
    %v541 = vunpack.c.l.b16 %v524
    %v542 = vunpack.c.h.b16 %v524
    %v543 = vunpack.c.l.b16 %v525
    %v544 = vunpack.c.h.b16 %v525
    %v545 = vunpack.c.l.b16 %v526
    %v546 = vunpack.c.h.b16 %v526
    %v547 = vunpack.c.l.b16 %v527
    %v548 = vunpack.c.h.b16 %v527
    %v549 = vunpack.c.l.b16 %v528
    %v550 = vunpack.c.h.b16 %v528
    %v551 = vunpack.c.l.b16 %v529
    %v552 = vunpack.c.h.b16 %v529
    %v553 = vunpack.c.l.b16 %v530
    %v554 = vunpack.c.h.b16 %v530
    %v555 = vpack.c.b16 %v541, %v539
    %v556 = vpack.c.b16 %v542, %v540
    %v557 = vpack.c.b16 %v545, %v543
    %v558 = vpack.c.b16 %v546, %v544
    %v559 = vpack.c.b16 %v549, %v547
    %v560 = vpack.c.b16 %v550, %v548
    %v561 = vpack.c.b16 %v553, %v551
    %v562 = vpack.c.b16 %v554, %v552
    %v572 = vsel %vm125, %v522, 0
    %574 = vmatpush.bf16.msra.mxu0 0
    %575 = vmatpush.bf16.msra.mxu0 0
    %576 = vmatpush.bf16.msra.mxu0 0
    %577 = vmatpush.bf16.msra.mxu0 0
    %578 = vmatpush.bf16.msra.mxu0 %v561
    %579 = vmatpush.bf16.msra.mxu0 %v559
    %580 = vmatpush.bf16.msra.mxu0 %v557
    %581 = vmatpush.bf16.msra.mxu0 %v555
    %582 = vmatmul.bf16.gmra.mxu0 %v572
    %v583 = vpop.f32.mrf.mxu0
    %v584 = vadd.f32 %v446, %v583
    %v585 = vpop.f32.mrf.mxu0
    %586 = vdwg.mxu0
    %587 = vmatpush.bf16.msra.mxu0 0
    %588 = vmatpush.bf16.msra.mxu0 0
    %589 = vmatpush.bf16.msra.mxu0 0
    %590 = vmatpush.bf16.msra.mxu0 0
    %591 = vmatpush.bf16.msra.mxu0 %v562
    %592 = vmatpush.bf16.msra.mxu0 %v560
    %593 = vmatpush.bf16.msra.mxu0 %v558
    %594 = vmatpush.bf16.msra.mxu0 %v556
    %595 = vmatmul.bf16.gmra.mxu0 %v572
    %v596 = vpop.f32.mrf.mxu0
    %v597 = vadd.f32 %v459, %v596
    %v598 = vpop.f32.mrf.mxu0
    %599 = vdwg.mxu0
    %v600 = vxor.u32 %v584, 2147483648
    %v601 = vxor.u32 %v597, 2147483648
    %v602 = vmul.f32 %v600, 1.442695
    %v603 = vpow.pop %v602
    %v604 = vmul.f32 %v601, 1.442695
    %v605 = vpow.pop %v604
    %v606 = vadd.f32 %v603, 1.0
    %v607 = vadd.f32 %v605, 1.0
    %v608 = vrcp.pop %v606
    %v609 = vmul.f32 %v606, %v608
    %v610 = vsub.f32 1.0, %v609
    %v611 = vmul.f32 %v608, %v610
    %v612 = vadd.f32 %v608, %v611
    %vm613 = vweird.f32 %v606
    %vm614 = vweird.f32 %v608
    %vm615 = vmor %vm613, %vm614
    %v616 = vsel %vm615, %v608, %v612
    %v617 = vand.u32 2147483647, %v606
    %vm618 = vcmp.eq.f32.partialorder %v617, 8.507059e+37
    %v619 = vand.u32 %v606, 2147483648
    %v620 = vor.u32 1.1754944e-38, %v619
    %v621 = vsel %vm618, %v620, %v616
    %v622 = vmul.f32 1.0, %v621
    %v623 = vrcp.pop %v607
    %v624 = vmul.f32 %v607, %v623
    %v625 = vsub.f32 1.0, %v624
    %v626 = vmul.f32 %v623, %v625
    %v627 = vadd.f32 %v623, %v626
    %vm628 = vweird.f32 %v607
    %vm629 = vweird.f32 %v623
    %vm630 = vmor %vm628, %vm629
    %v631 = vsel %vm630, %v623, %v627
    %v632 = vand.u32 2147483647, %v607
    %vm633 = vcmp.eq.f32.partialorder %v632, 8.507059e+37
    %v634 = vand.u32 %v607, 2147483648
    %v635 = vor.u32 1.1754944e-38, %v634
    %v636 = vsel %vm633, %v635, %v631
    %v637 = vmul.f32 1.0, %v636
    %v638 = vtanh.pop %v597
    %v639 = vmul.f32 %v622, %v503
    %641 = vrot.lane.b32.xlu0 %v638, 64
    %v642 = vpop.permute.xlu0 %641
    %v644 = vmul.f32 %v622, %v642
    %646 = vrot.lane.b32.xlu0 %v644, 64
    %v647 = vpop.permute.xlu0 %646
    %v649 = vadd.f32 %v639, %v647
    %v650 = vtanh.pop %v649
    %652 = vrot.lane.b32.xlu0 %v650, 64
    %v653 = vpop.permute.xlu0 %652
    %v655 = vmul.f32 %v637, %v653
    %v656 = vpack.c.bf16 %v655, %v655
    %v657 = vld [vmem:[%s9] sm:$0xf]
    %v658 = vld [vmem:[%s9 + $0x4] sm:$0xf]
    %v659 = vld [vmem:[%s9 + $0x8] sm:$0xf]
    %v660 = vld [vmem:[%s9 + $0xc] sm:$0xf]
    %v661 = vld [vmem:[%s9 + $0x10] sm:$0xf]
    %v662 = vld [vmem:[%s9 + $0x14] sm:$0xf]
    %v663 = vld [vmem:[%s9 + $0x18] sm:$0xf]
    %v664 = vld [vmem:[%s9 + $0x1c] sm:$0xf]
    %v673 = vunpack.c.l.b16 %v657
    %v674 = vunpack.c.l.b16 %v658
    %v675 = vunpack.c.l.b16 %v659
    %v676 = vunpack.c.l.b16 %v660
    %v677 = vunpack.c.l.b16 %v661
    %v678 = vunpack.c.l.b16 %v662
    %v679 = vunpack.c.l.b16 %v663
    %v680 = vunpack.c.l.b16 %v664
    %v681 = vpack.c.b16 %v674, %v673
    %v682 = vpack.c.b16 %v676, %v675
    %v683 = vpack.c.b16 %v678, %v677
    %v684 = vpack.c.b16 %v680, %v679
    %v690 = vsel %vm125, %v656, 0
    %692 = vmatpush.bf16.msra.mxu0 0
    %693 = vmatpush.bf16.msra.mxu0 0
    %694 = vmatpush.bf16.msra.mxu0 0
    %695 = vmatpush.bf16.msra.mxu0 0
    %696 = vmatpush.bf16.msra.mxu0 %v684
    %697 = vmatpush.bf16.msra.mxu0 %v683
    %698 = vmatpush.bf16.msra.mxu0 %v682
    %699 = vmatpush.bf16.msra.mxu0 %v681
    %700 = vmatmul.bf16.gmra.mxu0 %v690
    %v701 = vpop.f32.mrf.mxu0
    %v702 = vadd.f32 %v256, %v701
    %v703 = vpop.f32.mrf.mxu0
    %704 = vdwg.mxu0
    %705 = vst.msk [vmem:[#allocation2] sm:$0xff] %vm233, %v702
    %v707 = vshra.s32 %v702, 31
    %v708 = vand.u32 %v707, 2147483647
    %v709 = vxor.u32 %v702, %v708
    %v710 = vand.u32 %v709, 4294967264
    %v711 = vsub.s32 31, %v237
    %v712 = vor.u32 %v710, %v711
    %v713 = vsel %vm233, %v712, 2147483648
    %v714 = vand.u32 %v713, 65535
    %v715 = vshra.s32 %v713, 16
    %v716 = vcvt.s32.f32 %v714
    %v717 = vcvt.s32.f32 %v715
    %718 = vmax.xlane.f32.xlu0 %v717
    %v719 = vpop.xlane.xlu0 %718
    %vm720 = vcmp.eq.f32.partialorder %v717, %v719
    %v721 = vsel %vm720, %v716, -inf
    %722 = vmax.xlane.f32.xlu0 %v721
    %v723 = vpop.xlane.xlu0 %722
    %v724 = vcvt.f32.s32 %v723
    %v725 = vcvt.f32.s32 %v719
    %v726 = vshll.u32 %v725, 16
    %v727 = vadd.s32 %v726, %v724
    %v728 = vand.u32 %v727, 31
    %v729 = vsub.s32 31, %v728
    %vm730 = vcmp.eq.s32.totalorder %v237, %v729
    %v731 = vsel %vm730, 1, 0
    %v732 = vcvt.s32.f32 %v731
    %v733 = vpack.c.bf16 %v732, %v732
    %v734 = vld [vmem:[%s3] sm:$0xff]
    %v735 = vld [vmem:[%s3 + $0x8] sm:$0xff]
    %v736 = vld [vmem:[%s3 + $0x10] sm:$0xff]
    %v737 = vld [vmem:[%s3 + $0x18] sm:$0xff]
    %v738 = vld [vmem:[%s4] sm:$0xff]
    %v739 = vld [vmem:[%s4 + $0x8] sm:$0xff]
    %v740 = vld [vmem:[%s4 + $0x10] sm:$0xff]
    %v741 = vld [vmem:[%s4 + $0x18] sm:$0xff]
    %v742 = vld [vmem:[%s4 + $0x20] sm:$0xff]
    %v743 = vld [vmem:[%s4 + $0x28] sm:$0xff]
    %v744 = vld [vmem:[%s4 + $0x30] sm:$0xff]
    %v745 = vld [vmem:[%s4 + $0x38] sm:$0xff]
    %v754 = vunpack.c.l.b16 %v738
    %v755 = vunpack.c.h.b16 %v738
    %v756 = vunpack.c.l.b16 %v739
    %v757 = vunpack.c.h.b16 %v739
    %v758 = vunpack.c.l.b16 %v740
    %v759 = vunpack.c.h.b16 %v740
    %v760 = vunpack.c.l.b16 %v741
    %v761 = vunpack.c.h.b16 %v741
    %v762 = vunpack.c.l.b16 %v742
    %v763 = vunpack.c.h.b16 %v742
    %v764 = vunpack.c.l.b16 %v743
    %v765 = vunpack.c.h.b16 %v743
    %v766 = vunpack.c.l.b16 %v744
    %v767 = vunpack.c.h.b16 %v744
    %v768 = vunpack.c.l.b16 %v745
    %v769 = vunpack.c.h.b16 %v745
    %v770 = vpack.c.b16 %v756, %v754
    %v771 = vpack.c.b16 %v757, %v755
    %v772 = vpack.c.b16 %v760, %v758
    %v773 = vpack.c.b16 %v761, %v759
    %v774 = vpack.c.b16 %v764, %v762
    %v775 = vpack.c.b16 %v765, %v763
    %v776 = vpack.c.b16 %v768, %v766
    %v777 = vpack.c.b16 %v769, %v767
    %786 = vmatpush.bf16.msra.mxu0 0
    %787 = vmatpush.bf16.msra.mxu0 0
    %788 = vmatpush.bf16.msra.mxu0 0
    %789 = vmatpush.bf16.msra.mxu0 0
    %790 = vmatpush.bf16.msra.mxu0 %v776
    %791 = vmatpush.bf16.msra.mxu0 %v774
    %792 = vmatpush.bf16.msra.mxu0 %v772
    %793 = vmatpush.bf16.msra.mxu0 %v770
    %794 = vmatmul.bf16.gmra.mxu0 %v572
    %v795 = vpop.f32.mrf.mxu0
    %v796 = vadd.f32 %v244, %v795
    %v797 = vpop.f32.mrf.mxu0
    %798 = vdwg.mxu0
    %799 = vmatpush.bf16.msra.mxu0 0
    %800 = vmatpush.bf16.msra.mxu0 0
    %801 = vmatpush.bf16.msra.mxu0 0
    %802 = vmatpush.bf16.msra.mxu0 0
    %803 = vmatpush.bf16.msra.mxu0 %v777
    %804 = vmatpush.bf16.msra.mxu0 %v775
    %805 = vmatpush.bf16.msra.mxu0 %v773
    %806 = vmatpush.bf16.msra.mxu0 %v771
    %807 = vmatmul.bf16.gmra.mxu0 %v572
    %v808 = vpop.f32.mrf.mxu0
    %v809 = vadd.f32 %v245, %v808
    %v810 = vpop.f32.mrf.mxu0
    %811 = vdwg.mxu0
    %v816 = vunpack.c.l.b16 %v734
    %v817 = vunpack.c.h.b16 %v734
    %v818 = vunpack.c.l.b16 %v735
    %v819 = vunpack.c.h.b16 %v735
    %v820 = vunpack.c.l.b16 %v736
    %v821 = vunpack.c.h.b16 %v736
    %v822 = vunpack.c.l.b16 %v737
    %v823 = vunpack.c.h.b16 %v737
    %v824 = vpack.c.b16 %v818, %v816
    %v825 = vpack.c.b16 %v819, %v817
    %v826 = vpack.c.b16 %v822, %v820
    %v827 = vpack.c.b16 %v823, %v821
    %v833 = vsel %vm233, %v733, 0
    %835 = vmatpush.bf16.msra.mxu0 0
    %836 = vmatpush.bf16.msra.mxu0 0
    %837 = vmatpush.bf16.msra.mxu0 0
    %838 = vmatpush.bf16.msra.mxu0 0
    %839 = vmatpush.bf16.msra.mxu0 0
    %840 = vmatpush.bf16.msra.mxu0 0
    %841 = vmatpush.bf16.msra.mxu0 %v826
    %842 = vmatpush.bf16.msra.mxu0 %v824
    %843 = vmatmul.bf16.gmra.mxu0 %v833
    %v844 = vpop.f32.mrf.mxu0
    %v845 = vadd.f32 %v796, %v844
    %v846 = vpop.f32.mrf.mxu0
    %847 = vdwg.mxu0
    %848 = vmatpush.bf16.msra.mxu0 0
    %849 = vmatpush.bf16.msra.mxu0 0
    %850 = vmatpush.bf16.msra.mxu0 0
    %851 = vmatpush.bf16.msra.mxu0 0
    %852 = vmatpush.bf16.msra.mxu0 0
    %853 = vmatpush.bf16.msra.mxu0 0
    %854 = vmatpush.bf16.msra.mxu0 %v827
    %855 = vmatpush.bf16.msra.mxu0 %v825
    %856 = vmatmul.bf16.gmra.mxu0 %v833
    %v857 = vpop.f32.mrf.mxu0
    %v858 = vadd.f32 %v809, %v857
    %v859 = vpop.f32.mrf.mxu0
    %860 = vdwg.mxu0
    %v861 = vld [vmem:[%s7] sm:$0xff]
    %v862 = vld [vmem:[%s7 + $0x8] sm:$0xff]
    %v863 = vld [vmem:[%s7 + $0x10] sm:$0xff]
    %v864 = vld [vmem:[%s7 + $0x18] sm:$0xff]
    %v865 = vld [vmem:[%s7 + $0x20] sm:$0xff]
    %v866 = vld [vmem:[%s7 + $0x28] sm:$0xff]
    %v867 = vld [vmem:[%s7 + $0x30] sm:$0xff]
    %v868 = vld [vmem:[%s7 + $0x38] sm:$0xff]
    %v877 = vunpack.c.l.b16 %v861
    %v878 = vunpack.c.h.b16 %v861
    %v879 = vunpack.c.l.b16 %v862
    %v880 = vunpack.c.h.b16 %v862
    %v881 = vunpack.c.l.b16 %v863
    %v882 = vunpack.c.h.b16 %v863
    %v883 = vunpack.c.l.b16 %v864
    %v884 = vunpack.c.h.b16 %v864
    %v885 = vunpack.c.l.b16 %v865
    %v886 = vunpack.c.h.b16 %v865
    %v887 = vunpack.c.l.b16 %v866
    %v888 = vunpack.c.h.b16 %v866
    %v889 = vunpack.c.l.b16 %v867
    %v890 = vunpack.c.h.b16 %v867
    %v891 = vunpack.c.l.b16 %v868
    %v892 = vunpack.c.h.b16 %v868
    %v893 = vpack.c.b16 %v879, %v877
    %v894 = vpack.c.b16 %v880, %v878
    %v895 = vpack.c.b16 %v883, %v881
    %v896 = vpack.c.b16 %v884, %v882
    %v897 = vpack.c.b16 %v887, %v885
    %v898 = vpack.c.b16 %v888, %v886
    %v899 = vpack.c.b16 %v891, %v889
    %v900 = vpack.c.b16 %v892, %v890
    %909 = vmatpush.bf16.msra.mxu0 0
    %910 = vmatpush.bf16.msra.mxu0 0
    %911 = vmatpush.bf16.msra.mxu0 0
    %912 = vmatpush.bf16.msra.mxu0 0
    %913 = vmatpush.bf16.msra.mxu0 %v899
    %914 = vmatpush.bf16.msra.mxu0 %v897
    %915 = vmatpush.bf16.msra.mxu0 %v895
    %916 = vmatpush.bf16.msra.mxu0 %v893
    %917 = vmatmul.bf16.gmra.mxu0 %v690
    %v918 = vpop.f32.mrf.mxu0
    %v919 = vadd.f32 %v250, %v918
    %v920 = vpop.f32.mrf.mxu0
    %921 = vdwg.mxu0
    %922 = vmatpush.bf16.msra.mxu0 0
    %923 = vmatpush.bf16.msra.mxu0 0
    %924 = vmatpush.bf16.msra.mxu0 0
    %925 = vmatpush.bf16.msra.mxu0 0
    %926 = vmatpush.bf16.msra.mxu0 %v900
    %927 = vmatpush.bf16.msra.mxu0 %v898
    %928 = vmatpush.bf16.msra.mxu0 %v896
    %929 = vmatpush.bf16.msra.mxu0 %v894
    %930 = vmatmul.bf16.gmra.mxu0 %v690
    %v931 = vpop.f32.mrf.mxu0
    %v932 = vadd.f32 %v251, %v931
    %v933 = vpop.f32.mrf.mxu0
    %934 = vdwg.mxu0
    %v935 = vxor.u32 %v845, 2147483648
    %v936 = vxor.u32 %v858, 2147483648
    %v937 = vmul.f32 %v935, 1.442695
    %v938 = vpow.pop %v937
    %v939 = vmul.f32 %v936, 1.442695
    %v940 = vpow.pop %v939
    %v941 = vadd.f32 %v938, 1.0
    %v942 = vadd.f32 %v940, 1.0
    %v943 = vrcp.pop %v941
    %v944 = vmul.f32 %v941, %v943
    %v945 = vsub.f32 1.0, %v944
    %v946 = vmul.f32 %v943, %v945
    %v947 = vadd.f32 %v943, %v946
    %vm948 = vweird.f32 %v941
    %vm949 = vweird.f32 %v943
    %vm950 = vmor %vm948, %vm949
    %v951 = vsel %vm950, %v943, %v947
    %v952 = vand.u32 2147483647, %v941
    %vm953 = vcmp.eq.f32.partialorder %v952, 8.507059e+37
    %v954 = vand.u32 %v941, 2147483648
    %v955 = vor.u32 1.1754944e-38, %v954
    %v956 = vsel %vm953, %v955, %v951
    %v957 = vmul.f32 1.0, %v956
    %v958 = vrcp.pop %v942
    %v959 = vmul.f32 %v942, %v958
    %v960 = vsub.f32 1.0, %v959
    %v961 = vmul.f32 %v958, %v960
    %v962 = vadd.f32 %v958, %v961
    %vm963 = vweird.f32 %v942
    %vm964 = vweird.f32 %v958
    %vm965 = vmor %vm963, %vm964
    %v966 = vsel %vm965, %v958, %v962
    %v967 = vand.u32 2147483647, %v942
    %vm968 = vcmp.eq.f32.partialorder %v967, 8.507059e+37
    %v969 = vand.u32 %v942, 2147483648
    %v970 = vor.u32 1.1754944e-38, %v969
    %v971 = vsel %vm968, %v970, %v966
    %v972 = vmul.f32 1.0, %v971
    %v973 = vtanh.pop %v858
    %v974 = vmul.f32 %v957, %v515
    %976 = vrot.lane.b32.xlu0 %v973, 64
    %v977 = vpop.permute.xlu0 %976
    %v979 = vmul.f32 %v957, %v977
    %981 = vrot.lane.b32.xlu0 %v979, 64
    %v982 = vpop.permute.xlu0 %981
    %v984 = vadd.f32 %v974, %v982
    %v985 = vtanh.pop %v984
    %987 = vrot.lane.b32.xlu0 %v985, 64
    %v988 = vpop.permute.xlu0 %987
    %v990 = vmul.f32 %v972, %v988
    %v991 = vpack.c.bf16 %v990, %v990
    %v992 = vld [vmem:[%s6] sm:$0xff]
    %v993 = vld [vmem:[%s6 + $0x8] sm:$0xff]
    %v994 = vld [vmem:[%s6 + $0x10] sm:$0xff]
    %v995 = vld [vmem:[%s6 + $0x18] sm:$0xff]
    %v996 = vld [vmem:[%s6 + $0x20] sm:$0xff]
    %v997 = vld [vmem:[%s6 + $0x28] sm:$0xff]
    %v998 = vld [vmem:[%s6 + $0x30] sm:$0xff]
    %v999 = vld [vmem:[%s6 + $0x38] sm:$0xff]
    %v1008 = vunpack.c.l.b16 %v992
    %v1009 = vunpack.c.h.b16 %v992
    %v1010 = vunpack.c.l.b16 %v993
    %v1011 = vunpack.c.h.b16 %v993
    %v1012 = vunpack.c.l.b16 %v994
    %v1013 = vunpack.c.h.b16 %v994
    %v1014 = vunpack.c.l.b16 %v995
    %v1015 = vunpack.c.h.b16 %v995
    %v1016 = vunpack.c.l.b16 %v996
    %v1017 = vunpack.c.h.b16 %v996
    %v1018 = vunpack.c.l.b16 %v997
    %v1019 = vunpack.c.h.b16 %v997
    %v1020 = vunpack.c.l.b16 %v998
    %v1021 = vunpack.c.h.b16 %v998
    %v1022 = vunpack.c.l.b16 %v999
    %v1023 = vunpack.c.h.b16 %v999
    %v1024 = vpack.c.b16 %v1010, %v1008
    %v1025 = vpack.c.b16 %v1011, %v1009
    %v1026 = vpack.c.b16 %v1014, %v1012
    %v1027 = vpack.c.b16 %v1015, %v1013
    %v1028 = vpack.c.b16 %v1018, %v1016
    %v1029 = vpack.c.b16 %v1019, %v1017
    %v1030 = vpack.c.b16 %v1022, %v1020
    %v1031 = vpack.c.b16 %v1023, %v1021
    %v1041 = vsel %vm125, %v991, 0
    %1043 = vmatpush.bf16.msra.mxu0 0
    %1044 = vmatpush.bf16.msra.mxu0 0
    %1045 = vmatpush.bf16.msra.mxu0 0
    %1046 = vmatpush.bf16.msra.mxu0 0
    %1047 = vmatpush.bf16.msra.mxu0 %v1030
    %1048 = vmatpush.bf16.msra.mxu0 %v1028
    %1049 = vmatpush.bf16.msra.mxu0 %v1026
    %1050 = vmatpush.bf16.msra.mxu0 %v1024
    %1051 = vmatmul.bf16.gmra.mxu0 %v1041
    %v1052 = vpop.f32.mrf.mxu0
    %v1053 = vadd.f32 %v919, %v1052
    %v1054 = vpop.f32.mrf.mxu0
    %1055 = vdwg.mxu0
    %1056 = vmatpush.bf16.msra.mxu0 0
    %1057 = vmatpush.bf16.msra.mxu0 0
    %1058 = vmatpush.bf16.msra.mxu0 0
    %1059 = vmatpush.bf16.msra.mxu0 0
    %1060 = vmatpush.bf16.msra.mxu0 %v1031
    %1061 = vmatpush.bf16.msra.mxu0 %v1029
    %1062 = vmatpush.bf16.msra.mxu0 %v1027
    %1063 = vmatpush.bf16.msra.mxu0 %v1025
    %1064 = vmatmul.bf16.gmra.mxu0 %v1041
    %v1065 = vpop.f32.mrf.mxu0
    %v1066 = vadd.f32 %v932, %v1065
    %v1067 = vpop.f32.mrf.mxu0
    %1068 = vdwg.mxu0
    %v1069 = vxor.u32 %v1053, 2147483648
    %v1070 = vxor.u32 %v1066, 2147483648
    %v1071 = vmul.f32 %v1069, 1.442695
    %v1072 = vpow.pop %v1071
    %v1073 = vmul.f32 %v1070, 1.442695
    %v1074 = vpow.pop %v1073
    %v1075 = vadd.f32 %v1072, 1.0
    %v1076 = vadd.f32 %v1074, 1.0
    %v1077 = vrcp.pop %v1075
    %v1078 = vmul.f32 %v1075, %v1077
    %v1079 = vsub.f32 1.0, %v1078
    %v1080 = vmul.f32 %v1077, %v1079
    %v1081 = vadd.f32 %v1077, %v1080
    %vm1082 = vweird.f32 %v1075
    %vm1083 = vweird.f32 %v1077
    %vm1084 = vmor %vm1082, %vm1083
    %v1085 = vsel %vm1084, %v1077, %v1081
    %v1086 = vand.u32 2147483647, %v1075
    %vm1087 = vcmp.eq.f32.partialorder %v1086, 8.507059e+37
    %v1088 = vand.u32 %v1075, 2147483648
    %v1089 = vor.u32 1.1754944e-38, %v1088
    %v1090 = vsel %vm1087, %v1089, %v1085
    %v1091 = vmul.f32 1.0, %v1090
    %v1092 = vrcp.pop %v1076
    %v1093 = vmul.f32 %v1076, %v1092
    %v1094 = vsub.f32 1.0, %v1093
    %v1095 = vmul.f32 %v1092, %v1094
    %v1096 = vadd.f32 %v1092, %v1095
    %vm1097 = vweird.f32 %v1076
    %vm1098 = vweird.f32 %v1092
    %vm1099 = vmor %vm1097, %vm1098
    %v1100 = vsel %vm1099, %v1092, %v1096
    %v1101 = vand.u32 2147483647, %v1076
    %vm1102 = vcmp.eq.f32.partialorder %v1101, 8.507059e+37
    %v1103 = vand.u32 %v1076, 2147483648
    %v1104 = vor.u32 1.1754944e-38, %v1103
    %v1105 = vsel %vm1102, %v1104, %v1100
    %v1106 = vmul.f32 1.0, %v1105
    %v1107 = vtanh.pop %v1066
    %v1108 = vmul.f32 %v1091, %v649
    %1110 = vrot.lane.b32.xlu0 %v1107, 64
    %v1111 = vpop.permute.xlu0 %1110
    %v1113 = vmul.f32 %v1091, %v1111
    %1115 = vrot.lane.b32.xlu0 %v1113, 64
    %v1116 = vpop.permute.xlu0 %1115
    %v1118 = vadd.f32 %v1108, %v1116
    %v1119 = vtanh.pop %v1118
    %1121 = vrot.lane.b32.xlu0 %v1119, 64
    %v1122 = vpop.permute.xlu0 %1121
    %v1124 = vmul.f32 %v1106, %v1122
    %v1125 = vpack.c.bf16 %v1124, %v1124
    %v1126 = vld [vmem:[%s9] sm:$0xf]
    %v1127 = vld [vmem:[%s9 + $0x4] sm:$0xf]
    %v1128 = vld [vmem:[%s9 + $0x8] sm:$0xf]
    %v1129 = vld [vmem:[%s9 + $0xc] sm:$0xf]
    %v1130 = vld [vmem:[%s9 + $0x10] sm:$0xf]
    %v1131 = vld [vmem:[%s9 + $0x14] sm:$0xf]
    %v1132 = vld [vmem:[%s9 + $0x18] sm:$0xf]
    %v1133 = vld [vmem:[%s9 + $0x1c] sm:$0xf]
    %v1142 = vunpack.c.l.b16 %v1126
    %v1143 = vunpack.c.l.b16 %v1127
    %v1144 = vunpack.c.l.b16 %v1128
    %v1145 = vunpack.c.l.b16 %v1129
    %v1146 = vunpack.c.l.b16 %v1130
    %v1147 = vunpack.c.l.b16 %v1131
    %v1148 = vunpack.c.l.b16 %v1132
    %v1149 = vunpack.c.l.b16 %v1133
    %v1150 = vpack.c.b16 %v1143, %v1142
    %v1151 = vpack.c.b16 %v1145, %v1144
    %v1152 = vpack.c.b16 %v1147, %v1146
    %v1153 = vpack.c.b16 %v1149, %v1148
    %v1159 = vsel %vm125, %v1125, 0
    %1161 = vmatpush.bf16.msra.mxu0 0
    %1162 = vmatpush.bf16.msra.mxu0 0
    %1163 = vmatpush.bf16.msra.mxu0 0
    %1164 = vmatpush.bf16.msra.mxu0 0
    %1165 = vmatpush.bf16.msra.mxu0 %v1153
    %1166 = vmatpush.bf16.msra.mxu0 %v1152
    %1167 = vmatpush.bf16.msra.mxu0 %v1151
    %1168 = vmatpush.bf16.msra.mxu0 %v1150
    %1169 = vmatmul.bf16.gmra.mxu0 %v1159
    %v1170 = vpop.f32.mrf.mxu0
    %v1171 = vadd.f32 %v256, %v1170
    %v1172 = vpop.f32.mrf.mxu0
    %1173 = vdwg.mxu0
    %1175 = vrot.lane.b32.xlu0 %v1171, 32
    %v1176 = vpop.permute.xlu0 %1175
    %vm1178 = vcmask 523520
    %1179 = vst.msk [vmem:[#allocation2] sm:$0xff] %vm1178, %v1176
    %v1180 = vshra.s32 %v1171, 31
    %v1181 = vand.u32 %v1180, 2147483647
    %v1182 = vxor.u32 %v1171, %v1181
    %v1183 = vand.u32 %v1182, 4294967264
    %v1184 = vor.u32 %v1183, %v711
    %v1185 = vsel %vm233, %v1184, 2147483648
    %v1186 = vand.u32 %v1185, 65535
    %v1187 = vshra.s32 %v1185, 16
    %v1188 = vcvt.s32.f32 %v1186
    %v1189 = vcvt.s32.f32 %v1187
    %1190 = vmax.xlane.f32.xlu0 %v1189
    %v1191 = vpop.xlane.xlu0 %1190
    %vm1192 = vcmp.eq.f32.partialorder %v1189, %v1191
    %v1193 = vsel %vm1192, %v1188, -inf
    %1194 = vmax.xlane.f32.xlu0 %v1193
    %v1195 = vpop.xlane.xlu0 %1194
    %v1196 = vcvt.f32.s32 %v1195
    %v1197 = vcvt.f32.s32 %v1191
    %v1198 = vshll.u32 %v1197, 16
    %v1199 = vadd.s32 %v1198, %v1196
    %v1200 = vand.u32 %v1199, 31
    %v1201 = vsub.s32 31, %v1200
    %vm1202 = vcmp.eq.s32.totalorder %v237, %v1201
    %v1203 = vsel %vm1202, 1, 0
    %v1204 = vcvt.s32.f32 %v1203
    %v1205 = vpack.c.bf16 %v1204, %v1204
    %v1206 = vld [vmem:[%s3] sm:$0xff]
    %v1207 = vld [vmem:[%s3 + $0x8] sm:$0xff]
    %v1208 = vld [vmem:[%s3 + $0x10] sm:$0xff]
    %v1209 = vld [vmem:[%s3 + $0x18] sm:$0xff]
    %v1210 = vld [vmem:[%s4] sm:$0xff]
    %v1211 = vld [vmem:[%s4 + $0x8] sm:$0xff]
    %v1212 = vld [vmem:[%s4 + $0x10] sm:$0xff]
    %v1213 = vld [vmem:[%s4 + $0x18] sm:$0xff]
    %v1214 = vld [vmem:[%s4 + $0x20] sm:$0xff]
    %v1215 = vld [vmem:[%s4 + $0x28] sm:$0xff]
    %v1216 = vld [vmem:[%s4 + $0x30] sm:$0xff]
    %v1217 = vld [vmem:[%s4 + $0x38] sm:$0xff]
    %v1226 = vunpack.c.l.b16 %v1210
    %v1227 = vunpack.c.h.b16 %v1210
    %v1228 = vunpack.c.l.b16 %v1211
    %v1229 = vunpack.c.h.b16 %v1211
    %v1230 = vunpack.c.l.b16 %v1212
    %v1231 = vunpack.c.h.b16 %v1212
    %v1232 = vunpack.c.l.b16 %v1213
    %v1233 = vunpack.c.h.b16 %v1213
    %v1234 = vunpack.c.l.b16 %v1214
    %v1235 = vunpack.c.h.b16 %v1214
    %v1236 = vunpack.c.l.b16 %v1215
    %v1237 = vunpack.c.h.b16 %v1215
    %v1238 = vunpack.c.l.b16 %v1216
    %v1239 = vunpack.c.h.b16 %v1216
    %v1240 = vunpack.c.l.b16 %v1217
    %v1241 = vunpack.c.h.b16 %v1217
    %v1242 = vpack.c.b16 %v1228, %v1226
    %v1243 = vpack.c.b16 %v1229, %v1227
    %v1244 = vpack.c.b16 %v1232, %v1230
    %v1245 = vpack.c.b16 %v1233, %v1231
    %v1246 = vpack.c.b16 %v1236, %v1234
    %v1247 = vpack.c.b16 %v1237, %v1235
    %v1248 = vpack.c.b16 %v1240, %v1238
    %v1249 = vpack.c.b16 %v1241, %v1239
    %1258 = vmatpush.bf16.msra.mxu0 0
    %1259 = vmatpush.bf16.msra.mxu0 0
    %1260 = vmatpush.bf16.msra.mxu0 0
    %1261 = vmatpush.bf16.msra.mxu0 0
    %1262 = vmatpush.bf16.msra.mxu0 %v1248
    %1263 = vmatpush.bf16.msra.mxu0 %v1246
    %1264 = vmatpush.bf16.msra.mxu0 %v1244
    %1265 = vmatpush.bf16.msra.mxu0 %v1242
    %1266 = vmatmul.bf16.gmra.mxu0 %v1041
    %v1267 = vpop.f32.mrf.mxu0
    %v1268 = vadd.f32 %v244, %v1267
    %v1269 = vpop.f32.mrf.mxu0
    %1270 = vdwg.mxu0
    %1271 = vmatpush.bf16.msra.mxu0 0
    %1272 = vmatpush.bf16.msra.mxu0 0
    %1273 = vmatpush.bf16.msra.mxu0 0
    %1274 = vmatpush.bf16.msra.mxu0 0
    %1275 = vmatpush.bf16.msra.mxu0 %v1249
    %1276 = vmatpush.bf16.msra.mxu0 %v1247
    %1277 = vmatpush.bf16.msra.mxu0 %v1245
    %1278 = vmatpush.bf16.msra.mxu0 %v1243
    %1279 = vmatmul.bf16.gmra.mxu0 %v1041
    %v1280 = vpop.f32.mrf.mxu0
    %v1281 = vadd.f32 %v245, %v1280
    %v1282 = vpop.f32.mrf.mxu0
    %1283 = vdwg.mxu0
    %v1288 = vunpack.c.l.b16 %v1206
    %v1289 = vunpack.c.h.b16 %v1206
    %v1290 = vunpack.c.l.b16 %v1207
    %v1291 = vunpack.c.h.b16 %v1207
    %v1292 = vunpack.c.l.b16 %v1208
    %v1293 = vunpack.c.h.b16 %v1208
    %v1294 = vunpack.c.l.b16 %v1209
    %v1295 = vunpack.c.h.b16 %v1209
    %v1296 = vpack.c.b16 %v1290, %v1288
    %v1297 = vpack.c.b16 %v1291, %v1289
    %v1298 = vpack.c.b16 %v1294, %v1292
    %v1299 = vpack.c.b16 %v1295, %v1293
    %v1305 = vsel %vm233, %v1205, 0
    %1307 = vmatpush.bf16.msra.mxu0 0
    %1308 = vmatpush.bf16.msra.mxu0 0
    %1309 = vmatpush.bf16.msra.mxu0 0
    %1310 = vmatpush.bf16.msra.mxu0 0
    %1311 = vmatpush.bf16.msra.mxu0 0
    %1312 = vmatpush.bf16.msra.mxu0 0
    %1313 = vmatpush.bf16.msra.mxu0 %v1298
    %1314 = vmatpush.bf16.msra.mxu0 %v1296
    %1315 = vmatmul.bf16.gmra.mxu0 %v1305
    %v1316 = vpop.f32.mrf.mxu0
    %v1317 = vadd.f32 %v1268, %v1316
    %v1318 = vpop.f32.mrf.mxu0
    %1319 = vdwg.mxu0
    %1320 = vmatpush.bf16.msra.mxu0 0
    %1321 = vmatpush.bf16.msra.mxu0 0
    %1322 = vmatpush.bf16.msra.mxu0 0
    %1323 = vmatpush.bf16.msra.mxu0 0
    %1324 = vmatpush.bf16.msra.mxu0 0
    %1325 = vmatpush.bf16.msra.mxu0 0
    %1326 = vmatpush.bf16.msra.mxu0 %v1299
    %1327 = vmatpush.bf16.msra.mxu0 %v1297
    %1328 = vmatmul.bf16.gmra.mxu0 %v1305
    %v1329 = vpop.f32.mrf.mxu0
    %v1330 = vadd.f32 %v1281, %v1329
    %v1331 = vpop.f32.mrf.mxu0
    %1332 = vdwg.mxu0
    %v1333 = vld [vmem:[%s7] sm:$0xff]
    %v1334 = vld [vmem:[%s7 + $0x8] sm:$0xff]
    %v1335 = vld [vmem:[%s7 + $0x10] sm:$0xff]
    %v1336 = vld [vmem:[%s7 + $0x18] sm:$0xff]
    %v1337 = vld [vmem:[%s7 + $0x20] sm:$0xff]
    %v1338 = vld [vmem:[%s7 + $0x28] sm:$0xff]
    %v1339 = vld [vmem:[%s7 + $0x30] sm:$0xff]
    %v1340 = vld [vmem:[%s7 + $0x38] sm:$0xff]
    %v1349 = vunpack.c.l.b16 %v1333
    %v1350 = vunpack.c.h.b16 %v1333
    %v1351 = vunpack.c.l.b16 %v1334
    %v1352 = vunpack.c.h.b16 %v1334
    %v1353 = vunpack.c.l.b16 %v1335
    %v1354 = vunpack.c.h.b16 %v1335
    %v1355 = vunpack.c.l.b16 %v1336
    %v1356 = vunpack.c.h.b16 %v1336
    %v1357 = vunpack.c.l.b16 %v1337
    %v1358 = vunpack.c.h.b16 %v1337
    %v1359 = vunpack.c.l.b16 %v1338
    %v1360 = vunpack.c.h.b16 %v1338
    %v1361 = vunpack.c.l.b16 %v1339
    %v1362 = vunpack.c.h.b16 %v1339
    %v1363 = vunpack.c.l.b16 %v1340
    %v1364 = vunpack.c.h.b16 %v1340
    %v1365 = vpack.c.b16 %v1351, %v1349
    %v1366 = vpack.c.b16 %v1352, %v1350
    %v1367 = vpack.c.b16 %v1355, %v1353
    %v1368 = vpack.c.b16 %v1356, %v1354
    %v1369 = vpack.c.b16 %v1359, %v1357
    %v1370 = vpack.c.b16 %v1360, %v1358
    %v1371 = vpack.c.b16 %v1363, %v1361
    %v1372 = vpack.c.b16 %v1364, %v1362
    %1381 = vmatpush.bf16.msra.mxu0 0
    %1382 = vmatpush.bf16.msra.mxu0 0
    %1383 = vmatpush.bf16.msra.mxu0 0
    %1384 = vmatpush.bf16.msra.mxu0 0
    %1385 = vmatpush.bf16.msra.mxu0 %v1371
    %1386 = vmatpush.bf16.msra.mxu0 %v1369
    %1387 = vmatpush.bf16.msra.mxu0 %v1367
    %1388 = vmatpush.bf16.msra.mxu0 %v1365
    %1389 = vmatmul.bf16.gmra.mxu0 %v1159
    %v1390 = vpop.f32.mrf.mxu0
    %v1391 = vadd.f32 %v250, %v1390
    %v1392 = vpop.f32.mrf.mxu0
    %1393 = vdwg.mxu0
    %1394 = vmatpush.bf16.msra.mxu0 0
    %1395 = vmatpush.bf16.msra.mxu0 0
    %1396 = vmatpush.bf16.msra.mxu0 0
    %1397 = vmatpush.bf16.msra.mxu0 0
    %1398 = vmatpush.bf16.msra.mxu0 %v1372
    %1399 = vmatpush.bf16.msra.mxu0 %v1370
    %1400 = vmatpush.bf16.msra.mxu0 %v1368
    %1401 = vmatpush.bf16.msra.mxu0 %v1366
    %1402 = vmatmul.bf16.gmra.mxu0 %v1159
    %v1403 = vpop.f32.mrf.mxu0
    %v1404 = vadd.f32 %v251, %v1403
    %v1405 = vpop.f32.mrf.mxu0
    %1406 = vdwg.mxu0
    %v1407 = vxor.u32 %v1317, 2147483648
    %v1408 = vxor.u32 %v1330, 2147483648
    %v1409 = vmul.f32 %v1407, 1.442695
    %v1410 = vpow.pop %v1409
    %v1411 = vmul.f32 %v1408, 1.442695
    %v1412 = vpow.pop %v1411
    %v1413 = vadd.f32 %v1410, 1.0
    %v1414 = vadd.f32 %v1412, 1.0
    %v1415 = vrcp.pop %v1413
    %v1416 = vmul.f32 %v1413, %v1415
    %v1417 = vsub.f32 1.0, %v1416
    %v1418 = vmul.f32 %v1415, %v1417
    %v1419 = vadd.f32 %v1415, %v1418
    %vm1420 = vweird.f32 %v1413
    %vm1421 = vweird.f32 %v1415
    %vm1422 = vmor %vm1420, %vm1421
    %v1423 = vsel %vm1422, %v1415, %v1419
    %v1424 = vand.u32 2147483647, %v1413
    %vm1425 = vcmp.eq.f32.partialorder %v1424, 8.507059e+37
    %v1426 = vand.u32 %v1413, 2147483648
    %v1427 = vor.u32 1.1754944e-38, %v1426
    %v1428 = vsel %vm1425, %v1427, %v1423
    %v1429 = vmul.f32 1.0, %v1428
    %v1430 = vrcp.pop %v1414
    %v1431 = vmul.f32 %v1414, %v1430
    %v1432 = vsub.f32 1.0, %v1431
    %v1433 = vmul.f32 %v1430, %v1432
    %v1434 = vadd.f32 %v1430, %v1433
    %vm1435 = vweird.f32 %v1414
    %vm1436 = vweird.f32 %v1430
    %vm1437 = vmor %vm1435, %vm1436
    %v1438 = vsel %vm1437, %v1430, %v1434
    %v1439 = vand.u32 2147483647, %v1414
    %vm1440 = vcmp.eq.f32.partialorder %v1439, 8.507059e+37
    %v1441 = vand.u32 %v1414, 2147483648
    %v1442 = vor.u32 1.1754944e-38, %v1441
    %v1443 = vsel %vm1440, %v1442, %v1438
    %v1444 = vmul.f32 1.0, %v1443
    %v1445 = vtanh.pop %v1330
    %v1446 = vmul.f32 %v1429, %v984
    %1448 = vrot.lane.b32.xlu0 %v1445, 64
    %v1449 = vpop.permute.xlu0 %1448
    %v1451 = vmul.f32 %v1429, %v1449
    %1453 = vrot.lane.b32.xlu0 %v1451, 64
    %v1454 = vpop.permute.xlu0 %1453
    %v1456 = vadd.f32 %v1446, %v1454
    %v1457 = vtanh.pop %v1456
    %1459 = vrot.lane.b32.xlu0 %v1457, 64
    %v1460 = vpop.permute.xlu0 %1459
    %v1462 = vmul.f32 %v1444, %v1460
    %v1463 = vpack.c.bf16 %v1462, %v1462
    %v1464 = vld [vmem:[%s6] sm:$0xff]
    %v1465 = vld [vmem:[%s6 + $0x8] sm:$0xff]
    %v1466 = vld [vmem:[%s6 + $0x10] sm:$0xff]
    %v1467 = vld [vmem:[%s6 + $0x18] sm:$0xff]
    %v1468 = vld [vmem:[%s6 + $0x20] sm:$0xff]
    %v1469 = vld [vmem:[%s6 + $0x28] sm:$0xff]
    %v1470 = vld [vmem:[%s6 + $0x30] sm:$0xff]
    %v1471 = vld [vmem:[%s6 + $0x38] sm:$0xff]
    %v1480 = vunpack.c.l.b16 %v1464
    %v1481 = vunpack.c.h.b16 %v1464
    %v1482 = vunpack.c.l.b16 %v1465
    %v1483 = vunpack.c.h.b16 %v1465
    %v1484 = vunpack.c.l.b16 %v1466
    %v1485 = vunpack.c.h.b16 %v1466
    %v1486 = vunpack.c.l.b16 %v1467
    %v1487 = vunpack.c.h.b16 %v1467
    %v1488 = vunpack.c.l.b16 %v1468
    %v1489 = vunpack.c.h.b16 %v1468
    %v1490 = vunpack.c.l.b16 %v1469
    %v1491 = vunpack.c.h.b16 %v1469
    %v1492 = vunpack.c.l.b16 %v1470
    %v1493 = vunpack.c.h.b16 %v1470
    %v1494 = vunpack.c.l.b16 %v1471
    %v1495 = vunpack.c.h.b16 %v1471
    %v1496 = vpack.c.b16 %v1482, %v1480
    %v1497 = vpack.c.b16 %v1483, %v1481
    %v1498 = vpack.c.b16 %v1486, %v1484
    %v1499 = vpack.c.b16 %v1487, %v1485
    %v1500 = vpack.c.b16 %v1490, %v1488
    %v1501 = vpack.c.b16 %v1491, %v1489
    %v1502 = vpack.c.b16 %v1494, %v1492
    %v1503 = vpack.c.b16 %v1495, %v1493
    %v1513 = vsel %vm125, %v1463, 0
    %1515 = vmatpush.bf16.msra.mxu0 0
    %1516 = vmatpush.bf16.msra.mxu0 0
    %1517 = vmatpush.bf16.msra.mxu0 0
    %1518 = vmatpush.bf16.msra.mxu0 0
    %1519 = vmatpush.bf16.msra.mxu0 %v1502
    %1520 = vmatpush.bf16.msra.mxu0 %v1500
    %1521 = vmatpush.bf16.msra.mxu0 %v1498
    %1522 = vmatpush.bf16.msra.mxu0 %v1496
    %1523 = vmatmul.bf16.gmra.mxu0 %v1513
    %v1524 = vpop.f32.mrf.mxu0
    %v1525 = vadd.f32 %v1391, %v1524
    %v1526 = vpop.f32.mrf.mxu0
    %1527 = vdwg.mxu0
    %1528 = vmatpush.bf16.msra.mxu0 0
    %1529 = vmatpush.bf16.msra.mxu0 0
    %1530 = vmatpush.bf16.msra.mxu0 0
    %1531 = vmatpush.bf16.msra.mxu0 0
    %1532 = vmatpush.bf16.msra.mxu0 %v1503
    %1533 = vmatpush.bf16.msra.mxu0 %v1501
    %1534 = vmatpush.bf16.msra.mxu0 %v1499
    %1535 = vmatpush.bf16.msra.mxu0 %v1497
    %1536 = vmatmul.bf16.gmra.mxu0 %v1513
    %v1537 = vpop.f32.mrf.mxu0
    %v1538 = vadd.f32 %v1404, %v1537
    %v1539 = vpop.f32.mrf.mxu0
    %1540 = vdwg.mxu0
    %v1541 = vxor.u32 %v1525, 2147483648
    %v1542 = vxor.u32 %v1538, 2147483648
    %v1543 = vmul.f32 %v1541, 1.442695
    %v1544 = vpow.pop %v1543
    %v1545 = vmul.f32 %v1542, 1.442695
    %v1546 = vpow.pop %v1545
    %v1547 = vadd.f32 %v1544, 1.0
    %v1548 = vadd.f32 %v1546, 1.0
    %v1549 = vrcp.pop %v1547
    %v1550 = vmul.f32 %v1547, %v1549
    %v1551 = vsub.f32 1.0, %v1550
    %v1552 = vmul.f32 %v1549, %v1551
    %v1553 = vadd.f32 %v1549, %v1552
    %vm1554 = vweird.f32 %v1547
    %vm1555 = vweird.f32 %v1549
    %vm1556 = vmor %vm1554, %vm1555
    %v1557 = vsel %vm1556, %v1549, %v1553
    %v1558 = vand.u32 2147483647, %v1547
    %vm1559 = vcmp.eq.f32.partialorder %v1558, 8.507059e+37
    %v1560 = vand.u32 %v1547, 2147483648
    %v1561 = vor.u32 1.1754944e-38, %v1560
    %v1562 = vsel %vm1559, %v1561, %v1557
    %v1563 = vmul.f32 1.0, %v1562
    %v1564 = vrcp.pop %v1548
    %v1565 = vmul.f32 %v1548, %v1564
    %v1566 = vsub.f32 1.0, %v1565
    %v1567 = vmul.f32 %v1564, %v1566
    %v1568 = vadd.f32 %v1564, %v1567
    %vm1569 = vweird.f32 %v1548
    %vm1570 = vweird.f32 %v1564
    %vm1571 = vmor %vm1569, %vm1570
    %v1572 = vsel %vm1571, %v1564, %v1568
    %v1573 = vand.u32 2147483647, %v1548
    %vm1574 = vcmp.eq.f32.partialorder %v1573, 8.507059e+37
    %v1575 = vand.u32 %v1548, 2147483648
    %v1576 = vor.u32 1.1754944e-38, %v1575
    %v1577 = vsel %vm1574, %v1576, %v1572
    %v1578 = vmul.f32 1.0, %v1577
    %v1579 = vtanh.pop %v1538
    %v1580 = vmul.f32 %v1563, %v1118
    %1582 = vrot.lane.b32.xlu0 %v1579, 64
    %v1583 = vpop.permute.xlu0 %1582
    %v1585 = vmul.f32 %v1563, %v1583
    %1587 = vrot.lane.b32.xlu0 %v1585, 64
    %v1588 = vpop.permute.xlu0 %1587
    %v1590 = vadd.f32 %v1580, %v1588
    %v1591 = vtanh.pop %v1590
    %1593 = vrot.lane.b32.xlu0 %v1591, 64
    %v1594 = vpop.permute.xlu0 %1593
    %v1596 = vmul.f32 %v1578, %v1594
    %v1597 = vpack.c.bf16 %v1596, %v1596
    %v1598 = vld [vmem:[%s9] sm:$0xf]
    %v1599 = vld [vmem:[%s9 + $0x4] sm:$0xf]
    %v1600 = vld [vmem:[%s9 + $0x8] sm:$0xf]
    %v1601 = vld [vmem:[%s9 + $0xc] sm:$0xf]
    %v1602 = vld [vmem:[%s9 + $0x10] sm:$0xf]
    %v1603 = vld [vmem:[%s9 + $0x14] sm:$0xf]
    %v1604 = vld [vmem:[%s9 + $0x18] sm:$0xf]
    %v1605 = vld [vmem:[%s9 + $0x1c] sm:$0xf]
    %v1614 = vunpack.c.l.b16 %v1598
    %v1615 = vunpack.c.l.b16 %v1599
    %v1616 = vunpack.c.l.b16 %v1600
    %v1617 = vunpack.c.l.b16 %v1601
    %v1618 = vunpack.c.l.b16 %v1602
    %v1619 = vunpack.c.l.b16 %v1603
    %v1620 = vunpack.c.l.b16 %v1604
    %v1621 = vunpack.c.l.b16 %v1605
    %v1622 = vpack.c.b16 %v1615, %v1614
    %v1623 = vpack.c.b16 %v1617, %v1616
    %v1624 = vpack.c.b16 %v1619, %v1618
    %v1625 = vpack.c.b16 %v1621, %v1620
    %v1631 = vsel %vm125, %v1597, 0
    %1633 = vmatpush.bf16.msra.mxu0 0
    %1634 = vmatpush.bf16.msra.mxu0 0
    %1635 = vmatpush.bf16.msra.mxu0 0
    %1636 = vmatpush.bf16.msra.mxu0 0
    %1637 = vmatpush.bf16.msra.mxu0 %v1625
    %1638 = vmatpush.bf16.msra.mxu0 %v1624
    %1639 = vmatpush.bf16.msra.mxu0 %v1623
    %1640 = vmatpush.bf16.msra.mxu0 %v1622
    %1641 = vmatmul.bf16.gmra.mxu0 %v1631
    %v1642 = vpop.f32.mrf.mxu0
    %v1643 = vadd.f32 %v256, %v1642
    %v1644 = vpop.f32.mrf.mxu0
    %1645 = vdwg.mxu0
    %1647 = vrot.lane.b32.xlu0 %v1643, 64
    %v1648 = vpop.permute.xlu0 %1647
    %vm1650 = vcmask 785920
    %1651 = vst.msk [vmem:[#allocation2] sm:$0xff] %vm1650, %v1648
    %v1652 = vshra.s32 %v1643, 31
    %v1653 = vand.u32 %v1652, 2147483647
    %v1654 = vxor.u32 %v1643, %v1653
    %v1655 = vand.u32 %v1654, 4294967264
    %v1656 = vor.u32 %v1655, %v711
    %v1657 = vsel %vm233, %v1656, 2147483648
    %v1658 = vand.u32 %v1657, 65535
    %v1659 = vshra.s32 %v1657, 16
    %v1660 = vcvt.s32.f32 %v1658
    %v1661 = vcvt.s32.f32 %v1659
    %1662 = vmax.xlane.f32.xlu0 %v1661
    %v1663 = vpop.xlane.xlu0 %1662
    %vm1664 = vcmp.eq.f32.partialorder %v1661, %v1663
    %v1665 = vsel %vm1664, %v1660, -inf
    %1666 = vmax.xlane.f32.xlu0 %v1665
    %v1667 = vpop.xlane.xlu0 %1666
    %v1668 = vcvt.f32.s32 %v1667
    %v1669 = vcvt.f32.s32 %v1663
    %v1670 = vshll.u32 %v1669, 16
    %v1671 = vadd.s32 %v1670, %v1668
    %v1672 = vand.u32 %v1671, 31
    %v1673 = vsub.s32 31, %v1672
    %vm1674 = vcmp.eq.s32.totalorder %v237, %v1673
    %v1675 = vsel %vm1674, 1, 0
    %v1676 = vcvt.s32.f32 %v1675
    %v1677 = vpack.c.bf16 %v1676, %v1676
    %v1678 = vld [vmem:[%s3] sm:$0xff]
    %v1679 = vld [vmem:[%s3 + $0x8] sm:$0xff]
    %v1680 = vld [vmem:[%s3 + $0x10] sm:$0xff]
    %v1681 = vld [vmem:[%s3 + $0x18] sm:$0xff]
    %v1682 = vld [vmem:[%s4] sm:$0xff]
    %v1683 = vld [vmem:[%s4 + $0x8] sm:$0xff]
    %v1684 = vld [vmem:[%s4 + $0x10] sm:$0xff]
    %v1685 = vld [vmem:[%s4 + $0x18] sm:$0xff]
    %v1686 = vld [vmem:[%s4 + $0x20] sm:$0xff]
    %v1687 = vld [vmem:[%s4 + $0x28] sm:$0xff]
    %v1688 = vld [vmem:[%s4 + $0x30] sm:$0xff]
    %v1689 = vld [vmem:[%s4 + $0x38] sm:$0xff]
    %v1698 = vunpack.c.l.b16 %v1682
    %v1699 = vunpack.c.h.b16 %v1682
    %v1700 = vunpack.c.l.b16 %v1683
    %v1701 = vunpack.c.h.b16 %v1683
    %v1702 = vunpack.c.l.b16 %v1684
    %v1703 = vunpack.c.h.b16 %v1684
    %v1704 = vunpack.c.l.b16 %v1685
    %v1705 = vunpack.c.h.b16 %v1685
    %v1706 = vunpack.c.l.b16 %v1686
    %v1707 = vunpack.c.h.b16 %v1686
    %v1708 = vunpack.c.l.b16 %v1687
    %v1709 = vunpack.c.h.b16 %v1687
    %v1710 = vunpack.c.l.b16 %v1688
    %v1711 = vunpack.c.h.b16 %v1688
    %v1712 = vunpack.c.l.b16 %v1689
    %v1713 = vunpack.c.h.b16 %v1689
    %v1714 = vpack.c.b16 %v1700, %v1698
    %v1715 = vpack.c.b16 %v1701, %v1699
    %v1716 = vpack.c.b16 %v1704, %v1702
    %v1717 = vpack.c.b16 %v1705, %v1703
    %v1718 = vpack.c.b16 %v1708, %v1706
    %v1719 = vpack.c.b16 %v1709, %v1707
    %v1720 = vpack.c.b16 %v1712, %v1710
    %v1721 = vpack.c.b16 %v1713, %v1711
    %1730 = vmatpush.bf16.msra.mxu0 0
    %1731 = vmatpush.bf16.msra.mxu0 0
    %1732 = vmatpush.bf16.msra.mxu0 0
    %1733 = vmatpush.bf16.msra.mxu0 0
    %1734 = vmatpush.bf16.msra.mxu0 %v1720
    %1735 = vmatpush.bf16.msra.mxu0 %v1718
    %1736 = vmatpush.bf16.msra.mxu0 %v1716
    %1737 = vmatpush.bf16.msra.mxu0 %v1714
    %1738 = vmatmul.bf16.gmra.mxu0 %v1513
    %v1739 = vpop.f32.mrf.mxu0
    %v1740 = vadd.f32 %v244, %v1739
    %v1741 = vpop.f32.mrf.mxu0
    %1742 = vdwg.mxu0
    %1743 = vmatpush.bf16.msra.mxu0 0
    %1744 = vmatpush.bf16.msra.mxu0 0
    %1745 = vmatpush.bf16.msra.mxu0 0
    %1746 = vmatpush.bf16.msra.mxu0 0
    %1747 = vmatpush.bf16.msra.mxu0 %v1721
    %1748 = vmatpush.bf16.msra.mxu0 %v1719
    %1749 = vmatpush.bf16.msra.mxu0 %v1717
    %1750 = vmatpush.bf16.msra.mxu0 %v1715
    %1751 = vmatmul.bf16.gmra.mxu0 %v1513
    %v1752 = vpop.f32.mrf.mxu0
    %v1753 = vadd.f32 %v245, %v1752
    %v1754 = vpop.f32.mrf.mxu0
    %1755 = vdwg.mxu0
    %v1760 = vunpack.c.l.b16 %v1678
    %v1761 = vunpack.c.h.b16 %v1678
    %v1762 = vunpack.c.l.b16 %v1679
    %v1763 = vunpack.c.h.b16 %v1679
    %v1764 = vunpack.c.l.b16 %v1680
    %v1765 = vunpack.c.h.b16 %v1680
    %v1766 = vunpack.c.l.b16 %v1681
    %v1767 = vunpack.c.h.b16 %v1681
    %v1768 = vpack.c.b16 %v1762, %v1760
    %v1769 = vpack.c.b16 %v1763, %v1761
    %v1770 = vpack.c.b16 %v1766, %v1764
    %v1771 = vpack.c.b16 %v1767, %v1765
    %v1777 = vsel %vm233, %v1677, 0
    %1779 = vmatpush.bf16.msra.mxu0 0
    %1780 = vmatpush.bf16.msra.mxu0 0
    %1781 = vmatpush.bf16.msra.mxu0 0
    %1782 = vmatpush.bf16.msra.mxu0 0
    %1783 = vmatpush.bf16.msra.mxu0 0
    %1784 = vmatpush.bf16.msra.mxu0 0
    %1785 = vmatpush.bf16.msra.mxu0 %v1770
    %1786 = vmatpush.bf16.msra.mxu0 %v1768
    %1787 = vmatmul.bf16.gmra.mxu0 %v1777
    %v1788 = vpop.f32.mrf.mxu0
    %v1789 = vadd.f32 %v1740, %v1788
    %v1790 = vpop.f32.mrf.mxu0
    %1791 = vdwg.mxu0
    %1792 = vmatpush.bf16.msra.mxu0 0
    %1793 = vmatpush.bf16.msra.mxu0 0
    %1794 = vmatpush.bf16.msra.mxu0 0
    %1795 = vmatpush.bf16.msra.mxu0 0
    %1796 = vmatpush.bf16.msra.mxu0 0
    %1797 = vmatpush.bf16.msra.mxu0 0
    %1798 = vmatpush.bf16.msra.mxu0 %v1771
    %1799 = vmatpush.bf16.msra.mxu0 %v1769
    %1800 = vmatmul.bf16.gmra.mxu0 %v1777
    %v1801 = vpop.f32.mrf.mxu0
    %v1802 = vadd.f32 %v1753, %v1801
    %v1803 = vpop.f32.mrf.mxu0
    %1804 = vdwg.mxu0
    %v1805 = vld [vmem:[%s7] sm:$0xff]
    %v1806 = vld [vmem:[%s7 + $0x8] sm:$0xff]
    %v1807 = vld [vmem:[%s7 + $0x10] sm:$0xff]
    %v1808 = vld [vmem:[%s7 + $0x18] sm:$0xff]
    %v1809 = vld [vmem:[%s7 + $0x20] sm:$0xff]
    %v1810 = vld [vmem:[%s7 + $0x28] sm:$0xff]
    %v1811 = vld [vmem:[%s7 + $0x30] sm:$0xff]
    %v1812 = vld [vmem:[%s7 + $0x38] sm:$0xff]
    %v1821 = vunpack.c.l.b16 %v1805
    %v1822 = vunpack.c.h.b16 %v1805
    %v1823 = vunpack.c.l.b16 %v1806
    %v1824 = vunpack.c.h.b16 %v1806
    %v1825 = vunpack.c.l.b16 %v1807
    %v1826 = vunpack.c.h.b16 %v1807
    %v1827 = vunpack.c.l.b16 %v1808
    %v1828 = vunpack.c.h.b16 %v1808
    %v1829 = vunpack.c.l.b16 %v1809
    %v1830 = vunpack.c.h.b16 %v1809
    %v1831 = vunpack.c.l.b16 %v1810
    %v1832 = vunpack.c.h.b16 %v1810
    %v1833 = vunpack.c.l.b16 %v1811
    %v1834 = vunpack.c.h.b16 %v1811
    %v1835 = vunpack.c.l.b16 %v1812
    %v1836 = vunpack.c.h.b16 %v1812
    %v1837 = vpack.c.b16 %v1823, %v1821
    %v1838 = vpack.c.b16 %v1824, %v1822
    %v1839 = vpack.c.b16 %v1827, %v1825
    %v1840 = vpack.c.b16 %v1828, %v1826
    %v1841 = vpack.c.b16 %v1831, %v1829
    %v1842 = vpack.c.b16 %v1832, %v1830
    %v1843 = vpack.c.b16 %v1835, %v1833
    %v1844 = vpack.c.b16 %v1836, %v1834
    %1853 = vmatpush.bf16.msra.mxu0 0
    %1854 = vmatpush.bf16.msra.mxu0 0
    %1855 = vmatpush.bf16.msra.mxu0 0
    %1856 = vmatpush.bf16.msra.mxu0 0
    %1857 = vmatpush.bf16.msra.mxu0 %v1843
    %1858 = vmatpush.bf16.msra.mxu0 %v1841
    %1859 = vmatpush.bf16.msra.mxu0 %v1839
    %1860 = vmatpush.bf16.msra.mxu0 %v1837
    %1861 = vmatmul.bf16.gmra.mxu0 %v1631
    %v1862 = vpop.f32.mrf.mxu0
    %v1863 = vadd.f32 %v250, %v1862
    %v1864 = vpop.f32.mrf.mxu0
    %1865 = vdwg.mxu0
    %1866 = vmatpush.bf16.msra.mxu0 0
    %1867 = vmatpush.bf16.msra.mxu0 0
    %1868 = vmatpush.bf16.msra.mxu0 0
    %1869 = vmatpush.bf16.msra.mxu0 0
    %1870 = vmatpush.bf16.msra.mxu0 %v1844
    %1871 = vmatpush.bf16.msra.mxu0 %v1842
    %1872 = vmatpush.bf16.msra.mxu0 %v1840
    %1873 = vmatpush.bf16.msra.mxu0 %v1838
    %1874 = vmatmul.bf16.gmra.mxu0 %v1631
    %v1875 = vpop.f32.mrf.mxu0
    %v1876 = vadd.f32 %v251, %v1875
    %v1877 = vpop.f32.mrf.mxu0
    %1878 = vdwg.mxu0
    %v1879 = vxor.u32 %v1789, 2147483648
    %v1880 = vxor.u32 %v1802, 2147483648
    %v1881 = vmul.f32 %v1879, 1.442695
    %v1882 = vpow.pop %v1881
    %v1883 = vmul.f32 %v1880, 1.442695
    %v1884 = vpow.pop %v1883
    %v1885 = vadd.f32 %v1882, 1.0
    %v1886 = vadd.f32 %v1884, 1.0
    %v1887 = vrcp.pop %v1885
    %v1888 = vmul.f32 %v1885, %v1887
    %v1889 = vsub.f32 1.0, %v1888
    %v1890 = vmul.f32 %v1887, %v1889
    %v1891 = vadd.f32 %v1887, %v1890
    %vm1892 = vweird.f32 %v1885
    %vm1893 = vweird.f32 %v1887
    %vm1894 = vmor %vm1892, %vm1893
    %v1895 = vsel %vm1894, %v1887, %v1891
    %v1896 = vand.u32 2147483647, %v1885
    %vm1897 = vcmp.eq.f32.partialorder %v1896, 8.507059e+37
    %v1898 = vand.u32 %v1885, 2147483648
    %v1899 = vor.u32 1.1754944e-38, %v1898
    %v1900 = vsel %vm1897, %v1899, %v1895
    %v1901 = vmul.f32 1.0, %v1900
    %v1902 = vrcp.pop %v1886
    %v1903 = vmul.f32 %v1886, %v1902
    %v1904 = vsub.f32 1.0, %v1903
    %v1905 = vmul.f32 %v1902, %v1904
    %v1906 = vadd.f32 %v1902, %v1905
    %vm1907 = vweird.f32 %v1886
    %vm1908 = vweird.f32 %v1902
    %vm1909 = vmor %vm1907, %vm1908
    %v1910 = vsel %vm1909, %v1902, %v1906
    %v1911 = vand.u32 2147483647, %v1886
    %vm1912 = vcmp.eq.f32.partialorder %v1911, 8.507059e+37
    %v1913 = vand.u32 %v1886, 2147483648
    %v1914 = vor.u32 1.1754944e-38, %v1913
    %v1915 = vsel %vm1912, %v1914, %v1910
    %v1916 = vmul.f32 1.0, %v1915
    %v1917 = vtanh.pop %v1802
    %v1918 = vmul.f32 %v1901, %v1456
    %1920 = vrot.lane.b32.xlu0 %v1917, 64
    %v1921 = vpop.permute.xlu0 %1920
    %v1923 = vmul.f32 %v1901, %v1921
    %1925 = vrot.lane.b32.xlu0 %v1923, 64
    %v1926 = vpop.permute.xlu0 %1925
    %v1928 = vadd.f32 %v1918, %v1926
    %v1929 = vtanh.pop %v1928
    %1931 = vrot.lane.b32.xlu0 %v1929, 64
    %v1932 = vpop.permute.xlu0 %1931
    %v1934 = vmul.f32 %v1916, %v1932
    %v1935 = vpack.c.bf16 %v1934, %v1934
    %v1936 = vld [vmem:[%s6] sm:$0xff]
    %v1937 = vld [vmem:[%s6 + $0x8] sm:$0xff]
    %v1938 = vld [vmem:[%s6 + $0x10] sm:$0xff]
    %v1939 = vld [vmem:[%s6 + $0x18] sm:$0xff]
    %v1940 = vld [vmem:[%s6 + $0x20] sm:$0xff]
    %v1941 = vld [vmem:[%s6 + $0x28] sm:$0xff]
    %v1942 = vld [vmem:[%s6 + $0x30] sm:$0xff]
    %v1943 = vld [vmem:[%s6 + $0x38] sm:$0xff]
    %v1952 = vunpack.c.l.b16 %v1936
    %v1953 = vunpack.c.h.b16 %v1936
    %v1954 = vunpack.c.l.b16 %v1937
    %v1955 = vunpack.c.h.b16 %v1937
    %v1956 = vunpack.c.l.b16 %v1938
    %v1957 = vunpack.c.h.b16 %v1938
    %v1958 = vunpack.c.l.b16 %v1939
    %v1959 = vunpack.c.h.b16 %v1939
    %v1960 = vunpack.c.l.b16 %v1940
    %v1961 = vunpack.c.h.b16 %v1940
    %v1962 = vunpack.c.l.b16 %v1941
    %v1963 = vunpack.c.h.b16 %v1941
    %v1964 = vunpack.c.l.b16 %v1942
    %v1965 = vunpack.c.h.b16 %v1942
    %v1966 = vunpack.c.l.b16 %v1943
    %v1967 = vunpack.c.h.b16 %v1943
    %v1968 = vpack.c.b16 %v1954, %v1952
    %v1969 = vpack.c.b16 %v1955, %v1953
    %v1970 = vpack.c.b16 %v1958, %v1956
    %v1971 = vpack.c.b16 %v1959, %v1957
    %v1972 = vpack.c.b16 %v1962, %v1960
    %v1973 = vpack.c.b16 %v1963, %v1961
    %v1974 = vpack.c.b16 %v1966, %v1964
    %v1975 = vpack.c.b16 %v1967, %v1965
    %v1985 = vsel %vm125, %v1935, 0
    %1987 = vmatpush.bf16.msra.mxu0 0
    %1988 = vmatpush.bf16.msra.mxu0 0
    %1989 = vmatpush.bf16.msra.mxu0 0
    %1990 = vmatpush.bf16.msra.mxu0 0
    %1991 = vmatpush.bf16.msra.mxu0 %v1974
    %1992 = vmatpush.bf16.msra.mxu0 %v1972
    %1993 = vmatpush.bf16.msra.mxu0 %v1970
    %1994 = vmatpush.bf16.msra.mxu0 %v1968
    %1995 = vmatmul.bf16.gmra.mxu0 %v1985
    %v1996 = vpop.f32.mrf.mxu0
    %v1997 = vadd.f32 %v1863, %v1996
    %v1998 = vpop.f32.mrf.mxu0
    %1999 = vdwg.mxu0
    %2000 = vmatpush.bf16.msra.mxu0 0
    %2001 = vmatpush.bf16.msra.mxu0 0
    %2002 = vmatpush.bf16.msra.mxu0 0
    %2003 = vmatpush.bf16.msra.mxu0 0
    %2004 = vmatpush.bf16.msra.mxu0 %v1975
    %2005 = vmatpush.bf16.msra.mxu0 %v1973
    %2006 = vmatpush.bf16.msra.mxu0 %v1971
    %2007 = vmatpush.bf16.msra.mxu0 %v1969
    %2008 = vmatmul.bf16.gmra.mxu0 %v1985
    %v2009 = vpop.f32.mrf.mxu0
    %v2010 = vadd.f32 %v1876, %v2009
    %v2011 = vpop.f32.mrf.mxu0
    %2012 = vdwg.mxu0
    %v2013 = vxor.u32 %v1997, 2147483648
    %v2014 = vxor.u32 %v2010, 2147483648
    %v2015 = vmul.f32 %v2013, 1.442695
    %v2016 = vpow.pop %v2015
    %v2017 = vmul.f32 %v2014, 1.442695
    %v2018 = vpow.pop %v2017
    %v2019 = vadd.f32 %v2016, 1.0
    %v2020 = vadd.f32 %v2018, 1.0
    %v2021 = vrcp.pop %v2019
    %v2022 = vmul.f32 %v2019, %v2021
    %v2023 = vsub.f32 1.0, %v2022
    %v2024 = vmul.f32 %v2021, %v2023
    %v2025 = vadd.f32 %v2021, %v2024
    %vm2026 = vweird.f32 %v2019
    %vm2027 = vweird.f32 %v2021
    %vm2028 = vmor %vm2026, %vm2027
    %v2029 = vsel %vm2028, %v2021, %v2025
    %v2030 = vand.u32 2147483647, %v2019
    %vm2031 = vcmp.eq.f32.partialorder %v2030, 8.507059e+37
    %v2032 = vand.u32 %v2019, 2147483648
    %v2033 = vor.u32 1.1754944e-38, %v2032
    %v2034 = vsel %vm2031, %v2033, %v2029
    %v2035 = vmul.f32 1.0, %v2034
    %v2036 = vrcp.pop %v2020
    %v2037 = vmul.f32 %v2020, %v2036
    %v2038 = vsub.f32 1.0, %v2037
    %v2039 = vmul.f32 %v2036, %v2038
    %v2040 = vadd.f32 %v2036, %v2039
    %vm2041 = vweird.f32 %v2020
    %vm2042 = vweird.f32 %v2036
    %vm2043 = vmor %vm2041, %vm2042
    %v2044 = vsel %vm2043, %v2036, %v2040
    %v2045 = vand.u32 2147483647, %v2020
    %vm2046 = vcmp.eq.f32.partialorder %v2045, 8.507059e+37
    %v2047 = vand.u32 %v2020, 2147483648
    %v2048 = vor.u32 1.1754944e-38, %v2047
    %v2049 = vsel %vm2046, %v2048, %v2044
    %v2050 = vmul.f32 1.0, %v2049
    %v2051 = vtanh.pop %v2010
    %v2052 = vmul.f32 %v2035, %v1590
    %2054 = vrot.lane.b32.xlu0 %v2051, 64
    %v2055 = vpop.permute.xlu0 %2054
    %v2057 = vmul.f32 %v2035, %v2055
    %2059 = vrot.lane.b32.xlu0 %v2057, 64
    %v2060 = vpop.permute.xlu0 %2059
    %v2062 = vadd.f32 %v2052, %v2060
    %v2063 = vtanh.pop %v2062
    %2065 = vrot.lane.b32.xlu0 %v2063, 64
    %v2066 = vpop.permute.xlu0 %2065
    %v2068 = vmul.f32 %v2050, %v2066
    %v2069 = vpack.c.bf16 %v2068, %v2068
    %v2070 = vld [vmem:[%s9] sm:$0xf]
    %v2071 = vld [vmem:[%s9 + $0x4] sm:$0xf]
    %v2072 = vld [vmem:[%s9 + $0x8] sm:$0xf]
    %v2073 = vld [vmem:[%s9 + $0xc] sm:$0xf]
    %v2074 = vld [vmem:[%s9 + $0x10] sm:$0xf]
    %v2075 = vld [vmem:[%s9 + $0x14] sm:$0xf]
    %v2076 = vld [vmem:[%s9 + $0x18] sm:$0xf]
    %v2077 = vld [vmem:[%s9 + $0x1c] sm:$0xf]
    %v2086 = vunpack.c.l.b16 %v2070
    %v2087 = vunpack.c.l.b16 %v2071
    %v2088 = vunpack.c.l.b16 %v2072
    %v2089 = vunpack.c.l.b16 %v2073
    %v2090 = vunpack.c.l.b16 %v2074
    %v2091 = vunpack.c.l.b16 %v2075
    %v2092 = vunpack.c.l.b16 %v2076
    %v2093 = vunpack.c.l.b16 %v2077
    %v2094 = vpack.c.b16 %v2087, %v2086
    %v2095 = vpack.c.b16 %v2089, %v2088
    %v2096 = vpack.c.b16 %v2091, %v2090
    %v2097 = vpack.c.b16 %v2093, %v2092
    %v2103 = vsel %vm125, %v2069, 0
    %2105 = vmatpush.bf16.msra.mxu0 0
    %2106 = vmatpush.bf16.msra.mxu0 0
    %2107 = vmatpush.bf16.msra.mxu0 0
    %2108 = vmatpush.bf16.msra.mxu0 0
    %2109 = vmatpush.bf16.msra.mxu0 %v2097
    %2110 = vmatpush.bf16.msra.mxu0 %v2096
    %2111 = vmatpush.bf16.msra.mxu0 %v2095
    %2112 = vmatpush.bf16.msra.mxu0 %v2094
    %2113 = vmatmul.bf16.gmra.mxu0 %v2103
    %v2114 = vpop.f32.mrf.mxu0
    %v2115 = vadd.f32 %v256, %v2114
    %v2116 = vpop.f32.mrf.mxu0
    %2117 = vdwg.mxu0
    %2119 = vrot.lane.b32.xlu0 %v2115, 96
    %v2120 = vpop.permute.xlu0 %2119
    %vm2122 = vcmask 1048320
    %2123 = vst.msk [vmem:[#allocation2] sm:$0xff] %vm2122, %v2120
    %v2124 = vshra.s32 %v2115, 31
    %v2125 = vand.u32 %v2124, 2147483647
    %v2126 = vxor.u32 %v2115, %v2125
    %v2127 = vand.u32 %v2126, 4294967264
    %v2128 = vor.u32 %v2127, %v711
    %v2129 = vsel %vm233, %v2128, 2147483648
    %v2130 = vand.u32 %v2129, 65535
    %v2131 = vshra.s32 %v2129, 16
    %v2132 = vcvt.s32.f32 %v2130
    %v2133 = vcvt.s32.f32 %v2131
    %2134 = vmax.xlane.f32.xlu0 %v2133
    %v2135 = vpop.xlane.xlu0 %2134
    %vm2136 = vcmp.eq.f32.partialorder %v2133, %v2135
    %v2137 = vsel %vm2136, %v2132, -inf
    %2138 = vmax.xlane.f32.xlu0 %v2137
    %v2139 = vpop.xlane.xlu0 %2138
    %v2140 = vcvt.f32.s32 %v2139
    %v2141 = vcvt.f32.s32 %v2135
    %v2142 = vshll.u32 %v2141, 16
    %v2143 = vadd.s32 %v2142, %v2140
    %v2144 = vand.u32 %v2143, 31
    %v2145 = vsub.s32 31, %v2144
    %vm2146 = vcmp.eq.s32.totalorder %v237, %v2145
    %v2147 = vsel %vm2146, 1, 0
    %v2148 = vcvt.s32.f32 %v2147
    %v2149 = vpack.c.bf16 %v2148, %v2148
    %v2150 = vld [vmem:[%s3] sm:$0xff]
    %v2151 = vld [vmem:[%s3 + $0x8] sm:$0xff]
    %v2152 = vld [vmem:[%s3 + $0x10] sm:$0xff]
    %v2153 = vld [vmem:[%s3 + $0x18] sm:$0xff]
    %v2154 = vld [vmem:[%s4] sm:$0xff]
    %v2155 = vld [vmem:[%s4 + $0x8] sm:$0xff]
    %v2156 = vld [vmem:[%s4 + $0x10] sm:$0xff]
    %v2157 = vld [vmem:[%s4 + $0x18] sm:$0xff]
    %v2158 = vld [vmem:[%s4 + $0x20] sm:$0xff]
    %v2159 = vld [vmem:[%s4 + $0x28] sm:$0xff]
    %v2160 = vld [vmem:[%s4 + $0x30] sm:$0xff]
    %v2161 = vld [vmem:[%s4 + $0x38] sm:$0xff]
    %v2170 = vunpack.c.l.b16 %v2154
    %v2171 = vunpack.c.h.b16 %v2154
    %v2172 = vunpack.c.l.b16 %v2155
    %v2173 = vunpack.c.h.b16 %v2155
    %v2174 = vunpack.c.l.b16 %v2156
    %v2175 = vunpack.c.h.b16 %v2156
    %v2176 = vunpack.c.l.b16 %v2157
    %v2177 = vunpack.c.h.b16 %v2157
    %v2178 = vunpack.c.l.b16 %v2158
    %v2179 = vunpack.c.h.b16 %v2158
    %v2180 = vunpack.c.l.b16 %v2159
    %v2181 = vunpack.c.h.b16 %v2159
    %v2182 = vunpack.c.l.b16 %v2160
    %v2183 = vunpack.c.h.b16 %v2160
    %v2184 = vunpack.c.l.b16 %v2161
    %v2185 = vunpack.c.h.b16 %v2161
    %v2186 = vpack.c.b16 %v2172, %v2170
    %v2187 = vpack.c.b16 %v2173, %v2171
    %v2188 = vpack.c.b16 %v2176, %v2174
    %v2189 = vpack.c.b16 %v2177, %v2175
    %v2190 = vpack.c.b16 %v2180, %v2178
    %v2191 = vpack.c.b16 %v2181, %v2179
    %v2192 = vpack.c.b16 %v2184, %v2182
    %v2193 = vpack.c.b16 %v2185, %v2183
    %2202 = vmatpush.bf16.msra.mxu0 0
    %2203 = vmatpush.bf16.msra.mxu0 0
    %2204 = vmatpush.bf16.msra.mxu0 0
    %2205 = vmatpush.bf16.msra.mxu0 0
    %2206 = vmatpush.bf16.msra.mxu0 %v2192
    %2207 = vmatpush.bf16.msra.mxu0 %v2190
    %2208 = vmatpush.bf16.msra.mxu0 %v2188
    %2209 = vmatpush.bf16.msra.mxu0 %v2186
    %2210 = vmatmul.bf16.gmra.mxu0 %v1985
    %v2211 = vpop.f32.mrf.mxu0
    %v2212 = vadd.f32 %v244, %v2211
    %v2213 = vpop.f32.mrf.mxu0
    %2214 = vdwg.mxu0
    %2215 = vmatpush.bf16.msra.mxu0 0
    %2216 = vmatpush.bf16.msra.mxu0 0
    %2217 = vmatpush.bf16.msra.mxu0 0
    %2218 = vmatpush.bf16.msra.mxu0 0
    %2219 = vmatpush.bf16.msra.mxu0 %v2193
    %2220 = vmatpush.bf16.msra.mxu0 %v2191
    %2221 = vmatpush.bf16.msra.mxu0 %v2189
    %2222 = vmatpush.bf16.msra.mxu0 %v2187
    %2223 = vmatmul.bf16.gmra.mxu0 %v1985
    %v2224 = vpop.f32.mrf.mxu0
    %v2225 = vadd.f32 %v245, %v2224
    %v2226 = vpop.f32.mrf.mxu0
    %2227 = vdwg.mxu0
    %v2232 = vunpack.c.l.b16 %v2150
    %v2233 = vunpack.c.h.b16 %v2150
    %v2234 = vunpack.c.l.b16 %v2151
    %v2235 = vunpack.c.h.b16 %v2151
    %v2236 = vunpack.c.l.b16 %v2152
    %v2237 = vunpack.c.h.b16 %v2152
    %v2238 = vunpack.c.l.b16 %v2153
    %v2239 = vunpack.c.h.b16 %v2153
    %v2240 = vpack.c.b16 %v2234, %v2232
    %v2241 = vpack.c.b16 %v2235, %v2233
    %v2242 = vpack.c.b16 %v2238, %v2236
    %v2243 = vpack.c.b16 %v2239, %v2237
    %v2249 = vsel %vm233, %v2149, 0
    %2251 = vmatpush.bf16.msra.mxu0 0
    %2252 = vmatpush.bf16.msra.mxu0 0
    %2253 = vmatpush.bf16.msra.mxu0 0
    %2254 = vmatpush.bf16.msra.mxu0 0
    %2255 = vmatpush.bf16.msra.mxu0 0
    %2256 = vmatpush.bf16.msra.mxu0 0
    %2257 = vmatpush.bf16.msra.mxu0 %v2242
    %2258 = vmatpush.bf16.msra.mxu0 %v2240
    %2259 = vmatmul.bf16.gmra.mxu0 %v2249
    %v2260 = vpop.f32.mrf.mxu0
    %v2261 = vadd.f32 %v2212, %v2260
    %v2262 = vpop.f32.mrf.mxu0
    %2263 = vdwg.mxu0
    %2264 = vmatpush.bf16.msra.mxu0 0
    %2265 = vmatpush.bf16.msra.mxu0 0
    %2266 = vmatpush.bf16.msra.mxu0 0
    %2267 = vmatpush.bf16.msra.mxu0 0
    %2268 = vmatpush.bf16.msra.mxu0 0
    %2269 = vmatpush.bf16.msra.mxu0 0
    %2270 = vmatpush.bf16.msra.mxu0 %v2243
    %2271 = vmatpush.bf16.msra.mxu0 %v2241
    %2272 = vmatmul.bf16.gmra.mxu0 %v2249
    %v2273 = vpop.f32.mrf.mxu0
    %v2274 = vadd.f32 %v2225, %v2273
    %v2275 = vpop.f32.mrf.mxu0
    %2276 = vdwg.mxu0
    %v2277 = vld [vmem:[%s7] sm:$0xff]
    %v2278 = vld [vmem:[%s7 + $0x8] sm:$0xff]
    %v2279 = vld [vmem:[%s7 + $0x10] sm:$0xff]
    %v2280 = vld [vmem:[%s7 + $0x18] sm:$0xff]
    %v2281 = vld [vmem:[%s7 + $0x20] sm:$0xff]
    %v2282 = vld [vmem:[%s7 + $0x28] sm:$0xff]
    %v2283 = vld [vmem:[%s7 + $0x30] sm:$0xff]
    %v2284 = vld [vmem:[%s7 + $0x38] sm:$0xff]
    %v2293 = vunpack.c.l.b16 %v2277
    %v2294 = vunpack.c.h.b16 %v2277
    %v2295 = vunpack.c.l.b16 %v2278
    %v2296 = vunpack.c.h.b16 %v2278
    %v2297 = vunpack.c.l.b16 %v2279
    %v2298 = vunpack.c.h.b16 %v2279
    %v2299 = vunpack.c.l.b16 %v2280
    %v2300 = vunpack.c.h.b16 %v2280
    %v2301 = vunpack.c.l.b16 %v2281
    %v2302 = vunpack.c.h.b16 %v2281
    %v2303 = vunpack.c.l.b16 %v2282
    %v2304 = vunpack.c.h.b16 %v2282
    %v2305 = vunpack.c.l.b16 %v2283
    %v2306 = vunpack.c.h.b16 %v2283
    %v2307 = vunpack.c.l.b16 %v2284
    %v2308 = vunpack.c.h.b16 %v2284
    %v2309 = vpack.c.b16 %v2295, %v2293
    %v2310 = vpack.c.b16 %v2296, %v2294
    %v2311 = vpack.c.b16 %v2299, %v2297
    %v2312 = vpack.c.b16 %v2300, %v2298
    %v2313 = vpack.c.b16 %v2303, %v2301
    %v2314 = vpack.c.b16 %v2304, %v2302
    %v2315 = vpack.c.b16 %v2307, %v2305
    %v2316 = vpack.c.b16 %v2308, %v2306
    %2325 = vmatpush.bf16.msra.mxu0 0
    %2326 = vmatpush.bf16.msra.mxu0 0
    %2327 = vmatpush.bf16.msra.mxu0 0
    %2328 = vmatpush.bf16.msra.mxu0 0
    %2329 = vmatpush.bf16.msra.mxu0 %v2315
    %2330 = vmatpush.bf16.msra.mxu0 %v2313
    %2331 = vmatpush.bf16.msra.mxu0 %v2311
    %2332 = vmatpush.bf16.msra.mxu0 %v2309
    %2333 = vmatmul.bf16.gmra.mxu0 %v2103
    %v2334 = vpop.f32.mrf.mxu0
    %v2335 = vadd.f32 %v250, %v2334
    %v2336 = vpop.f32.mrf.mxu0
    %2337 = vdwg.mxu0
    %2338 = vmatpush.bf16.msra.mxu0 0
    %2339 = vmatpush.bf16.msra.mxu0 0
    %2340 = vmatpush.bf16.msra.mxu0 0
    %2341 = vmatpush.bf16.msra.mxu0 0
    %2342 = vmatpush.bf16.msra.mxu0 %v2316
    %2343 = vmatpush.bf16.msra.mxu0 %v2314
    %2344 = vmatpush.bf16.msra.mxu0 %v2312
    %2345 = vmatpush.bf16.msra.mxu0 %v2310
    %2346 = vmatmul.bf16.gmra.mxu0 %v2103
    %v2347 = vpop.f32.mrf.mxu0
    %v2348 = vadd.f32 %v251, %v2347
    %v2349 = vpop.f32.mrf.mxu0
    %2350 = vdwg.mxu0
    %v2351 = vxor.u32 %v2261, 2147483648
    %v2352 = vxor.u32 %v2274, 2147483648
    %v2353 = vmul.f32 %v2351, 1.442695
    %v2354 = vpow.pop %v2353
    %v2355 = vmul.f32 %v2352, 1.442695
    %v2356 = vpow.pop %v2355
    %v2357 = vadd.f32 %v2354, 1.0
    %v2358 = vadd.f32 %v2356, 1.0
    %v2359 = vrcp.pop %v2357
    %v2360 = vmul.f32 %v2357, %v2359
    %v2361 = vsub.f32 1.0, %v2360
    %v2362 = vmul.f32 %v2359, %v2361
    %v2363 = vadd.f32 %v2359, %v2362
    %vm2364 = vweird.f32 %v2357
    %vm2365 = vweird.f32 %v2359
    %vm2366 = vmor %vm2364, %vm2365
    %v2367 = vsel %vm2366, %v2359, %v2363
    %v2368 = vand.u32 2147483647, %v2357
    %vm2369 = vcmp.eq.f32.partialorder %v2368, 8.507059e+37
    %v2370 = vand.u32 %v2357, 2147483648
    %v2371 = vor.u32 1.1754944e-38, %v2370
    %v2372 = vsel %vm2369, %v2371, %v2367
    %v2373 = vmul.f32 1.0, %v2372
    %v2374 = vrcp.pop %v2358
    %v2375 = vmul.f32 %v2358, %v2374
    %v2376 = vsub.f32 1.0, %v2375
    %v2377 = vmul.f32 %v2374, %v2376
    %v2378 = vadd.f32 %v2374, %v2377
    %vm2379 = vweird.f32 %v2358
    %vm2380 = vweird.f32 %v2374
    %vm2381 = vmor %vm2379, %vm2380
    %v2382 = vsel %vm2381, %v2374, %v2378
    %v2383 = vand.u32 2147483647, %v2358
    %vm2384 = vcmp.eq.f32.partialorder %v2383, 8.507059e+37
    %v2385 = vand.u32 %v2358, 2147483648
    %v2386 = vor.u32 1.1754944e-38, %v2385
    %v2387 = vsel %vm2384, %v2386, %v2382
    %v2388 = vmul.f32 1.0, %v2387
    %v2389 = vtanh.pop %v2274
    %v2390 = vmul.f32 %v2373, %v1928
    %2392 = vrot.lane.b32.xlu0 %v2389, 64
    %v2393 = vpop.permute.xlu0 %2392
    %v2395 = vmul.f32 %v2373, %v2393
    %2397 = vrot.lane.b32.xlu0 %v2395, 64
    %v2398 = vpop.permute.xlu0 %2397
    %v2400 = vadd.f32 %v2390, %v2398
    %v2401 = vtanh.pop %v2400
    %2403 = vrot.lane.b32.xlu0 %v2401, 64
    %v2404 = vpop.permute.xlu0 %2403
    %v2406 = vmul.f32 %v2388, %v2404
    %v2407 = vpack.c.bf16 %v2406, %v2406
    %v2408 = vld [vmem:[%s6] sm:$0xff]
    %v2409 = vld [vmem:[%s6 + $0x8] sm:$0xff]
    %v2410 = vld [vmem:[%s6 + $0x10] sm:$0xff]
    %v2411 = vld [vmem:[%s6 + $0x18] sm:$0xff]
    %v2412 = vld [vmem:[%s6 + $0x20] sm:$0xff]
    %v2413 = vld [vmem:[%s6 + $0x28] sm:$0xff]
    %v2414 = vld [vmem:[%s6 + $0x30] sm:$0xff]
    %v2415 = vld [vmem:[%s6 + $0x38] sm:$0xff]
    %v2424 = vunpack.c.l.b16 %v2408
    %v2425 = vunpack.c.h.b16 %v2408
    %v2426 = vunpack.c.l.b16 %v2409
    %v2427 = vunpack.c.h.b16 %v2409
    %v2428 = vunpack.c.l.b16 %v2410
    %v2429 = vunpack.c.h.b16 %v2410
    %v2430 = vunpack.c.l.b16 %v2411
    %v2431 = vunpack.c.h.b16 %v2411
    %v2432 = vunpack.c.l.b16 %v2412
    %v2433 = vunpack.c.h.b16 %v2412
    %v2434 = vunpack.c.l.b16 %v2413
    %v2435 = vunpack.c.h.b16 %v2413
    %v2436 = vunpack.c.l.b16 %v2414
    %v2437 = vunpack.c.h.b16 %v2414
    %v2438 = vunpack.c.l.b16 %v2415
    %v2439 = vunpack.c.h.b16 %v2415
    %v2440 = vpack.c.b16 %v2426, %v2424
    %v2441 = vpack.c.b16 %v2427, %v2425
    %v2442 = vpack.c.b16 %v2430, %v2428
    %v2443 = vpack.c.b16 %v2431, %v2429
    %v2444 = vpack.c.b16 %v2434, %v2432
    %v2445 = vpack.c.b16 %v2435, %v2433
    %v2446 = vpack.c.b16 %v2438, %v2436
    %v2447 = vpack.c.b16 %v2439, %v2437
    %v2457 = vsel %vm125, %v2407, 0
    %2459 = vmatpush.bf16.msra.mxu0 0
    %2460 = vmatpush.bf16.msra.mxu0 0
    %2461 = vmatpush.bf16.msra.mxu0 0
    %2462 = vmatpush.bf16.msra.mxu0 0
    %2463 = vmatpush.bf16.msra.mxu0 %v2446
    %2464 = vmatpush.bf16.msra.mxu0 %v2444
    %2465 = vmatpush.bf16.msra.mxu0 %v2442
    %2466 = vmatpush.bf16.msra.mxu0 %v2440
    %2467 = vmatmul.bf16.gmra.mxu0 %v2457
    %v2468 = vpop.f32.mrf.mxu0
    %v2469 = vadd.f32 %v2335, %v2468
    %v2470 = vpop.f32.mrf.mxu0
    %2471 = vdwg.mxu0
    %2472 = vmatpush.bf16.msra.mxu0 0
    %2473 = vmatpush.bf16.msra.mxu0 0
    %2474 = vmatpush.bf16.msra.mxu0 0
    %2475 = vmatpush.bf16.msra.mxu0 0
    %2476 = vmatpush.bf16.msra.mxu0 %v2447
    %2477 = vmatpush.bf16.msra.mxu0 %v2445
    %2478 = vmatpush.bf16.msra.mxu0 %v2443
    %2479 = vmatpush.bf16.msra.mxu0 %v2441
    %2480 = vmatmul.bf16.gmra.mxu0 %v2457
    %v2481 = vpop.f32.mrf.mxu0
    %v2482 = vadd.f32 %v2348, %v2481
    %v2483 = vpop.f32.mrf.mxu0
    %2484 = vdwg.mxu0
    %v2485 = vxor.u32 %v2469, 2147483648
    %v2486 = vxor.u32 %v2482, 2147483648
    %v2487 = vmul.f32 %v2485, 1.442695
    %v2488 = vpow.pop %v2487
    %v2489 = vmul.f32 %v2486, 1.442695
    %v2490 = vpow.pop %v2489
    %v2491 = vadd.f32 %v2488, 1.0
    %v2492 = vadd.f32 %v2490, 1.0
    %v2493 = vrcp.pop %v2491
    %v2494 = vmul.f32 %v2491, %v2493
    %v2495 = vsub.f32 1.0, %v2494
    %v2496 = vmul.f32 %v2493, %v2495
    %v2497 = vadd.f32 %v2493, %v2496
    %vm2498 = vweird.f32 %v2491
    %vm2499 = vweird.f32 %v2493
    %vm2500 = vmor %vm2498, %vm2499
    %v2501 = vsel %vm2500, %v2493, %v2497
    %v2502 = vand.u32 2147483647, %v2491
    %vm2503 = vcmp.eq.f32.partialorder %v2502, 8.507059e+37
    %v2504 = vand.u32 %v2491, 2147483648
    %v2505 = vor.u32 1.1754944e-38, %v2504
    %v2506 = vsel %vm2503, %v2505, %v2501
    %v2507 = vmul.f32 1.0, %v2506
    %v2508 = vrcp.pop %v2492
    %v2509 = vmul.f32 %v2492, %v2508
    %v2510 = vsub.f32 1.0, %v2509
    %v2511 = vmul.f32 %v2508, %v2510
    %v2512 = vadd.f32 %v2508, %v2511
    %vm2513 = vweird.f32 %v2492
    %vm2514 = vweird.f32 %v2508
    %vm2515 = vmor %vm2513, %vm2514
    %v2516 = vsel %vm2515, %v2508, %v2512
    %v2517 = vand.u32 2147483647, %v2492
    %vm2518 = vcmp.eq.f32.partialorder %v2517, 8.507059e+37
    %v2519 = vand.u32 %v2492, 2147483648
    %v2520 = vor.u32 1.1754944e-38, %v2519
    %v2521 = vsel %vm2518, %v2520, %v2516
    %v2522 = vmul.f32 1.0, %v2521
    %v2523 = vtanh.pop %v2482
    %v2524 = vmul.f32 %v2507, %v2062
    %2526 = vrot.lane.b32.xlu0 %v2523, 64
    %v2527 = vpop.permute.xlu0 %2526
    %v2529 = vmul.f32 %v2507, %v2527
    %2531 = vrot.lane.b32.xlu0 %v2529, 64
    %v2532 = vpop.permute.xlu0 %2531
    %v2534 = vadd.f32 %v2524, %v2532
    %v2535 = vtanh.pop %v2534
    %2537 = vrot.lane.b32.xlu0 %v2535, 64
    %v2538 = vpop.permute.xlu0 %2537
    %v2540 = vmul.f32 %v2522, %v2538
    %v2541 = vpack.c.bf16 %v2540, %v2540
    %v2542 = vld [vmem:[%s9] sm:$0xf]
    %v2543 = vld [vmem:[%s9 + $0x4] sm:$0xf]
    %v2544 = vld [vmem:[%s9 + $0x8] sm:$0xf]
    %v2545 = vld [vmem:[%s9 + $0xc] sm:$0xf]
    %v2546 = vld [vmem:[%s9 + $0x10] sm:$0xf]
    %v2547 = vld [vmem:[%s9 + $0x14] sm:$0xf]
    %v2548 = vld [vmem:[%s9 + $0x18] sm:$0xf]
    %v2549 = vld [vmem:[%s9 + $0x1c] sm:$0xf]
    %v2558 = vunpack.c.l.b16 %v2542
    %v2559 = vunpack.c.l.b16 %v2543
    %v2560 = vunpack.c.l.b16 %v2544
    %v2561 = vunpack.c.l.b16 %v2545
    %v2562 = vunpack.c.l.b16 %v2546
    %v2563 = vunpack.c.l.b16 %v2547
    %v2564 = vunpack.c.l.b16 %v2548
    %v2565 = vunpack.c.l.b16 %v2549
    %v2566 = vpack.c.b16 %v2559, %v2558
    %v2567 = vpack.c.b16 %v2561, %v2560
    %v2568 = vpack.c.b16 %v2563, %v2562
    %v2569 = vpack.c.b16 %v2565, %v2564
    %v2575 = vsel %vm125, %v2541, 0
    %2577 = vmatpush.bf16.msra.mxu0 0
    %2578 = vmatpush.bf16.msra.mxu0 0
    %2579 = vmatpush.bf16.msra.mxu0 0
    %2580 = vmatpush.bf16.msra.mxu0 0
    %2581 = vmatpush.bf16.msra.mxu0 %v2569
    %2582 = vmatpush.bf16.msra.mxu0 %v2568
    %2583 = vmatpush.bf16.msra.mxu0 %v2567
    %2584 = vmatpush.bf16.msra.mxu0 %v2566
    %2585 = vmatmul.bf16.gmra.mxu0 %v2575
    %v2586 = vpop.f32.mrf.mxu0
    %v2587 = vadd.f32 %v256, %v2586
    %v2588 = vpop.f32.mrf.mxu0
    %2589 = vdwg.mxu0
    %2590 = vst.msk [vmem:[#allocation2 + $0x8] sm:$0xff] %vm233, %v2587
    %v2592 = vshra.s32 %v2587, 31
    %v2593 = vand.u32 %v2592, 2147483647
    %v2594 = vxor.u32 %v2587, %v2593
    %v2595 = vand.u32 %v2594, 4294967264
    %v2596 = vor.u32 %v2595, %v711
    %v2597 = vsel %vm233, %v2596, 2147483648
    %v2598 = vand.u32 %v2597, 65535
    %v2599 = vshra.s32 %v2597, 16
    %v2600 = vcvt.s32.f32 %v2598
    %v2601 = vcvt.s32.f32 %v2599
    %2602 = vmax.xlane.f32.xlu0 %v2601
    %v2603 = vpop.xlane.xlu0 %2602
    %vm2604 = vcmp.eq.f32.partialorder %v2601, %v2603
    %v2605 = vsel %vm2604, %v2600, -inf
    %2606 = vmax.xlane.f32.xlu0 %v2605
    %v2607 = vpop.xlane.xlu0 %2606
    %v2608 = vcvt.f32.s32 %v2607
    %v2609 = vcvt.f32.s32 %v2603
    %v2610 = vshll.u32 %v2609, 16
    %v2611 = vadd.s32 %v2610, %v2608
    %v2612 = vand.u32 %v2611, 31
    %v2613 = vsub.s32 31, %v2612
    %vm2614 = vcmp.eq.s32.totalorder %v237, %v2613
    %v2615 = vsel %vm2614, 1, 0
    %v2616 = vcvt.s32.f32 %v2615
    %v2617 = vpack.c.bf16 %v2616, %v2616
    %v2618 = vld [vmem:[%s3] sm:$0xff]
    %v2619 = vld [vmem:[%s3 + $0x8] sm:$0xff]
    %v2620 = vld [vmem:[%s3 + $0x10] sm:$0xff]
    %v2621 = vld [vmem:[%s3 + $0x18] sm:$0xff]
    %v2622 = vld [vmem:[%s4] sm:$0xff]
    %v2623 = vld [vmem:[%s4 + $0x8] sm:$0xff]
    %v2624 = vld [vmem:[%s4 + $0x10] sm:$0xff]
    %v2625 = vld [vmem:[%s4 + $0x18] sm:$0xff]
    %v2626 = vld [vmem:[%s4 + $0x20] sm:$0xff]
    %v2627 = vld [vmem:[%s4 + $0x28] sm:$0xff]
    %v2628 = vld [vmem:[%s4 + $0x30] sm:$0xff]
    %v2629 = vld [vmem:[%s4 + $0x38] sm:$0xff]
    %v2638 = vunpack.c.l.b16 %v2622
    %v2639 = vunpack.c.h.b16 %v2622
    %v2640 = vunpack.c.l.b16 %v2623
    %v2641 = vunpack.c.h.b16 %v2623
    %v2642 = vunpack.c.l.b16 %v2624
    %v2643 = vunpack.c.h.b16 %v2624
    %v2644 = vunpack.c.l.b16 %v2625
    %v2645 = vunpack.c.h.b16 %v2625
    %v2646 = vunpack.c.l.b16 %v2626
    %v2647 = vunpack.c.h.b16 %v2626
    %v2648 = vunpack.c.l.b16 %v2627
    %v2649 = vunpack.c.h.b16 %v2627
    %v2650 = vunpack.c.l.b16 %v2628
    %v2651 = vunpack.c.h.b16 %v2628
    %v2652 = vunpack.c.l.b16 %v2629
    %v2653 = vunpack.c.h.b16 %v2629
    %v2654 = vpack.c.b16 %v2640, %v2638
    %v2655 = vpack.c.b16 %v2641, %v2639
    %v2656 = vpack.c.b16 %v2644, %v2642
    %v2657 = vpack.c.b16 %v2645, %v2643
    %v2658 = vpack.c.b16 %v2648, %v2646
    %v2659 = vpack.c.b16 %v2649, %v2647
    %v2660 = vpack.c.b16 %v2652, %v2650
    %v2661 = vpack.c.b16 %v2653, %v2651
    %2670 = vmatpush.bf16.msra.mxu0 0
    %2671 = vmatpush.bf16.msra.mxu0 0
    %2672 = vmatpush.bf16.msra.mxu0 0
    %2673 = vmatpush.bf16.msra.mxu0 0
    %2674 = vmatpush.bf16.msra.mxu0 %v2660
    %2675 = vmatpush.bf16.msra.mxu0 %v2658
    %2676 = vmatpush.bf16.msra.mxu0 %v2656
    %2677 = vmatpush.bf16.msra.mxu0 %v2654
    %2678 = vmatmul.bf16.gmra.mxu0 %v2457
    %v2679 = vpop.f32.mrf.mxu0
    %v2680 = vadd.f32 %v244, %v2679
    %v2681 = vpop.f32.mrf.mxu0
    %2682 = vdwg.mxu0
    %2683 = vmatpush.bf16.msra.mxu0 0
    %2684 = vmatpush.bf16.msra.mxu0 0
    %2685 = vmatpush.bf16.msra.mxu0 0
    %2686 = vmatpush.bf16.msra.mxu0 0
    %2687 = vmatpush.bf16.msra.mxu0 %v2661
    %2688 = vmatpush.bf16.msra.mxu0 %v2659
    %2689 = vmatpush.bf16.msra.mxu0 %v2657
    %2690 = vmatpush.bf16.msra.mxu0 %v2655
    %2691 = vmatmul.bf16.gmra.mxu0 %v2457
    %v2692 = vpop.f32.mrf.mxu0
    %v2693 = vadd.f32 %v245, %v2692
    %v2694 = vpop.f32.mrf.mxu0
    %2695 = vdwg.mxu0
    %v2700 = vunpack.c.l.b16 %v2618
    %v2701 = vunpack.c.h.b16 %v2618
    %v2702 = vunpack.c.l.b16 %v2619
    %v2703 = vunpack.c.h.b16 %v2619
    %v2704 = vunpack.c.l.b16 %v2620
    %v2705 = vunpack.c.h.b16 %v2620
    %v2706 = vunpack.c.l.b16 %v2621
    %v2707 = vunpack.c.h.b16 %v2621
    %v2708 = vpack.c.b16 %v2702, %v2700
    %v2709 = vpack.c.b16 %v2703, %v2701
    %v2710 = vpack.c.b16 %v2706, %v2704
    %v2711 = vpack.c.b16 %v2707, %v2705
    %v2717 = vsel %vm233, %v2617, 0
    %2719 = vmatpush.bf16.msra.mxu0 0
    %2720 = vmatpush.bf16.msra.mxu0 0
    %2721 = vmatpush.bf16.msra.mxu0 0
    %2722 = vmatpush.bf16.msra.mxu0 0
    %2723 = vmatpush.bf16.msra.mxu0 0
    %2724 = vmatpush.bf16.msra.mxu0 0
    %2725 = vmatpush.bf16.msra.mxu0 %v2710
    %2726 = vmatpush.bf16.msra.mxu0 %v2708
    %2727 = vmatmul.bf16.gmra.mxu0 %v2717
    %v2728 = vpop.f32.mrf.mxu0
    %v2729 = vadd.f32 %v2680, %v2728
    %v2730 = vpop.f32.mrf.mxu0
    %2731 = vdwg.mxu0
    %2732 = vmatpush.bf16.msra.mxu0 0
    %2733 = vmatpush.bf16.msra.mxu0 0
    %2734 = vmatpush.bf16.msra.mxu0 0
    %2735 = vmatpush.bf16.msra.mxu0 0
    %2736 = vmatpush.bf16.msra.mxu0 0
    %2737 = vmatpush.bf16.msra.mxu0 0
    %2738 = vmatpush.bf16.msra.mxu0 %v2711
    %2739 = vmatpush.bf16.msra.mxu0 %v2709
    %2740 = vmatmul.bf16.gmra.mxu0 %v2717
    %v2741 = vpop.f32.mrf.mxu0
    %v2742 = vadd.f32 %v2693, %v2741
    %v2743 = vpop.f32.mrf.mxu0
    %2744 = vdwg.mxu0
    %v2745 = vld [vmem:[%s7] sm:$0xff]
    %v2746 = vld [vmem:[%s7 + $0x8] sm:$0xff]
    %v2747 = vld [vmem:[%s7 + $0x10] sm:$0xff]
    %v2748 = vld [vmem:[%s7 + $0x18] sm:$0xff]
    %v2749 = vld [vmem:[%s7 + $0x20] sm:$0xff]
    %v2750 = vld [vmem:[%s7 + $0x28] sm:$0xff]
    %v2751 = vld [vmem:[%s7 + $0x30] sm:$0xff]
    %v2752 = vld [vmem:[%s7 + $0x38] sm:$0xff]
    %v2761 = vunpack.c.l.b16 %v2745
    %v2762 = vunpack.c.h.b16 %v2745
    %v2763 = vunpack.c.l.b16 %v2746
    %v2764 = vunpack.c.h.b16 %v2746
    %v2765 = vunpack.c.l.b16 %v2747
    %v2766 = vunpack.c.h.b16 %v2747
    %v2767 = vunpack.c.l.b16 %v2748
    %v2768 = vunpack.c.h.b16 %v2748
    %v2769 = vunpack.c.l.b16 %v2749
    %v2770 = vunpack.c.h.b16 %v2749
    %v2771 = vunpack.c.l.b16 %v2750
    %v2772 = vunpack.c.h.b16 %v2750
    %v2773 = vunpack.c.l.b16 %v2751
    %v2774 = vunpack.c.h.b16 %v2751
    %v2775 = vunpack.c.l.b16 %v2752
    %v2776 = vunpack.c.h.b16 %v2752
    %v2777 = vpack.c.b16 %v2763, %v2761
    %v2778 = vpack.c.b16 %v2764, %v2762
    %v2779 = vpack.c.b16 %v2767, %v2765
    %v2780 = vpack.c.b16 %v2768, %v2766
    %v2781 = vpack.c.b16 %v2771, %v2769
    %v2782 = vpack.c.b16 %v2772, %v2770
    %v2783 = vpack.c.b16 %v2775, %v2773
    %v2784 = vpack.c.b16 %v2776, %v2774
    %2793 = vmatpush.bf16.msra.mxu0 0
    %2794 = vmatpush.bf16.msra.mxu0 0
    %2795 = vmatpush.bf16.msra.mxu0 0
    %2796 = vmatpush.bf16.msra.mxu0 0
    %2797 = vmatpush.bf16.msra.mxu0 %v2783
    %2798 = vmatpush.bf16.msra.mxu0 %v2781
    %2799 = vmatpush.bf16.msra.mxu0 %v2779
    %2800 = vmatpush.bf16.msra.mxu0 %v2777
    %2801 = vmatmul.bf16.gmra.mxu0 %v2575
    %v2802 = vpop.f32.mrf.mxu0
    %v2803 = vadd.f32 %v250, %v2802
    %v2804 = vpop.f32.mrf.mxu0
    %2805 = vdwg.mxu0
    %2806 = vmatpush.bf16.msra.mxu0 0
    %2807 = vmatpush.bf16.msra.mxu0 0
    %2808 = vmatpush.bf16.msra.mxu0 0
    %2809 = vmatpush.bf16.msra.mxu0 0
    %2810 = vmatpush.bf16.msra.mxu0 %v2784
    %2811 = vmatpush.bf16.msra.mxu0 %v2782
    %2812 = vmatpush.bf16.msra.mxu0 %v2780
    %2813 = vmatpush.bf16.msra.mxu0 %v2778
    %2814 = vmatmul.bf16.gmra.mxu0 %v2575
    %v2815 = vpop.f32.mrf.mxu0
    %v2816 = vadd.f32 %v251, %v2815
    %v2817 = vpop.f32.mrf.mxu0
    %2818 = vdwg.mxu0
    %v2819 = vxor.u32 %v2729, 2147483648
    %v2820 = vxor.u32 %v2742, 2147483648
    %v2821 = vmul.f32 %v2819, 1.442695
    %v2822 = vpow.pop %v2821
    %v2823 = vmul.f32 %v2820, 1.442695
    %v2824 = vpow.pop %v2823
    %v2825 = vadd.f32 %v2822, 1.0
    %v2826 = vadd.f32 %v2824, 1.0
    %v2827 = vrcp.pop %v2825
    %v2828 = vmul.f32 %v2825, %v2827
    %v2829 = vsub.f32 1.0, %v2828
    %v2830 = vmul.f32 %v2827, %v2829
    %v2831 = vadd.f32 %v2827, %v2830
    %vm2832 = vweird.f32 %v2825
    %vm2833 = vweird.f32 %v2827
    %vm2834 = vmor %vm2832, %vm2833
    %v2835 = vsel %vm2834, %v2827, %v2831
    %v2836 = vand.u32 2147483647, %v2825
    %vm2837 = vcmp.eq.f32.partialorder %v2836, 8.507059e+37
    %v2838 = vand.u32 %v2825, 2147483648
    %v2839 = vor.u32 1.1754944e-38, %v2838
    %v2840 = vsel %vm2837, %v2839, %v2835
    %v2841 = vmul.f32 1.0, %v2840
    %v2842 = vrcp.pop %v2826
    %v2843 = vmul.f32 %v2826, %v2842
    %v2844 = vsub.f32 1.0, %v2843
    %v2845 = vmul.f32 %v2842, %v2844
    %v2846 = vadd.f32 %v2842, %v2845
    %vm2847 = vweird.f32 %v2826
    %vm2848 = vweird.f32 %v2842
    %vm2849 = vmor %vm2847, %vm2848
    %v2850 = vsel %vm2849, %v2842, %v2846
    %v2851 = vand.u32 2147483647, %v2826
    %vm2852 = vcmp.eq.f32.partialorder %v2851, 8.507059e+37
    %v2853 = vand.u32 %v2826, 2147483648
    %v2854 = vor.u32 1.1754944e-38, %v2853
    %v2855 = vsel %vm2852, %v2854, %v2850
    %v2856 = vmul.f32 1.0, %v2855
    %v2857 = vtanh.pop %v2742
    %v2858 = vmul.f32 %v2841, %v2400
    %2860 = vrot.lane.b32.xlu0 %v2857, 64
    %v2861 = vpop.permute.xlu0 %2860
    %v2863 = vmul.f32 %v2841, %v2861
    %2865 = vrot.lane.b32.xlu0 %v2863, 64
    %v2866 = vpop.permute.xlu0 %2865
    %v2868 = vadd.f32 %v2858, %v2866
    %v2869 = vtanh.pop %v2868
    %2871 = vrot.lane.b32.xlu0 %v2869, 64
    %v2872 = vpop.permute.xlu0 %2871
    %v2874 = vmul.f32 %v2856, %v2872
    %v2875 = vpack.c.bf16 %v2874, %v2874
    %v2876 = vld [vmem:[%s6] sm:$0xff]
    %v2877 = vld [vmem:[%s6 + $0x8] sm:$0xff]
    %v2878 = vld [vmem:[%s6 + $0x10] sm:$0xff]
    %v2879 = vld [vmem:[%s6 + $0x18] sm:$0xff]
    %v2880 = vld [vmem:[%s6 + $0x20] sm:$0xff]
    %v2881 = vld [vmem:[%s6 + $0x28] sm:$0xff]
    %v2882 = vld [vmem:[%s6 + $0x30] sm:$0xff]
    %v2883 = vld [vmem:[%s6 + $0x38] sm:$0xff]
    %v2892 = vunpack.c.l.b16 %v2876
    %v2893 = vunpack.c.h.b16 %v2876
    %v2894 = vunpack.c.l.b16 %v2877
    %v2895 = vunpack.c.h.b16 %v2877
    %v2896 = vunpack.c.l.b16 %v2878
    %v2897 = vunpack.c.h.b16 %v2878
    %v2898 = vunpack.c.l.b16 %v2879
    %v2899 = vunpack.c.h.b16 %v2879
    %v2900 = vunpack.c.l.b16 %v2880
    %v2901 = vunpack.c.h.b16 %v2880
    %v2902 = vunpack.c.l.b16 %v2881
    %v2903 = vunpack.c.h.b16 %v2881
    %v2904 = vunpack.c.l.b16 %v2882
    %v2905 = vunpack.c.h.b16 %v2882
    %v2906 = vunpack.c.l.b16 %v2883
    %v2907 = vunpack.c.h.b16 %v2883
    %v2908 = vpack.c.b16 %v2894, %v2892
    %v2909 = vpack.c.b16 %v2895, %v2893
    %v2910 = vpack.c.b16 %v2898, %v2896
    %v2911 = vpack.c.b16 %v2899, %v2897
    %v2912 = vpack.c.b16 %v2902, %v2900
    %v2913 = vpack.c.b16 %v2903, %v2901
    %v2914 = vpack.c.b16 %v2906, %v2904
    %v2915 = vpack.c.b16 %v2907, %v2905
    %v2925 = vsel %vm125, %v2875, 0
    %2927 = vmatpush.bf16.msra.mxu0 0
    %2928 = vmatpush.bf16.msra.mxu0 0
    %2929 = vmatpush.bf16.msra.mxu0 0
    %2930 = vmatpush.bf16.msra.mxu0 0
    %2931 = vmatpush.bf16.msra.mxu0 %v2914
    %2932 = vmatpush.bf16.msra.mxu0 %v2912
    %2933 = vmatpush.bf16.msra.mxu0 %v2910
    %2934 = vmatpush.bf16.msra.mxu0 %v2908
    %2935 = vmatmul.bf16.gmra.mxu0 %v2925
    %v2936 = vpop.f32.mrf.mxu0
    %v2937 = vadd.f32 %v2803, %v2936
    %v2938 = vpop.f32.mrf.mxu0
    %2939 = vdwg.mxu0
    %2940 = vmatpush.bf16.msra.mxu0 0
    %2941 = vmatpush.bf16.msra.mxu0 0
    %2942 = vmatpush.bf16.msra.mxu0 0
    %2943 = vmatpush.bf16.msra.mxu0 0
    %2944 = vmatpush.bf16.msra.mxu0 %v2915
    %2945 = vmatpush.bf16.msra.mxu0 %v2913
    %2946 = vmatpush.bf16.msra.mxu0 %v2911
    %2947 = vmatpush.bf16.msra.mxu0 %v2909
    %2948 = vmatmul.bf16.gmra.mxu0 %v2925
    %v2949 = vpop.f32.mrf.mxu0
    %v2950 = vadd.f32 %v2816, %v2949
    %v2951 = vpop.f32.mrf.mxu0
    %2952 = vdwg.mxu0
    %v2953 = vxor.u32 %v2937, 2147483648
    %v2954 = vxor.u32 %v2950, 2147483648
    %v2955 = vmul.f32 %v2953, 1.442695
    %v2956 = vpow.pop %v2955
    %v2957 = vmul.f32 %v2954, 1.442695
    %v2958 = vpow.pop %v2957
    %v2959 = vadd.f32 %v2956, 1.0
    %v2960 = vadd.f32 %v2958, 1.0
    %v2961 = vrcp.pop %v2959
    %v2962 = vmul.f32 %v2959, %v2961
    %v2963 = vsub.f32 1.0, %v2962
    %v2964 = vmul.f32 %v2961, %v2963
    %v2965 = vadd.f32 %v2961, %v2964
    %vm2966 = vweird.f32 %v2959
    %vm2967 = vweird.f32 %v2961
    %vm2968 = vmor %vm2966, %vm2967
    %v2969 = vsel %vm2968, %v2961, %v2965
    %v2970 = vand.u32 2147483647, %v2959
    %vm2971 = vcmp.eq.f32.partialorder %v2970, 8.507059e+37
    %v2972 = vand.u32 %v2959, 2147483648
    %v2973 = vor.u32 1.1754944e-38, %v2972
    %v2974 = vsel %vm2971, %v2973, %v2969
    %v2975 = vmul.f32 1.0, %v2974
    %v2976 = vrcp.pop %v2960
    %v2977 = vmul.f32 %v2960, %v2976
    %v2978 = vsub.f32 1.0, %v2977
    %v2979 = vmul.f32 %v2976, %v2978
    %v2980 = vadd.f32 %v2976, %v2979
    %vm2981 = vweird.f32 %v2960
    %vm2982 = vweird.f32 %v2976
    %vm2983 = vmor %vm2981, %vm2982
    %v2984 = vsel %vm2983, %v2976, %v2980
    %v2985 = vand.u32 2147483647, %v2960
    %vm2986 = vcmp.eq.f32.partialorder %v2985, 8.507059e+37
    %v2987 = vand.u32 %v2960, 2147483648
    %v2988 = vor.u32 1.1754944e-38, %v2987
    %v2989 = vsel %vm2986, %v2988, %v2984
    %v2990 = vmul.f32 1.0, %v2989
    %v2991 = vtanh.pop %v2950
    %v2992 = vmul.f32 %v2975, %v2534
    %2994 = vrot.lane.b32.xlu0 %v2991, 64
    %v2995 = vpop.permute.xlu0 %2994
    %v2997 = vmul.f32 %v2975, %v2995
    %2999 = vrot.lane.b32.xlu0 %v2997, 64
    %v3000 = vpop.permute.xlu0 %2999
    %v3002 = vadd.f32 %v2992, %v3000
    %v3003 = vtanh.pop %v3002
    %3005 = vrot.lane.b32.xlu0 %v3003, 64
    %v3006 = vpop.permute.xlu0 %3005
    %v3008 = vmul.f32 %v2990, %v3006
    %v3009 = vpack.c.bf16 %v3008, %v3008
    %v3010 = vld [vmem:[%s9] sm:$0xf]
    %v3011 = vld [vmem:[%s9 + $0x4] sm:$0xf]
    %v3012 = vld [vmem:[%s9 + $0x8] sm:$0xf]
    %v3013 = vld [vmem:[%s9 + $0xc] sm:$0xf]
    %v3014 = vld [vmem:[%s9 + $0x10] sm:$0xf]
    %v3015 = vld [vmem:[%s9 + $0x14] sm:$0xf]
    %v3016 = vld [vmem:[%s9 + $0x18] sm:$0xf]
    %v3017 = vld [vmem:[%s9 + $0x1c] sm:$0xf]
    %v3026 = vunpack.c.l.b16 %v3010
    %v3027 = vunpack.c.l.b16 %v3011
    %v3028 = vunpack.c.l.b16 %v3012
    %v3029 = vunpack.c.l.b16 %v3013
    %v3030 = vunpack.c.l.b16 %v3014
    %v3031 = vunpack.c.l.b16 %v3015
    %v3032 = vunpack.c.l.b16 %v3016
    %v3033 = vunpack.c.l.b16 %v3017
    %v3034 = vpack.c.b16 %v3027, %v3026
    %v3035 = vpack.c.b16 %v3029, %v3028
    %v3036 = vpack.c.b16 %v3031, %v3030
    %v3037 = vpack.c.b16 %v3033, %v3032
    %v3043 = vsel %vm125, %v3009, 0
    %3045 = vmatpush.bf16.msra.mxu0 0
    %3046 = vmatpush.bf16.msra.mxu0 0
    %3047 = vmatpush.bf16.msra.mxu0 0
    %3048 = vmatpush.bf16.msra.mxu0 0
    %3049 = vmatpush.bf16.msra.mxu0 %v3037
    %3050 = vmatpush.bf16.msra.mxu0 %v3036
    %3051 = vmatpush.bf16.msra.mxu0 %v3035
    %3052 = vmatpush.bf16.msra.mxu0 %v3034
    %3053 = vmatmul.bf16.gmra.mxu0 %v3043
    %v3054 = vpop.f32.mrf.mxu0
    %v3055 = vadd.f32 %v256, %v3054
    %v3056 = vpop.f32.mrf.mxu0
    %3057 = vdwg.mxu0
    %3059 = vrot.lane.b32.xlu0 %v3055, 32
    %v3060 = vpop.permute.xlu0 %3059
    %3062 = vst.msk [vmem:[#allocation2 + $0x8] sm:$0xff] %vm1178, %v3060
    %v3063 = vshra.s32 %v3055, 31
    %v3064 = vand.u32 %v3063, 2147483647
    %v3065 = vxor.u32 %v3055, %v3064
    %v3066 = vand.u32 %v3065, 4294967264
    %v3067 = vor.u32 %v3066, %v711
    %v3068 = vsel %vm233, %v3067, 2147483648
    %v3069 = vand.u32 %v3068, 65535
    %v3070 = vshra.s32 %v3068, 16
    %v3071 = vcvt.s32.f32 %v3069
    %v3072 = vcvt.s32.f32 %v3070
    %3073 = vmax.xlane.f32.xlu0 %v3072
    %v3074 = vpop.xlane.xlu0 %3073
    %vm3075 = vcmp.eq.f32.partialorder %v3072, %v3074
    %v3076 = vsel %vm3075, %v3071, -inf
    %3077 = vmax.xlane.f32.xlu0 %v3076
    %v3078 = vpop.xlane.xlu0 %3077
    %v3079 = vcvt.f32.s32 %v3078
    %v3080 = vcvt.f32.s32 %v3074
    %v3081 = vshll.u32 %v3080, 16
    %v3082 = vadd.s32 %v3081, %v3079
    %v3083 = vand.u32 %v3082, 31
    %v3084 = vsub.s32 31, %v3083
    %vm3085 = vcmp.eq.s32.totalorder %v237, %v3084
    %v3086 = vsel %vm3085, 1, 0
    %v3087 = vcvt.s32.f32 %v3086
    %v3088 = vpack.c.bf16 %v3087, %v3087
    %v3089 = vld [vmem:[%s3] sm:$0xff]
    %v3090 = vld [vmem:[%s3 + $0x8] sm:$0xff]
    %v3091 = vld [vmem:[%s3 + $0x10] sm:$0xff]
    %v3092 = vld [vmem:[%s3 + $0x18] sm:$0xff]
    %v3093 = vld [vmem:[%s4] sm:$0xff]
    %v3094 = vld [vmem:[%s4 + $0x8] sm:$0xff]
    %v3095 = vld [vmem:[%s4 + $0x10] sm:$0xff]
    %v3096 = vld [vmem:[%s4 + $0x18] sm:$0xff]
    %v3097 = vld [vmem:[%s4 + $0x20] sm:$0xff]
    %v3098 = vld [vmem:[%s4 + $0x28] sm:$0xff]
    %v3099 = vld [vmem:[%s4 + $0x30] sm:$0xff]
    %v3100 = vld [vmem:[%s4 + $0x38] sm:$0xff]
    %v3109 = vunpack.c.l.b16 %v3093
    %v3110 = vunpack.c.h.b16 %v3093
    %v3111 = vunpack.c.l.b16 %v3094
    %v3112 = vunpack.c.h.b16 %v3094
    %v3113 = vunpack.c.l.b16 %v3095
    %v3114 = vunpack.c.h.b16 %v3095
    %v3115 = vunpack.c.l.b16 %v3096
    %v3116 = vunpack.c.h.b16 %v3096
    %v3117 = vunpack.c.l.b16 %v3097
    %v3118 = vunpack.c.h.b16 %v3097
    %v3119 = vunpack.c.l.b16 %v3098
    %v3120 = vunpack.c.h.b16 %v3098
    %v3121 = vunpack.c.l.b16 %v3099
    %v3122 = vunpack.c.h.b16 %v3099
    %v3123 = vunpack.c.l.b16 %v3100
    %v3124 = vunpack.c.h.b16 %v3100
    %v3125 = vpack.c.b16 %v3111, %v3109
    %v3126 = vpack.c.b16 %v3112, %v3110
    %v3127 = vpack.c.b16 %v3115, %v3113
    %v3128 = vpack.c.b16 %v3116, %v3114
    %v3129 = vpack.c.b16 %v3119, %v3117
    %v3130 = vpack.c.b16 %v3120, %v3118
    %v3131 = vpack.c.b16 %v3123, %v3121
    %v3132 = vpack.c.b16 %v3124, %v3122
    %3141 = vmatpush.bf16.msra.mxu0 0
    %3142 = vmatpush.bf16.msra.mxu0 0
    %3143 = vmatpush.bf16.msra.mxu0 0
    %3144 = vmatpush.bf16.msra.mxu0 0
    %3145 = vmatpush.bf16.msra.mxu0 %v3131
    %3146 = vmatpush.bf16.msra.mxu0 %v3129
    %3147 = vmatpush.bf16.msra.mxu0 %v3127
    %3148 = vmatpush.bf16.msra.mxu0 %v3125
    %3149 = vmatmul.bf16.gmra.mxu0 %v2925
    %v3150 = vpop.f32.mrf.mxu0
    %v3151 = vadd.f32 %v244, %v3150
    %v3152 = vpop.f32.mrf.mxu0
    %3153 = vdwg.mxu0
    %3154 = vmatpush.bf16.msra.mxu0 0
    %3155 = vmatpush.bf16.msra.mxu0 0
    %3156 = vmatpush.bf16.msra.mxu0 0
    %3157 = vmatpush.bf16.msra.mxu0 0
    %3158 = vmatpush.bf16.msra.mxu0 %v3132
    %3159 = vmatpush.bf16.msra.mxu0 %v3130
    %3160 = vmatpush.bf16.msra.mxu0 %v3128
    %3161 = vmatpush.bf16.msra.mxu0 %v3126
    %3162 = vmatmul.bf16.gmra.mxu0 %v2925
    %v3163 = vpop.f32.mrf.mxu0
    %v3164 = vadd.f32 %v245, %v3163
    %v3165 = vpop.f32.mrf.mxu0
    %3166 = vdwg.mxu0
    %v3171 = vunpack.c.l.b16 %v3089
    %v3172 = vunpack.c.h.b16 %v3089
    %v3173 = vunpack.c.l.b16 %v3090
    %v3174 = vunpack.c.h.b16 %v3090
    %v3175 = vunpack.c.l.b16 %v3091
    %v3176 = vunpack.c.h.b16 %v3091
    %v3177 = vunpack.c.l.b16 %v3092
    %v3178 = vunpack.c.h.b16 %v3092
    %v3179 = vpack.c.b16 %v3173, %v3171
    %v3180 = vpack.c.b16 %v3174, %v3172
    %v3181 = vpack.c.b16 %v3177, %v3175
    %v3182 = vpack.c.b16 %v3178, %v3176
    %v3188 = vsel %vm233, %v3088, 0
    %3190 = vmatpush.bf16.msra.mxu0 0
    %3191 = vmatpush.bf16.msra.mxu0 0
    %3192 = vmatpush.bf16.msra.mxu0 0
    %3193 = vmatpush.bf16.msra.mxu0 0
    %3194 = vmatpush.bf16.msra.mxu0 0
    %3195 = vmatpush.bf16.msra.mxu0 0
    %3196 = vmatpush.bf16.msra.mxu0 %v3181
    %3197 = vmatpush.bf16.msra.mxu0 %v3179
    %3198 = vmatmul.bf16.gmra.mxu0 %v3188
    %v3199 = vpop.f32.mrf.mxu0
    %v3200 = vadd.f32 %v3151, %v3199
    %v3201 = vpop.f32.mrf.mxu0
    %3202 = vdwg.mxu0
    %3203 = vmatpush.bf16.msra.mxu0 0
    %3204 = vmatpush.bf16.msra.mxu0 0
    %3205 = vmatpush.bf16.msra.mxu0 0
    %3206 = vmatpush.bf16.msra.mxu0 0
    %3207 = vmatpush.bf16.msra.mxu0 0
    %3208 = vmatpush.bf16.msra.mxu0 0
    %3209 = vmatpush.bf16.msra.mxu0 %v3182
    %3210 = vmatpush.bf16.msra.mxu0 %v3180
    %3211 = vmatmul.bf16.gmra.mxu0 %v3188
    %v3212 = vpop.f32.mrf.mxu0
    %v3213 = vadd.f32 %v3164, %v3212
    %v3214 = vpop.f32.mrf.mxu0
    %3215 = vdwg.mxu0
    %v3216 = vld [vmem:[%s7] sm:$0xff]
    %v3217 = vld [vmem:[%s7 + $0x8] sm:$0xff]
    %v3218 = vld [vmem:[%s7 + $0x10] sm:$0xff]
    %v3219 = vld [vmem:[%s7 + $0x18] sm:$0xff]
    %v3220 = vld [vmem:[%s7 + $0x20] sm:$0xff]
    %v3221 = vld [vmem:[%s7 + $0x28] sm:$0xff]
    %v3222 = vld [vmem:[%s7 + $0x30] sm:$0xff]
    %v3223 = vld [vmem:[%s7 + $0x38] sm:$0xff]
    %v3232 = vunpack.c.l.b16 %v3216
    %v3233 = vunpack.c.h.b16 %v3216
    %v3234 = vunpack.c.l.b16 %v3217
    %v3235 = vunpack.c.h.b16 %v3217
    %v3236 = vunpack.c.l.b16 %v3218
    %v3237 = vunpack.c.h.b16 %v3218
    %v3238 = vunpack.c.l.b16 %v3219
    %v3239 = vunpack.c.h.b16 %v3219
    %v3240 = vunpack.c.l.b16 %v3220
    %v3241 = vunpack.c.h.b16 %v3220
    %v3242 = vunpack.c.l.b16 %v3221
    %v3243 = vunpack.c.h.b16 %v3221
    %v3244 = vunpack.c.l.b16 %v3222
    %v3245 = vunpack.c.h.b16 %v3222
    %v3246 = vunpack.c.l.b16 %v3223
    %v3247 = vunpack.c.h.b16 %v3223
    %v3248 = vpack.c.b16 %v3234, %v3232
    %v3249 = vpack.c.b16 %v3235, %v3233
    %v3250 = vpack.c.b16 %v3238, %v3236
    %v3251 = vpack.c.b16 %v3239, %v3237
    %v3252 = vpack.c.b16 %v3242, %v3240
    %v3253 = vpack.c.b16 %v3243, %v3241
    %v3254 = vpack.c.b16 %v3246, %v3244
    %v3255 = vpack.c.b16 %v3247, %v3245
    %3264 = vmatpush.bf16.msra.mxu0 0
    %3265 = vmatpush.bf16.msra.mxu0 0
    %3266 = vmatpush.bf16.msra.mxu0 0
    %3267 = vmatpush.bf16.msra.mxu0 0
    %3268 = vmatpush.bf16.msra.mxu0 %v3254
    %3269 = vmatpush.bf16.msra.mxu0 %v3252
    %3270 = vmatpush.bf16.msra.mxu0 %v3250
    %3271 = vmatpush.bf16.msra.mxu0 %v3248
    %3272 = vmatmul.bf16.gmra.mxu0 %v3043
    %v3273 = vpop.f32.mrf.mxu0
    %v3274 = vadd.f32 %v250, %v3273
    %v3275 = vpop.f32.mrf.mxu0
    %3276 = vdwg.mxu0
    %3277 = vmatpush.bf16.msra.mxu0 0
    %3278 = vmatpush.bf16.msra.mxu0 0
    %3279 = vmatpush.bf16.msra.mxu0 0
    %3280 = vmatpush.bf16.msra.mxu0 0
    %3281 = vmatpush.bf16.msra.mxu0 %v3255
    %3282 = vmatpush.bf16.msra.mxu0 %v3253
    %3283 = vmatpush.bf16.msra.mxu0 %v3251
    %3284 = vmatpush.bf16.msra.mxu0 %v3249
    %3285 = vmatmul.bf16.gmra.mxu0 %v3043
    %v3286 = vpop.f32.mrf.mxu0
    %v3287 = vadd.f32 %v251, %v3286
    %v3288 = vpop.f32.mrf.mxu0
    %3289 = vdwg.mxu0
    %v3290 = vxor.u32 %v3200, 2147483648
    %v3291 = vxor.u32 %v3213, 2147483648
    %v3292 = vmul.f32 %v3290, 1.442695
    %v3293 = vpow.pop %v3292
    %v3294 = vmul.f32 %v3291, 1.442695
    %v3295 = vpow.pop %v3294
    %v3296 = vadd.f32 %v3293, 1.0
    %v3297 = vadd.f32 %v3295, 1.0
    %v3298 = vrcp.pop %v3296
    %v3299 = vmul.f32 %v3296, %v3298
    %v3300 = vsub.f32 1.0, %v3299
    %v3301 = vmul.f32 %v3298, %v3300
    %v3302 = vadd.f32 %v3298, %v3301
    %vm3303 = vweird.f32 %v3296
    %vm3304 = vweird.f32 %v3298
    %vm3305 = vmor %vm3303, %vm3304
    %v3306 = vsel %vm3305, %v3298, %v3302
    %v3307 = vand.u32 2147483647, %v3296
    %vm3308 = vcmp.eq.f32.partialorder %v3307, 8.507059e+37
    %v3309 = vand.u32 %v3296, 2147483648
    %v3310 = vor.u32 1.1754944e-38, %v3309
    %v3311 = vsel %vm3308, %v3310, %v3306
    %v3312 = vmul.f32 1.0, %v3311
    %v3313 = vrcp.pop %v3297
    %v3314 = vmul.f32 %v3297, %v3313
    %v3315 = vsub.f32 1.0, %v3314
    %v3316 = vmul.f32 %v3313, %v3315
    %v3317 = vadd.f32 %v3313, %v3316
    %vm3318 = vweird.f32 %v3297
    %vm3319 = vweird.f32 %v3313
    %vm3320 = vmor %vm3318, %vm3319
    %v3321 = vsel %vm3320, %v3313, %v3317
    %v3322 = vand.u32 2147483647, %v3297
    %vm3323 = vcmp.eq.f32.partialorder %v3322, 8.507059e+37
    %v3324 = vand.u32 %v3297, 2147483648
    %v3325 = vor.u32 1.1754944e-38, %v3324
    %v3326 = vsel %vm3323, %v3325, %v3321
    %v3327 = vmul.f32 1.0, %v3326
    %v3328 = vtanh.pop %v3213
    %v3329 = vmul.f32 %v3312, %v2868
    %3331 = vrot.lane.b32.xlu0 %v3328, 64
    %v3332 = vpop.permute.xlu0 %3331
    %v3334 = vmul.f32 %v3312, %v3332
    %3336 = vrot.lane.b32.xlu0 %v3334, 64
    %v3337 = vpop.permute.xlu0 %3336
    %v3339 = vadd.f32 %v3329, %v3337
    %v3340 = vtanh.pop %v3339
    %3342 = vrot.lane.b32.xlu0 %v3340, 64
    %v3343 = vpop.permute.xlu0 %3342
    %v3345 = vmul.f32 %v3327, %v3343
    %v3346 = vpack.c.bf16 %v3345, %v3345
    %v3347 = vld [vmem:[%s6] sm:$0xff]
    %v3348 = vld [vmem:[%s6 + $0x8] sm:$0xff]
    %v3349 = vld [vmem:[%s6 + $0x10] sm:$0xff]
    %v3350 = vld [vmem:[%s6 + $0x18] sm:$0xff]
    %v3351 = vld [vmem:[%s6 + $0x20] sm:$0xff]
    %v3352 = vld [vmem:[%s6 + $0x28] sm:$0xff]
    %v3353 = vld [vmem:[%s6 + $0x30] sm:$0xff]
    %v3354 = vld [vmem:[%s6 + $0x38] sm:$0xff]
    %v3363 = vunpack.c.l.b16 %v3347
    %v3364 = vunpack.c.h.b16 %v3347
    %v3365 = vunpack.c.l.b16 %v3348
    %v3366 = vunpack.c.h.b16 %v3348
    %v3367 = vunpack.c.l.b16 %v3349
    %v3368 = vunpack.c.h.b16 %v3349
    %v3369 = vunpack.c.l.b16 %v3350
    %v3370 = vunpack.c.h.b16 %v3350
    %v3371 = vunpack.c.l.b16 %v3351
    %v3372 = vunpack.c.h.b16 %v3351
    %v3373 = vunpack.c.l.b16 %v3352
    %v3374 = vunpack.c.h.b16 %v3352
    %v3375 = vunpack.c.l.b16 %v3353
    %v3376 = vunpack.c.h.b16 %v3353
    %v3377 = vunpack.c.l.b16 %v3354
    %v3378 = vunpack.c.h.b16 %v3354
    %v3379 = vpack.c.b16 %v3365, %v3363
    %v3380 = vpack.c.b16 %v3366, %v3364
    %v3381 = vpack.c.b16 %v3369, %v3367
    %v3382 = vpack.c.b16 %v3370, %v3368
    %v3383 = vpack.c.b16 %v3373, %v3371
    %v3384 = vpack.c.b16 %v3374, %v3372
    %v3385 = vpack.c.b16 %v3377, %v3375
    %v3386 = vpack.c.b16 %v3378, %v3376
    %v3396 = vsel %vm125, %v3346, 0
    %3398 = vmatpush.bf16.msra.mxu0 0
    %3399 = vmatpush.bf16.msra.mxu0 0
    %3400 = vmatpush.bf16.msra.mxu0 0
    %3401 = vmatpush.bf16.msra.mxu0 0
    %3402 = vmatpush.bf16.msra.mxu0 %v3385
    %3403 = vmatpush.bf16.msra.mxu0 %v3383
    %3404 = vmatpush.bf16.msra.mxu0 %v3381
    %3405 = vmatpush.bf16.msra.mxu0 %v3379
    %3406 = vmatmul.bf16.gmra.mxu0 %v3396
    %v3407 = vpop.f32.mrf.mxu0
    %v3408 = vadd.f32 %v3274, %v3407
    %v3409 = vpop.f32.mrf.mxu0
    %3410 = vdwg.mxu0
    %3411 = vmatpush.bf16.msra.mxu0 0
    %3412 = vmatpush.bf16.msra.mxu0 0
    %3413 = vmatpush.bf16.msra.mxu0 0
    %3414 = vmatpush.bf16.msra.mxu0 0
    %3415 = vmatpush.bf16.msra.mxu0 %v3386
    %3416 = vmatpush.bf16.msra.mxu0 %v3384
    %3417 = vmatpush.bf16.msra.mxu0 %v3382
    %3418 = vmatpush.bf16.msra.mxu0 %v3380
    %3419 = vmatmul.bf16.gmra.mxu0 %v3396
    %v3420 = vpop.f32.mrf.mxu0
    %v3421 = vadd.f32 %v3287, %v3420
    %v3422 = vpop.f32.mrf.mxu0
    %3423 = vdwg.mxu0
    %v3424 = vxor.u32 %v3408, 2147483648
    %v3425 = vxor.u32 %v3421, 2147483648
    %v3426 = vmul.f32 %v3424, 1.442695
    %v3427 = vpow.pop %v3426
    %v3428 = vmul.f32 %v3425, 1.442695
    %v3429 = vpow.pop %v3428
    %v3430 = vadd.f32 %v3427, 1.0
    %v3431 = vadd.f32 %v3429, 1.0
    %v3432 = vrcp.pop %v3430
    %v3433 = vmul.f32 %v3430, %v3432
    %v3434 = vsub.f32 1.0, %v3433
    %v3435 = vmul.f32 %v3432, %v3434
    %v3436 = vadd.f32 %v3432, %v3435
    %vm3437 = vweird.f32 %v3430
    %vm3438 = vweird.f32 %v3432
    %vm3439 = vmor %vm3437, %vm3438
    %v3440 = vsel %vm3439, %v3432, %v3436
    %v3441 = vand.u32 2147483647, %v3430
    %vm3442 = vcmp.eq.f32.partialorder %v3441, 8.507059e+37
    %v3443 = vand.u32 %v3430, 2147483648
    %v3444 = vor.u32 1.1754944e-38, %v3443
    %v3445 = vsel %vm3442, %v3444, %v3440
    %v3446 = vmul.f32 1.0, %v3445
    %v3447 = vrcp.pop %v3431
    %v3448 = vmul.f32 %v3431, %v3447
    %v3449 = vsub.f32 1.0, %v3448
    %v3450 = vmul.f32 %v3447, %v3449
    %v3451 = vadd.f32 %v3447, %v3450
    %vm3452 = vweird.f32 %v3431
    %vm3453 = vweird.f32 %v3447
    %vm3454 = vmor %vm3452, %vm3453
    %v3455 = vsel %vm3454, %v3447, %v3451
    %v3456 = vand.u32 2147483647, %v3431
    %vm3457 = vcmp.eq.f32.partialorder %v3456, 8.507059e+37
    %v3458 = vand.u32 %v3431, 2147483648
    %v3459 = vor.u32 1.1754944e-38, %v3458
    %v3460 = vsel %vm3457, %v3459, %v3455
    %v3461 = vmul.f32 1.0, %v3460
    %v3462 = vtanh.pop %v3421
    %v3463 = vmul.f32 %v3446, %v3002
    %3465 = vrot.lane.b32.xlu0 %v3462, 64
    %v3466 = vpop.permute.xlu0 %3465
    %v3468 = vmul.f32 %v3446, %v3466
    %3470 = vrot.lane.b32.xlu0 %v3468, 64
    %v3471 = vpop.permute.xlu0 %3470
    %v3473 = vadd.f32 %v3463, %v3471
    %v3474 = vtanh.pop %v3473
    %3476 = vrot.lane.b32.xlu0 %v3474, 64
    %v3477 = vpop.permute.xlu0 %3476
    %v3479 = vmul.f32 %v3461, %v3477
    %v3480 = vpack.c.bf16 %v3479, %v3479
    %v3481 = vld [vmem:[%s9] sm:$0xf]
    %v3482 = vld [vmem:[%s9 + $0x4] sm:$0xf]
    %v3483 = vld [vmem:[%s9 + $0x8] sm:$0xf]
    %v3484 = vld [vmem:[%s9 + $0xc] sm:$0xf]
    %v3485 = vld [vmem:[%s9 + $0x10] sm:$0xf]
    %v3486 = vld [vmem:[%s9 + $0x14] sm:$0xf]
    %v3487 = vld [vmem:[%s9 + $0x18] sm:$0xf]
    %v3488 = vld [vmem:[%s9 + $0x1c] sm:$0xf]
    %v3497 = vunpack.c.l.b16 %v3481
    %v3498 = vunpack.c.l.b16 %v3482
    %v3499 = vunpack.c.l.b16 %v3483
    %v3500 = vunpack.c.l.b16 %v3484
    %v3501 = vunpack.c.l.b16 %v3485
    %v3502 = vunpack.c.l.b16 %v3486
    %v3503 = vunpack.c.l.b16 %v3487
    %v3504 = vunpack.c.l.b16 %v3488
    %v3505 = vpack.c.b16 %v3498, %v3497
    %v3506 = vpack.c.b16 %v3500, %v3499
    %v3507 = vpack.c.b16 %v3502, %v3501
    %v3508 = vpack.c.b16 %v3504, %v3503
    %v3514 = vsel %vm125, %v3480, 0
    %3516 = vmatpush.bf16.msra.mxu0 0
    %3517 = vmatpush.bf16.msra.mxu0 0
    %3518 = vmatpush.bf16.msra.mxu0 0
    %3519 = vmatpush.bf16.msra.mxu0 0
    %3520 = vmatpush.bf16.msra.mxu0 %v3508
    %3521 = vmatpush.bf16.msra.mxu0 %v3507
    %3522 = vmatpush.bf16.msra.mxu0 %v3506
    %3523 = vmatpush.bf16.msra.mxu0 %v3505
    %3524 = vmatmul.bf16.gmra.mxu0 %v3514
    %v3525 = vpop.f32.mrf.mxu0
    %v3526 = vadd.f32 %v256, %v3525
    %v3527 = vpop.f32.mrf.mxu0
    %3528 = vdwg.mxu0
    %3530 = vrot.lane.b32.xlu0 %v3526, 64
    %v3531 = vpop.permute.xlu0 %3530
    %3533 = vst.msk [vmem:[#allocation2 + $0x8] sm:$0xff] %vm1650, %v3531
    %v3534 = vshra.s32 %v3526, 31
    %v3535 = vand.u32 %v3534, 2147483647
    %v3536 = vxor.u32 %v3526, %v3535
    %v3537 = vand.u32 %v3536, 4294967264
    %v3538 = vor.u32 %v3537, %v711
    %v3539 = vsel %vm233, %v3538, 2147483648
    %v3540 = vand.u32 %v3539, 65535
    %v3541 = vshra.s32 %v3539, 16
    %v3542 = vcvt.s32.f32 %v3540
    %v3543 = vcvt.s32.f32 %v3541
    %3544 = vmax.xlane.f32.xlu0 %v3543
    %v3545 = vpop.xlane.xlu0 %3544
    %vm3546 = vcmp.eq.f32.partialorder %v3543, %v3545
    %v3547 = vsel %vm3546, %v3542, -inf
    %3548 = vmax.xlane.f32.xlu0 %v3547
    %v3549 = vpop.xlane.xlu0 %3548
    %v3550 = vcvt.f32.s32 %v3549
    %v3551 = vcvt.f32.s32 %v3545
    %v3552 = vshll.u32 %v3551, 16
    %v3553 = vadd.s32 %v3552, %v3550
    %v3554 = vand.u32 %v3553, 31
    %v3555 = vsub.s32 31, %v3554
    %vm3556 = vcmp.eq.s32.totalorder %v237, %v3555
    %v3557 = vsel %vm3556, 1, 0
    %v3558 = vcvt.s32.f32 %v3557
    %v3559 = vpack.c.bf16 %v3558, %v3558
    %v3560 = vld [vmem:[%s3] sm:$0xff]
    %v3561 = vld [vmem:[%s3 + $0x8] sm:$0xff]
    %v3562 = vld [vmem:[%s3 + $0x10] sm:$0xff]
    %v3563 = vld [vmem:[%s3 + $0x18] sm:$0xff]
    %v3564 = vld [vmem:[%s4] sm:$0xff]
    %v3565 = vld [vmem:[%s4 + $0x8] sm:$0xff]
    %v3566 = vld [vmem:[%s4 + $0x10] sm:$0xff]
    %v3567 = vld [vmem:[%s4 + $0x18] sm:$0xff]
    %v3568 = vld [vmem:[%s4 + $0x20] sm:$0xff]
    %v3569 = vld [vmem:[%s4 + $0x28] sm:$0xff]
    %v3570 = vld [vmem:[%s4 + $0x30] sm:$0xff]
    %v3571 = vld [vmem:[%s4 + $0x38] sm:$0xff]
    %v3580 = vunpack.c.l.b16 %v3564
    %v3581 = vunpack.c.h.b16 %v3564
    %v3582 = vunpack.c.l.b16 %v3565
    %v3583 = vunpack.c.h.b16 %v3565
    %v3584 = vunpack.c.l.b16 %v3566
    %v3585 = vunpack.c.h.b16 %v3566
    %v3586 = vunpack.c.l.b16 %v3567
    %v3587 = vunpack.c.h.b16 %v3567
    %v3588 = vunpack.c.l.b16 %v3568
    %v3589 = vunpack.c.h.b16 %v3568
    %v3590 = vunpack.c.l.b16 %v3569
    %v3591 = vunpack.c.h.b16 %v3569
    %v3592 = vunpack.c.l.b16 %v3570
    %v3593 = vunpack.c.h.b16 %v3570
    %v3594 = vunpack.c.l.b16 %v3571
    %v3595 = vunpack.c.h.b16 %v3571
    %v3596 = vpack.c.b16 %v3582, %v3580
    %v3597 = vpack.c.b16 %v3583, %v3581
    %v3598 = vpack.c.b16 %v3586, %v3584
    %v3599 = vpack.c.b16 %v3587, %v3585
    %v3600 = vpack.c.b16 %v3590, %v3588
    %v3601 = vpack.c.b16 %v3591, %v3589
    %v3602 = vpack.c.b16 %v3594, %v3592
    %v3603 = vpack.c.b16 %v3595, %v3593
    %3612 = vmatpush.bf16.msra.mxu0 0
    %3613 = vmatpush.bf16.msra.mxu0 0
    %3614 = vmatpush.bf16.msra.mxu0 0
    %3615 = vmatpush.bf16.msra.mxu0 0
    %3616 = vmatpush.bf16.msra.mxu0 %v3602
    %3617 = vmatpush.bf16.msra.mxu0 %v3600
    %3618 = vmatpush.bf16.msra.mxu0 %v3598
    %3619 = vmatpush.bf16.msra.mxu0 %v3596
    %3620 = vmatmul.bf16.gmra.mxu0 %v3396
    %v3621 = vpop.f32.mrf.mxu0
    %v3622 = vadd.f32 %v244, %v3621
    %v3623 = vpop.f32.mrf.mxu0
    %3624 = vdwg.mxu0
    %3625 = vmatpush.bf16.msra.mxu0 0
    %3626 = vmatpush.bf16.msra.mxu0 0
    %3627 = vmatpush.bf16.msra.mxu0 0
    %3628 = vmatpush.bf16.msra.mxu0 0
    %3629 = vmatpush.bf16.msra.mxu0 %v3603
    %3630 = vmatpush.bf16.msra.mxu0 %v3601
    %3631 = vmatpush.bf16.msra.mxu0 %v3599
    %3632 = vmatpush.bf16.msra.mxu0 %v3597
    %3633 = vmatmul.bf16.gmra.mxu0 %v3396
    %v3634 = vpop.f32.mrf.mxu0
    %v3635 = vadd.f32 %v245, %v3634
    %v3636 = vpop.f32.mrf.mxu0
    %3637 = vdwg.mxu0
    %v3642 = vunpack.c.l.b16 %v3560
    %v3643 = vunpack.c.h.b16 %v3560
    %v3644 = vunpack.c.l.b16 %v3561
    %v3645 = vunpack.c.h.b16 %v3561
    %v3646 = vunpack.c.l.b16 %v3562
    %v3647 = vunpack.c.h.b16 %v3562
    %v3648 = vunpack.c.l.b16 %v3563
    %v3649 = vunpack.c.h.b16 %v3563
    %v3650 = vpack.c.b16 %v3644, %v3642
    %v3651 = vpack.c.b16 %v3645, %v3643
    %v3652 = vpack.c.b16 %v3648, %v3646
    %v3653 = vpack.c.b16 %v3649, %v3647
    %v3659 = vsel %vm233, %v3559, 0
    %3661 = vmatpush.bf16.msra.mxu0 0
    %3662 = vmatpush.bf16.msra.mxu0 0
    %3663 = vmatpush.bf16.msra.mxu0 0
    %3664 = vmatpush.bf16.msra.mxu0 0
    %3665 = vmatpush.bf16.msra.mxu0 0
    %3666 = vmatpush.bf16.msra.mxu0 0
    %3667 = vmatpush.bf16.msra.mxu0 %v3652
    %3668 = vmatpush.bf16.msra.mxu0 %v3650
    %3669 = vmatmul.bf16.gmra.mxu0 %v3659
    %v3670 = vpop.f32.mrf.mxu0
    %v3671 = vadd.f32 %v3622, %v3670
    %v3672 = vpop.f32.mrf.mxu0
    %3673 = vdwg.mxu0
    %3674 = vmatpush.bf16.msra.mxu0 0
    %3675 = vmatpush.bf16.msra.mxu0 0
    %3676 = vmatpush.bf16.msra.mxu0 0
    %3677 = vmatpush.bf16.msra.mxu0 0
    %3678 = vmatpush.bf16.msra.mxu0 0
    %3679 = vmatpush.bf16.msra.mxu0 0
    %3680 = vmatpush.bf16.msra.mxu0 %v3653
    %3681 = vmatpush.bf16.msra.mxu0 %v3651
    %3682 = vmatmul.bf16.gmra.mxu0 %v3659
    %v3683 = vpop.f32.mrf.mxu0
    %v3684 = vadd.f32 %v3635, %v3683
    %v3685 = vpop.f32.mrf.mxu0
    %3686 = vdwg.mxu0
    %v3687 = vld [vmem:[%s7] sm:$0xff]
    %v3688 = vld [vmem:[%s7 + $0x8] sm:$0xff]
    %v3689 = vld [vmem:[%s7 + $0x10] sm:$0xff]
    %v3690 = vld [vmem:[%s7 + $0x18] sm:$0xff]
    %v3691 = vld [vmem:[%s7 + $0x20] sm:$0xff]
    %v3692 = vld [vmem:[%s7 + $0x28] sm:$0xff]
    %v3693 = vld [vmem:[%s7 + $0x30] sm:$0xff]
    %v3694 = vld [vmem:[%s7 + $0x38] sm:$0xff]
    %v3703 = vunpack.c.l.b16 %v3687
    %v3704 = vunpack.c.h.b16 %v3687
    %v3705 = vunpack.c.l.b16 %v3688
    %v3706 = vunpack.c.h.b16 %v3688
    %v3707 = vunpack.c.l.b16 %v3689
    %v3708 = vunpack.c.h.b16 %v3689
    %v3709 = vunpack.c.l.b16 %v3690
    %v3710 = vunpack.c.h.b16 %v3690
    %v3711 = vunpack.c.l.b16 %v3691
    %v3712 = vunpack.c.h.b16 %v3691
    %v3713 = vunpack.c.l.b16 %v3692
    %v3714 = vunpack.c.h.b16 %v3692
    %v3715 = vunpack.c.l.b16 %v3693
    %v3716 = vunpack.c.h.b16 %v3693
    %v3717 = vunpack.c.l.b16 %v3694
    %v3718 = vunpack.c.h.b16 %v3694
    %v3719 = vpack.c.b16 %v3705, %v3703
    %v3720 = vpack.c.b16 %v3706, %v3704
    %v3721 = vpack.c.b16 %v3709, %v3707
    %v3722 = vpack.c.b16 %v3710, %v3708
    %v3723 = vpack.c.b16 %v3713, %v3711
    %v3724 = vpack.c.b16 %v3714, %v3712
    %v3725 = vpack.c.b16 %v3717, %v3715
    %v3726 = vpack.c.b16 %v3718, %v3716
    %3735 = vmatpush.bf16.msra.mxu0 0
    %3736 = vmatpush.bf16.msra.mxu0 0
    %3737 = vmatpush.bf16.msra.mxu0 0
    %3738 = vmatpush.bf16.msra.mxu0 0
    %3739 = vmatpush.bf16.msra.mxu0 %v3725
    %3740 = vmatpush.bf16.msra.mxu0 %v3723
    %3741 = vmatpush.bf16.msra.mxu0 %v3721
    %3742 = vmatpush.bf16.msra.mxu0 %v3719
    %3743 = vmatmul.bf16.gmra.mxu0 %v3514
    %v3744 = vpop.f32.mrf.mxu0
    %v3745 = vadd.f32 %v250, %v3744
    %v3746 = vpop.f32.mrf.mxu0
    %3747 = vdwg.mxu0
    %3748 = vmatpush.bf16.msra.mxu0 0
    %3749 = vmatpush.bf16.msra.mxu0 0
    %3750 = vmatpush.bf16.msra.mxu0 0
    %3751 = vmatpush.bf16.msra.mxu0 0
    %3752 = vmatpush.bf16.msra.mxu0 %v3726
    %3753 = vmatpush.bf16.msra.mxu0 %v3724
    %3754 = vmatpush.bf16.msra.mxu0 %v3722
    %3755 = vmatpush.bf16.msra.mxu0 %v3720
    %3756 = vmatmul.bf16.gmra.mxu0 %v3514
    %v3757 = vpop.f32.mrf.mxu0
    %v3758 = vadd.f32 %v251, %v3757
    %v3759 = vpop.f32.mrf.mxu0
    %3760 = vdwg.mxu0
    %v3761 = vxor.u32 %v3671, 2147483648
    %v3762 = vxor.u32 %v3684, 2147483648
    %v3763 = vmul.f32 %v3761, 1.442695
    %v3764 = vpow.pop %v3763
    %v3765 = vmul.f32 %v3762, 1.442695
    %v3766 = vpow.pop %v3765
    %v3767 = vadd.f32 %v3764, 1.0
    %v3768 = vadd.f32 %v3766, 1.0
    %v3769 = vrcp.pop %v3767
    %v3770 = vmul.f32 %v3767, %v3769
    %v3771 = vsub.f32 1.0, %v3770
    %v3772 = vmul.f32 %v3769, %v3771
    %v3773 = vadd.f32 %v3769, %v3772
    %vm3774 = vweird.f32 %v3767
    %vm3775 = vweird.f32 %v3769
    %vm3776 = vmor %vm3774, %vm3775
    %v3777 = vsel %vm3776, %v3769, %v3773
    %v3778 = vand.u32 2147483647, %v3767
    %vm3779 = vcmp.eq.f32.partialorder %v3778, 8.507059e+37
    %v3780 = vand.u32 %v3767, 2147483648
    %v3781 = vor.u32 1.1754944e-38, %v3780
    %v3782 = vsel %vm3779, %v3781, %v3777
    %v3783 = vmul.f32 1.0, %v3782
    %v3784 = vrcp.pop %v3768
    %v3785 = vmul.f32 %v3768, %v3784
    %v3786 = vsub.f32 1.0, %v3785
    %v3787 = vmul.f32 %v3784, %v3786
    %v3788 = vadd.f32 %v3784, %v3787
    %vm3789 = vweird.f32 %v3768
    %vm3790 = vweird.f32 %v3784
    %vm3791 = vmor %vm3789, %vm3790
    %v3792 = vsel %vm3791, %v3784, %v3788
    %v3793 = vand.u32 2147483647, %v3768
    %vm3794 = vcmp.eq.f32.partialorder %v3793, 8.507059e+37
    %v3795 = vand.u32 %v3768, 2147483648
    %v3796 = vor.u32 1.1754944e-38, %v3795
    %v3797 = vsel %vm3794, %v3796, %v3792
    %v3798 = vmul.f32 1.0, %v3797
    %v3799 = vtanh.pop %v3684
    %v3800 = vmul.f32 %v3783, %v3339
    %3802 = vrot.lane.b32.xlu0 %v3799, 64
    %v3803 = vpop.permute.xlu0 %3802
    %v3805 = vmul.f32 %v3783, %v3803
    %3807 = vrot.lane.b32.xlu0 %v3805, 64
    %v3808 = vpop.permute.xlu0 %3807
    %v3810 = vadd.f32 %v3800, %v3808
    %v3811 = vtanh.pop %v3810
    %3813 = vrot.lane.b32.xlu0 %v3811, 64
    %v3814 = vpop.permute.xlu0 %3813
    %v3816 = vmul.f32 %v3798, %v3814
    %v3817 = vpack.c.bf16 %v3816, %v3816
    %v3818 = vld [vmem:[%s6] sm:$0xff]
    %v3819 = vld [vmem:[%s6 + $0x8] sm:$0xff]
    %v3820 = vld [vmem:[%s6 + $0x10] sm:$0xff]
    %v3821 = vld [vmem:[%s6 + $0x18] sm:$0xff]
    %v3822 = vld [vmem:[%s6 + $0x20] sm:$0xff]
    %v3823 = vld [vmem:[%s6 + $0x28] sm:$0xff]
    %v3824 = vld [vmem:[%s6 + $0x30] sm:$0xff]
    %v3825 = vld [vmem:[%s6 + $0x38] sm:$0xff]
    %v3834 = vunpack.c.l.b16 %v3818
    %v3835 = vunpack.c.h.b16 %v3818
    %v3836 = vunpack.c.l.b16 %v3819
    %v3837 = vunpack.c.h.b16 %v3819
    %v3838 = vunpack.c.l.b16 %v3820
    %v3839 = vunpack.c.h.b16 %v3820
    %v3840 = vunpack.c.l.b16 %v3821
    %v3841 = vunpack.c.h.b16 %v3821
    %v3842 = vunpack.c.l.b16 %v3822
    %v3843 = vunpack.c.h.b16 %v3822
    %v3844 = vunpack.c.l.b16 %v3823
    %v3845 = vunpack.c.h.b16 %v3823
    %v3846 = vunpack.c.l.b16 %v3824
    %v3847 = vunpack.c.h.b16 %v3824
    %v3848 = vunpack.c.l.b16 %v3825
    %v3849 = vunpack.c.h.b16 %v3825
    %v3850 = vpack.c.b16 %v3836, %v3834
    %v3851 = vpack.c.b16 %v3837, %v3835
    %v3852 = vpack.c.b16 %v3840, %v3838
    %v3853 = vpack.c.b16 %v3841, %v3839
    %v3854 = vpack.c.b16 %v3844, %v3842
    %v3855 = vpack.c.b16 %v3845, %v3843
    %v3856 = vpack.c.b16 %v3848, %v3846
    %v3857 = vpack.c.b16 %v3849, %v3847
    %v3867 = vsel %vm125, %v3817, 0
    %3869 = vmatpush.bf16.msra.mxu0 0
    %3870 = vmatpush.bf16.msra.mxu0 0
    %3871 = vmatpush.bf16.msra.mxu0 0
    %3872 = vmatpush.bf16.msra.mxu0 0
    %3873 = vmatpush.bf16.msra.mxu0 %v3856
    %3874 = vmatpush.bf16.msra.mxu0 %v3854
    %3875 = vmatpush.bf16.msra.mxu0 %v3852
    %3876 = vmatpush.bf16.msra.mxu0 %v3850
    %3877 = vmatmul.bf16.gmra.mxu0 %v3867
    %v3878 = vpop.f32.mrf.mxu0
    %v3879 = vadd.f32 %v3745, %v3878
    %v3880 = vpop.f32.mrf.mxu0
    %3881 = vdwg.mxu0
    %3882 = vmatpush.bf16.msra.mxu0 0
    %3883 = vmatpush.bf16.msra.mxu0 0
    %3884 = vmatpush.bf16.msra.mxu0 0
    %3885 = vmatpush.bf16.msra.mxu0 0
    %3886 = vmatpush.bf16.msra.mxu0 %v3857
    %3887 = vmatpush.bf16.msra.mxu0 %v3855
    %3888 = vmatpush.bf16.msra.mxu0 %v3853
    %3889 = vmatpush.bf16.msra.mxu0 %v3851
    %3890 = vmatmul.bf16.gmra.mxu0 %v3867
    %v3891 = vpop.f32.mrf.mxu0
    %v3892 = vadd.f32 %v3758, %v3891
    %v3893 = vpop.f32.mrf.mxu0
    %3894 = vdwg.mxu0
    %v3895 = vxor.u32 %v3879, 2147483648
    %v3896 = vxor.u32 %v3892, 2147483648
    %v3897 = vmul.f32 %v3895, 1.442695
    %v3898 = vpow.pop %v3897
    %v3899 = vmul.f32 %v3896, 1.442695
    %v3900 = vpow.pop %v3899
    %v3901 = vadd.f32 %v3898, 1.0
    %v3902 = vadd.f32 %v3900, 1.0
    %v3903 = vrcp.pop %v3901
    %v3904 = vmul.f32 %v3901, %v3903
    %v3905 = vsub.f32 1.0, %v3904
    %v3906 = vmul.f32 %v3903, %v3905
    %v3907 = vadd.f32 %v3903, %v3906
    %vm3908 = vweird.f32 %v3901
    %vm3909 = vweird.f32 %v3903
    %vm3910 = vmor %vm3908, %vm3909
    %v3911 = vsel %vm3910, %v3903, %v3907
    %v3912 = vand.u32 2147483647, %v3901
    %vm3913 = vcmp.eq.f32.partialorder %v3912, 8.507059e+37
    %v3914 = vand.u32 %v3901, 2147483648
    %v3915 = vor.u32 1.1754944e-38, %v3914
    %v3916 = vsel %vm3913, %v3915, %v3911
    %v3917 = vmul.f32 1.0, %v3916
    %v3918 = vrcp.pop %v3902
    %v3919 = vmul.f32 %v3902, %v3918
    %v3920 = vsub.f32 1.0, %v3919
    %v3921 = vmul.f32 %v3918, %v3920
    %v3922 = vadd.f32 %v3918, %v3921
    %vm3923 = vweird.f32 %v3902
    %vm3924 = vweird.f32 %v3918
    %vm3925 = vmor %vm3923, %vm3924
    %v3926 = vsel %vm3925, %v3918, %v3922
    %v3927 = vand.u32 2147483647, %v3902
    %vm3928 = vcmp.eq.f32.partialorder %v3927, 8.507059e+37
    %v3929 = vand.u32 %v3902, 2147483648
    %v3930 = vor.u32 1.1754944e-38, %v3929
    %v3931 = vsel %vm3928, %v3930, %v3926
    %v3932 = vmul.f32 1.0, %v3931
    %v3933 = vtanh.pop %v3892
    %v3934 = vmul.f32 %v3917, %v3473
    %3936 = vrot.lane.b32.xlu0 %v3933, 64
    %v3937 = vpop.permute.xlu0 %3936
    %v3939 = vmul.f32 %v3917, %v3937
    %3941 = vrot.lane.b32.xlu0 %v3939, 64
    %v3942 = vpop.permute.xlu0 %3941
    %v3944 = vadd.f32 %v3934, %v3942
    %v3945 = vtanh.pop %v3944
    %3947 = vrot.lane.b32.xlu0 %v3945, 64
    %v3948 = vpop.permute.xlu0 %3947
    %v3950 = vmul.f32 %v3932, %v3948
    %v3951 = vpack.c.bf16 %v3950, %v3950
    %v3952 = vld [vmem:[%s9] sm:$0xf]
    %v3953 = vld [vmem:[%s9 + $0x4] sm:$0xf]
    %v3954 = vld [vmem:[%s9 + $0x8] sm:$0xf]
    %v3955 = vld [vmem:[%s9 + $0xc] sm:$0xf]
    %v3956 = vld [vmem:[%s9 + $0x10] sm:$0xf]
    %v3957 = vld [vmem:[%s9 + $0x14] sm:$0xf]
    %v3958 = vld [vmem:[%s9 + $0x18] sm:$0xf]
    %v3959 = vld [vmem:[%s9 + $0x1c] sm:$0xf]
    %v3968 = vunpack.c.l.b16 %v3952
    %v3969 = vunpack.c.l.b16 %v3953
    %v3970 = vunpack.c.l.b16 %v3954
    %v3971 = vunpack.c.l.b16 %v3955
    %v3972 = vunpack.c.l.b16 %v3956
    %v3973 = vunpack.c.l.b16 %v3957
    %v3974 = vunpack.c.l.b16 %v3958
    %v3975 = vunpack.c.l.b16 %v3959
    %v3976 = vpack.c.b16 %v3969, %v3968
    %v3977 = vpack.c.b16 %v3971, %v3970
    %v3978 = vpack.c.b16 %v3973, %v3972
    %v3979 = vpack.c.b16 %v3975, %v3974
    %v3985 = vsel %vm125, %v3951, 0
    %3987 = vmatpush.bf16.msra.mxu0 0
    %3988 = vmatpush.bf16.msra.mxu0 0
    %3989 = vmatpush.bf16.msra.mxu0 0
    %3990 = vmatpush.bf16.msra.mxu0 0
    %3991 = vmatpush.bf16.msra.mxu0 %v3979
    %3992 = vmatpush.bf16.msra.mxu0 %v3978
    %3993 = vmatpush.bf16.msra.mxu0 %v3977
    %3994 = vmatpush.bf16.msra.mxu0 %v3976
    %3995 = vmatmul.bf16.gmra.mxu0 %v3985
    %v3996 = vpop.f32.mrf.mxu0
    %v3997 = vadd.f32 %v256, %v3996
    %v3998 = vpop.f32.mrf.mxu0
    %3999 = vdwg.mxu0
    %4001 = vrot.lane.b32.xlu0 %v3997, 96
    %v4002 = vpop.permute.xlu0 %4001
    %4004 = vst.msk [vmem:[#allocation2 + $0x8] sm:$0xff] %vm2122, %v4002
    %v4005 = vshra.s32 %v3997, 31
    %v4006 = vand.u32 %v4005, 2147483647
    %v4007 = vxor.u32 %v3997, %v4006
    %v4008 = vand.u32 %v4007, 4294967264
    %v4009 = vor.u32 %v4008, %v711
    %v4010 = vsel %vm233, %v4009, 2147483648
    %v4011 = vand.u32 %v4010, 65535
    %v4012 = vshra.s32 %v4010, 16
    %v4013 = vcvt.s32.f32 %v4011
    %v4014 = vcvt.s32.f32 %v4012
    %4015 = vmax.xlane.f32.xlu0 %v4014
    %v4016 = vpop.xlane.xlu0 %4015
    %vm4017 = vcmp.eq.f32.partialorder %v4014, %v4016
    %v4018 = vsel %vm4017, %v4013, -inf
    %4019 = vmax.xlane.f32.xlu0 %v4018
    %v4020 = vpop.xlane.xlu0 %4019
    %v4021 = vcvt.f32.s32 %v4020
    %v4022 = vcvt.f32.s32 %v4016
    %v4023 = vshll.u32 %v4022, 16
    %v4024 = vadd.s32 %v4023, %v4021
    %v4025 = vand.u32 %v4024, 31
    %v4026 = vsub.s32 31, %v4025
    %vm4027 = vcmp.eq.s32.totalorder %v237, %v4026
    %v4028 = vsel %vm4027, 1, 0
    %v4029 = vcvt.s32.f32 %v4028
    %v4030 = vpack.c.bf16 %v4029, %v4029
    %v4031 = vld [vmem:[%s3] sm:$0xff]
    %v4032 = vld [vmem:[%s3 + $0x8] sm:$0xff]
    %v4033 = vld [vmem:[%s3 + $0x10] sm:$0xff]
    %v4034 = vld [vmem:[%s3 + $0x18] sm:$0xff]
    %v4035 = vld [vmem:[%s4] sm:$0xff]
    %v4036 = vld [vmem:[%s4 + $0x8] sm:$0xff]
    %v4037 = vld [vmem:[%s4 + $0x10] sm:$0xff]
    %v4038 = vld [vmem:[%s4 + $0x18] sm:$0xff]
    %v4039 = vld [vmem:[%s4 + $0x20] sm:$0xff]
    %v4040 = vld [vmem:[%s4 + $0x28] sm:$0xff]
    %v4041 = vld [vmem:[%s4 + $0x30] sm:$0xff]
    %v4042 = vld [vmem:[%s4 + $0x38] sm:$0xff]
    %v4051 = vunpack.c.l.b16 %v4035
    %v4052 = vunpack.c.h.b16 %v4035
    %v4053 = vunpack.c.l.b16 %v4036
    %v4054 = vunpack.c.h.b16 %v4036
    %v4055 = vunpack.c.l.b16 %v4037
    %v4056 = vunpack.c.h.b16 %v4037
    %v4057 = vunpack.c.l.b16 %v4038
    %v4058 = vunpack.c.h.b16 %v4038
    %v4059 = vunpack.c.l.b16 %v4039
    %v4060 = vunpack.c.h.b16 %v4039
    %v4061 = vunpack.c.l.b16 %v4040
    %v4062 = vunpack.c.h.b16 %v4040
    %v4063 = vunpack.c.l.b16 %v4041
    %v4064 = vunpack.c.h.b16 %v4041
    %v4065 = vunpack.c.l.b16 %v4042
    %v4066 = vunpack.c.h.b16 %v4042
    %v4067 = vpack.c.b16 %v4053, %v4051
    %v4068 = vpack.c.b16 %v4054, %v4052
    %v4069 = vpack.c.b16 %v4057, %v4055
    %v4070 = vpack.c.b16 %v4058, %v4056
    %v4071 = vpack.c.b16 %v4061, %v4059
    %v4072 = vpack.c.b16 %v4062, %v4060
    %v4073 = vpack.c.b16 %v4065, %v4063
    %v4074 = vpack.c.b16 %v4066, %v4064
    %4083 = vmatpush.bf16.msra.mxu0 0
    %4084 = vmatpush.bf16.msra.mxu0 0
    %4085 = vmatpush.bf16.msra.mxu0 0
    %4086 = vmatpush.bf16.msra.mxu0 0
    %4087 = vmatpush.bf16.msra.mxu0 %v4073
    %4088 = vmatpush.bf16.msra.mxu0 %v4071
    %4089 = vmatpush.bf16.msra.mxu0 %v4069
    %4090 = vmatpush.bf16.msra.mxu0 %v4067
    %4091 = vmatmul.bf16.gmra.mxu0 %v3867
    %v4092 = vpop.f32.mrf.mxu0
    %v4093 = vadd.f32 %v244, %v4092
    %v4094 = vpop.f32.mrf.mxu0
    %4095 = vdwg.mxu0
    %4096 = vmatpush.bf16.msra.mxu0 0
    %4097 = vmatpush.bf16.msra.mxu0 0
    %4098 = vmatpush.bf16.msra.mxu0 0
    %4099 = vmatpush.bf16.msra.mxu0 0
    %4100 = vmatpush.bf16.msra.mxu0 %v4074
    %4101 = vmatpush.bf16.msra.mxu0 %v4072
    %4102 = vmatpush.bf16.msra.mxu0 %v4070
    %4103 = vmatpush.bf16.msra.mxu0 %v4068
    %4104 = vmatmul.bf16.gmra.mxu0 %v3867
    %v4105 = vpop.f32.mrf.mxu0
    %v4106 = vadd.f32 %v245, %v4105
    %v4107 = vpop.f32.mrf.mxu0
    %4108 = vdwg.mxu0
    %v4113 = vunpack.c.l.b16 %v4031
    %v4114 = vunpack.c.h.b16 %v4031
    %v4115 = vunpack.c.l.b16 %v4032
    %v4116 = vunpack.c.h.b16 %v4032
    %v4117 = vunpack.c.l.b16 %v4033
    %v4118 = vunpack.c.h.b16 %v4033
    %v4119 = vunpack.c.l.b16 %v4034
    %v4120 = vunpack.c.h.b16 %v4034
    %v4121 = vpack.c.b16 %v4115, %v4113
    %v4122 = vpack.c.b16 %v4116, %v4114
    %v4123 = vpack.c.b16 %v4119, %v4117
    %v4124 = vpack.c.b16 %v4120, %v4118
    %v4130 = vsel %vm233, %v4030, 0
    %4132 = vmatpush.bf16.msra.mxu0 0
    %4133 = vmatpush.bf16.msra.mxu0 0
    %4134 = vmatpush.bf16.msra.mxu0 0
    %4135 = vmatpush.bf16.msra.mxu0 0
    %4136 = vmatpush.bf16.msra.mxu0 0
    %4137 = vmatpush.bf16.msra.mxu0 0
    %4138 = vmatpush.bf16.msra.mxu0 %v4123
    %4139 = vmatpush.bf16.msra.mxu0 %v4121
    %4140 = vmatmul.bf16.gmra.mxu0 %v4130
    %v4141 = vpop.f32.mrf.mxu0
    %v4142 = vadd.f32 %v4093, %v4141
    %v4143 = vpop.f32.mrf.mxu0
    %4144 = vdwg.mxu0
    %4145 = vmatpush.bf16.msra.mxu0 0
    %4146 = vmatpush.bf16.msra.mxu0 0
    %4147 = vmatpush.bf16.msra.mxu0 0
    %4148 = vmatpush.bf16.msra.mxu0 0
    %4149 = vmatpush.bf16.msra.mxu0 0
    %4150 = vmatpush.bf16.msra.mxu0 0
    %4151 = vmatpush.bf16.msra.mxu0 %v4124
    %4152 = vmatpush.bf16.msra.mxu0 %v4122
    %4153 = vmatmul.bf16.gmra.mxu0 %v4130
    %v4154 = vpop.f32.mrf.mxu0
    %v4155 = vadd.f32 %v4106, %v4154
    %v4156 = vpop.f32.mrf.mxu0
    %4157 = vdwg.mxu0
    %v4158 = vld [vmem:[%s7] sm:$0xff]
    %v4159 = vld [vmem:[%s7 + $0x8] sm:$0xff]
    %v4160 = vld [vmem:[%s7 + $0x10] sm:$0xff]
    %v4161 = vld [vmem:[%s7 + $0x18] sm:$0xff]
    %v4162 = vld [vmem:[%s7 + $0x20] sm:$0xff]
    %v4163 = vld [vmem:[%s7 + $0x28] sm:$0xff]
    %v4164 = vld [vmem:[%s7 + $0x30] sm:$0xff]
    %v4165 = vld [vmem:[%s7 + $0x38] sm:$0xff]
    %v4174 = vunpack.c.l.b16 %v4158
    %v4175 = vunpack.c.h.b16 %v4158
    %v4176 = vunpack.c.l.b16 %v4159
    %v4177 = vunpack.c.h.b16 %v4159
    %v4178 = vunpack.c.l.b16 %v4160
    %v4179 = vunpack.c.h.b16 %v4160
    %v4180 = vunpack.c.l.b16 %v4161
    %v4181 = vunpack.c.h.b16 %v4161
    %v4182 = vunpack.c.l.b16 %v4162
    %v4183 = vunpack.c.h.b16 %v4162
    %v4184 = vunpack.c.l.b16 %v4163
    %v4185 = vunpack.c.h.b16 %v4163
    %v4186 = vunpack.c.l.b16 %v4164
    %v4187 = vunpack.c.h.b16 %v4164
    %v4188 = vunpack.c.l.b16 %v4165
    %v4189 = vunpack.c.h.b16 %v4165
    %v4190 = vpack.c.b16 %v4176, %v4174
    %v4191 = vpack.c.b16 %v4177, %v4175
    %v4192 = vpack.c.b16 %v4180, %v4178
    %v4193 = vpack.c.b16 %v4181, %v4179
    %v4194 = vpack.c.b16 %v4184, %v4182
    %v4195 = vpack.c.b16 %v4185, %v4183
    %v4196 = vpack.c.b16 %v4188, %v4186
    %v4197 = vpack.c.b16 %v4189, %v4187
    %4206 = vmatpush.bf16.msra.mxu0 0
    %4207 = vmatpush.bf16.msra.mxu0 0
    %4208 = vmatpush.bf16.msra.mxu0 0
    %4209 = vmatpush.bf16.msra.mxu0 0
    %4210 = vmatpush.bf16.msra.mxu0 %v4196
    %4211 = vmatpush.bf16.msra.mxu0 %v4194
    %4212 = vmatpush.bf16.msra.mxu0 %v4192
    %4213 = vmatpush.bf16.msra.mxu0 %v4190
    %4214 = vmatmul.bf16.gmra.mxu0 %v3985
    %v4215 = vpop.f32.mrf.mxu0
    %v4216 = vadd.f32 %v250, %v4215
    %v4217 = vpop.f32.mrf.mxu0
    %4218 = vdwg.mxu0
    %4219 = vmatpush.bf16.msra.mxu0 0
    %4220 = vmatpush.bf16.msra.mxu0 0
    %4221 = vmatpush.bf16.msra.mxu0 0
    %4222 = vmatpush.bf16.msra.mxu0 0
    %4223 = vmatpush.bf16.msra.mxu0 %v4197
    %4224 = vmatpush.bf16.msra.mxu0 %v4195
    %4225 = vmatpush.bf16.msra.mxu0 %v4193
    %4226 = vmatpush.bf16.msra.mxu0 %v4191
    %4227 = vmatmul.bf16.gmra.mxu0 %v3985
    %v4228 = vpop.f32.mrf.mxu0
    %v4229 = vadd.f32 %v251, %v4228
    %v4230 = vpop.f32.mrf.mxu0
    %4231 = vdwg.mxu0
    %v4232 = vxor.u32 %v4142, 2147483648
    %v4233 = vxor.u32 %v4155, 2147483648
    %v4234 = vmul.f32 %v4232, 1.442695
    %v4235 = vpow.pop %v4234
    %v4236 = vmul.f32 %v4233, 1.442695
    %v4237 = vpow.pop %v4236
    %v4238 = vadd.f32 %v4235, 1.0
    %v4239 = vadd.f32 %v4237, 1.0
    %v4240 = vrcp.pop %v4238
    %v4241 = vmul.f32 %v4238, %v4240
    %v4242 = vsub.f32 1.0, %v4241
    %v4243 = vmul.f32 %v4240, %v4242
    %v4244 = vadd.f32 %v4240, %v4243
    %vm4245 = vweird.f32 %v4238
    %vm4246 = vweird.f32 %v4240
    %vm4247 = vmor %vm4245, %vm4246
    %v4248 = vsel %vm4247, %v4240, %v4244
    %v4249 = vand.u32 2147483647, %v4238
    %vm4250 = vcmp.eq.f32.partialorder %v4249, 8.507059e+37
    %v4251 = vand.u32 %v4238, 2147483648
    %v4252 = vor.u32 1.1754944e-38, %v4251
    %v4253 = vsel %vm4250, %v4252, %v4248
    %v4254 = vmul.f32 1.0, %v4253
    %v4255 = vrcp.pop %v4239
    %v4256 = vmul.f32 %v4239, %v4255
    %v4257 = vsub.f32 1.0, %v4256
    %v4258 = vmul.f32 %v4255, %v4257
    %v4259 = vadd.f32 %v4255, %v4258
    %vm4260 = vweird.f32 %v4239
    %vm4261 = vweird.f32 %v4255
    %vm4262 = vmor %vm4260, %vm4261
    %v4263 = vsel %vm4262, %v4255, %v4259
    %v4264 = vand.u32 2147483647, %v4239
    %vm4265 = vcmp.eq.f32.partialorder %v4264, 8.507059e+37
    %v4266 = vand.u32 %v4239, 2147483648
    %v4267 = vor.u32 1.1754944e-38, %v4266
    %v4268 = vsel %vm4265, %v4267, %v4263
    %v4269 = vmul.f32 1.0, %v4268
    %v4270 = vtanh.pop %v4155
    %v4271 = vmul.f32 %v4254, %v3810
    %4273 = vrot.lane.b32.xlu0 %v4270, 64
    %v4274 = vpop.permute.xlu0 %4273
    %v4276 = vmul.f32 %v4254, %v4274
    %4278 = vrot.lane.b32.xlu0 %v4276, 64
    %v4279 = vpop.permute.xlu0 %4278
    %v4281 = vadd.f32 %v4271, %v4279
    %v4282 = vtanh.pop %v4281
    %4284 = vrot.lane.b32.xlu0 %v4282, 64
    %v4285 = vpop.permute.xlu0 %4284
    %v4287 = vmul.f32 %v4269, %v4285
    %v4288 = vpack.c.bf16 %v4287, %v4287
    %v4289 = vld [vmem:[%s6] sm:$0xff]
    %v4290 = vld [vmem:[%s6 + $0x8] sm:$0xff]
    %v4291 = vld [vmem:[%s6 + $0x10] sm:$0xff]
    %v4292 = vld [vmem:[%s6 + $0x18] sm:$0xff]
    %v4293 = vld [vmem:[%s6 + $0x20] sm:$0xff]
    %v4294 = vld [vmem:[%s6 + $0x28] sm:$0xff]
    %v4295 = vld [vmem:[%s6 + $0x30] sm:$0xff]
    %v4296 = vld [vmem:[%s6 + $0x38] sm:$0xff]
    %v4305 = vunpack.c.l.b16 %v4289
    %v4306 = vunpack.c.h.b16 %v4289
    %v4307 = vunpack.c.l.b16 %v4290
    %v4308 = vunpack.c.h.b16 %v4290
    %v4309 = vunpack.c.l.b16 %v4291
    %v4310 = vunpack.c.h.b16 %v4291
    %v4311 = vunpack.c.l.b16 %v4292
    %v4312 = vunpack.c.h.b16 %v4292
    %v4313 = vunpack.c.l.b16 %v4293
    %v4314 = vunpack.c.h.b16 %v4293
    %v4315 = vunpack.c.l.b16 %v4294
    %v4316 = vunpack.c.h.b16 %v4294
    %v4317 = vunpack.c.l.b16 %v4295
    %v4318 = vunpack.c.h.b16 %v4295
    %v4319 = vunpack.c.l.b16 %v4296
    %v4320 = vunpack.c.h.b16 %v4296
    %v4321 = vpack.c.b16 %v4307, %v4305
    %v4322 = vpack.c.b16 %v4308, %v4306
    %v4323 = vpack.c.b16 %v4311, %v4309
    %v4324 = vpack.c.b16 %v4312, %v4310
    %v4325 = vpack.c.b16 %v4315, %v4313
    %v4326 = vpack.c.b16 %v4316, %v4314
    %v4327 = vpack.c.b16 %v4319, %v4317
    %v4328 = vpack.c.b16 %v4320, %v4318
    %v4338 = vsel %vm125, %v4288, 0
    %4340 = vmatpush.bf16.msra.mxu0 0
    %4341 = vmatpush.bf16.msra.mxu0 0
    %4342 = vmatpush.bf16.msra.mxu0 0
    %4343 = vmatpush.bf16.msra.mxu0 0
    %4344 = vmatpush.bf16.msra.mxu0 %v4327
    %4345 = vmatpush.bf16.msra.mxu0 %v4325
    %4346 = vmatpush.bf16.msra.mxu0 %v4323
    %4347 = vmatpush.bf16.msra.mxu0 %v4321
    %4348 = vmatmul.bf16.gmra.mxu0 %v4338
    %v4349 = vpop.f32.mrf.mxu0
    %v4350 = vadd.f32 %v4216, %v4349
    %v4351 = vpop.f32.mrf.mxu0
    %4352 = vdwg.mxu0
    %4353 = vmatpush.bf16.msra.mxu0 0
    %4354 = vmatpush.bf16.msra.mxu0 0
    %4355 = vmatpush.bf16.msra.mxu0 0
    %4356 = vmatpush.bf16.msra.mxu0 0
    %4357 = vmatpush.bf16.msra.mxu0 %v4328
    %4358 = vmatpush.bf16.msra.mxu0 %v4326
    %4359 = vmatpush.bf16.msra.mxu0 %v4324
    %4360 = vmatpush.bf16.msra.mxu0 %v4322
    %4361 = vmatmul.bf16.gmra.mxu0 %v4338
    %v4362 = vpop.f32.mrf.mxu0
    %v4363 = vadd.f32 %v4229, %v4362
    %v4364 = vpop.f32.mrf.mxu0
    %4365 = vdwg.mxu0
    %v4366 = vxor.u32 %v4350, 2147483648
    %v4367 = vxor.u32 %v4363, 2147483648
    %v4368 = vmul.f32 %v4366, 1.442695
    %v4369 = vpow.pop %v4368
    %v4370 = vmul.f32 %v4367, 1.442695
    %v4371 = vpow.pop %v4370
    %v4372 = vadd.f32 %v4369, 1.0
    %v4373 = vadd.f32 %v4371, 1.0
    %v4374 = vrcp.pop %v4372
    %v4375 = vmul.f32 %v4372, %v4374
    %v4376 = vsub.f32 1.0, %v4375
    %v4377 = vmul.f32 %v4374, %v4376
    %v4378 = vadd.f32 %v4374, %v4377
    %vm4379 = vweird.f32 %v4372
    %vm4380 = vweird.f32 %v4374
    %vm4381 = vmor %vm4379, %vm4380
    %v4382 = vsel %vm4381, %v4374, %v4378
    %v4383 = vand.u32 2147483647, %v4372
    %vm4384 = vcmp.eq.f32.partialorder %v4383, 8.507059e+37
    %v4385 = vand.u32 %v4372, 2147483648
    %v4386 = vor.u32 1.1754944e-38, %v4385
    %v4387 = vsel %vm4384, %v4386, %v4382
    %v4388 = vmul.f32 1.0, %v4387
    %v4389 = vrcp.pop %v4373
    %v4390 = vmul.f32 %v4373, %v4389
    %v4391 = vsub.f32 1.0, %v4390
    %v4392 = vmul.f32 %v4389, %v4391
    %v4393 = vadd.f32 %v4389, %v4392
    %vm4394 = vweird.f32 %v4373
    %vm4395 = vweird.f32 %v4389
    %vm4396 = vmor %vm4394, %vm4395
    %v4397 = vsel %vm4396, %v4389, %v4393
    %v4398 = vand.u32 2147483647, %v4373
    %vm4399 = vcmp.eq.f32.partialorder %v4398, 8.507059e+37
    %v4400 = vand.u32 %v4373, 2147483648
    %v4401 = vor.u32 1.1754944e-38, %v4400
    %v4402 = vsel %vm4399, %v4401, %v4397
    %v4403 = vmul.f32 1.0, %v4402
    %v4404 = vtanh.pop %v4363
    %v4405 = vmul.f32 %v4388, %v3944
    %4407 = vrot.lane.b32.xlu0 %v4404, 64
    %v4408 = vpop.permute.xlu0 %4407
    %v4410 = vmul.f32 %v4388, %v4408
    %4412 = vrot.lane.b32.xlu0 %v4410, 64
    %v4413 = vpop.permute.xlu0 %4412
    %v4415 = vadd.f32 %v4405, %v4413
    %v4416 = vtanh.pop %v4415
    %4418 = vrot.lane.b32.xlu0 %v4416, 64
    %v4419 = vpop.permute.xlu0 %4418
    %v4421 = vmul.f32 %v4403, %v4419
    %v4422 = vpack.c.bf16 %v4421, %v4421
    %v4423 = vld [vmem:[%s9] sm:$0xf]
    %v4424 = vld [vmem:[%s9 + $0x4] sm:$0xf]
    %v4425 = vld [vmem:[%s9 + $0x8] sm:$0xf]
    %v4426 = vld [vmem:[%s9 + $0xc] sm:$0xf]
    %v4427 = vld [vmem:[%s9 + $0x10] sm:$0xf]
    %v4428 = vld [vmem:[%s9 + $0x14] sm:$0xf]
    %v4429 = vld [vmem:[%s9 + $0x18] sm:$0xf]
    %v4430 = vld [vmem:[%s9 + $0x1c] sm:$0xf]
    %v4439 = vunpack.c.l.b16 %v4423
    %v4440 = vunpack.c.l.b16 %v4424
    %v4441 = vunpack.c.l.b16 %v4425
    %v4442 = vunpack.c.l.b16 %v4426
    %v4443 = vunpack.c.l.b16 %v4427
    %v4444 = vunpack.c.l.b16 %v4428
    %v4445 = vunpack.c.l.b16 %v4429
    %v4446 = vunpack.c.l.b16 %v4430
    %v4447 = vpack.c.b16 %v4440, %v4439
    %v4448 = vpack.c.b16 %v4442, %v4441
    %v4449 = vpack.c.b16 %v4444, %v4443
    %v4450 = vpack.c.b16 %v4446, %v4445
    %v4456 = vsel %vm125, %v4422, 0
    %4458 = vmatpush.bf16.msra.mxu0 0
    %4459 = vmatpush.bf16.msra.mxu0 0
    %4460 = vmatpush.bf16.msra.mxu0 0
    %4461 = vmatpush.bf16.msra.mxu0 0
    %4462 = vmatpush.bf16.msra.mxu0 %v4450
    %4463 = vmatpush.bf16.msra.mxu0 %v4449
    %4464 = vmatpush.bf16.msra.mxu0 %v4448
    %4465 = vmatpush.bf16.msra.mxu0 %v4447
    %4466 = vmatmul.bf16.gmra.mxu0 %v4456
    %v4467 = vpop.f32.mrf.mxu0
    %v4468 = vadd.f32 %v256, %v4467
    %v4469 = vpop.f32.mrf.mxu0
    %4470 = vdwg.mxu0
    %4471 = vst.msk [vmem:[#allocation2 + $0x10] sm:$0xff] %vm233, %v4468
    %v4473 = vshra.s32 %v4468, 31
    %v4474 = vand.u32 %v4473, 2147483647
    %v4475 = vxor.u32 %v4468, %v4474
    %v4476 = vand.u32 %v4475, 4294967264
    %v4477 = vor.u32 %v4476, %v711
    %v4478 = vsel %vm233, %v4477, 2147483648
    %v4479 = vand.u32 %v4478, 65535
    %v4480 = vshra.s32 %v4478, 16
    %v4481 = vcvt.s32.f32 %v4479
    %v4482 = vcvt.s32.f32 %v4480
    %4483 = vmax.xlane.f32.xlu0 %v4482
    %v4484 = vpop.xlane.xlu0 %4483
    %vm4485 = vcmp.eq.f32.partialorder %v4482, %v4484
    %v4486 = vsel %vm4485, %v4481, -inf
    %4487 = vmax.xlane.f32.xlu0 %v4486
    %v4488 = vpop.xlane.xlu0 %4487
    %v4489 = vcvt.f32.s32 %v4488
    %v4490 = vcvt.f32.s32 %v4484
    %v4491 = vshll.u32 %v4490, 16
    %v4492 = vadd.s32 %v4491, %v4489
    %v4493 = vand.u32 %v4492, 31
    %v4494 = vsub.s32 31, %v4493
    %vm4495 = vcmp.eq.s32.totalorder %v237, %v4494
    %v4496 = vsel %vm4495, 1, 0
    %v4497 = vcvt.s32.f32 %v4496
    %v4498 = vpack.c.bf16 %v4497, %v4497
    %v4499 = vld [vmem:[%s3] sm:$0xff]
    %v4500 = vld [vmem:[%s3 + $0x8] sm:$0xff]
    %v4501 = vld [vmem:[%s3 + $0x10] sm:$0xff]
    %v4502 = vld [vmem:[%s3 + $0x18] sm:$0xff]
    %v4503 = vld [vmem:[%s4] sm:$0xff]
    %v4504 = vld [vmem:[%s4 + $0x8] sm:$0xff]
    %v4505 = vld [vmem:[%s4 + $0x10] sm:$0xff]
    %v4506 = vld [vmem:[%s4 + $0x18] sm:$0xff]
    %v4507 = vld [vmem:[%s4 + $0x20] sm:$0xff]
    %v4508 = vld [vmem:[%s4 + $0x28] sm:$0xff]
    %v4509 = vld [vmem:[%s4 + $0x30] sm:$0xff]
    %v4510 = vld [vmem:[%s4 + $0x38] sm:$0xff]
    %v4519 = vunpack.c.l.b16 %v4503
    %v4520 = vunpack.c.h.b16 %v4503
    %v4521 = vunpack.c.l.b16 %v4504
    %v4522 = vunpack.c.h.b16 %v4504
    %v4523 = vunpack.c.l.b16 %v4505
    %v4524 = vunpack.c.h.b16 %v4505
    %v4525 = vunpack.c.l.b16 %v4506
    %v4526 = vunpack.c.h.b16 %v4506
    %v4527 = vunpack.c.l.b16 %v4507
    %v4528 = vunpack.c.h.b16 %v4507
    %v4529 = vunpack.c.l.b16 %v4508
    %v4530 = vunpack.c.h.b16 %v4508
    %v4531 = vunpack.c.l.b16 %v4509
    %v4532 = vunpack.c.h.b16 %v4509
    %v4533 = vunpack.c.l.b16 %v4510
    %v4534 = vunpack.c.h.b16 %v4510
    %v4535 = vpack.c.b16 %v4521, %v4519
    %v4536 = vpack.c.b16 %v4522, %v4520
    %v4537 = vpack.c.b16 %v4525, %v4523
    %v4538 = vpack.c.b16 %v4526, %v4524
    %v4539 = vpack.c.b16 %v4529, %v4527
    %v4540 = vpack.c.b16 %v4530, %v4528
    %v4541 = vpack.c.b16 %v4533, %v4531
    %v4542 = vpack.c.b16 %v4534, %v4532
    %4551 = vmatpush.bf16.msra.mxu0 0
    %4552 = vmatpush.bf16.msra.mxu0 0
    %4553 = vmatpush.bf16.msra.mxu0 0
    %4554 = vmatpush.bf16.msra.mxu0 0
    %4555 = vmatpush.bf16.msra.mxu0 %v4541
    %4556 = vmatpush.bf16.msra.mxu0 %v4539
    %4557 = vmatpush.bf16.msra.mxu0 %v4537
    %4558 = vmatpush.bf16.msra.mxu0 %v4535
    %4559 = vmatmul.bf16.gmra.mxu0 %v4338
    %v4560 = vpop.f32.mrf.mxu0
    %v4561 = vadd.f32 %v244, %v4560
    %v4562 = vpop.f32.mrf.mxu0
    %4563 = vdwg.mxu0
    %4564 = vmatpush.bf16.msra.mxu0 0
    %4565 = vmatpush.bf16.msra.mxu0 0
    %4566 = vmatpush.bf16.msra.mxu0 0
    %4567 = vmatpush.bf16.msra.mxu0 0
    %4568 = vmatpush.bf16.msra.mxu0 %v4542
    %4569 = vmatpush.bf16.msra.mxu0 %v4540
    %4570 = vmatpush.bf16.msra.mxu0 %v4538
    %4571 = vmatpush.bf16.msra.mxu0 %v4536
    %4572 = vmatmul.bf16.gmra.mxu0 %v4338
    %v4573 = vpop.f32.mrf.mxu0
    %v4574 = vadd.f32 %v245, %v4573
    %v4575 = vpop.f32.mrf.mxu0
    %4576 = vdwg.mxu0
    %v4581 = vunpack.c.l.b16 %v4499
    %v4582 = vunpack.c.h.b16 %v4499
    %v4583 = vunpack.c.l.b16 %v4500
    %v4584 = vunpack.c.h.b16 %v4500
    %v4585 = vunpack.c.l.b16 %v4501
    %v4586 = vunpack.c.h.b16 %v4501
    %v4587 = vunpack.c.l.b16 %v4502
    %v4588 = vunpack.c.h.b16 %v4502
    %v4589 = vpack.c.b16 %v4583, %v4581
    %v4590 = vpack.c.b16 %v4584, %v4582
    %v4591 = vpack.c.b16 %v4587, %v4585
    %v4592 = vpack.c.b16 %v4588, %v4586
    %v4598 = vsel %vm233, %v4498, 0
    %4600 = vmatpush.bf16.msra.mxu0 0
    %4601 = vmatpush.bf16.msra.mxu0 0
    %4602 = vmatpush.bf16.msra.mxu0 0
    %4603 = vmatpush.bf16.msra.mxu0 0
    %4604 = vmatpush.bf16.msra.mxu0 0
    %4605 = vmatpush.bf16.msra.mxu0 0
    %4606 = vmatpush.bf16.msra.mxu0 %v4591
    %4607 = vmatpush.bf16.msra.mxu0 %v4589
    %4608 = vmatmul.bf16.gmra.mxu0 %v4598
    %v4609 = vpop.f32.mrf.mxu0
    %v4610 = vadd.f32 %v4561, %v4609
    %v4611 = vpop.f32.mrf.mxu0
    %4612 = vdwg.mxu0
    %4613 = vmatpush.bf16.msra.mxu0 0
    %4614 = vmatpush.bf16.msra.mxu0 0
    %4615 = vmatpush.bf16.msra.mxu0 0
    %4616 = vmatpush.bf16.msra.mxu0 0
    %4617 = vmatpush.bf16.msra.mxu0 0
    %4618 = vmatpush.bf16.msra.mxu0 0
    %4619 = vmatpush.bf16.msra.mxu0 %v4592
    %4620 = vmatpush.bf16.msra.mxu0 %v4590
    %4621 = vmatmul.bf16.gmra.mxu0 %v4598
    %v4622 = vpop.f32.mrf.mxu0
    %v4623 = vadd.f32 %v4574, %v4622
    %v4624 = vpop.f32.mrf.mxu0
    %4625 = vdwg.mxu0
    %v4626 = vld [vmem:[%s7] sm:$0xff]
    %v4627 = vld [vmem:[%s7 + $0x8] sm:$0xff]
    %v4628 = vld [vmem:[%s7 + $0x10] sm:$0xff]
    %v4629 = vld [vmem:[%s7 + $0x18] sm:$0xff]
    %v4630 = vld [vmem:[%s7 + $0x20] sm:$0xff]
    %v4631 = vld [vmem:[%s7 + $0x28] sm:$0xff]
    %v4632 = vld [vmem:[%s7 + $0x30] sm:$0xff]
    %v4633 = vld [vmem:[%s7 + $0x38] sm:$0xff]
    %v4642 = vunpack.c.l.b16 %v4626
    %v4643 = vunpack.c.h.b16 %v4626
    %v4644 = vunpack.c.l.b16 %v4627
    %v4645 = vunpack.c.h.b16 %v4627
    %v4646 = vunpack.c.l.b16 %v4628
    %v4647 = vunpack.c.h.b16 %v4628
    %v4648 = vunpack.c.l.b16 %v4629
    %v4649 = vunpack.c.h.b16 %v4629
    %v4650 = vunpack.c.l.b16 %v4630
    %v4651 = vunpack.c.h.b16 %v4630
    %v4652 = vunpack.c.l.b16 %v4631
    %v4653 = vunpack.c.h.b16 %v4631
    %v4654 = vunpack.c.l.b16 %v4632
    %v4655 = vunpack.c.h.b16 %v4632
    %v4656 = vunpack.c.l.b16 %v4633
    %v4657 = vunpack.c.h.b16 %v4633
    %v4658 = vpack.c.b16 %v4644, %v4642
    %v4659 = vpack.c.b16 %v4645, %v4643
    %v4660 = vpack.c.b16 %v4648, %v4646
    %v4661 = vpack.c.b16 %v4649, %v4647
    %v4662 = vpack.c.b16 %v4652, %v4650
    %v4663 = vpack.c.b16 %v4653, %v4651
    %v4664 = vpack.c.b16 %v4656, %v4654
    %v4665 = vpack.c.b16 %v4657, %v4655
    %4674 = vmatpush.bf16.msra.mxu0 0
    %4675 = vmatpush.bf16.msra.mxu0 0
    %4676 = vmatpush.bf16.msra.mxu0 0
    %4677 = vmatpush.bf16.msra.mxu0 0
    %4678 = vmatpush.bf16.msra.mxu0 %v4664
    %4679 = vmatpush.bf16.msra.mxu0 %v4662
    %4680 = vmatpush.bf16.msra.mxu0 %v4660
    %4681 = vmatpush.bf16.msra.mxu0 %v4658
    %4682 = vmatmul.bf16.gmra.mxu0 %v4456
    %v4683 = vpop.f32.mrf.mxu0
    %v4684 = vadd.f32 %v250, %v4683
    %v4685 = vpop.f32.mrf.mxu0
    %4686 = vdwg.mxu0
    %4687 = vmatpush.bf16.msra.mxu0 0
    %4688 = vmatpush.bf16.msra.mxu0 0
    %4689 = vmatpush.bf16.msra.mxu0 0
    %4690 = vmatpush.bf16.msra.mxu0 0
    %4691 = vmatpush.bf16.msra.mxu0 %v4665
    %4692 = vmatpush.bf16.msra.mxu0 %v4663
    %4693 = vmatpush.bf16.msra.mxu0 %v4661
    %4694 = vmatpush.bf16.msra.mxu0 %v4659
    %4695 = vmatmul.bf16.gmra.mxu0 %v4456
    %v4696 = vpop.f32.mrf.mxu0
    %v4697 = vadd.f32 %v251, %v4696
    %v4698 = vpop.f32.mrf.mxu0
    %4699 = vdwg.mxu0
    %v4700 = vxor.u32 %v4610, 2147483648
    %v4701 = vxor.u32 %v4623, 2147483648
    %v4702 = vmul.f32 %v4700, 1.442695
    %v4703 = vpow.pop %v4702
    %v4704 = vmul.f32 %v4701, 1.442695
    %v4705 = vpow.pop %v4704
    %v4706 = vadd.f32 %v4703, 1.0
    %v4707 = vadd.f32 %v4705, 1.0
    %v4708 = vrcp.pop %v4706
    %v4709 = vmul.f32 %v4706, %v4708
    %v4710 = vsub.f32 1.0, %v4709
    %v4711 = vmul.f32 %v4708, %v4710
    %v4712 = vadd.f32 %v4708, %v4711
    %vm4713 = vweird.f32 %v4706
    %vm4714 = vweird.f32 %v4708
    %vm4715 = vmor %vm4713, %vm4714
    %v4716 = vsel %vm4715, %v4708, %v4712
    %v4717 = vand.u32 2147483647, %v4706
    %vm4718 = vcmp.eq.f32.partialorder %v4717, 8.507059e+37
    %v4719 = vand.u32 %v4706, 2147483648
    %v4720 = vor.u32 1.1754944e-38, %v4719
    %v4721 = vsel %vm4718, %v4720, %v4716
    %v4722 = vmul.f32 1.0, %v4721
    %v4723 = vrcp.pop %v4707
    %v4724 = vmul.f32 %v4707, %v4723
    %v4725 = vsub.f32 1.0, %v4724
    %v4726 = vmul.f32 %v4723, %v4725
    %v4727 = vadd.f32 %v4723, %v4726
    %vm4728 = vweird.f32 %v4707
    %vm4729 = vweird.f32 %v4723
    %vm4730 = vmor %vm4728, %vm4729
    %v4731 = vsel %vm4730, %v4723, %v4727
    %v4732 = vand.u32 2147483647, %v4707
    %vm4733 = vcmp.eq.f32.partialorder %v4732, 8.507059e+37
    %v4734 = vand.u32 %v4707, 2147483648
    %v4735 = vor.u32 1.1754944e-38, %v4734
    %v4736 = vsel %vm4733, %v4735, %v4731
    %v4737 = vmul.f32 1.0, %v4736
    %v4738 = vtanh.pop %v4623
    %v4739 = vmul.f32 %v4722, %v4281
    %4741 = vrot.lane.b32.xlu0 %v4738, 64
    %v4742 = vpop.permute.xlu0 %4741
    %v4744 = vmul.f32 %v4722, %v4742
    %4746 = vrot.lane.b32.xlu0 %v4744, 64
    %v4747 = vpop.permute.xlu0 %4746
    %v4749 = vadd.f32 %v4739, %v4747
    %v4750 = vtanh.pop %v4749
    %4752 = vrot.lane.b32.xlu0 %v4750, 64
    %v4753 = vpop.permute.xlu0 %4752
    %v4755 = vmul.f32 %v4737, %v4753
    %v4756 = vpack.c.bf16 %v4755, %v4755
    %v4757 = vld [vmem:[%s6] sm:$0xff]
    %v4758 = vld [vmem:[%s6 + $0x8] sm:$0xff]
    %v4759 = vld [vmem:[%s6 + $0x10] sm:$0xff]
    %v4760 = vld [vmem:[%s6 + $0x18] sm:$0xff]
    %v4761 = vld [vmem:[%s6 + $0x20] sm:$0xff]
    %v4762 = vld [vmem:[%s6 + $0x28] sm:$0xff]
    %v4763 = vld [vmem:[%s6 + $0x30] sm:$0xff]
    %v4764 = vld [vmem:[%s6 + $0x38] sm:$0xff]
    %v4773 = vunpack.c.l.b16 %v4757
    %v4774 = vunpack.c.h.b16 %v4757
    %v4775 = vunpack.c.l.b16 %v4758
    %v4776 = vunpack.c.h.b16 %v4758
    %v4777 = vunpack.c.l.b16 %v4759
    %v4778 = vunpack.c.h.b16 %v4759
    %v4779 = vunpack.c.l.b16 %v4760
    %v4780 = vunpack.c.h.b16 %v4760
    %v4781 = vunpack.c.l.b16 %v4761
    %v4782 = vunpack.c.h.b16 %v4761
    %v4783 = vunpack.c.l.b16 %v4762
    %v4784 = vunpack.c.h.b16 %v4762
    %v4785 = vunpack.c.l.b16 %v4763
    %v4786 = vunpack.c.h.b16 %v4763
    %v4787 = vunpack.c.l.b16 %v4764
    %v4788 = vunpack.c.h.b16 %v4764
    %v4789 = vpack.c.b16 %v4775, %v4773
    %v4790 = vpack.c.b16 %v4776, %v4774
    %v4791 = vpack.c.b16 %v4779, %v4777
    %v4792 = vpack.c.b16 %v4780, %v4778
    %v4793 = vpack.c.b16 %v4783, %v4781
    %v4794 = vpack.c.b16 %v4784, %v4782
    %v4795 = vpack.c.b16 %v4787, %v4785
    %v4796 = vpack.c.b16 %v4788, %v4786
    %v4806 = vsel %vm125, %v4756, 0
    %4808 = vmatpush.bf16.msra.mxu0 0
    %4809 = vmatpush.bf16.msra.mxu0 0
    %4810 = vmatpush.bf16.msra.mxu0 0
    %4811 = vmatpush.bf16.msra.mxu0 0
    %4812 = vmatpush.bf16.msra.mxu0 %v4795
    %4813 = vmatpush.bf16.msra.mxu0 %v4793
    %4814 = vmatpush.bf16.msra.mxu0 %v4791
    %4815 = vmatpush.bf16.msra.mxu0 %v4789
    %4816 = vmatmul.bf16.gmra.mxu0 %v4806
    %v4817 = vpop.f32.mrf.mxu0
    %v4818 = vadd.f32 %v4684, %v4817
    %v4819 = vpop.f32.mrf.mxu0
    %4820 = vdwg.mxu0
    %4821 = vmatpush.bf16.msra.mxu0 0
    %4822 = vmatpush.bf16.msra.mxu0 0
    %4823 = vmatpush.bf16.msra.mxu0 0
    %4824 = vmatpush.bf16.msra.mxu0 0
    %4825 = vmatpush.bf16.msra.mxu0 %v4796
    %4826 = vmatpush.bf16.msra.mxu0 %v4794
    %4827 = vmatpush.bf16.msra.mxu0 %v4792
    %4828 = vmatpush.bf16.msra.mxu0 %v4790
    %4829 = vmatmul.bf16.gmra.mxu0 %v4806
    %v4830 = vpop.f32.mrf.mxu0
    %v4831 = vadd.f32 %v4697, %v4830
    %v4832 = vpop.f32.mrf.mxu0
    %4833 = vdwg.mxu0
    %v4834 = vxor.u32 %v4818, 2147483648
    %v4835 = vxor.u32 %v4831, 2147483648
    %v4836 = vmul.f32 %v4834, 1.442695
    %v4837 = vpow.pop %v4836
    %v4838 = vmul.f32 %v4835, 1.442695
    %v4839 = vpow.pop %v4838
    %v4840 = vadd.f32 %v4837, 1.0
    %v4841 = vadd.f32 %v4839, 1.0
    %v4842 = vrcp.pop %v4840
    %v4843 = vmul.f32 %v4840, %v4842
    %v4844 = vsub.f32 1.0, %v4843
    %v4845 = vmul.f32 %v4842, %v4844
    %v4846 = vadd.f32 %v4842, %v4845
    %vm4847 = vweird.f32 %v4840
    %vm4848 = vweird.f32 %v4842
    %vm4849 = vmor %vm4847, %vm4848
    %v4850 = vsel %vm4849, %v4842, %v4846
    %v4851 = vand.u32 2147483647, %v4840
    %vm4852 = vcmp.eq.f32.partialorder %v4851, 8.507059e+37
    %v4853 = vand.u32 %v4840, 2147483648
    %v4854 = vor.u32 1.1754944e-38, %v4853
    %v4855 = vsel %vm4852, %v4854, %v4850
    %v4856 = vmul.f32 1.0, %v4855
    %v4857 = vrcp.pop %v4841
    %v4858 = vmul.f32 %v4841, %v4857
    %v4859 = vsub.f32 1.0, %v4858
    %v4860 = vmul.f32 %v4857, %v4859
    %v4861 = vadd.f32 %v4857, %v4860
    %vm4862 = vweird.f32 %v4841
    %vm4863 = vweird.f32 %v4857
    %vm4864 = vmor %vm4862, %vm4863
    %v4865 = vsel %vm4864, %v4857, %v4861
    %v4866 = vand.u32 2147483647, %v4841
    %vm4867 = vcmp.eq.f32.partialorder %v4866, 8.507059e+37
    %v4868 = vand.u32 %v4841, 2147483648
    %v4869 = vor.u32 1.1754944e-38, %v4868
    %v4870 = vsel %vm4867, %v4869, %v4865
    %v4871 = vmul.f32 1.0, %v4870
    %v4872 = vtanh.pop %v4831
    %v4873 = vmul.f32 %v4856, %v4415
    %4875 = vrot.lane.b32.xlu0 %v4872, 64
    %v4876 = vpop.permute.xlu0 %4875
    %v4878 = vmul.f32 %v4856, %v4876
    %4880 = vrot.lane.b32.xlu0 %v4878, 64
    %v4881 = vpop.permute.xlu0 %4880
    %v4883 = vadd.f32 %v4873, %v4881
    %v4884 = vtanh.pop %v4883
    %4886 = vrot.lane.b32.xlu0 %v4884, 64
    %v4887 = vpop.permute.xlu0 %4886
    %v4889 = vmul.f32 %v4871, %v4887
    %v4890 = vpack.c.bf16 %v4889, %v4889
    %v4891 = vld [vmem:[%s9] sm:$0xf]
    %v4892 = vld [vmem:[%s9 + $0x4] sm:$0xf]
    %v4893 = vld [vmem:[%s9 + $0x8] sm:$0xf]
    %v4894 = vld [vmem:[%s9 + $0xc] sm:$0xf]
    %v4895 = vld [vmem:[%s9 + $0x10] sm:$0xf]
    %v4896 = vld [vmem:[%s9 + $0x14] sm:$0xf]
    %v4897 = vld [vmem:[%s9 + $0x18] sm:$0xf]
    %v4898 = vld [vmem:[%s9 + $0x1c] sm:$0xf]
    %v4907 = vunpack.c.l.b16 %v4891
    %v4908 = vunpack.c.l.b16 %v4892
    %v4909 = vunpack.c.l.b16 %v4893
    %v4910 = vunpack.c.l.b16 %v4894
    %v4911 = vunpack.c.l.b16 %v4895
    %v4912 = vunpack.c.l.b16 %v4896
    %v4913 = vunpack.c.l.b16 %v4897
    %v4914 = vunpack.c.l.b16 %v4898
    %v4915 = vpack.c.b16 %v4908, %v4907
    %v4916 = vpack.c.b16 %v4910, %v4909
    %v4917 = vpack.c.b16 %v4912, %v4911
    %v4918 = vpack.c.b16 %v4914, %v4913
    %v4924 = vsel %vm125, %v4890, 0
    %4926 = vmatpush.bf16.msra.mxu0 0
    %4927 = vmatpush.bf16.msra.mxu0 0
    %4928 = vmatpush.bf16.msra.mxu0 0
    %4929 = vmatpush.bf16.msra.mxu0 0
    %4930 = vmatpush.bf16.msra.mxu0 %v4918
    %4931 = vmatpush.bf16.msra.mxu0 %v4917
    %4932 = vmatpush.bf16.msra.mxu0 %v4916
    %4933 = vmatpush.bf16.msra.mxu0 %v4915
    %4934 = vmatmul.bf16.gmra.mxu0 %v4924
    %v4935 = vpop.f32.mrf.mxu0
    %v4936 = vadd.f32 %v256, %v4935
    %v4937 = vpop.f32.mrf.mxu0
    %4938 = vdwg.mxu0
    %4940 = vrot.lane.b32.xlu0 %v4936, 32
    %v4941 = vpop.permute.xlu0 %4940
    %4943 = vst.msk [vmem:[#allocation2 + $0x10] sm:$0xff] %vm1178, %v4941
    %v4944 = vshra.s32 %v4936, 31
    %v4945 = vand.u32 %v4944, 2147483647
    %v4946 = vxor.u32 %v4936, %v4945
    %v4947 = vand.u32 %v4946, 4294967264
    %v4948 = vor.u32 %v4947, %v711
    %v4949 = vsel %vm233, %v4948, 2147483648
    %v4950 = vand.u32 %v4949, 65535
    %v4951 = vshra.s32 %v4949, 16
    %v4952 = vcvt.s32.f32 %v4950
    %v4953 = vcvt.s32.f32 %v4951
    %4954 = vmax.xlane.f32.xlu0 %v4953
    %v4955 = vpop.xlane.xlu0 %4954
    %vm4956 = vcmp.eq.f32.partialorder %v4953, %v4955
    %v4957 = vsel %vm4956, %v4952, -inf
    %4958 = vmax.xlane.f32.xlu0 %v4957
    %v4959 = vpop.xlane.xlu0 %4958
    %v4960 = vcvt.f32.s32 %v4959
    %v4961 = vcvt.f32.s32 %v4955
    %v4962 = vshll.u32 %v4961, 16
    %v4963 = vadd.s32 %v4962, %v4960
    %v4964 = vand.u32 %v4963, 31
    %v4965 = vsub.s32 31, %v4964
    %vm4966 = vcmp.eq.s32.totalorder %v237, %v4965
    %v4967 = vsel %vm4966, 1, 0
    %v4968 = vcvt.s32.f32 %v4967
    %v4969 = vpack.c.bf16 %v4968, %v4968
    %v4970 = vld [vmem:[%s3] sm:$0xff]
    %v4971 = vld [vmem:[%s3 + $0x8] sm:$0xff]
    %v4972 = vld [vmem:[%s3 + $0x10] sm:$0xff]
    %v4973 = vld [vmem:[%s3 + $0x18] sm:$0xff]
    %v4974 = vld [vmem:[%s4] sm:$0xff]
    %v4975 = vld [vmem:[%s4 + $0x8] sm:$0xff]
    %v4976 = vld [vmem:[%s4 + $0x10] sm:$0xff]
    %v4977 = vld [vmem:[%s4 + $0x18] sm:$0xff]
    %v4978 = vld [vmem:[%s4 + $0x20] sm:$0xff]
    %v4979 = vld [vmem:[%s4 + $0x28] sm:$0xff]
    %v4980 = vld [vmem:[%s4 + $0x30] sm:$0xff]
    %v4981 = vld [vmem:[%s4 + $0x38] sm:$0xff]
    %v4990 = vunpack.c.l.b16 %v4974
    %v4991 = vunpack.c.h.b16 %v4974
    %v4992 = vunpack.c.l.b16 %v4975
    %v4993 = vunpack.c.h.b16 %v4975
    %v4994 = vunpack.c.l.b16 %v4976
    %v4995 = vunpack.c.h.b16 %v4976
    %v4996 = vunpack.c.l.b16 %v4977
    %v4997 = vunpack.c.h.b16 %v4977
    %v4998 = vunpack.c.l.b16 %v4978
    %v4999 = vunpack.c.h.b16 %v4978
    %v5000 = vunpack.c.l.b16 %v4979
    %v5001 = vunpack.c.h.b16 %v4979
    %v5002 = vunpack.c.l.b16 %v4980
    %v5003 = vunpack.c.h.b16 %v4980
    %v5004 = vunpack.c.l.b16 %v4981
    %v5005 = vunpack.c.h.b16 %v4981
    %v5006 = vpack.c.b16 %v4992, %v4990
    %v5007 = vpack.c.b16 %v4993, %v4991
    %v5008 = vpack.c.b16 %v4996, %v4994
    %v5009 = vpack.c.b16 %v4997, %v4995
    %v5010 = vpack.c.b16 %v5000, %v4998
    %v5011 = vpack.c.b16 %v5001, %v4999
    %v5012 = vpack.c.b16 %v5004, %v5002
    %v5013 = vpack.c.b16 %v5005, %v5003
    %5022 = vmatpush.bf16.msra.mxu0 0
    %5023 = vmatpush.bf16.msra.mxu0 0
    %5024 = vmatpush.bf16.msra.mxu0 0
    %5025 = vmatpush.bf16.msra.mxu0 0
    %5026 = vmatpush.bf16.msra.mxu0 %v5012
    %5027 = vmatpush.bf16.msra.mxu0 %v5010
    %5028 = vmatpush.bf16.msra.mxu0 %v5008
    %5029 = vmatpush.bf16.msra.mxu0 %v5006
    %5030 = vmatmul.bf16.gmra.mxu0 %v4806
    %v5031 = vpop.f32.mrf.mxu0
    %v5032 = vadd.f32 %v244, %v5031
    %v5033 = vpop.f32.mrf.mxu0
    %5034 = vdwg.mxu0
    %5035 = vmatpush.bf16.msra.mxu0 0
    %5036 = vmatpush.bf16.msra.mxu0 0
    %5037 = vmatpush.bf16.msra.mxu0 0
    %5038 = vmatpush.bf16.msra.mxu0 0
    %5039 = vmatpush.bf16.msra.mxu0 %v5013
    %5040 = vmatpush.bf16.msra.mxu0 %v5011
    %5041 = vmatpush.bf16.msra.mxu0 %v5009
    %5042 = vmatpush.bf16.msra.mxu0 %v5007
    %5043 = vmatmul.bf16.gmra.mxu0 %v4806
    %v5044 = vpop.f32.mrf.mxu0
    %v5045 = vadd.f32 %v245, %v5044
    %v5046 = vpop.f32.mrf.mxu0
    %5047 = vdwg.mxu0
    %v5052 = vunpack.c.l.b16 %v4970
    %v5053 = vunpack.c.h.b16 %v4970
    %v5054 = vunpack.c.l.b16 %v4971
    %v5055 = vunpack.c.h.b16 %v4971
    %v5056 = vunpack.c.l.b16 %v4972
    %v5057 = vunpack.c.h.b16 %v4972
    %v5058 = vunpack.c.l.b16 %v4973
    %v5059 = vunpack.c.h.b16 %v4973
    %v5060 = vpack.c.b16 %v5054, %v5052
    %v5061 = vpack.c.b16 %v5055, %v5053
    %v5062 = vpack.c.b16 %v5058, %v5056
    %v5063 = vpack.c.b16 %v5059, %v5057
    %v5069 = vsel %vm233, %v4969, 0
    %5071 = vmatpush.bf16.msra.mxu0 0
    %5072 = vmatpush.bf16.msra.mxu0 0
    %5073 = vmatpush.bf16.msra.mxu0 0
    %5074 = vmatpush.bf16.msra.mxu0 0
    %5075 = vmatpush.bf16.msra.mxu0 0
    %5076 = vmatpush.bf16.msra.mxu0 0
    %5077 = vmatpush.bf16.msra.mxu0 %v5062
    %5078 = vmatpush.bf16.msra.mxu0 %v5060
    %5079 = vmatmul.bf16.gmra.mxu0 %v5069
    %v5080 = vpop.f32.mrf.mxu0
    %v5081 = vadd.f32 %v5032, %v5080
    %v5082 = vpop.f32.mrf.mxu0
    %5083 = vdwg.mxu0
    %5084 = vmatpush.bf16.msra.mxu0 0
    %5085 = vmatpush.bf16.msra.mxu0 0
    %5086 = vmatpush.bf16.msra.mxu0 0
    %5087 = vmatpush.bf16.msra.mxu0 0
    %5088 = vmatpush.bf16.msra.mxu0 0
    %5089 = vmatpush.bf16.msra.mxu0 0
    %5090 = vmatpush.bf16.msra.mxu0 %v5063
    %5091 = vmatpush.bf16.msra.mxu0 %v5061
    %5092 = vmatmul.bf16.gmra.mxu0 %v5069
    %v5093 = vpop.f32.mrf.mxu0
    %v5094 = vadd.f32 %v5045, %v5093
    %v5095 = vpop.f32.mrf.mxu0
    %5096 = vdwg.mxu0
    %v5097 = vld [vmem:[%s7] sm:$0xff]
    %v5098 = vld [vmem:[%s7 + $0x8] sm:$0xff]
    %v5099 = vld [vmem:[%s7 + $0x10] sm:$0xff]
    %v5100 = vld [vmem:[%s7 + $0x18] sm:$0xff]
    %v5101 = vld [vmem:[%s7 + $0x20] sm:$0xff]
    %v5102 = vld [vmem:[%s7 + $0x28] sm:$0xff]
    %v5103 = vld [vmem:[%s7 + $0x30] sm:$0xff]
    %v5104 = vld [vmem:[%s7 + $0x38] sm:$0xff]
    %v5113 = vunpack.c.l.b16 %v5097
    %v5114 = vunpack.c.h.b16 %v5097
    %v5115 = vunpack.c.l.b16 %v5098
    %v5116 = vunpack.c.h.b16 %v5098
    %v5117 = vunpack.c.l.b16 %v5099
    %v5118 = vunpack.c.h.b16 %v5099
    %v5119 = vunpack.c.l.b16 %v5100
    %v5120 = vunpack.c.h.b16 %v5100
    %v5121 = vunpack.c.l.b16 %v5101
    %v5122 = vunpack.c.h.b16 %v5101
    %v5123 = vunpack.c.l.b16 %v5102
    %v5124 = vunpack.c.h.b16 %v5102
    %v5125 = vunpack.c.l.b16 %v5103
    %v5126 = vunpack.c.h.b16 %v5103
    %v5127 = vunpack.c.l.b16 %v5104
    %v5128 = vunpack.c.h.b16 %v5104
    %v5129 = vpack.c.b16 %v5115, %v5113
    %v5130 = vpack.c.b16 %v5116, %v5114
    %v5131 = vpack.c.b16 %v5119, %v5117
    %v5132 = vpack.c.b16 %v5120, %v5118
    %v5133 = vpack.c.b16 %v5123, %v5121
    %v5134 = vpack.c.b16 %v5124, %v5122
    %v5135 = vpack.c.b16 %v5127, %v5125
    %v5136 = vpack.c.b16 %v5128, %v5126
    %5145 = vmatpush.bf16.msra.mxu0 0
    %5146 = vmatpush.bf16.msra.mxu0 0
    %5147 = vmatpush.bf16.msra.mxu0 0
    %5148 = vmatpush.bf16.msra.mxu0 0
    %5149 = vmatpush.bf16.msra.mxu0 %v5135
    %5150 = vmatpush.bf16.msra.mxu0 %v5133
    %5151 = vmatpush.bf16.msra.mxu0 %v5131
    %5152 = vmatpush.bf16.msra.mxu0 %v5129
    %5153 = vmatmul.bf16.gmra.mxu0 %v4924
    %v5154 = vpop.f32.mrf.mxu0
    %v5155 = vadd.f32 %v250, %v5154
    %v5156 = vpop.f32.mrf.mxu0
    %5157 = vdwg.mxu0
    %5158 = vmatpush.bf16.msra.mxu0 0
    %5159 = vmatpush.bf16.msra.mxu0 0
    %5160 = vmatpush.bf16.msra.mxu0 0
    %5161 = vmatpush.bf16.msra.mxu0 0
    %5162 = vmatpush.bf16.msra.mxu0 %v5136
    %5163 = vmatpush.bf16.msra.mxu0 %v5134
    %5164 = vmatpush.bf16.msra.mxu0 %v5132
    %5165 = vmatpush.bf16.msra.mxu0 %v5130
    %5166 = vmatmul.bf16.gmra.mxu0 %v4924
    %v5167 = vpop.f32.mrf.mxu0
    %v5168 = vadd.f32 %v251, %v5167
    %v5169 = vpop.f32.mrf.mxu0
    %5170 = vdwg.mxu0
    %v5171 = vxor.u32 %v5081, 2147483648
    %v5172 = vxor.u32 %v5094, 2147483648
    %v5173 = vmul.f32 %v5171, 1.442695
    %v5174 = vpow.pop %v5173
    %v5175 = vmul.f32 %v5172, 1.442695
    %v5176 = vpow.pop %v5175
    %v5177 = vadd.f32 %v5174, 1.0
    %v5178 = vadd.f32 %v5176, 1.0
    %v5179 = vrcp.pop %v5177
    %v5180 = vmul.f32 %v5177, %v5179
    %v5181 = vsub.f32 1.0, %v5180
    %v5182 = vmul.f32 %v5179, %v5181
    %v5183 = vadd.f32 %v5179, %v5182
    %vm5184 = vweird.f32 %v5177
    %vm5185 = vweird.f32 %v5179
    %vm5186 = vmor %vm5184, %vm5185
    %v5187 = vsel %vm5186, %v5179, %v5183
    %v5188 = vand.u32 2147483647, %v5177
    %vm5189 = vcmp.eq.f32.partialorder %v5188, 8.507059e+37
    %v5190 = vand.u32 %v5177, 2147483648
    %v5191 = vor.u32 1.1754944e-38, %v5190
    %v5192 = vsel %vm5189, %v5191, %v5187
    %v5193 = vmul.f32 1.0, %v5192
    %v5194 = vrcp.pop %v5178
    %v5195 = vmul.f32 %v5178, %v5194
    %v5196 = vsub.f32 1.0, %v5195
    %v5197 = vmul.f32 %v5194, %v5196
    %v5198 = vadd.f32 %v5194, %v5197
    %vm5199 = vweird.f32 %v5178
    %vm5200 = vweird.f32 %v5194
    %vm5201 = vmor %vm5199, %vm5200
    %v5202 = vsel %vm5201, %v5194, %v5198
    %v5203 = vand.u32 2147483647, %v5178
    %vm5204 = vcmp.eq.f32.partialorder %v5203, 8.507059e+37
    %v5205 = vand.u32 %v5178, 2147483648
    %v5206 = vor.u32 1.1754944e-38, %v5205
    %v5207 = vsel %vm5204, %v5206, %v5202
    %v5208 = vmul.f32 1.0, %v5207
    %v5209 = vtanh.pop %v5094
    %v5210 = vmul.f32 %v5193, %v4749
    %5212 = vrot.lane.b32.xlu0 %v5209, 64
    %v5213 = vpop.permute.xlu0 %5212
    %v5215 = vmul.f32 %v5193, %v5213
    %5217 = vrot.lane.b32.xlu0 %v5215, 64
    %v5218 = vpop.permute.xlu0 %5217
    %v5220 = vadd.f32 %v5210, %v5218
    %v5221 = vtanh.pop %v5220
    %5223 = vrot.lane.b32.xlu0 %v5221, 64
    %v5224 = vpop.permute.xlu0 %5223
    %v5226 = vmul.f32 %v5208, %v5224
    %v5227 = vpack.c.bf16 %v5226, %v5226
    %v5228 = vld [vmem:[%s6] sm:$0xff]
    %v5229 = vld [vmem:[%s6 + $0x8] sm:$0xff]
    %v5230 = vld [vmem:[%s6 + $0x10] sm:$0xff]
    %v5231 = vld [vmem:[%s6 + $0x18] sm:$0xff]
    %v5232 = vld [vmem:[%s6 + $0x20] sm:$0xff]
    %v5233 = vld [vmem:[%s6 + $0x28] sm:$0xff]
    %v5234 = vld [vmem:[%s6 + $0x30] sm:$0xff]
    %v5235 = vld [vmem:[%s6 + $0x38] sm:$0xff]
    %v5244 = vunpack.c.l.b16 %v5228
    %v5245 = vunpack.c.h.b16 %v5228
    %v5246 = vunpack.c.l.b16 %v5229
    %v5247 = vunpack.c.h.b16 %v5229
    %v5248 = vunpack.c.l.b16 %v5230
    %v5249 = vunpack.c.h.b16 %v5230
    %v5250 = vunpack.c.l.b16 %v5231
    %v5251 = vunpack.c.h.b16 %v5231
    %v5252 = vunpack.c.l.b16 %v5232
    %v5253 = vunpack.c.h.b16 %v5232
    %v5254 = vunpack.c.l.b16 %v5233
    %v5255 = vunpack.c.h.b16 %v5233
    %v5256 = vunpack.c.l.b16 %v5234
    %v5257 = vunpack.c.h.b16 %v5234
    %v5258 = vunpack.c.l.b16 %v5235
    %v5259 = vunpack.c.h.b16 %v5235
    %v5260 = vpack.c.b16 %v5246, %v5244
    %v5261 = vpack.c.b16 %v5247, %v5245
    %v5262 = vpack.c.b16 %v5250, %v5248
    %v5263 = vpack.c.b16 %v5251, %v5249
    %v5264 = vpack.c.b16 %v5254, %v5252
    %v5265 = vpack.c.b16 %v5255, %v5253
    %v5266 = vpack.c.b16 %v5258, %v5256
    %v5267 = vpack.c.b16 %v5259, %v5257
    %v5277 = vsel %vm125, %v5227, 0
    %5279 = vmatpush.bf16.msra.mxu0 0
    %5280 = vmatpush.bf16.msra.mxu0 0
    %5281 = vmatpush.bf16.msra.mxu0 0
    %5282 = vmatpush.bf16.msra.mxu0 0
    %5283 = vmatpush.bf16.msra.mxu0 %v5266
    %5284 = vmatpush.bf16.msra.mxu0 %v5264
    %5285 = vmatpush.bf16.msra.mxu0 %v5262
    %5286 = vmatpush.bf16.msra.mxu0 %v5260
    %5287 = vmatmul.bf16.gmra.mxu0 %v5277
    %v5288 = vpop.f32.mrf.mxu0
    %v5289 = vadd.f32 %v5155, %v5288
    %v5290 = vpop.f32.mrf.mxu0
    %5291 = vdwg.mxu0
    %5292 = vmatpush.bf16.msra.mxu0 0
    %5293 = vmatpush.bf16.msra.mxu0 0
    %5294 = vmatpush.bf16.msra.mxu0 0
    %5295 = vmatpush.bf16.msra.mxu0 0
    %5296 = vmatpush.bf16.msra.mxu0 %v5267
    %5297 = vmatpush.bf16.msra.mxu0 %v5265
    %5298 = vmatpush.bf16.msra.mxu0 %v5263
    %5299 = vmatpush.bf16.msra.mxu0 %v5261
    %5300 = vmatmul.bf16.gmra.mxu0 %v5277
    %v5301 = vpop.f32.mrf.mxu0
    %v5302 = vadd.f32 %v5168, %v5301
    %v5303 = vpop.f32.mrf.mxu0
    %5304 = vdwg.mxu0
    %v5305 = vxor.u32 %v5289, 2147483648
    %v5306 = vxor.u32 %v5302, 2147483648
    %v5307 = vmul.f32 %v5305, 1.442695
    %v5308 = vpow.pop %v5307
    %v5309 = vmul.f32 %v5306, 1.442695
    %v5310 = vpow.pop %v5309
    %v5311 = vadd.f32 %v5308, 1.0
    %v5312 = vadd.f32 %v5310, 1.0
    %v5313 = vrcp.pop %v5311
    %v5314 = vmul.f32 %v5311, %v5313
    %v5315 = vsub.f32 1.0, %v5314
    %v5316 = vmul.f32 %v5313, %v5315
    %v5317 = vadd.f32 %v5313, %v5316
    %vm5318 = vweird.f32 %v5311
    %vm5319 = vweird.f32 %v5313
    %vm5320 = vmor %vm5318, %vm5319
    %v5321 = vsel %vm5320, %v5313, %v5317
    %v5322 = vand.u32 2147483647, %v5311
    %vm5323 = vcmp.eq.f32.partialorder %v5322, 8.507059e+37
    %v5324 = vand.u32 %v5311, 2147483648
    %v5325 = vor.u32 1.1754944e-38, %v5324
    %v5326 = vsel %vm5323, %v5325, %v5321
    %v5327 = vmul.f32 1.0, %v5326
    %v5328 = vrcp.pop %v5312
    %v5329 = vmul.f32 %v5312, %v5328
    %v5330 = vsub.f32 1.0, %v5329
    %v5331 = vmul.f32 %v5328, %v5330
    %v5332 = vadd.f32 %v5328, %v5331
    %vm5333 = vweird.f32 %v5312
    %vm5334 = vweird.f32 %v5328
    %vm5335 = vmor %vm5333, %vm5334
    %v5336 = vsel %vm5335, %v5328, %v5332
    %v5337 = vand.u32 2147483647, %v5312
    %vm5338 = vcmp.eq.f32.partialorder %v5337, 8.507059e+37
    %v5339 = vand.u32 %v5312, 2147483648
    %v5340 = vor.u32 1.1754944e-38, %v5339
    %v5341 = vsel %vm5338, %v5340, %v5336
    %v5342 = vmul.f32 1.0, %v5341
    %v5343 = vtanh.pop %v5302
    %v5344 = vmul.f32 %v5327, %v4883
    %5346 = vrot.lane.b32.xlu0 %v5343, 64
    %v5347 = vpop.permute.xlu0 %5346
    %v5349 = vmul.f32 %v5327, %v5347
    %5351 = vrot.lane.b32.xlu0 %v5349, 64
    %v5352 = vpop.permute.xlu0 %5351
    %v5354 = vadd.f32 %v5344, %v5352
    %v5355 = vtanh.pop %v5354
    %5357 = vrot.lane.b32.xlu0 %v5355, 64
    %v5358 = vpop.permute.xlu0 %5357
    %v5360 = vmul.f32 %v5342, %v5358
    %v5361 = vpack.c.bf16 %v5360, %v5360
    %v5362 = vld [vmem:[%s9] sm:$0xf]
    %v5363 = vld [vmem:[%s9 + $0x4] sm:$0xf]
    %v5364 = vld [vmem:[%s9 + $0x8] sm:$0xf]
    %v5365 = vld [vmem:[%s9 + $0xc] sm:$0xf]
    %v5366 = vld [vmem:[%s9 + $0x10] sm:$0xf]
    %v5367 = vld [vmem:[%s9 + $0x14] sm:$0xf]
    %v5368 = vld [vmem:[%s9 + $0x18] sm:$0xf]
    %v5369 = vld [vmem:[%s9 + $0x1c] sm:$0xf]
    %v5378 = vunpack.c.l.b16 %v5362
    %v5379 = vunpack.c.l.b16 %v5363
    %v5380 = vunpack.c.l.b16 %v5364
    %v5381 = vunpack.c.l.b16 %v5365
    %v5382 = vunpack.c.l.b16 %v5366
    %v5383 = vunpack.c.l.b16 %v5367
    %v5384 = vunpack.c.l.b16 %v5368
    %v5385 = vunpack.c.l.b16 %v5369
    %v5386 = vpack.c.b16 %v5379, %v5378
    %v5387 = vpack.c.b16 %v5381, %v5380
    %v5388 = vpack.c.b16 %v5383, %v5382
    %v5389 = vpack.c.b16 %v5385, %v5384
    %v5395 = vsel %vm125, %v5361, 0
    %5397 = vmatpush.bf16.msra.mxu0 0
    %5398 = vmatpush.bf16.msra.mxu0 0
    %5399 = vmatpush.bf16.msra.mxu0 0
    %5400 = vmatpush.bf16.msra.mxu0 0
    %5401 = vmatpush.bf16.msra.mxu0 %v5389
    %5402 = vmatpush.bf16.msra.mxu0 %v5388
    %5403 = vmatpush.bf16.msra.mxu0 %v5387
    %5404 = vmatpush.bf16.msra.mxu0 %v5386
    %5405 = vmatmul.bf16.gmra.mxu0 %v5395
    %v5406 = vpop.f32.mrf.mxu0
    %v5407 = vadd.f32 %v256, %v5406
    %v5408 = vpop.f32.mrf.mxu0
    %5409 = vdwg.mxu0
    %5411 = vrot.lane.b32.xlu0 %v5407, 64
    %v5412 = vpop.permute.xlu0 %5411
    %5414 = vst.msk [vmem:[#allocation2 + $0x10] sm:$0xff] %vm1650, %v5412
    %v5415 = vshra.s32 %v5407, 31
    %v5416 = vand.u32 %v5415, 2147483647
    %v5417 = vxor.u32 %v5407, %v5416
    %v5418 = vand.u32 %v5417, 4294967264
    %v5419 = vor.u32 %v5418, %v711
    %v5420 = vsel %vm233, %v5419, 2147483648
    %v5421 = vand.u32 %v5420, 65535
    %v5422 = vshra.s32 %v5420, 16
    %v5423 = vcvt.s32.f32 %v5421
    %v5424 = vcvt.s32.f32 %v5422
    %5425 = vmax.xlane.f32.xlu0 %v5424
    %v5426 = vpop.xlane.xlu0 %5425
    %vm5427 = vcmp.eq.f32.partialorder %v5424, %v5426
    %v5428 = vsel %vm5427, %v5423, -inf
    %5429 = vmax.xlane.f32.xlu0 %v5428
    %v5430 = vpop.xlane.xlu0 %5429
    %v5431 = vcvt.f32.s32 %v5430
    %v5432 = vcvt.f32.s32 %v5426
    %v5433 = vshll.u32 %v5432, 16
    %v5434 = vadd.s32 %v5433, %v5431
    %v5435 = vand.u32 %v5434, 31
    %v5436 = vsub.s32 31, %v5435
    %vm5437 = vcmp.eq.s32.totalorder %v237, %v5436
    %v5438 = vsel %vm5437, 1, 0
    %v5439 = vcvt.s32.f32 %v5438
    %v5440 = vpack.c.bf16 %v5439, %v5439
    %v5441 = vld [vmem:[%s3] sm:$0xff]
    %v5442 = vld [vmem:[%s3 + $0x8] sm:$0xff]
    %v5443 = vld [vmem:[%s3 + $0x10] sm:$0xff]
    %v5444 = vld [vmem:[%s3 + $0x18] sm:$0xff]
    %v5445 = vld [vmem:[%s4] sm:$0xff]
    %v5446 = vld [vmem:[%s4 + $0x8] sm:$0xff]
    %v5447 = vld [vmem:[%s4 + $0x10] sm:$0xff]
    %v5448 = vld [vmem:[%s4 + $0x18] sm:$0xff]
    %v5449 = vld [vmem:[%s4 + $0x20] sm:$0xff]
    %v5450 = vld [vmem:[%s4 + $0x28] sm:$0xff]
    %v5451 = vld [vmem:[%s4 + $0x30] sm:$0xff]
    %v5452 = vld [vmem:[%s4 + $0x38] sm:$0xff]
    %v5461 = vunpack.c.l.b16 %v5445
    %v5462 = vunpack.c.h.b16 %v5445
    %v5463 = vunpack.c.l.b16 %v5446
    %v5464 = vunpack.c.h.b16 %v5446
    %v5465 = vunpack.c.l.b16 %v5447
    %v5466 = vunpack.c.h.b16 %v5447
    %v5467 = vunpack.c.l.b16 %v5448
    %v5468 = vunpack.c.h.b16 %v5448
    %v5469 = vunpack.c.l.b16 %v5449
    %v5470 = vunpack.c.h.b16 %v5449
    %v5471 = vunpack.c.l.b16 %v5450
    %v5472 = vunpack.c.h.b16 %v5450
    %v5473 = vunpack.c.l.b16 %v5451
    %v5474 = vunpack.c.h.b16 %v5451
    %v5475 = vunpack.c.l.b16 %v5452
    %v5476 = vunpack.c.h.b16 %v5452
    %v5477 = vpack.c.b16 %v5463, %v5461
    %v5478 = vpack.c.b16 %v5464, %v5462
    %v5479 = vpack.c.b16 %v5467, %v5465
    %v5480 = vpack.c.b16 %v5468, %v5466
    %v5481 = vpack.c.b16 %v5471, %v5469
    %v5482 = vpack.c.b16 %v5472, %v5470
    %v5483 = vpack.c.b16 %v5475, %v5473
    %v5484 = vpack.c.b16 %v5476, %v5474
    %5493 = vmatpush.bf16.msra.mxu0 0
    %5494 = vmatpush.bf16.msra.mxu0 0
    %5495 = vmatpush.bf16.msra.mxu0 0
    %5496 = vmatpush.bf16.msra.mxu0 0
    %5497 = vmatpush.bf16.msra.mxu0 %v5483
    %5498 = vmatpush.bf16.msra.mxu0 %v5481
    %5499 = vmatpush.bf16.msra.mxu0 %v5479
    %5500 = vmatpush.bf16.msra.mxu0 %v5477
    %5501 = vmatmul.bf16.gmra.mxu0 %v5277
    %v5502 = vpop.f32.mrf.mxu0
    %v5503 = vadd.f32 %v244, %v5502
    %v5504 = vpop.f32.mrf.mxu0
    %5505 = vdwg.mxu0
    %5506 = vmatpush.bf16.msra.mxu0 0
    %5507 = vmatpush.bf16.msra.mxu0 0
    %5508 = vmatpush.bf16.msra.mxu0 0
    %5509 = vmatpush.bf16.msra.mxu0 0
    %5510 = vmatpush.bf16.msra.mxu0 %v5484
    %5511 = vmatpush.bf16.msra.mxu0 %v5482
    %5512 = vmatpush.bf16.msra.mxu0 %v5480
    %5513 = vmatpush.bf16.msra.mxu0 %v5478
    %5514 = vmatmul.bf16.gmra.mxu0 %v5277
    %v5515 = vpop.f32.mrf.mxu0
    %v5516 = vadd.f32 %v245, %v5515
    %v5517 = vpop.f32.mrf.mxu0
    %5518 = vdwg.mxu0
    %v5523 = vunpack.c.l.b16 %v5441
    %v5524 = vunpack.c.h.b16 %v5441
    %v5525 = vunpack.c.l.b16 %v5442
    %v5526 = vunpack.c.h.b16 %v5442
    %v5527 = vunpack.c.l.b16 %v5443
    %v5528 = vunpack.c.h.b16 %v5443
    %v5529 = vunpack.c.l.b16 %v5444
    %v5530 = vunpack.c.h.b16 %v5444
    %v5531 = vpack.c.b16 %v5525, %v5523
    %v5532 = vpack.c.b16 %v5526, %v5524
    %v5533 = vpack.c.b16 %v5529, %v5527
    %v5534 = vpack.c.b16 %v5530, %v5528
    %v5540 = vsel %vm233, %v5440, 0
    %5542 = vmatpush.bf16.msra.mxu0 0
    %5543 = vmatpush.bf16.msra.mxu0 0
    %5544 = vmatpush.bf16.msra.mxu0 0
    %5545 = vmatpush.bf16.msra.mxu0 0
    %5546 = vmatpush.bf16.msra.mxu0 0
    %5547 = vmatpush.bf16.msra.mxu0 0
    %5548 = vmatpush.bf16.msra.mxu0 %v5533
    %5549 = vmatpush.bf16.msra.mxu0 %v5531
    %5550 = vmatmul.bf16.gmra.mxu0 %v5540
    %v5551 = vpop.f32.mrf.mxu0
    %v5552 = vadd.f32 %v5503, %v5551
    %v5553 = vpop.f32.mrf.mxu0
    %5554 = vdwg.mxu0
    %5555 = vmatpush.bf16.msra.mxu0 0
    %5556 = vmatpush.bf16.msra.mxu0 0
    %5557 = vmatpush.bf16.msra.mxu0 0
    %5558 = vmatpush.bf16.msra.mxu0 0
    %5559 = vmatpush.bf16.msra.mxu0 0
    %5560 = vmatpush.bf16.msra.mxu0 0
    %5561 = vmatpush.bf16.msra.mxu0 %v5534
    %5562 = vmatpush.bf16.msra.mxu0 %v5532
    %5563 = vmatmul.bf16.gmra.mxu0 %v5540
    %v5564 = vpop.f32.mrf.mxu0
    %v5565 = vadd.f32 %v5516, %v5564
    %v5566 = vpop.f32.mrf.mxu0
    %5567 = vdwg.mxu0
    %v5568 = vld [vmem:[%s7] sm:$0xff]
    %v5569 = vld [vmem:[%s7 + $0x8] sm:$0xff]
    %v5570 = vld [vmem:[%s7 + $0x10] sm:$0xff]
    %v5571 = vld [vmem:[%s7 + $0x18] sm:$0xff]
    %v5572 = vld [vmem:[%s7 + $0x20] sm:$0xff]
    %v5573 = vld [vmem:[%s7 + $0x28] sm:$0xff]
    %v5574 = vld [vmem:[%s7 + $0x30] sm:$0xff]
    %v5575 = vld [vmem:[%s7 + $0x38] sm:$0xff]
    %v5584 = vunpack.c.l.b16 %v5568
    %v5585 = vunpack.c.h.b16 %v5568
    %v5586 = vunpack.c.l.b16 %v5569
    %v5587 = vunpack.c.h.b16 %v5569
    %v5588 = vunpack.c.l.b16 %v5570
    %v5589 = vunpack.c.h.b16 %v5570
    %v5590 = vunpack.c.l.b16 %v5571
    %v5591 = vunpack.c.h.b16 %v5571
    %v5592 = vunpack.c.l.b16 %v5572
    %v5593 = vunpack.c.h.b16 %v5572
    %v5594 = vunpack.c.l.b16 %v5573
    %v5595 = vunpack.c.h.b16 %v5573
    %v5596 = vunpack.c.l.b16 %v5574
    %v5597 = vunpack.c.h.b16 %v5574
    %v5598 = vunpack.c.l.b16 %v5575
    %v5599 = vunpack.c.h.b16 %v5575
    %v5600 = vpack.c.b16 %v5586, %v5584
    %v5601 = vpack.c.b16 %v5587, %v5585
    %v5602 = vpack.c.b16 %v5590, %v5588
    %v5603 = vpack.c.b16 %v5591, %v5589
    %v5604 = vpack.c.b16 %v5594, %v5592
    %v5605 = vpack.c.b16 %v5595, %v5593
    %v5606 = vpack.c.b16 %v5598, %v5596
    %v5607 = vpack.c.b16 %v5599, %v5597
    %5616 = vmatpush.bf16.msra.mxu0 0
    %5617 = vmatpush.bf16.msra.mxu0 0
    %5618 = vmatpush.bf16.msra.mxu0 0
    %5619 = vmatpush.bf16.msra.mxu0 0
    %5620 = vmatpush.bf16.msra.mxu0 %v5606
    %5621 = vmatpush.bf16.msra.mxu0 %v5604
    %5622 = vmatpush.bf16.msra.mxu0 %v5602
    %5623 = vmatpush.bf16.msra.mxu0 %v5600
    %5624 = vmatmul.bf16.gmra.mxu0 %v5395
    %v5625 = vpop.f32.mrf.mxu0
    %v5626 = vadd.f32 %v250, %v5625
    %v5627 = vpop.f32.mrf.mxu0
    %5628 = vdwg.mxu0
    %5629 = vmatpush.bf16.msra.mxu0 0
    %5630 = vmatpush.bf16.msra.mxu0 0
    %5631 = vmatpush.bf16.msra.mxu0 0
    %5632 = vmatpush.bf16.msra.mxu0 0
    %5633 = vmatpush.bf16.msra.mxu0 %v5607
    %5634 = vmatpush.bf16.msra.mxu0 %v5605
    %5635 = vmatpush.bf16.msra.mxu0 %v5603
    %5636 = vmatpush.bf16.msra.mxu0 %v5601
    %5637 = vmatmul.bf16.gmra.mxu0 %v5395
    %v5638 = vpop.f32.mrf.mxu0
    %v5639 = vadd.f32 %v251, %v5638
    %v5640 = vpop.f32.mrf.mxu0
    %5641 = vdwg.mxu0
    %v5642 = vxor.u32 %v5552, 2147483648
    %v5643 = vxor.u32 %v5565, 2147483648
    %v5644 = vmul.f32 %v5642, 1.442695
    %v5645 = vpow.pop %v5644
    %v5646 = vmul.f32 %v5643, 1.442695
    %v5647 = vpow.pop %v5646
    %v5648 = vadd.f32 %v5645, 1.0
    %v5649 = vadd.f32 %v5647, 1.0
    %v5650 = vrcp.pop %v5648
    %v5651 = vmul.f32 %v5648, %v5650
    %v5652 = vsub.f32 1.0, %v5651
    %v5653 = vmul.f32 %v5650, %v5652
    %v5654 = vadd.f32 %v5650, %v5653
    %vm5655 = vweird.f32 %v5648
    %vm5656 = vweird.f32 %v5650
    %vm5657 = vmor %vm5655, %vm5656
    %v5658 = vsel %vm5657, %v5650, %v5654
    %v5659 = vand.u32 2147483647, %v5648
    %vm5660 = vcmp.eq.f32.partialorder %v5659, 8.507059e+37
    %v5661 = vand.u32 %v5648, 2147483648
    %v5662 = vor.u32 1.1754944e-38, %v5661
    %v5663 = vsel %vm5660, %v5662, %v5658
    %v5664 = vmul.f32 1.0, %v5663
    %v5665 = vrcp.pop %v5649
    %v5666 = vmul.f32 %v5649, %v5665
    %v5667 = vsub.f32 1.0, %v5666
    %v5668 = vmul.f32 %v5665, %v5667
    %v5669 = vadd.f32 %v5665, %v5668
    %vm5670 = vweird.f32 %v5649
    %vm5671 = vweird.f32 %v5665
    %vm5672 = vmor %vm5670, %vm5671
    %v5673 = vsel %vm5672, %v5665, %v5669
    %v5674 = vand.u32 2147483647, %v5649
    %vm5675 = vcmp.eq.f32.partialorder %v5674, 8.507059e+37
    %v5676 = vand.u32 %v5649, 2147483648
    %v5677 = vor.u32 1.1754944e-38, %v5676
    %v5678 = vsel %vm5675, %v5677, %v5673
    %v5679 = vmul.f32 1.0, %v5678
    %v5680 = vtanh.pop %v5565
    %v5681 = vmul.f32 %v5664, %v5220
    %5683 = vrot.lane.b32.xlu0 %v5680, 64
    %v5684 = vpop.permute.xlu0 %5683
    %v5686 = vmul.f32 %v5664, %v5684
    %5688 = vrot.lane.b32.xlu0 %v5686, 64
    %v5689 = vpop.permute.xlu0 %5688
    %v5691 = vadd.f32 %v5681, %v5689
    %v5692 = vtanh.pop %v5691
    %5694 = vrot.lane.b32.xlu0 %v5692, 64
    %v5695 = vpop.permute.xlu0 %5694
    %v5697 = vmul.f32 %v5679, %v5695
    %v5698 = vpack.c.bf16 %v5697, %v5697
    %v5699 = vld [vmem:[%s6] sm:$0xff]
    %v5700 = vld [vmem:[%s6 + $0x8] sm:$0xff]
    %v5701 = vld [vmem:[%s6 + $0x10] sm:$0xff]
    %v5702 = vld [vmem:[%s6 + $0x18] sm:$0xff]
    %v5703 = vld [vmem:[%s6 + $0x20] sm:$0xff]
    %v5704 = vld [vmem:[%s6 + $0x28] sm:$0xff]
    %v5705 = vld [vmem:[%s6 + $0x30] sm:$0xff]
    %v5706 = vld [vmem:[%s6 + $0x38] sm:$0xff]
    %v5715 = vunpack.c.l.b16 %v5699
    %v5716 = vunpack.c.h.b16 %v5699
    %v5717 = vunpack.c.l.b16 %v5700
    %v5718 = vunpack.c.h.b16 %v5700
    %v5719 = vunpack.c.l.b16 %v5701
    %v5720 = vunpack.c.h.b16 %v5701
    %v5721 = vunpack.c.l.b16 %v5702
    %v5722 = vunpack.c.h.b16 %v5702
    %v5723 = vunpack.c.l.b16 %v5703
    %v5724 = vunpack.c.h.b16 %v5703
    %v5725 = vunpack.c.l.b16 %v5704
    %v5726 = vunpack.c.h.b16 %v5704
    %v5727 = vunpack.c.l.b16 %v5705
    %v5728 = vunpack.c.h.b16 %v5705
    %v5729 = vunpack.c.l.b16 %v5706
    %v5730 = vunpack.c.h.b16 %v5706
    %v5731 = vpack.c.b16 %v5717, %v5715
    %v5732 = vpack.c.b16 %v5718, %v5716
    %v5733 = vpack.c.b16 %v5721, %v5719
    %v5734 = vpack.c.b16 %v5722, %v5720
    %v5735 = vpack.c.b16 %v5725, %v5723
    %v5736 = vpack.c.b16 %v5726, %v5724
    %v5737 = vpack.c.b16 %v5729, %v5727
    %v5738 = vpack.c.b16 %v5730, %v5728
    %v5748 = vsel %vm125, %v5698, 0
    %5750 = vmatpush.bf16.msra.mxu0 0
    %5751 = vmatpush.bf16.msra.mxu0 0
    %5752 = vmatpush.bf16.msra.mxu0 0
    %5753 = vmatpush.bf16.msra.mxu0 0
    %5754 = vmatpush.bf16.msra.mxu0 %v5737
    %5755 = vmatpush.bf16.msra.mxu0 %v5735
    %5756 = vmatpush.bf16.msra.mxu0 %v5733
    %5757 = vmatpush.bf16.msra.mxu0 %v5731
    %5758 = vmatmul.bf16.gmra.mxu0 %v5748
    %v5759 = vpop.f32.mrf.mxu0
    %v5760 = vadd.f32 %v5626, %v5759
    %v5761 = vpop.f32.mrf.mxu0
    %5762 = vdwg.mxu0
    %5763 = vmatpush.bf16.msra.mxu0 0
    %5764 = vmatpush.bf16.msra.mxu0 0
    %5765 = vmatpush.bf16.msra.mxu0 0
    %5766 = vmatpush.bf16.msra.mxu0 0
    %5767 = vmatpush.bf16.msra.mxu0 %v5738
    %5768 = vmatpush.bf16.msra.mxu0 %v5736
    %5769 = vmatpush.bf16.msra.mxu0 %v5734
    %5770 = vmatpush.bf16.msra.mxu0 %v5732
    %5771 = vmatmul.bf16.gmra.mxu0 %v5748
    %v5772 = vpop.f32.mrf.mxu0
    %v5773 = vadd.f32 %v5639, %v5772
    %v5774 = vpop.f32.mrf.mxu0
    %5775 = vdwg.mxu0
    %v5776 = vxor.u32 %v5760, 2147483648
    %v5777 = vxor.u32 %v5773, 2147483648
    %v5778 = vmul.f32 %v5776, 1.442695
    %v5779 = vpow.pop %v5778
    %v5780 = vmul.f32 %v5777, 1.442695
    %v5781 = vpow.pop %v5780
    %v5782 = vadd.f32 %v5779, 1.0
    %v5783 = vadd.f32 %v5781, 1.0
    %v5784 = vrcp.pop %v5782
    %v5785 = vmul.f32 %v5782, %v5784
    %v5786 = vsub.f32 1.0, %v5785
    %v5787 = vmul.f32 %v5784, %v5786
    %v5788 = vadd.f32 %v5784, %v5787
    %vm5789 = vweird.f32 %v5782
    %vm5790 = vweird.f32 %v5784
    %vm5791 = vmor %vm5789, %vm5790
    %v5792 = vsel %vm5791, %v5784, %v5788
    %v5793 = vand.u32 2147483647, %v5782
    %vm5794 = vcmp.eq.f32.partialorder %v5793, 8.507059e+37
    %v5795 = vand.u32 %v5782, 2147483648
    %v5796 = vor.u32 1.1754944e-38, %v5795
    %v5797 = vsel %vm5794, %v5796, %v5792
    %v5798 = vmul.f32 1.0, %v5797
    %v5799 = vrcp.pop %v5783
    %v5800 = vmul.f32 %v5783, %v5799
    %v5801 = vsub.f32 1.0, %v5800
    %v5802 = vmul.f32 %v5799, %v5801
    %v5803 = vadd.f32 %v5799, %v5802
    %vm5804 = vweird.f32 %v5783
    %vm5805 = vweird.f32 %v5799
    %vm5806 = vmor %vm5804, %vm5805
    %v5807 = vsel %vm5806, %v5799, %v5803
    %v5808 = vand.u32 2147483647, %v5783
    %vm5809 = vcmp.eq.f32.partialorder %v5808, 8.507059e+37
    %v5810 = vand.u32 %v5783, 2147483648
    %v5811 = vor.u32 1.1754944e-38, %v5810
    %v5812 = vsel %vm5809, %v5811, %v5807
    %v5813 = vmul.f32 1.0, %v5812
    %v5814 = vtanh.pop %v5773
    %v5815 = vmul.f32 %v5798, %v5354
    %5817 = vrot.lane.b32.xlu0 %v5814, 64
    %v5818 = vpop.permute.xlu0 %5817
    %v5820 = vmul.f32 %v5798, %v5818
    %5822 = vrot.lane.b32.xlu0 %v5820, 64
    %v5823 = vpop.permute.xlu0 %5822
    %v5825 = vadd.f32 %v5815, %v5823
    %v5826 = vtanh.pop %v5825
    %5828 = vrot.lane.b32.xlu0 %v5826, 64
    %v5829 = vpop.permute.xlu0 %5828
    %v5831 = vmul.f32 %v5813, %v5829
    %v5832 = vpack.c.bf16 %v5831, %v5831
    %v5833 = vld [vmem:[%s9] sm:$0xf]
    %v5834 = vld [vmem:[%s9 + $0x4] sm:$0xf]
    %v5835 = vld [vmem:[%s9 + $0x8] sm:$0xf]
    %v5836 = vld [vmem:[%s9 + $0xc] sm:$0xf]
    %v5837 = vld [vmem:[%s9 + $0x10] sm:$0xf]
    %v5838 = vld [vmem:[%s9 + $0x14] sm:$0xf]
    %v5839 = vld [vmem:[%s9 + $0x18] sm:$0xf]
    %v5840 = vld [vmem:[%s9 + $0x1c] sm:$0xf]
    %v5849 = vunpack.c.l.b16 %v5833
    %v5850 = vunpack.c.l.b16 %v5834
    %v5851 = vunpack.c.l.b16 %v5835
    %v5852 = vunpack.c.l.b16 %v5836
    %v5853 = vunpack.c.l.b16 %v5837
    %v5854 = vunpack.c.l.b16 %v5838
    %v5855 = vunpack.c.l.b16 %v5839
    %v5856 = vunpack.c.l.b16 %v5840
    %v5857 = vpack.c.b16 %v5850, %v5849
    %v5858 = vpack.c.b16 %v5852, %v5851
    %v5859 = vpack.c.b16 %v5854, %v5853
    %v5860 = vpack.c.b16 %v5856, %v5855
    %v5866 = vsel %vm125, %v5832, 0
    %5868 = vmatpush.bf16.msra.mxu0 0
    %5869 = vmatpush.bf16.msra.mxu0 0
    %5870 = vmatpush.bf16.msra.mxu0 0
    %5871 = vmatpush.bf16.msra.mxu0 0
    %5872 = vmatpush.bf16.msra.mxu0 %v5860
    %5873 = vmatpush.bf16.msra.mxu0 %v5859
    %5874 = vmatpush.bf16.msra.mxu0 %v5858
    %5875 = vmatpush.bf16.msra.mxu0 %v5857
    %5876 = vmatmul.bf16.gmra.mxu0 %v5866
    %v5877 = vpop.f32.mrf.mxu0
    %v5878 = vadd.f32 %v256, %v5877
    %v5879 = vpop.f32.mrf.mxu0
    %5880 = vdwg.mxu0
    %5882 = vrot.lane.b32.xlu0 %v5878, 96
    %v5883 = vpop.permute.xlu0 %5882
    %5885 = vst.msk [vmem:[#allocation2 + $0x10] sm:$0xff] %vm2122, %v5883
    %v5886 = vshra.s32 %v5878, 31
    %v5887 = vand.u32 %v5886, 2147483647
    %v5888 = vxor.u32 %v5878, %v5887
    %v5889 = vand.u32 %v5888, 4294967264
    %v5890 = vor.u32 %v5889, %v711
    %v5891 = vsel %vm233, %v5890, 2147483648
    %v5892 = vand.u32 %v5891, 65535
    %v5893 = vshra.s32 %v5891, 16
    %v5894 = vcvt.s32.f32 %v5892
    %v5895 = vcvt.s32.f32 %v5893
    %5896 = vmax.xlane.f32.xlu0 %v5895
    %v5897 = vpop.xlane.xlu0 %5896
    %vm5898 = vcmp.eq.f32.partialorder %v5895, %v5897
    %v5899 = vsel %vm5898, %v5894, -inf
    %5900 = vmax.xlane.f32.xlu0 %v5899
    %v5901 = vpop.xlane.xlu0 %5900
    %v5902 = vcvt.f32.s32 %v5901
    %v5903 = vcvt.f32.s32 %v5897
    %v5904 = vshll.u32 %v5903, 16
    %v5905 = vadd.s32 %v5904, %v5902
    %v5906 = vand.u32 %v5905, 31
    %v5907 = vsub.s32 31, %v5906
    %vm5908 = vcmp.eq.s32.totalorder %v237, %v5907
    %v5909 = vsel %vm5908, 1, 0
    %v5910 = vcvt.s32.f32 %v5909
    %v5911 = vpack.c.bf16 %v5910, %v5910
    %v5912 = vld [vmem:[%s3] sm:$0xff]
    %v5913 = vld [vmem:[%s3 + $0x8] sm:$0xff]
    %v5914 = vld [vmem:[%s3 + $0x10] sm:$0xff]
    %v5915 = vld [vmem:[%s3 + $0x18] sm:$0xff]
    %v5916 = vld [vmem:[%s4] sm:$0xff]
    %v5917 = vld [vmem:[%s4 + $0x8] sm:$0xff]
    %v5918 = vld [vmem:[%s4 + $0x10] sm:$0xff]
    %v5919 = vld [vmem:[%s4 + $0x18] sm:$0xff]
    %v5920 = vld [vmem:[%s4 + $0x20] sm:$0xff]
    %v5921 = vld [vmem:[%s4 + $0x28] sm:$0xff]
    %v5922 = vld [vmem:[%s4 + $0x30] sm:$0xff]
    %v5923 = vld [vmem:[%s4 + $0x38] sm:$0xff]
    %v5932 = vunpack.c.l.b16 %v5916
    %v5933 = vunpack.c.h.b16 %v5916
    %v5934 = vunpack.c.l.b16 %v5917
    %v5935 = vunpack.c.h.b16 %v5917
    %v5936 = vunpack.c.l.b16 %v5918
    %v5937 = vunpack.c.h.b16 %v5918
    %v5938 = vunpack.c.l.b16 %v5919
    %v5939 = vunpack.c.h.b16 %v5919
    %v5940 = vunpack.c.l.b16 %v5920
    %v5941 = vunpack.c.h.b16 %v5920
    %v5942 = vunpack.c.l.b16 %v5921
    %v5943 = vunpack.c.h.b16 %v5921
    %v5944 = vunpack.c.l.b16 %v5922
    %v5945 = vunpack.c.h.b16 %v5922
    %v5946 = vunpack.c.l.b16 %v5923
    %v5947 = vunpack.c.h.b16 %v5923
    %v5948 = vpack.c.b16 %v5934, %v5932
    %v5949 = vpack.c.b16 %v5935, %v5933
    %v5950 = vpack.c.b16 %v5938, %v5936
    %v5951 = vpack.c.b16 %v5939, %v5937
    %v5952 = vpack.c.b16 %v5942, %v5940
    %v5953 = vpack.c.b16 %v5943, %v5941
    %v5954 = vpack.c.b16 %v5946, %v5944
    %v5955 = vpack.c.b16 %v5947, %v5945
    %5964 = vmatpush.bf16.msra.mxu0 0
    %5965 = vmatpush.bf16.msra.mxu0 0
    %5966 = vmatpush.bf16.msra.mxu0 0
    %5967 = vmatpush.bf16.msra.mxu0 0
    %5968 = vmatpush.bf16.msra.mxu0 %v5954
    %5969 = vmatpush.bf16.msra.mxu0 %v5952
    %5970 = vmatpush.bf16.msra.mxu0 %v5950
    %5971 = vmatpush.bf16.msra.mxu0 %v5948
    %5972 = vmatmul.bf16.gmra.mxu0 %v5748
    %v5973 = vpop.f32.mrf.mxu0
    %v5974 = vadd.f32 %v244, %v5973
    %v5975 = vpop.f32.mrf.mxu0
    %5976 = vdwg.mxu0
    %5977 = vmatpush.bf16.msra.mxu0 0
    %5978 = vmatpush.bf16.msra.mxu0 0
    %5979 = vmatpush.bf16.msra.mxu0 0
    %5980 = vmatpush.bf16.msra.mxu0 0
    %5981 = vmatpush.bf16.msra.mxu0 %v5955
    %5982 = vmatpush.bf16.msra.mxu0 %v5953
    %5983 = vmatpush.bf16.msra.mxu0 %v5951
    %5984 = vmatpush.bf16.msra.mxu0 %v5949
    %5985 = vmatmul.bf16.gmra.mxu0 %v5748
    %v5986 = vpop.f32.mrf.mxu0
    %v5987 = vadd.f32 %v245, %v5986
    %v5988 = vpop.f32.mrf.mxu0
    %5989 = vdwg.mxu0
    %v5994 = vunpack.c.l.b16 %v5912
    %v5995 = vunpack.c.h.b16 %v5912
    %v5996 = vunpack.c.l.b16 %v5913
    %v5997 = vunpack.c.h.b16 %v5913
    %v5998 = vunpack.c.l.b16 %v5914
    %v5999 = vunpack.c.h.b16 %v5914
    %v6000 = vunpack.c.l.b16 %v5915
    %v6001 = vunpack.c.h.b16 %v5915
    %v6002 = vpack.c.b16 %v5996, %v5994
    %v6003 = vpack.c.b16 %v5997, %v5995
    %v6004 = vpack.c.b16 %v6000, %v5998
    %v6005 = vpack.c.b16 %v6001, %v5999
    %v6011 = vsel %vm233, %v5911, 0
    %6013 = vmatpush.bf16.msra.mxu0 0
    %6014 = vmatpush.bf16.msra.mxu0 0
    %6015 = vmatpush.bf16.msra.mxu0 0
    %6016 = vmatpush.bf16.msra.mxu0 0
    %6017 = vmatpush.bf16.msra.mxu0 0
    %6018 = vmatpush.bf16.msra.mxu0 0
    %6019 = vmatpush.bf16.msra.mxu0 %v6004
    %6020 = vmatpush.bf16.msra.mxu0 %v6002
    %6021 = vmatmul.bf16.gmra.mxu0 %v6011
    %v6022 = vpop.f32.mrf.mxu0
    %v6023 = vadd.f32 %v5974, %v6022
    %v6024 = vpop.f32.mrf.mxu0
    %6025 = vdwg.mxu0
    %6026 = vmatpush.bf16.msra.mxu0 0
    %6027 = vmatpush.bf16.msra.mxu0 0
    %6028 = vmatpush.bf16.msra.mxu0 0
    %6029 = vmatpush.bf16.msra.mxu0 0
    %6030 = vmatpush.bf16.msra.mxu0 0
    %6031 = vmatpush.bf16.msra.mxu0 0
    %6032 = vmatpush.bf16.msra.mxu0 %v6005
    %6033 = vmatpush.bf16.msra.mxu0 %v6003
    %6034 = vmatmul.bf16.gmra.mxu0 %v6011
    %v6035 = vpop.f32.mrf.mxu0
    %v6036 = vadd.f32 %v5987, %v6035
    %v6037 = vpop.f32.mrf.mxu0
    %6038 = vdwg.mxu0
    %v6039 = vld [vmem:[%s7] sm:$0xff]
    %v6040 = vld [vmem:[%s7 + $0x8] sm:$0xff]
    %v6041 = vld [vmem:[%s7 + $0x10] sm:$0xff]
    %v6042 = vld [vmem:[%s7 + $0x18] sm:$0xff]
    %v6043 = vld [vmem:[%s7 + $0x20] sm:$0xff]
    %v6044 = vld [vmem:[%s7 + $0x28] sm:$0xff]
    %v6045 = vld [vmem:[%s7 + $0x30] sm:$0xff]
    %v6046 = vld [vmem:[%s7 + $0x38] sm:$0xff]
    %v6055 = vunpack.c.l.b16 %v6039
    %v6056 = vunpack.c.h.b16 %v6039
    %v6057 = vunpack.c.l.b16 %v6040
    %v6058 = vunpack.c.h.b16 %v6040
    %v6059 = vunpack.c.l.b16 %v6041
    %v6060 = vunpack.c.h.b16 %v6041
    %v6061 = vunpack.c.l.b16 %v6042
    %v6062 = vunpack.c.h.b16 %v6042
    %v6063 = vunpack.c.l.b16 %v6043
    %v6064 = vunpack.c.h.b16 %v6043
    %v6065 = vunpack.c.l.b16 %v6044
    %v6066 = vunpack.c.h.b16 %v6044
    %v6067 = vunpack.c.l.b16 %v6045
    %v6068 = vunpack.c.h.b16 %v6045
    %v6069 = vunpack.c.l.b16 %v6046
    %v6070 = vunpack.c.h.b16 %v6046
    %v6071 = vpack.c.b16 %v6057, %v6055
    %v6072 = vpack.c.b16 %v6058, %v6056
    %v6073 = vpack.c.b16 %v6061, %v6059
    %v6074 = vpack.c.b16 %v6062, %v6060
    %v6075 = vpack.c.b16 %v6065, %v6063
    %v6076 = vpack.c.b16 %v6066, %v6064
    %v6077 = vpack.c.b16 %v6069, %v6067
    %v6078 = vpack.c.b16 %v6070, %v6068
    %6087 = vmatpush.bf16.msra.mxu0 0
    %6088 = vmatpush.bf16.msra.mxu0 0
    %6089 = vmatpush.bf16.msra.mxu0 0
    %6090 = vmatpush.bf16.msra.mxu0 0
    %6091 = vmatpush.bf16.msra.mxu0 %v6077
    %6092 = vmatpush.bf16.msra.mxu0 %v6075
    %6093 = vmatpush.bf16.msra.mxu0 %v6073
    %6094 = vmatpush.bf16.msra.mxu0 %v6071
    %6095 = vmatmul.bf16.gmra.mxu0 %v5866
    %v6096 = vpop.f32.mrf.mxu0
    %v6097 = vadd.f32 %v250, %v6096
    %v6098 = vpop.f32.mrf.mxu0
    %6099 = vdwg.mxu0
    %6100 = vmatpush.bf16.msra.mxu0 0
    %6101 = vmatpush.bf16.msra.mxu0 0
    %6102 = vmatpush.bf16.msra.mxu0 0
    %6103 = vmatpush.bf16.msra.mxu0 0
    %6104 = vmatpush.bf16.msra.mxu0 %v6078
    %6105 = vmatpush.bf16.msra.mxu0 %v6076
    %6106 = vmatpush.bf16.msra.mxu0 %v6074
    %6107 = vmatpush.bf16.msra.mxu0 %v6072
    %6108 = vmatmul.bf16.gmra.mxu0 %v5866
    %v6109 = vpop.f32.mrf.mxu0
    %v6110 = vadd.f32 %v251, %v6109
    %v6111 = vpop.f32.mrf.mxu0
    %6112 = vdwg.mxu0
    %v6113 = vxor.u32 %v6023, 2147483648
    %v6114 = vxor.u32 %v6036, 2147483648
    %v6115 = vmul.f32 %v6113, 1.442695
    %v6116 = vpow.pop %v6115
    %v6117 = vmul.f32 %v6114, 1.442695
    %v6118 = vpow.pop %v6117
    %v6119 = vadd.f32 %v6116, 1.0
    %v6120 = vadd.f32 %v6118, 1.0
    %v6121 = vrcp.pop %v6119
    %v6122 = vmul.f32 %v6119, %v6121
    %v6123 = vsub.f32 1.0, %v6122
    %v6124 = vmul.f32 %v6121, %v6123
    %v6125 = vadd.f32 %v6121, %v6124
    %vm6126 = vweird.f32 %v6119
    %vm6127 = vweird.f32 %v6121
    %vm6128 = vmor %vm6126, %vm6127
    %v6129 = vsel %vm6128, %v6121, %v6125
    %v6130 = vand.u32 2147483647, %v6119
    %vm6131 = vcmp.eq.f32.partialorder %v6130, 8.507059e+37
    %v6132 = vand.u32 %v6119, 2147483648
    %v6133 = vor.u32 1.1754944e-38, %v6132
    %v6134 = vsel %vm6131, %v6133, %v6129
    %v6135 = vmul.f32 1.0, %v6134
    %v6136 = vrcp.pop %v6120
    %v6137 = vmul.f32 %v6120, %v6136
    %v6138 = vsub.f32 1.0, %v6137
    %v6139 = vmul.f32 %v6136, %v6138
    %v6140 = vadd.f32 %v6136, %v6139
    %vm6141 = vweird.f32 %v6120
    %vm6142 = vweird.f32 %v6136
    %vm6143 = vmor %vm6141, %vm6142
    %v6144 = vsel %vm6143, %v6136, %v6140
    %v6145 = vand.u32 2147483647, %v6120
    %vm6146 = vcmp.eq.f32.partialorder %v6145, 8.507059e+37
    %v6147 = vand.u32 %v6120, 2147483648
    %v6148 = vor.u32 1.1754944e-38, %v6147
    %v6149 = vsel %vm6146, %v6148, %v6144
    %v6150 = vmul.f32 1.0, %v6149
    %v6151 = vtanh.pop %v6036
    %v6152 = vmul.f32 %v6135, %v5691
    %6154 = vrot.lane.b32.xlu0 %v6151, 64
    %v6155 = vpop.permute.xlu0 %6154
    %v6157 = vmul.f32 %v6135, %v6155
    %6159 = vrot.lane.b32.xlu0 %v6157, 64
    %v6160 = vpop.permute.xlu0 %6159
    %v6162 = vadd.f32 %v6152, %v6160
    %v6163 = vtanh.pop %v6162
    %6165 = vrot.lane.b32.xlu0 %v6163, 64
    %v6166 = vpop.permute.xlu0 %6165
    %v6168 = vmul.f32 %v6150, %v6166
    %v6169 = vpack.c.bf16 %v6168, %v6168
    %v6170 = vld [vmem:[%s6] sm:$0xff]
    %v6171 = vld [vmem:[%s6 + $0x8] sm:$0xff]
    %v6172 = vld [vmem:[%s6 + $0x10] sm:$0xff]
    %v6173 = vld [vmem:[%s6 + $0x18] sm:$0xff]
    %v6174 = vld [vmem:[%s6 + $0x20] sm:$0xff]
    %v6175 = vld [vmem:[%s6 + $0x28] sm:$0xff]
    %v6176 = vld [vmem:[%s6 + $0x30] sm:$0xff]
    %v6177 = vld [vmem:[%s6 + $0x38] sm:$0xff]
    %v6186 = vunpack.c.l.b16 %v6170
    %v6187 = vunpack.c.h.b16 %v6170
    %v6188 = vunpack.c.l.b16 %v6171
    %v6189 = vunpack.c.h.b16 %v6171
    %v6190 = vunpack.c.l.b16 %v6172
    %v6191 = vunpack.c.h.b16 %v6172
    %v6192 = vunpack.c.l.b16 %v6173
    %v6193 = vunpack.c.h.b16 %v6173
    %v6194 = vunpack.c.l.b16 %v6174
    %v6195 = vunpack.c.h.b16 %v6174
    %v6196 = vunpack.c.l.b16 %v6175
    %v6197 = vunpack.c.h.b16 %v6175
    %v6198 = vunpack.c.l.b16 %v6176
    %v6199 = vunpack.c.h.b16 %v6176
    %v6200 = vunpack.c.l.b16 %v6177
    %v6201 = vunpack.c.h.b16 %v6177
    %v6202 = vpack.c.b16 %v6188, %v6186
    %v6203 = vpack.c.b16 %v6189, %v6187
    %v6204 = vpack.c.b16 %v6192, %v6190
    %v6205 = vpack.c.b16 %v6193, %v6191
    %v6206 = vpack.c.b16 %v6196, %v6194
    %v6207 = vpack.c.b16 %v6197, %v6195
    %v6208 = vpack.c.b16 %v6200, %v6198
    %v6209 = vpack.c.b16 %v6201, %v6199
    %v6219 = vsel %vm125, %v6169, 0
    %6221 = vmatpush.bf16.msra.mxu0 0
    %6222 = vmatpush.bf16.msra.mxu0 0
    %6223 = vmatpush.bf16.msra.mxu0 0
    %6224 = vmatpush.bf16.msra.mxu0 0
    %6225 = vmatpush.bf16.msra.mxu0 %v6208
    %6226 = vmatpush.bf16.msra.mxu0 %v6206
    %6227 = vmatpush.bf16.msra.mxu0 %v6204
    %6228 = vmatpush.bf16.msra.mxu0 %v6202
    %6229 = vmatmul.bf16.gmra.mxu0 %v6219
    %v6230 = vpop.f32.mrf.mxu0
    %v6231 = vadd.f32 %v6097, %v6230
    %v6232 = vpop.f32.mrf.mxu0
    %6233 = vdwg.mxu0
    %6234 = vmatpush.bf16.msra.mxu0 0
    %6235 = vmatpush.bf16.msra.mxu0 0
    %6236 = vmatpush.bf16.msra.mxu0 0
    %6237 = vmatpush.bf16.msra.mxu0 0
    %6238 = vmatpush.bf16.msra.mxu0 %v6209
    %6239 = vmatpush.bf16.msra.mxu0 %v6207
    %6240 = vmatpush.bf16.msra.mxu0 %v6205
    %6241 = vmatpush.bf16.msra.mxu0 %v6203
    %6242 = vmatmul.bf16.gmra.mxu0 %v6219
    %v6243 = vpop.f32.mrf.mxu0
    %v6244 = vadd.f32 %v6110, %v6243
    %v6245 = vpop.f32.mrf.mxu0
    %6246 = vdwg.mxu0
    %v6247 = vxor.u32 %v6231, 2147483648
    %v6248 = vxor.u32 %v6244, 2147483648
    %v6249 = vmul.f32 %v6247, 1.442695
    %v6250 = vpow.pop %v6249
    %v6251 = vmul.f32 %v6248, 1.442695
    %v6252 = vpow.pop %v6251
    %v6253 = vadd.f32 %v6250, 1.0
    %v6254 = vadd.f32 %v6252, 1.0
    %v6255 = vrcp.pop %v6253
    %v6256 = vmul.f32 %v6253, %v6255
    %v6257 = vsub.f32 1.0, %v6256
    %v6258 = vmul.f32 %v6255, %v6257
    %v6259 = vadd.f32 %v6255, %v6258
    %vm6260 = vweird.f32 %v6253
    %vm6261 = vweird.f32 %v6255
    %vm6262 = vmor %vm6260, %vm6261
    %v6263 = vsel %vm6262, %v6255, %v6259
    %v6264 = vand.u32 2147483647, %v6253
    %vm6265 = vcmp.eq.f32.partialorder %v6264, 8.507059e+37
    %v6266 = vand.u32 %v6253, 2147483648
    %v6267 = vor.u32 1.1754944e-38, %v6266
    %v6268 = vsel %vm6265, %v6267, %v6263
    %v6269 = vmul.f32 1.0, %v6268
    %v6270 = vrcp.pop %v6254
    %v6271 = vmul.f32 %v6254, %v6270
    %v6272 = vsub.f32 1.0, %v6271
    %v6273 = vmul.f32 %v6270, %v6272
    %v6274 = vadd.f32 %v6270, %v6273
    %vm6275 = vweird.f32 %v6254
    %vm6276 = vweird.f32 %v6270
    %vm6277 = vmor %vm6275, %vm6276
    %v6278 = vsel %vm6277, %v6270, %v6274
    %v6279 = vand.u32 2147483647, %v6254
    %vm6280 = vcmp.eq.f32.partialorder %v6279, 8.507059e+37
    %v6281 = vand.u32 %v6254, 2147483648
    %v6282 = vor.u32 1.1754944e-38, %v6281
    %v6283 = vsel %vm6280, %v6282, %v6278
    %v6284 = vmul.f32 1.0, %v6283
    %v6285 = vtanh.pop %v6244
    %v6286 = vmul.f32 %v6269, %v5825
    %6288 = vrot.lane.b32.xlu0 %v6285, 64
    %v6289 = vpop.permute.xlu0 %6288
    %v6291 = vmul.f32 %v6269, %v6289
    %6293 = vrot.lane.b32.xlu0 %v6291, 64
    %v6294 = vpop.permute.xlu0 %6293
    %v6296 = vadd.f32 %v6286, %v6294
    %v6297 = vtanh.pop %v6296
    %6299 = vrot.lane.b32.xlu0 %v6297, 64
    %v6300 = vpop.permute.xlu0 %6299
    %v6302 = vmul.f32 %v6284, %v6300
    %v6303 = vpack.c.bf16 %v6302, %v6302
    %v6304 = vld [vmem:[%s9] sm:$0xf]
    %v6305 = vld [vmem:[%s9 + $0x4] sm:$0xf]
    %v6306 = vld [vmem:[%s9 + $0x8] sm:$0xf]
    %v6307 = vld [vmem:[%s9 + $0xc] sm:$0xf]
    %v6308 = vld [vmem:[%s9 + $0x10] sm:$0xf]
    %v6309 = vld [vmem:[%s9 + $0x14] sm:$0xf]
    %v6310 = vld [vmem:[%s9 + $0x18] sm:$0xf]
    %v6311 = vld [vmem:[%s9 + $0x1c] sm:$0xf]
    %v6320 = vunpack.c.l.b16 %v6304
    %v6321 = vunpack.c.l.b16 %v6305
    %v6322 = vunpack.c.l.b16 %v6306
    %v6323 = vunpack.c.l.b16 %v6307
    %v6324 = vunpack.c.l.b16 %v6308
    %v6325 = vunpack.c.l.b16 %v6309
    %v6326 = vunpack.c.l.b16 %v6310
    %v6327 = vunpack.c.l.b16 %v6311
    %v6328 = vpack.c.b16 %v6321, %v6320
    %v6329 = vpack.c.b16 %v6323, %v6322
    %v6330 = vpack.c.b16 %v6325, %v6324
    %v6331 = vpack.c.b16 %v6327, %v6326
    %v6337 = vsel %vm125, %v6303, 0
    %6339 = vmatpush.bf16.msra.mxu0 0
    %6340 = vmatpush.bf16.msra.mxu0 0
    %6341 = vmatpush.bf16.msra.mxu0 0
    %6342 = vmatpush.bf16.msra.mxu0 0
    %6343 = vmatpush.bf16.msra.mxu0 %v6331
    %6344 = vmatpush.bf16.msra.mxu0 %v6330
    %6345 = vmatpush.bf16.msra.mxu0 %v6329
    %6346 = vmatpush.bf16.msra.mxu0 %v6328
    %6347 = vmatmul.bf16.gmra.mxu0 %v6337
    %v6348 = vpop.f32.mrf.mxu0
    %v6349 = vadd.f32 %v256, %v6348
    %v6350 = vpop.f32.mrf.mxu0
    %6351 = vdwg.mxu0
    %6352 = vst.msk [vmem:[#allocation2 + $0x18] sm:$0xff] %vm233, %v6349
    %v6354 = vshra.s32 %v6349, 31
    %v6355 = vand.u32 %v6354, 2147483647
    %v6356 = vxor.u32 %v6349, %v6355
    %v6357 = vand.u32 %v6356, 4294967264
    %v6358 = vor.u32 %v6357, %v711
    %v6359 = vsel %vm233, %v6358, 2147483648
    %v6360 = vand.u32 %v6359, 65535
    %v6361 = vshra.s32 %v6359, 16
    %v6362 = vcvt.s32.f32 %v6360
    %v6363 = vcvt.s32.f32 %v6361
    %6364 = vmax.xlane.f32.xlu0 %v6363
    %v6365 = vpop.xlane.xlu0 %6364
    %vm6366 = vcmp.eq.f32.partialorder %v6363, %v6365
    %v6367 = vsel %vm6366, %v6362, -inf
    %6368 = vmax.xlane.f32.xlu0 %v6367
    %v6369 = vpop.xlane.xlu0 %6368
    %v6370 = vcvt.f32.s32 %v6369
    %v6371 = vcvt.f32.s32 %v6365
    %v6372 = vshll.u32 %v6371, 16
    %v6373 = vadd.s32 %v6372, %v6370
    %v6374 = vand.u32 %v6373, 31
    %v6375 = vsub.s32 31, %v6374
    %vm6376 = vcmp.eq.s32.totalorder %v237, %v6375
    %v6377 = vsel %vm6376, 1, 0
    %v6378 = vcvt.s32.f32 %v6377
    %v6379 = vpack.c.bf16 %v6378, %v6378
    %v6380 = vld [vmem:[%s3] sm:$0xff]
    %v6381 = vld [vmem:[%s3 + $0x8] sm:$0xff]
    %v6382 = vld [vmem:[%s3 + $0x10] sm:$0xff]
    %v6383 = vld [vmem:[%s3 + $0x18] sm:$0xff]
    %v6384 = vld [vmem:[%s4] sm:$0xff]
    %v6385 = vld [vmem:[%s4 + $0x8] sm:$0xff]
    %v6386 = vld [vmem:[%s4 + $0x10] sm:$0xff]
    %v6387 = vld [vmem:[%s4 + $0x18] sm:$0xff]
    %v6388 = vld [vmem:[%s4 + $0x20] sm:$0xff]
    %v6389 = vld [vmem:[%s4 + $0x28] sm:$0xff]
    %v6390 = vld [vmem:[%s4 + $0x30] sm:$0xff]
    %v6391 = vld [vmem:[%s4 + $0x38] sm:$0xff]
    %v6400 = vunpack.c.l.b16 %v6384
    %v6401 = vunpack.c.h.b16 %v6384
    %v6402 = vunpack.c.l.b16 %v6385
    %v6403 = vunpack.c.h.b16 %v6385
    %v6404 = vunpack.c.l.b16 %v6386
    %v6405 = vunpack.c.h.b16 %v6386
    %v6406 = vunpack.c.l.b16 %v6387
    %v6407 = vunpack.c.h.b16 %v6387
    %v6408 = vunpack.c.l.b16 %v6388
    %v6409 = vunpack.c.h.b16 %v6388
    %v6410 = vunpack.c.l.b16 %v6389
    %v6411 = vunpack.c.h.b16 %v6389
    %v6412 = vunpack.c.l.b16 %v6390
    %v6413 = vunpack.c.h.b16 %v6390
    %v6414 = vunpack.c.l.b16 %v6391
    %v6415 = vunpack.c.h.b16 %v6391
    %v6416 = vpack.c.b16 %v6402, %v6400
    %v6417 = vpack.c.b16 %v6403, %v6401
    %v6418 = vpack.c.b16 %v6406, %v6404
    %v6419 = vpack.c.b16 %v6407, %v6405
    %v6420 = vpack.c.b16 %v6410, %v6408
    %v6421 = vpack.c.b16 %v6411, %v6409
    %v6422 = vpack.c.b16 %v6414, %v6412
    %v6423 = vpack.c.b16 %v6415, %v6413
    %6432 = vmatpush.bf16.msra.mxu0 0
    %6433 = vmatpush.bf16.msra.mxu0 0
    %6434 = vmatpush.bf16.msra.mxu0 0
    %6435 = vmatpush.bf16.msra.mxu0 0
    %6436 = vmatpush.bf16.msra.mxu0 %v6422
    %6437 = vmatpush.bf16.msra.mxu0 %v6420
    %6438 = vmatpush.bf16.msra.mxu0 %v6418
    %6439 = vmatpush.bf16.msra.mxu0 %v6416
    %6440 = vmatmul.bf16.gmra.mxu0 %v6219
    %v6441 = vpop.f32.mrf.mxu0
    %v6442 = vadd.f32 %v244, %v6441
    %v6443 = vpop.f32.mrf.mxu0
    %6444 = vdwg.mxu0
    %6445 = vmatpush.bf16.msra.mxu0 0
    %6446 = vmatpush.bf16.msra.mxu0 0
    %6447 = vmatpush.bf16.msra.mxu0 0
    %6448 = vmatpush.bf16.msra.mxu0 0
    %6449 = vmatpush.bf16.msra.mxu0 %v6423
    %6450 = vmatpush.bf16.msra.mxu0 %v6421
    %6451 = vmatpush.bf16.msra.mxu0 %v6419
    %6452 = vmatpush.bf16.msra.mxu0 %v6417
    %6453 = vmatmul.bf16.gmra.mxu0 %v6219
    %v6454 = vpop.f32.mrf.mxu0
    %v6455 = vadd.f32 %v245, %v6454
    %v6456 = vpop.f32.mrf.mxu0
    %6457 = vdwg.mxu0
    %v6462 = vunpack.c.l.b16 %v6380
    %v6463 = vunpack.c.h.b16 %v6380
    %v6464 = vunpack.c.l.b16 %v6381
    %v6465 = vunpack.c.h.b16 %v6381
    %v6466 = vunpack.c.l.b16 %v6382
    %v6467 = vunpack.c.h.b16 %v6382
    %v6468 = vunpack.c.l.b16 %v6383
    %v6469 = vunpack.c.h.b16 %v6383
    %v6470 = vpack.c.b16 %v6464, %v6462
    %v6471 = vpack.c.b16 %v6465, %v6463
    %v6472 = vpack.c.b16 %v6468, %v6466
    %v6473 = vpack.c.b16 %v6469, %v6467
    %v6479 = vsel %vm233, %v6379, 0
    %6481 = vmatpush.bf16.msra.mxu0 0
    %6482 = vmatpush.bf16.msra.mxu0 0
    %6483 = vmatpush.bf16.msra.mxu0 0
    %6484 = vmatpush.bf16.msra.mxu0 0
    %6485 = vmatpush.bf16.msra.mxu0 0
    %6486 = vmatpush.bf16.msra.mxu0 0
    %6487 = vmatpush.bf16.msra.mxu0 %v6472
    %6488 = vmatpush.bf16.msra.mxu0 %v6470
    %6489 = vmatmul.bf16.gmra.mxu0 %v6479
    %v6490 = vpop.f32.mrf.mxu0
    %v6491 = vadd.f32 %v6442, %v6490
    %v6492 = vpop.f32.mrf.mxu0
    %6493 = vdwg.mxu0
    %6494 = vmatpush.bf16.msra.mxu0 0
    %6495 = vmatpush.bf16.msra.mxu0 0
    %6496 = vmatpush.bf16.msra.mxu0 0
    %6497 = vmatpush.bf16.msra.mxu0 0
    %6498 = vmatpush.bf16.msra.mxu0 0
    %6499 = vmatpush.bf16.msra.mxu0 0
    %6500 = vmatpush.bf16.msra.mxu0 %v6473
    %6501 = vmatpush.bf16.msra.mxu0 %v6471
    %6502 = vmatmul.bf16.gmra.mxu0 %v6479
    %v6503 = vpop.f32.mrf.mxu0
    %v6504 = vadd.f32 %v6455, %v6503
    %v6505 = vpop.f32.mrf.mxu0
    %6506 = vdwg.mxu0
    %v6507 = vld [vmem:[%s7] sm:$0xff]
    %v6508 = vld [vmem:[%s7 + $0x8] sm:$0xff]
    %v6509 = vld [vmem:[%s7 + $0x10] sm:$0xff]
    %v6510 = vld [vmem:[%s7 + $0x18] sm:$0xff]
    %v6511 = vld [vmem:[%s7 + $0x20] sm:$0xff]
    %v6512 = vld [vmem:[%s7 + $0x28] sm:$0xff]
    %v6513 = vld [vmem:[%s7 + $0x30] sm:$0xff]
    %v6514 = vld [vmem:[%s7 + $0x38] sm:$0xff]
    %v6523 = vunpack.c.l.b16 %v6507
    %v6524 = vunpack.c.h.b16 %v6507
    %v6525 = vunpack.c.l.b16 %v6508
    %v6526 = vunpack.c.h.b16 %v6508
    %v6527 = vunpack.c.l.b16 %v6509
    %v6528 = vunpack.c.h.b16 %v6509
    %v6529 = vunpack.c.l.b16 %v6510
    %v6530 = vunpack.c.h.b16 %v6510
    %v6531 = vunpack.c.l.b16 %v6511
    %v6532 = vunpack.c.h.b16 %v6511
    %v6533 = vunpack.c.l.b16 %v6512
    %v6534 = vunpack.c.h.b16 %v6512
    %v6535 = vunpack.c.l.b16 %v6513
    %v6536 = vunpack.c.h.b16 %v6513
    %v6537 = vunpack.c.l.b16 %v6514
    %v6538 = vunpack.c.h.b16 %v6514
    %v6539 = vpack.c.b16 %v6525, %v6523
    %v6540 = vpack.c.b16 %v6526, %v6524
    %v6541 = vpack.c.b16 %v6529, %v6527
    %v6542 = vpack.c.b16 %v6530, %v6528
    %v6543 = vpack.c.b16 %v6533, %v6531
    %v6544 = vpack.c.b16 %v6534, %v6532
    %v6545 = vpack.c.b16 %v6537, %v6535
    %v6546 = vpack.c.b16 %v6538, %v6536
    %6555 = vmatpush.bf16.msra.mxu0 0
    %6556 = vmatpush.bf16.msra.mxu0 0
    %6557 = vmatpush.bf16.msra.mxu0 0
    %6558 = vmatpush.bf16.msra.mxu0 0
    %6559 = vmatpush.bf16.msra.mxu0 %v6545
    %6560 = vmatpush.bf16.msra.mxu0 %v6543
    %6561 = vmatpush.bf16.msra.mxu0 %v6541
    %6562 = vmatpush.bf16.msra.mxu0 %v6539
    %6563 = vmatmul.bf16.gmra.mxu0 %v6337
    %v6564 = vpop.f32.mrf.mxu0
    %v6565 = vadd.f32 %v250, %v6564
    %v6566 = vpop.f32.mrf.mxu0
    %6567 = vdwg.mxu0
    %6568 = vmatpush.bf16.msra.mxu0 0
    %6569 = vmatpush.bf16.msra.mxu0 0
    %6570 = vmatpush.bf16.msra.mxu0 0
    %6571 = vmatpush.bf16.msra.mxu0 0
    %6572 = vmatpush.bf16.msra.mxu0 %v6546
    %6573 = vmatpush.bf16.msra.mxu0 %v6544
    %6574 = vmatpush.bf16.msra.mxu0 %v6542
    %6575 = vmatpush.bf16.msra.mxu0 %v6540
    %6576 = vmatmul.bf16.gmra.mxu0 %v6337
    %v6577 = vpop.f32.mrf.mxu0
    %v6578 = vadd.f32 %v251, %v6577
    %v6579 = vpop.f32.mrf.mxu0
    %6580 = vdwg.mxu0
    %v6581 = vxor.u32 %v6491, 2147483648
    %v6582 = vxor.u32 %v6504, 2147483648
    %v6583 = vmul.f32 %v6581, 1.442695
    %v6584 = vpow.pop %v6583
    %v6585 = vmul.f32 %v6582, 1.442695
    %v6586 = vpow.pop %v6585
    %v6587 = vadd.f32 %v6584, 1.0
    %v6588 = vadd.f32 %v6586, 1.0
    %v6589 = vrcp.pop %v6587
    %v6590 = vmul.f32 %v6587, %v6589
    %v6591 = vsub.f32 1.0, %v6590
    %v6592 = vmul.f32 %v6589, %v6591
    %v6593 = vadd.f32 %v6589, %v6592
    %vm6594 = vweird.f32 %v6587
    %vm6595 = vweird.f32 %v6589
    %vm6596 = vmor %vm6594, %vm6595
    %v6597 = vsel %vm6596, %v6589, %v6593
    %v6598 = vand.u32 2147483647, %v6587
    %vm6599 = vcmp.eq.f32.partialorder %v6598, 8.507059e+37
    %v6600 = vand.u32 %v6587, 2147483648
    %v6601 = vor.u32 1.1754944e-38, %v6600
    %v6602 = vsel %vm6599, %v6601, %v6597
    %v6603 = vmul.f32 1.0, %v6602
    %v6604 = vrcp.pop %v6588
    %v6605 = vmul.f32 %v6588, %v6604
    %v6606 = vsub.f32 1.0, %v6605
    %v6607 = vmul.f32 %v6604, %v6606
    %v6608 = vadd.f32 %v6604, %v6607
    %vm6609 = vweird.f32 %v6588
    %vm6610 = vweird.f32 %v6604
    %vm6611 = vmor %vm6609, %vm6610
    %v6612 = vsel %vm6611, %v6604, %v6608
    %v6613 = vand.u32 2147483647, %v6588
    %vm6614 = vcmp.eq.f32.partialorder %v6613, 8.507059e+37
    %v6615 = vand.u32 %v6588, 2147483648
    %v6616 = vor.u32 1.1754944e-38, %v6615
    %v6617 = vsel %vm6614, %v6616, %v6612
    %v6618 = vmul.f32 1.0, %v6617
    %v6619 = vtanh.pop %v6504
    %v6620 = vmul.f32 %v6603, %v6162
    %6622 = vrot.lane.b32.xlu0 %v6619, 64
    %v6623 = vpop.permute.xlu0 %6622
    %v6625 = vmul.f32 %v6603, %v6623
    %6627 = vrot.lane.b32.xlu0 %v6625, 64
    %v6628 = vpop.permute.xlu0 %6627
    %v6630 = vadd.f32 %v6620, %v6628
    %v6631 = vtanh.pop %v6630
    %6633 = vrot.lane.b32.xlu0 %v6631, 64
    %v6634 = vpop.permute.xlu0 %6633
    %v6636 = vmul.f32 %v6618, %v6634
    %v6637 = vpack.c.bf16 %v6636, %v6636
    %v6638 = vld [vmem:[%s6] sm:$0xff]
    %v6639 = vld [vmem:[%s6 + $0x8] sm:$0xff]
    %v6640 = vld [vmem:[%s6 + $0x10] sm:$0xff]
    %v6641 = vld [vmem:[%s6 + $0x18] sm:$0xff]
    %v6642 = vld [vmem:[%s6 + $0x20] sm:$0xff]
    %v6643 = vld [vmem:[%s6 + $0x28] sm:$0xff]
    %v6644 = vld [vmem:[%s6 + $0x30] sm:$0xff]
    %v6645 = vld [vmem:[%s6 + $0x38] sm:$0xff]
    %v6654 = vunpack.c.l.b16 %v6638
    %v6655 = vunpack.c.h.b16 %v6638
    %v6656 = vunpack.c.l.b16 %v6639
    %v6657 = vunpack.c.h.b16 %v6639
    %v6658 = vunpack.c.l.b16 %v6640
    %v6659 = vunpack.c.h.b16 %v6640
    %v6660 = vunpack.c.l.b16 %v6641
    %v6661 = vunpack.c.h.b16 %v6641
    %v6662 = vunpack.c.l.b16 %v6642
    %v6663 = vunpack.c.h.b16 %v6642
    %v6664 = vunpack.c.l.b16 %v6643
    %v6665 = vunpack.c.h.b16 %v6643
    %v6666 = vunpack.c.l.b16 %v6644
    %v6667 = vunpack.c.h.b16 %v6644
    %v6668 = vunpack.c.l.b16 %v6645
    %v6669 = vunpack.c.h.b16 %v6645
    %v6670 = vpack.c.b16 %v6656, %v6654
    %v6671 = vpack.c.b16 %v6657, %v6655
    %v6672 = vpack.c.b16 %v6660, %v6658
    %v6673 = vpack.c.b16 %v6661, %v6659
    %v6674 = vpack.c.b16 %v6664, %v6662
    %v6675 = vpack.c.b16 %v6665, %v6663
    %v6676 = vpack.c.b16 %v6668, %v6666
    %v6677 = vpack.c.b16 %v6669, %v6667
    %v6687 = vsel %vm125, %v6637, 0
    %6689 = vmatpush.bf16.msra.mxu0 0
    %6690 = vmatpush.bf16.msra.mxu0 0
    %6691 = vmatpush.bf16.msra.mxu0 0
    %6692 = vmatpush.bf16.msra.mxu0 0
    %6693 = vmatpush.bf16.msra.mxu0 %v6676
    %6694 = vmatpush.bf16.msra.mxu0 %v6674
    %6695 = vmatpush.bf16.msra.mxu0 %v6672
    %6696 = vmatpush.bf16.msra.mxu0 %v6670
    %6697 = vmatmul.bf16.gmra.mxu0 %v6687
    %v6698 = vpop.f32.mrf.mxu0
    %v6699 = vadd.f32 %v6565, %v6698
    %v6700 = vpop.f32.mrf.mxu0
    %6701 = vdwg.mxu0
    %6702 = vmatpush.bf16.msra.mxu0 0
    %6703 = vmatpush.bf16.msra.mxu0 0
    %6704 = vmatpush.bf16.msra.mxu0 0
    %6705 = vmatpush.bf16.msra.mxu0 0
    %6706 = vmatpush.bf16.msra.mxu0 %v6677
    %6707 = vmatpush.bf16.msra.mxu0 %v6675
    %6708 = vmatpush.bf16.msra.mxu0 %v6673
    %6709 = vmatpush.bf16.msra.mxu0 %v6671
    %6710 = vmatmul.bf16.gmra.mxu0 %v6687
    %v6711 = vpop.f32.mrf.mxu0
    %v6712 = vadd.f32 %v6578, %v6711
    %v6713 = vpop.f32.mrf.mxu0
    %6714 = vdwg.mxu0
    %v6715 = vxor.u32 %v6699, 2147483648
    %v6716 = vxor.u32 %v6712, 2147483648
    %v6717 = vmul.f32 %v6715, 1.442695
    %v6718 = vpow.pop %v6717
    %v6719 = vmul.f32 %v6716, 1.442695
    %v6720 = vpow.pop %v6719
    %v6721 = vadd.f32 %v6718, 1.0
    %v6722 = vadd.f32 %v6720, 1.0
    %v6723 = vrcp.pop %v6721
    %v6724 = vmul.f32 %v6721, %v6723
    %v6725 = vsub.f32 1.0, %v6724
    %v6726 = vmul.f32 %v6723, %v6725
    %v6727 = vadd.f32 %v6723, %v6726
    %vm6728 = vweird.f32 %v6721
    %vm6729 = vweird.f32 %v6723
    %vm6730 = vmor %vm6728, %vm6729
    %v6731 = vsel %vm6730, %v6723, %v6727
    %v6732 = vand.u32 2147483647, %v6721
    %vm6733 = vcmp.eq.f32.partialorder %v6732, 8.507059e+37
    %v6734 = vand.u32 %v6721, 2147483648
    %v6735 = vor.u32 1.1754944e-38, %v6734
    %v6736 = vsel %vm6733, %v6735, %v6731
    %v6737 = vmul.f32 1.0, %v6736
    %v6738 = vrcp.pop %v6722
    %v6739 = vmul.f32 %v6722, %v6738
    %v6740 = vsub.f32 1.0, %v6739
    %v6741 = vmul.f32 %v6738, %v6740
    %v6742 = vadd.f32 %v6738, %v6741
    %vm6743 = vweird.f32 %v6722
    %vm6744 = vweird.f32 %v6738
    %vm6745 = vmor %vm6743, %vm6744
    %v6746 = vsel %vm6745, %v6738, %v6742
    %v6747 = vand.u32 2147483647, %v6722
    %vm6748 = vcmp.eq.f32.partialorder %v6747, 8.507059e+37
    %v6749 = vand.u32 %v6722, 2147483648
    %v6750 = vor.u32 1.1754944e-38, %v6749
    %v6751 = vsel %vm6748, %v6750, %v6746
    %v6752 = vmul.f32 1.0, %v6751
    %v6753 = vtanh.pop %v6712
    %v6754 = vmul.f32 %v6737, %v6296
    %6756 = vrot.lane.b32.xlu0 %v6753, 64
    %v6757 = vpop.permute.xlu0 %6756
    %v6759 = vmul.f32 %v6737, %v6757
    %6761 = vrot.lane.b32.xlu0 %v6759, 64
    %v6762 = vpop.permute.xlu0 %6761
    %v6764 = vadd.f32 %v6754, %v6762
    %v6765 = vtanh.pop %v6764
    %6767 = vrot.lane.b32.xlu0 %v6765, 64
    %v6768 = vpop.permute.xlu0 %6767
    %v6770 = vmul.f32 %v6752, %v6768
    %v6771 = vpack.c.bf16 %v6770, %v6770
    %v6772 = vld [vmem:[%s9] sm:$0xf]
    %v6773 = vld [vmem:[%s9 + $0x4] sm:$0xf]
    %v6774 = vld [vmem:[%s9 + $0x8] sm:$0xf]
    %v6775 = vld [vmem:[%s9 + $0xc] sm:$0xf]
    %v6776 = vld [vmem:[%s9 + $0x10] sm:$0xf]
    %v6777 = vld [vmem:[%s9 + $0x14] sm:$0xf]
    %v6778 = vld [vmem:[%s9 + $0x18] sm:$0xf]
    %v6779 = vld [vmem:[%s9 + $0x1c] sm:$0xf]
    %v6788 = vunpack.c.l.b16 %v6772
    %v6789 = vunpack.c.l.b16 %v6773
    %v6790 = vunpack.c.l.b16 %v6774
    %v6791 = vunpack.c.l.b16 %v6775
    %v6792 = vunpack.c.l.b16 %v6776
    %v6793 = vunpack.c.l.b16 %v6777
    %v6794 = vunpack.c.l.b16 %v6778
    %v6795 = vunpack.c.l.b16 %v6779
    %v6796 = vpack.c.b16 %v6789, %v6788
    %v6797 = vpack.c.b16 %v6791, %v6790
    %v6798 = vpack.c.b16 %v6793, %v6792
    %v6799 = vpack.c.b16 %v6795, %v6794
    %v6805 = vsel %vm125, %v6771, 0
    %6807 = vmatpush.bf16.msra.mxu0 0
    %6808 = vmatpush.bf16.msra.mxu0 0
    %6809 = vmatpush.bf16.msra.mxu0 0
    %6810 = vmatpush.bf16.msra.mxu0 0
    %6811 = vmatpush.bf16.msra.mxu0 %v6799
    %6812 = vmatpush.bf16.msra.mxu0 %v6798
    %6813 = vmatpush.bf16.msra.mxu0 %v6797
    %6814 = vmatpush.bf16.msra.mxu0 %v6796
    %6815 = vmatmul.bf16.gmra.mxu0 %v6805
    %v6816 = vpop.f32.mrf.mxu0
    %v6817 = vadd.f32 %v256, %v6816
    %v6818 = vpop.f32.mrf.mxu0
    %6819 = vdwg.mxu0
    %6821 = vrot.lane.b32.xlu0 %v6817, 32
    %v6822 = vpop.permute.xlu0 %6821
    %6824 = vst.msk [vmem:[#allocation2 + $0x18] sm:$0xff] %vm1178, %v6822
    %v6825 = vshra.s32 %v6817, 31
    %v6826 = vand.u32 %v6825, 2147483647
    %v6827 = vxor.u32 %v6817, %v6826
    %v6828 = vand.u32 %v6827, 4294967264
    %v6829 = vor.u32 %v6828, %v711
    %v6830 = vsel %vm233, %v6829, 2147483648
    %v6831 = vand.u32 %v6830, 65535
    %v6832 = vshra.s32 %v6830, 16
    %v6833 = vcvt.s32.f32 %v6831
    %v6834 = vcvt.s32.f32 %v6832
    %6835 = vmax.xlane.f32.xlu0 %v6834
    %v6836 = vpop.xlane.xlu0 %6835
    %vm6837 = vcmp.eq.f32.partialorder %v6834, %v6836
    %v6838 = vsel %vm6837, %v6833, -inf
    %6839 = vmax.xlane.f32.xlu0 %v6838
    %v6840 = vpop.xlane.xlu0 %6839
    %v6841 = vcvt.f32.s32 %v6840
    %v6842 = vcvt.f32.s32 %v6836
    %v6843 = vshll.u32 %v6842, 16
    %v6844 = vadd.s32 %v6843, %v6841
    %v6845 = vand.u32 %v6844, 31
    %v6846 = vsub.s32 31, %v6845
    %vm6847 = vcmp.eq.s32.totalorder %v237, %v6846
    %v6848 = vsel %vm6847, 1, 0
    %v6849 = vcvt.s32.f32 %v6848
    %v6850 = vpack.c.bf16 %v6849, %v6849
    %v6851 = vld [vmem:[%s3] sm:$0xff]
    %v6852 = vld [vmem:[%s3 + $0x8] sm:$0xff]
    %v6853 = vld [vmem:[%s3 + $0x10] sm:$0xff]
    %v6854 = vld [vmem:[%s3 + $0x18] sm:$0xff]
    %v6855 = vld [vmem:[%s4] sm:$0xff]
    %v6856 = vld [vmem:[%s4 + $0x8] sm:$0xff]
    %v6857 = vld [vmem:[%s4 + $0x10] sm:$0xff]
    %v6858 = vld [vmem:[%s4 + $0x18] sm:$0xff]
    %v6859 = vld [vmem:[%s4 + $0x20] sm:$0xff]
    %v6860 = vld [vmem:[%s4 + $0x28] sm:$0xff]
    %v6861 = vld [vmem:[%s4 + $0x30] sm:$0xff]
    %v6862 = vld [vmem:[%s4 + $0x38] sm:$0xff]
    %v6871 = vunpack.c.l.b16 %v6855
    %v6872 = vunpack.c.h.b16 %v6855
    %v6873 = vunpack.c.l.b16 %v6856
    %v6874 = vunpack.c.h.b16 %v6856
    %v6875 = vunpack.c.l.b16 %v6857
    %v6876 = vunpack.c.h.b16 %v6857
    %v6877 = vunpack.c.l.b16 %v6858
    %v6878 = vunpack.c.h.b16 %v6858
    %v6879 = vunpack.c.l.b16 %v6859
    %v6880 = vunpack.c.h.b16 %v6859
    %v6881 = vunpack.c.l.b16 %v6860
    %v6882 = vunpack.c.h.b16 %v6860
    %v6883 = vunpack.c.l.b16 %v6861
    %v6884 = vunpack.c.h.b16 %v6861
    %v6885 = vunpack.c.l.b16 %v6862
    %v6886 = vunpack.c.h.b16 %v6862
    %v6887 = vpack.c.b16 %v6873, %v6871
    %v6888 = vpack.c.b16 %v6874, %v6872
    %v6889 = vpack.c.b16 %v6877, %v6875
    %v6890 = vpack.c.b16 %v6878, %v6876
    %v6891 = vpack.c.b16 %v6881, %v6879
    %v6892 = vpack.c.b16 %v6882, %v6880
    %v6893 = vpack.c.b16 %v6885, %v6883
    %v6894 = vpack.c.b16 %v6886, %v6884
    %6903 = vmatpush.bf16.msra.mxu0 0
    %6904 = vmatpush.bf16.msra.mxu0 0
    %6905 = vmatpush.bf16.msra.mxu0 0
    %6906 = vmatpush.bf16.msra.mxu0 0
    %6907 = vmatpush.bf16.msra.mxu0 %v6893
    %6908 = vmatpush.bf16.msra.mxu0 %v6891
    %6909 = vmatpush.bf16.msra.mxu0 %v6889
    %6910 = vmatpush.bf16.msra.mxu0 %v6887
    %6911 = vmatmul.bf16.gmra.mxu0 %v6687
    %v6912 = vpop.f32.mrf.mxu0
    %v6913 = vadd.f32 %v244, %v6912
    %v6914 = vpop.f32.mrf.mxu0
    %6915 = vdwg.mxu0
    %6916 = vmatpush.bf16.msra.mxu0 0
    %6917 = vmatpush.bf16.msra.mxu0 0
    %6918 = vmatpush.bf16.msra.mxu0 0
    %6919 = vmatpush.bf16.msra.mxu0 0
    %6920 = vmatpush.bf16.msra.mxu0 %v6894
    %6921 = vmatpush.bf16.msra.mxu0 %v6892
    %6922 = vmatpush.bf16.msra.mxu0 %v6890
    %6923 = vmatpush.bf16.msra.mxu0 %v6888
    %6924 = vmatmul.bf16.gmra.mxu0 %v6687
    %v6925 = vpop.f32.mrf.mxu0
    %v6926 = vadd.f32 %v245, %v6925
    %v6927 = vpop.f32.mrf.mxu0
    %6928 = vdwg.mxu0
    %v6933 = vunpack.c.l.b16 %v6851
    %v6934 = vunpack.c.h.b16 %v6851
    %v6935 = vunpack.c.l.b16 %v6852
    %v6936 = vunpack.c.h.b16 %v6852
    %v6937 = vunpack.c.l.b16 %v6853
    %v6938 = vunpack.c.h.b16 %v6853
    %v6939 = vunpack.c.l.b16 %v6854
    %v6940 = vunpack.c.h.b16 %v6854
    %v6941 = vpack.c.b16 %v6935, %v6933
    %v6942 = vpack.c.b16 %v6936, %v6934
    %v6943 = vpack.c.b16 %v6939, %v6937
    %v6944 = vpack.c.b16 %v6940, %v6938
    %v6950 = vsel %vm233, %v6850, 0
    %6952 = vmatpush.bf16.msra.mxu0 0
    %6953 = vmatpush.bf16.msra.mxu0 0
    %6954 = vmatpush.bf16.msra.mxu0 0
    %6955 = vmatpush.bf16.msra.mxu0 0
    %6956 = vmatpush.bf16.msra.mxu0 0
    %6957 = vmatpush.bf16.msra.mxu0 0
    %6958 = vmatpush.bf16.msra.mxu0 %v6943
    %6959 = vmatpush.bf16.msra.mxu0 %v6941
    %6960 = vmatmul.bf16.gmra.mxu0 %v6950
    %v6961 = vpop.f32.mrf.mxu0
    %v6962 = vadd.f32 %v6913, %v6961
    %v6963 = vpop.f32.mrf.mxu0
    %6964 = vdwg.mxu0
    %6965 = vmatpush.bf16.msra.mxu0 0
    %6966 = vmatpush.bf16.msra.mxu0 0
    %6967 = vmatpush.bf16.msra.mxu0 0
    %6968 = vmatpush.bf16.msra.mxu0 0
    %6969 = vmatpush.bf16.msra.mxu0 0
    %6970 = vmatpush.bf16.msra.mxu0 0
    %6971 = vmatpush.bf16.msra.mxu0 %v6944
    %6972 = vmatpush.bf16.msra.mxu0 %v6942
    %6973 = vmatmul.bf16.gmra.mxu0 %v6950
    %v6974 = vpop.f32.mrf.mxu0
    %v6975 = vadd.f32 %v6926, %v6974
    %v6976 = vpop.f32.mrf.mxu0
    %6977 = vdwg.mxu0
    %v6978 = vld [vmem:[%s7] sm:$0xff]
    %v6979 = vld [vmem:[%s7 + $0x8] sm:$0xff]
    %v6980 = vld [vmem:[%s7 + $0x10] sm:$0xff]
    %v6981 = vld [vmem:[%s7 + $0x18] sm:$0xff]
    %v6982 = vld [vmem:[%s7 + $0x20] sm:$0xff]
    %v6983 = vld [vmem:[%s7 + $0x28] sm:$0xff]
    %v6984 = vld [vmem:[%s7 + $0x30] sm:$0xff]
    %v6985 = vld [vmem:[%s7 + $0x38] sm:$0xff]
    %v6994 = vunpack.c.l.b16 %v6978
    %v6995 = vunpack.c.h.b16 %v6978
    %v6996 = vunpack.c.l.b16 %v6979
    %v6997 = vunpack.c.h.b16 %v6979
    %v6998 = vunpack.c.l.b16 %v6980
    %v6999 = vunpack.c.h.b16 %v6980
    %v7000 = vunpack.c.l.b16 %v6981
    %v7001 = vunpack.c.h.b16 %v6981
    %v7002 = vunpack.c.l.b16 %v6982
    %v7003 = vunpack.c.h.b16 %v6982
    %v7004 = vunpack.c.l.b16 %v6983
    %v7005 = vunpack.c.h.b16 %v6983
    %v7006 = vunpack.c.l.b16 %v6984
    %v7007 = vunpack.c.h.b16 %v6984
    %v7008 = vunpack.c.l.b16 %v6985
    %v7009 = vunpack.c.h.b16 %v6985
    %v7010 = vpack.c.b16 %v6996, %v6994
    %v7011 = vpack.c.b16 %v6997, %v6995
    %v7012 = vpack.c.b16 %v7000, %v6998
    %v7013 = vpack.c.b16 %v7001, %v6999
    %v7014 = vpack.c.b16 %v7004, %v7002
    %v7015 = vpack.c.b16 %v7005, %v7003
    %v7016 = vpack.c.b16 %v7008, %v7006
    %v7017 = vpack.c.b16 %v7009, %v7007
    %7026 = vmatpush.bf16.msra.mxu0 0
    %7027 = vmatpush.bf16.msra.mxu0 0
    %7028 = vmatpush.bf16.msra.mxu0 0
    %7029 = vmatpush.bf16.msra.mxu0 0
    %7030 = vmatpush.bf16.msra.mxu0 %v7016
    %7031 = vmatpush.bf16.msra.mxu0 %v7014
    %7032 = vmatpush.bf16.msra.mxu0 %v7012
    %7033 = vmatpush.bf16.msra.mxu0 %v7010
    %7034 = vmatmul.bf16.gmra.mxu0 %v6805
    %v7035 = vpop.f32.mrf.mxu0
    %v7036 = vadd.f32 %v250, %v7035
    %v7037 = vpop.f32.mrf.mxu0
    %7038 = vdwg.mxu0
    %7039 = vmatpush.bf16.msra.mxu0 0
    %7040 = vmatpush.bf16.msra.mxu0 0
    %7041 = vmatpush.bf16.msra.mxu0 0
    %7042 = vmatpush.bf16.msra.mxu0 0
    %7043 = vmatpush.bf16.msra.mxu0 %v7017
    %7044 = vmatpush.bf16.msra.mxu0 %v7015
    %7045 = vmatpush.bf16.msra.mxu0 %v7013
    %7046 = vmatpush.bf16.msra.mxu0 %v7011
    %7047 = vmatmul.bf16.gmra.mxu0 %v6805
    %v7048 = vpop.f32.mrf.mxu0
    %v7049 = vadd.f32 %v251, %v7048
    %v7050 = vpop.f32.mrf.mxu0
    %7051 = vdwg.mxu0
    %v7052 = vxor.u32 %v6962, 2147483648
    %v7053 = vxor.u32 %v6975, 2147483648
    %v7054 = vmul.f32 %v7052, 1.442695
    %v7055 = vpow.pop %v7054
    %v7056 = vmul.f32 %v7053, 1.442695
    %v7057 = vpow.pop %v7056
    %v7058 = vadd.f32 %v7055, 1.0
    %v7059 = vadd.f32 %v7057, 1.0
    %v7060 = vrcp.pop %v7058
    %v7061 = vmul.f32 %v7058, %v7060
    %v7062 = vsub.f32 1.0, %v7061
    %v7063 = vmul.f32 %v7060, %v7062
    %v7064 = vadd.f32 %v7060, %v7063
    %vm7065 = vweird.f32 %v7058
    %vm7066 = vweird.f32 %v7060
    %vm7067 = vmor %vm7065, %vm7066
    %v7068 = vsel %vm7067, %v7060, %v7064
    %v7069 = vand.u32 2147483647, %v7058
    %vm7070 = vcmp.eq.f32.partialorder %v7069, 8.507059e+37
    %v7071 = vand.u32 %v7058, 2147483648
    %v7072 = vor.u32 1.1754944e-38, %v7071
    %v7073 = vsel %vm7070, %v7072, %v7068
    %v7074 = vmul.f32 1.0, %v7073
    %v7075 = vrcp.pop %v7059
    %v7076 = vmul.f32 %v7059, %v7075
    %v7077 = vsub.f32 1.0, %v7076
    %v7078 = vmul.f32 %v7075, %v7077
    %v7079 = vadd.f32 %v7075, %v7078
    %vm7080 = vweird.f32 %v7059
    %vm7081 = vweird.f32 %v7075
    %vm7082 = vmor %vm7080, %vm7081
    %v7083 = vsel %vm7082, %v7075, %v7079
    %v7084 = vand.u32 2147483647, %v7059
    %vm7085 = vcmp.eq.f32.partialorder %v7084, 8.507059e+37
    %v7086 = vand.u32 %v7059, 2147483648
    %v7087 = vor.u32 1.1754944e-38, %v7086
    %v7088 = vsel %vm7085, %v7087, %v7083
    %v7089 = vmul.f32 1.0, %v7088
    %v7090 = vtanh.pop %v6975
    %v7091 = vmul.f32 %v7074, %v6630
    %7093 = vrot.lane.b32.xlu0 %v7090, 64
    %v7094 = vpop.permute.xlu0 %7093
    %v7096 = vmul.f32 %v7074, %v7094
    %7098 = vrot.lane.b32.xlu0 %v7096, 64
    %v7099 = vpop.permute.xlu0 %7098
    %v7101 = vadd.f32 %v7091, %v7099
    %v7102 = vtanh.pop %v7101
    %7104 = vrot.lane.b32.xlu0 %v7102, 64
    %v7105 = vpop.permute.xlu0 %7104
    %v7107 = vmul.f32 %v7089, %v7105
    %v7108 = vpack.c.bf16 %v7107, %v7107
    %v7109 = vld [vmem:[%s6] sm:$0xff]
    %v7110 = vld [vmem:[%s6 + $0x8] sm:$0xff]
    %v7111 = vld [vmem:[%s6 + $0x10] sm:$0xff]
    %v7112 = vld [vmem:[%s6 + $0x18] sm:$0xff]
    %v7113 = vld [vmem:[%s6 + $0x20] sm:$0xff]
    %v7114 = vld [vmem:[%s6 + $0x28] sm:$0xff]
    %v7115 = vld [vmem:[%s6 + $0x30] sm:$0xff]
    %v7116 = vld [vmem:[%s6 + $0x38] sm:$0xff]
    %v7125 = vunpack.c.l.b16 %v7109
    %v7126 = vunpack.c.h.b16 %v7109
    %v7127 = vunpack.c.l.b16 %v7110
    %v7128 = vunpack.c.h.b16 %v7110
    %v7129 = vunpack.c.l.b16 %v7111
    %v7130 = vunpack.c.h.b16 %v7111
    %v7131 = vunpack.c.l.b16 %v7112
    %v7132 = vunpack.c.h.b16 %v7112
    %v7133 = vunpack.c.l.b16 %v7113
    %v7134 = vunpack.c.h.b16 %v7113
    %v7135 = vunpack.c.l.b16 %v7114
    %v7136 = vunpack.c.h.b16 %v7114
    %v7137 = vunpack.c.l.b16 %v7115
    %v7138 = vunpack.c.h.b16 %v7115
    %v7139 = vunpack.c.l.b16 %v7116
    %v7140 = vunpack.c.h.b16 %v7116
    %v7141 = vpack.c.b16 %v7127, %v7125
    %v7142 = vpack.c.b16 %v7128, %v7126
    %v7143 = vpack.c.b16 %v7131, %v7129
    %v7144 = vpack.c.b16 %v7132, %v7130
    %v7145 = vpack.c.b16 %v7135, %v7133
    %v7146 = vpack.c.b16 %v7136, %v7134
    %v7147 = vpack.c.b16 %v7139, %v7137
    %v7148 = vpack.c.b16 %v7140, %v7138
    %v7158 = vsel %vm125, %v7108, 0
    %7160 = vmatpush.bf16.msra.mxu0 0
    %7161 = vmatpush.bf16.msra.mxu0 0
    %7162 = vmatpush.bf16.msra.mxu0 0
    %7163 = vmatpush.bf16.msra.mxu0 0
    %7164 = vmatpush.bf16.msra.mxu0 %v7147
    %7165 = vmatpush.bf16.msra.mxu0 %v7145
    %7166 = vmatpush.bf16.msra.mxu0 %v7143
    %7167 = vmatpush.bf16.msra.mxu0 %v7141
    %7168 = vmatmul.bf16.gmra.mxu0 %v7158
    %v7169 = vpop.f32.mrf.mxu0
    %v7170 = vadd.f32 %v7036, %v7169
    %v7171 = vpop.f32.mrf.mxu0
    %7172 = vdwg.mxu0
    %7173 = vmatpush.bf16.msra.mxu0 0
    %7174 = vmatpush.bf16.msra.mxu0 0
    %7175 = vmatpush.bf16.msra.mxu0 0
    %7176 = vmatpush.bf16.msra.mxu0 0
    %7177 = vmatpush.bf16.msra.mxu0 %v7148
    %7178 = vmatpush.bf16.msra.mxu0 %v7146
    %7179 = vmatpush.bf16.msra.mxu0 %v7144
    %7180 = vmatpush.bf16.msra.mxu0 %v7142
    %7181 = vmatmul.bf16.gmra.mxu0 %v7158
    %v7182 = vpop.f32.mrf.mxu0
    %v7183 = vadd.f32 %v7049, %v7182
    %v7184 = vpop.f32.mrf.mxu0
    %7185 = vdwg.mxu0
    %v7186 = vxor.u32 %v7170, 2147483648
    %v7187 = vxor.u32 %v7183, 2147483648
    %v7188 = vmul.f32 %v7186, 1.442695
    %v7189 = vpow.pop %v7188
    %v7190 = vmul.f32 %v7187, 1.442695
    %v7191 = vpow.pop %v7190
    %v7192 = vadd.f32 %v7189, 1.0
    %v7193 = vadd.f32 %v7191, 1.0
    %v7194 = vrcp.pop %v7192
    %v7195 = vmul.f32 %v7192, %v7194
    %v7196 = vsub.f32 1.0, %v7195
    %v7197 = vmul.f32 %v7194, %v7196
    %v7198 = vadd.f32 %v7194, %v7197
    %vm7199 = vweird.f32 %v7192
    %vm7200 = vweird.f32 %v7194
    %vm7201 = vmor %vm7199, %vm7200
    %v7202 = vsel %vm7201, %v7194, %v7198
    %v7203 = vand.u32 2147483647, %v7192
    %vm7204 = vcmp.eq.f32.partialorder %v7203, 8.507059e+37
    %v7205 = vand.u32 %v7192, 2147483648
    %v7206 = vor.u32 1.1754944e-38, %v7205
    %v7207 = vsel %vm7204, %v7206, %v7202
    %v7208 = vmul.f32 1.0, %v7207
    %v7209 = vrcp.pop %v7193
    %v7210 = vmul.f32 %v7193, %v7209
    %v7211 = vsub.f32 1.0, %v7210
    %v7212 = vmul.f32 %v7209, %v7211
    %v7213 = vadd.f32 %v7209, %v7212
    %vm7214 = vweird.f32 %v7193
    %vm7215 = vweird.f32 %v7209
    %vm7216 = vmor %vm7214, %vm7215
    %v7217 = vsel %vm7216, %v7209, %v7213
    %v7218 = vand.u32 2147483647, %v7193
    %vm7219 = vcmp.eq.f32.partialorder %v7218, 8.507059e+37
    %v7220 = vand.u32 %v7193, 2147483648
    %v7221 = vor.u32 1.1754944e-38, %v7220
    %v7222 = vsel %vm7219, %v7221, %v7217
    %v7223 = vmul.f32 1.0, %v7222
    %v7224 = vtanh.pop %v7183
    %v7225 = vmul.f32 %v7208, %v6764
    %7227 = vrot.lane.b32.xlu0 %v7224, 64
    %v7228 = vpop.permute.xlu0 %7227
    %v7230 = vmul.f32 %v7208, %v7228
    %7232 = vrot.lane.b32.xlu0 %v7230, 64
    %v7233 = vpop.permute.xlu0 %7232
    %v7235 = vadd.f32 %v7225, %v7233
    %v7236 = vtanh.pop %v7235
    %7238 = vrot.lane.b32.xlu0 %v7236, 64
    %v7239 = vpop.permute.xlu0 %7238
    %v7241 = vmul.f32 %v7223, %v7239
    %v7242 = vpack.c.bf16 %v7241, %v7241
    %v7243 = vld [vmem:[%s9] sm:$0xf]
    %v7244 = vld [vmem:[%s9 + $0x4] sm:$0xf]
    %v7245 = vld [vmem:[%s9 + $0x8] sm:$0xf]
    %v7246 = vld [vmem:[%s9 + $0xc] sm:$0xf]
    %v7247 = vld [vmem:[%s9 + $0x10] sm:$0xf]
    %v7248 = vld [vmem:[%s9 + $0x14] sm:$0xf]
    %v7249 = vld [vmem:[%s9 + $0x18] sm:$0xf]
    %v7250 = vld [vmem:[%s9 + $0x1c] sm:$0xf]
    %v7259 = vunpack.c.l.b16 %v7243
    %v7260 = vunpack.c.l.b16 %v7244
    %v7261 = vunpack.c.l.b16 %v7245
    %v7262 = vunpack.c.l.b16 %v7246
    %v7263 = vunpack.c.l.b16 %v7247
    %v7264 = vunpack.c.l.b16 %v7248
    %v7265 = vunpack.c.l.b16 %v7249
    %v7266 = vunpack.c.l.b16 %v7250
    %v7267 = vpack.c.b16 %v7260, %v7259
    %v7268 = vpack.c.b16 %v7262, %v7261
    %v7269 = vpack.c.b16 %v7264, %v7263
    %v7270 = vpack.c.b16 %v7266, %v7265
    %v7276 = vsel %vm125, %v7242, 0
    %7278 = vmatpush.bf16.msra.mxu0 0
    %7279 = vmatpush.bf16.msra.mxu0 0
    %7280 = vmatpush.bf16.msra.mxu0 0
    %7281 = vmatpush.bf16.msra.mxu0 0
    %7282 = vmatpush.bf16.msra.mxu0 %v7270
    %7283 = vmatpush.bf16.msra.mxu0 %v7269
    %7284 = vmatpush.bf16.msra.mxu0 %v7268
    %7285 = vmatpush.bf16.msra.mxu0 %v7267
    %7286 = vmatmul.bf16.gmra.mxu0 %v7276
    %v7287 = vpop.f32.mrf.mxu0
    %v7288 = vadd.f32 %v256, %v7287
    %v7289 = vpop.f32.mrf.mxu0
    %7290 = vdwg.mxu0
    %7292 = vrot.lane.b32.xlu0 %v7288, 64
    %v7293 = vpop.permute.xlu0 %7292
    %7295 = vst.msk [vmem:[#allocation2 + $0x18] sm:$0xff] %vm1650, %v7293
    %v7296 = vshra.s32 %v7288, 31
    %v7297 = vand.u32 %v7296, 2147483647
    %v7298 = vxor.u32 %v7288, %v7297
    %v7299 = vand.u32 %v7298, 4294967264
    %v7300 = vor.u32 %v7299, %v711
    %v7301 = vsel %vm233, %v7300, 2147483648
    %v7302 = vand.u32 %v7301, 65535
    %v7303 = vshra.s32 %v7301, 16
    %v7304 = vcvt.s32.f32 %v7302
    %v7305 = vcvt.s32.f32 %v7303
    %7306 = vmax.xlane.f32.xlu0 %v7305
    %v7307 = vpop.xlane.xlu0 %7306
    %vm7308 = vcmp.eq.f32.partialorder %v7305, %v7307
    %v7309 = vsel %vm7308, %v7304, -inf
    %7310 = vmax.xlane.f32.xlu0 %v7309
    %v7311 = vpop.xlane.xlu0 %7310
    %v7312 = vcvt.f32.s32 %v7311
    %v7313 = vcvt.f32.s32 %v7307
    %v7314 = vshll.u32 %v7313, 16
    %v7315 = vadd.s32 %v7314, %v7312
    %v7316 = vand.u32 %v7315, 31
    %v7317 = vsub.s32 31, %v7316
    %vm7318 = vcmp.eq.s32.totalorder %v237, %v7317
    %v7319 = vsel %vm7318, 1, 0
    %v7320 = vcvt.s32.f32 %v7319
    %v7321 = vpack.c.bf16 %v7320, %v7320
    %v7322 = vld [vmem:[%s3] sm:$0xff]
    %v7323 = vld [vmem:[%s3 + $0x8] sm:$0xff]
    %v7324 = vld [vmem:[%s3 + $0x10] sm:$0xff]
    %v7325 = vld [vmem:[%s3 + $0x18] sm:$0xff]
    %v7326 = vld [vmem:[%s4] sm:$0xff]
    %v7327 = vld [vmem:[%s4 + $0x8] sm:$0xff]
    %v7328 = vld [vmem:[%s4 + $0x10] sm:$0xff]
    %v7329 = vld [vmem:[%s4 + $0x18] sm:$0xff]
    %v7330 = vld [vmem:[%s4 + $0x20] sm:$0xff]
    %v7331 = vld [vmem:[%s4 + $0x28] sm:$0xff]
    %v7332 = vld [vmem:[%s4 + $0x30] sm:$0xff]
    %v7333 = vld [vmem:[%s4 + $0x38] sm:$0xff]
    %v7342 = vunpack.c.l.b16 %v7326
    %v7343 = vunpack.c.h.b16 %v7326
    %v7344 = vunpack.c.l.b16 %v7327
    %v7345 = vunpack.c.h.b16 %v7327
    %v7346 = vunpack.c.l.b16 %v7328
    %v7347 = vunpack.c.h.b16 %v7328
    %v7348 = vunpack.c.l.b16 %v7329
    %v7349 = vunpack.c.h.b16 %v7329
    %v7350 = vunpack.c.l.b16 %v7330
    %v7351 = vunpack.c.h.b16 %v7330
    %v7352 = vunpack.c.l.b16 %v7331
    %v7353 = vunpack.c.h.b16 %v7331
    %v7354 = vunpack.c.l.b16 %v7332
    %v7355 = vunpack.c.h.b16 %v7332
    %v7356 = vunpack.c.l.b16 %v7333
    %v7357 = vunpack.c.h.b16 %v7333
    %v7358 = vpack.c.b16 %v7344, %v7342
    %v7359 = vpack.c.b16 %v7345, %v7343
    %v7360 = vpack.c.b16 %v7348, %v7346
    %v7361 = vpack.c.b16 %v7349, %v7347
    %v7362 = vpack.c.b16 %v7352, %v7350
    %v7363 = vpack.c.b16 %v7353, %v7351
    %v7364 = vpack.c.b16 %v7356, %v7354
    %v7365 = vpack.c.b16 %v7357, %v7355
    %7374 = vmatpush.bf16.msra.mxu0 0
    %7375 = vmatpush.bf16.msra.mxu0 0
    %7376 = vmatpush.bf16.msra.mxu0 0
    %7377 = vmatpush.bf16.msra.mxu0 0
    %7378 = vmatpush.bf16.msra.mxu0 %v7364
    %7379 = vmatpush.bf16.msra.mxu0 %v7362
    %7380 = vmatpush.bf16.msra.mxu0 %v7360
    %7381 = vmatpush.bf16.msra.mxu0 %v7358
    %7382 = vmatmul.bf16.gmra.mxu0 %v7158
    %v7383 = vpop.f32.mrf.mxu0
    %v7384 = vadd.f32 %v244, %v7383
    %v7385 = vpop.f32.mrf.mxu0
    %7386 = vdwg.mxu0
    %7387 = vmatpush.bf16.msra.mxu0 0
    %7388 = vmatpush.bf16.msra.mxu0 0
    %7389 = vmatpush.bf16.msra.mxu0 0
    %7390 = vmatpush.bf16.msra.mxu0 0
    %7391 = vmatpush.bf16.msra.mxu0 %v7365
    %7392 = vmatpush.bf16.msra.mxu0 %v7363
    %7393 = vmatpush.bf16.msra.mxu0 %v7361
    %7394 = vmatpush.bf16.msra.mxu0 %v7359
    %7395 = vmatmul.bf16.gmra.mxu0 %v7158
    %v7396 = vpop.f32.mrf.mxu0
    %v7397 = vadd.f32 %v245, %v7396
    %v7398 = vpop.f32.mrf.mxu0
    %7399 = vdwg.mxu0
    %v7404 = vunpack.c.l.b16 %v7322
    %v7405 = vunpack.c.h.b16 %v7322
    %v7406 = vunpack.c.l.b16 %v7323
    %v7407 = vunpack.c.h.b16 %v7323
    %v7408 = vunpack.c.l.b16 %v7324
    %v7409 = vunpack.c.h.b16 %v7324
    %v7410 = vunpack.c.l.b16 %v7325
    %v7411 = vunpack.c.h.b16 %v7325
    %v7412 = vpack.c.b16 %v7406, %v7404
    %v7413 = vpack.c.b16 %v7407, %v7405
    %v7414 = vpack.c.b16 %v7410, %v7408
    %v7415 = vpack.c.b16 %v7411, %v7409
    %v7421 = vsel %vm233, %v7321, 0
    %7423 = vmatpush.bf16.msra.mxu0 0
    %7424 = vmatpush.bf16.msra.mxu0 0
    %7425 = vmatpush.bf16.msra.mxu0 0
    %7426 = vmatpush.bf16.msra.mxu0 0
    %7427 = vmatpush.bf16.msra.mxu0 0
    %7428 = vmatpush.bf16.msra.mxu0 0
    %7429 = vmatpush.bf16.msra.mxu0 %v7414
    %7430 = vmatpush.bf16.msra.mxu0 %v7412
    %7431 = vmatmul.bf16.gmra.mxu0 %v7421
    %v7432 = vpop.f32.mrf.mxu0
    %v7433 = vadd.f32 %v7384, %v7432
    %v7434 = vpop.f32.mrf.mxu0
    %7435 = vdwg.mxu0
    %7436 = vmatpush.bf16.msra.mxu0 0
    %7437 = vmatpush.bf16.msra.mxu0 0
    %7438 = vmatpush.bf16.msra.mxu0 0
    %7439 = vmatpush.bf16.msra.mxu0 0
    %7440 = vmatpush.bf16.msra.mxu0 0
    %7441 = vmatpush.bf16.msra.mxu0 0
    %7442 = vmatpush.bf16.msra.mxu0 %v7415
    %7443 = vmatpush.bf16.msra.mxu0 %v7413
    %7444 = vmatmul.bf16.gmra.mxu0 %v7421
    %v7445 = vpop.f32.mrf.mxu0
    %v7446 = vadd.f32 %v7397, %v7445
    %v7447 = vpop.f32.mrf.mxu0
    %7448 = vdwg.mxu0
    %v7449 = vld [vmem:[%s7] sm:$0xff]
    %v7450 = vld [vmem:[%s7 + $0x8] sm:$0xff]
    %v7451 = vld [vmem:[%s7 + $0x10] sm:$0xff]
    %v7452 = vld [vmem:[%s7 + $0x18] sm:$0xff]
    %v7453 = vld [vmem:[%s7 + $0x20] sm:$0xff]
    %v7454 = vld [vmem:[%s7 + $0x28] sm:$0xff]
    %v7455 = vld [vmem:[%s7 + $0x30] sm:$0xff]
    %v7456 = vld [vmem:[%s7 + $0x38] sm:$0xff]
    %v7465 = vunpack.c.l.b16 %v7449
    %v7466 = vunpack.c.h.b16 %v7449
    %v7467 = vunpack.c.l.b16 %v7450
    %v7468 = vunpack.c.h.b16 %v7450
    %v7469 = vunpack.c.l.b16 %v7451
    %v7470 = vunpack.c.h.b16 %v7451
    %v7471 = vunpack.c.l.b16 %v7452
    %v7472 = vunpack.c.h.b16 %v7452
    %v7473 = vunpack.c.l.b16 %v7453
    %v7474 = vunpack.c.h.b16 %v7453
    %v7475 = vunpack.c.l.b16 %v7454
    %v7476 = vunpack.c.h.b16 %v7454
    %v7477 = vunpack.c.l.b16 %v7455
    %v7478 = vunpack.c.h.b16 %v7455
    %v7479 = vunpack.c.l.b16 %v7456
    %v7480 = vunpack.c.h.b16 %v7456
    %v7481 = vpack.c.b16 %v7467, %v7465
    %v7482 = vpack.c.b16 %v7468, %v7466
    %v7483 = vpack.c.b16 %v7471, %v7469
    %v7484 = vpack.c.b16 %v7472, %v7470
    %v7485 = vpack.c.b16 %v7475, %v7473
    %v7486 = vpack.c.b16 %v7476, %v7474
    %v7487 = vpack.c.b16 %v7479, %v7477
    %v7488 = vpack.c.b16 %v7480, %v7478
    %7497 = vmatpush.bf16.msra.mxu0 0
    %7498 = vmatpush.bf16.msra.mxu0 0
    %7499 = vmatpush.bf16.msra.mxu0 0
    %7500 = vmatpush.bf16.msra.mxu0 0
    %7501 = vmatpush.bf16.msra.mxu0 %v7487
    %7502 = vmatpush.bf16.msra.mxu0 %v7485
    %7503 = vmatpush.bf16.msra.mxu0 %v7483
    %7504 = vmatpush.bf16.msra.mxu0 %v7481
    %7505 = vmatmul.bf16.gmra.mxu0 %v7276
    %v7506 = vpop.f32.mrf.mxu0
    %v7507 = vadd.f32 %v250, %v7506
    %v7508 = vpop.f32.mrf.mxu0
    %7509 = vdwg.mxu0
    %7510 = vmatpush.bf16.msra.mxu0 0
    %7511 = vmatpush.bf16.msra.mxu0 0
    %7512 = vmatpush.bf16.msra.mxu0 0
    %7513 = vmatpush.bf16.msra.mxu0 0
    %7514 = vmatpush.bf16.msra.mxu0 %v7488
    %7515 = vmatpush.bf16.msra.mxu0 %v7486
    %7516 = vmatpush.bf16.msra.mxu0 %v7484
    %7517 = vmatpush.bf16.msra.mxu0 %v7482
    %7518 = vmatmul.bf16.gmra.mxu0 %v7276
    %v7519 = vpop.f32.mrf.mxu0
    %v7520 = vadd.f32 %v251, %v7519
    %v7521 = vpop.f32.mrf.mxu0
    %7522 = vdwg.mxu0
    %v7523 = vxor.u32 %v7433, 2147483648
    %v7524 = vxor.u32 %v7446, 2147483648
    %v7525 = vmul.f32 %v7523, 1.442695
    %v7526 = vpow.pop %v7525
    %v7527 = vmul.f32 %v7524, 1.442695
    %v7528 = vpow.pop %v7527
    %v7529 = vadd.f32 %v7526, 1.0
    %v7530 = vadd.f32 %v7528, 1.0
    %v7531 = vrcp.pop %v7529
    %v7532 = vmul.f32 %v7529, %v7531
    %v7533 = vsub.f32 1.0, %v7532
    %v7534 = vmul.f32 %v7531, %v7533
    %v7535 = vadd.f32 %v7531, %v7534
    %vm7536 = vweird.f32 %v7529
    %vm7537 = vweird.f32 %v7531
    %vm7538 = vmor %vm7536, %vm7537
    %v7539 = vsel %vm7538, %v7531, %v7535
    %v7540 = vand.u32 2147483647, %v7529
    %vm7541 = vcmp.eq.f32.partialorder %v7540, 8.507059e+37
    %v7542 = vand.u32 %v7529, 2147483648
    %v7543 = vor.u32 1.1754944e-38, %v7542
    %v7544 = vsel %vm7541, %v7543, %v7539
    %v7545 = vmul.f32 1.0, %v7544
    %v7546 = vrcp.pop %v7530
    %v7547 = vmul.f32 %v7530, %v7546
    %v7548 = vsub.f32 1.0, %v7547
    %v7549 = vmul.f32 %v7546, %v7548
    %v7550 = vadd.f32 %v7546, %v7549
    %vm7551 = vweird.f32 %v7530
    %vm7552 = vweird.f32 %v7546
    %vm7553 = vmor %vm7551, %vm7552
    %v7554 = vsel %vm7553, %v7546, %v7550
    %v7555 = vand.u32 2147483647, %v7530
    %vm7556 = vcmp.eq.f32.partialorder %v7555, 8.507059e+37
    %v7557 = vand.u32 %v7530, 2147483648
    %v7558 = vor.u32 1.1754944e-38, %v7557
    %v7559 = vsel %vm7556, %v7558, %v7554
    %v7560 = vmul.f32 1.0, %v7559
    %v7561 = vtanh.pop %v7446
    %v7562 = vmul.f32 %v7545, %v7101
    %7564 = vrot.lane.b32.xlu0 %v7561, 64
    %v7565 = vpop.permute.xlu0 %7564
    %v7567 = vmul.f32 %v7545, %v7565
    %7569 = vrot.lane.b32.xlu0 %v7567, 64
    %v7570 = vpop.permute.xlu0 %7569
    %v7572 = vadd.f32 %v7562, %v7570
    %v7573 = vtanh.pop %v7572
    %7575 = vrot.lane.b32.xlu0 %v7573, 64
    %v7576 = vpop.permute.xlu0 %7575
    %v7578 = vmul.f32 %v7560, %v7576
    %v7579 = vpack.c.bf16 %v7578, %v7578
    %v7580 = vld [vmem:[%s6] sm:$0xff]
    %v7581 = vld [vmem:[%s6 + $0x8] sm:$0xff]
    %v7582 = vld [vmem:[%s6 + $0x10] sm:$0xff]
    %v7583 = vld [vmem:[%s6 + $0x18] sm:$0xff]
    %v7584 = vld [vmem:[%s6 + $0x20] sm:$0xff]
    %v7585 = vld [vmem:[%s6 + $0x28] sm:$0xff]
    %v7586 = vld [vmem:[%s6 + $0x30] sm:$0xff]
    %v7587 = vld [vmem:[%s6 + $0x38] sm:$0xff]
    %v7596 = vunpack.c.l.b16 %v7580
    %v7597 = vunpack.c.h.b16 %v7580
    %v7598 = vunpack.c.l.b16 %v7581
    %v7599 = vunpack.c.h.b16 %v7581
    %v7600 = vunpack.c.l.b16 %v7582
    %v7601 = vunpack.c.h.b16 %v7582
    %v7602 = vunpack.c.l.b16 %v7583
    %v7603 = vunpack.c.h.b16 %v7583
    %v7604 = vunpack.c.l.b16 %v7584
    %v7605 = vunpack.c.h.b16 %v7584
    %v7606 = vunpack.c.l.b16 %v7585
    %v7607 = vunpack.c.h.b16 %v7585
    %v7608 = vunpack.c.l.b16 %v7586
    %v7609 = vunpack.c.h.b16 %v7586
    %v7610 = vunpack.c.l.b16 %v7587
    %v7611 = vunpack.c.h.b16 %v7587
    %v7612 = vpack.c.b16 %v7598, %v7596
    %v7613 = vpack.c.b16 %v7599, %v7597
    %v7614 = vpack.c.b16 %v7602, %v7600
    %v7615 = vpack.c.b16 %v7603, %v7601
    %v7616 = vpack.c.b16 %v7606, %v7604
    %v7617 = vpack.c.b16 %v7607, %v7605
    %v7618 = vpack.c.b16 %v7610, %v7608
    %v7619 = vpack.c.b16 %v7611, %v7609
    %v7629 = vsel %vm125, %v7579, 0
    %7631 = vmatpush.bf16.msra.mxu0 0
    %7632 = vmatpush.bf16.msra.mxu0 0
    %7633 = vmatpush.bf16.msra.mxu0 0
    %7634 = vmatpush.bf16.msra.mxu0 0
    %7635 = vmatpush.bf16.msra.mxu0 %v7618
    %7636 = vmatpush.bf16.msra.mxu0 %v7616
    %7637 = vmatpush.bf16.msra.mxu0 %v7614
    %7638 = vmatpush.bf16.msra.mxu0 %v7612
    %7639 = vmatmul.bf16.gmra.mxu0 %v7629
    %v7640 = vpop.f32.mrf.mxu0
    %v7641 = vadd.f32 %v7507, %v7640
    %v7642 = vpop.f32.mrf.mxu0
    %7643 = vdwg.mxu0
    %7644 = vmatpush.bf16.msra.mxu0 0
    %7645 = vmatpush.bf16.msra.mxu0 0
    %7646 = vmatpush.bf16.msra.mxu0 0
    %7647 = vmatpush.bf16.msra.mxu0 0
    %7648 = vmatpush.bf16.msra.mxu0 %v7619
    %7649 = vmatpush.bf16.msra.mxu0 %v7617
    %7650 = vmatpush.bf16.msra.mxu0 %v7615
    %7651 = vmatpush.bf16.msra.mxu0 %v7613
    %7652 = vmatmul.bf16.gmra.mxu0 %v7629
    %v7653 = vpop.f32.mrf.mxu0
    %v7654 = vadd.f32 %v7520, %v7653
    %v7655 = vpop.f32.mrf.mxu0
    %7656 = vdwg.mxu0
    %v7657 = vxor.u32 %v7641, 2147483648
    %v7658 = vxor.u32 %v7654, 2147483648
    %v7659 = vmul.f32 %v7657, 1.442695
    %v7660 = vpow.pop %v7659
    %v7661 = vmul.f32 %v7658, 1.442695
    %v7662 = vpow.pop %v7661
    %v7663 = vadd.f32 %v7660, 1.0
    %v7664 = vadd.f32 %v7662, 1.0
    %v7665 = vrcp.pop %v7663
    %v7666 = vmul.f32 %v7663, %v7665
    %v7667 = vsub.f32 1.0, %v7666
    %v7668 = vmul.f32 %v7665, %v7667
    %v7669 = vadd.f32 %v7665, %v7668
    %vm7670 = vweird.f32 %v7663
    %vm7671 = vweird.f32 %v7665
    %vm7672 = vmor %vm7670, %vm7671
    %v7673 = vsel %vm7672, %v7665, %v7669
    %v7674 = vand.u32 2147483647, %v7663
    %vm7675 = vcmp.eq.f32.partialorder %v7674, 8.507059e+37
    %v7676 = vand.u32 %v7663, 2147483648
    %v7677 = vor.u32 1.1754944e-38, %v7676
    %v7678 = vsel %vm7675, %v7677, %v7673
    %v7679 = vmul.f32 1.0, %v7678
    %v7680 = vrcp.pop %v7664
    %v7681 = vmul.f32 %v7664, %v7680
    %v7682 = vsub.f32 1.0, %v7681
    %v7683 = vmul.f32 %v7680, %v7682
    %v7684 = vadd.f32 %v7680, %v7683
    %vm7685 = vweird.f32 %v7664
    %vm7686 = vweird.f32 %v7680
    %vm7687 = vmor %vm7685, %vm7686
    %v7688 = vsel %vm7687, %v7680, %v7684
    %v7689 = vand.u32 2147483647, %v7664
    %vm7690 = vcmp.eq.f32.partialorder %v7689, 8.507059e+37
    %v7691 = vand.u32 %v7664, 2147483648
    %v7692 = vor.u32 1.1754944e-38, %v7691
    %v7693 = vsel %vm7690, %v7692, %v7688
    %v7694 = vmul.f32 1.0, %v7693
    %v7695 = vtanh.pop %v7654
    %v7696 = vmul.f32 %v7679, %v7235
    %7698 = vrot.lane.b32.xlu0 %v7695, 64
    %v7699 = vpop.permute.xlu0 %7698
    %v7701 = vmul.f32 %v7679, %v7699
    %7703 = vrot.lane.b32.xlu0 %v7701, 64
    %v7704 = vpop.permute.xlu0 %7703
    %v7706 = vadd.f32 %v7696, %v7704
    %v7707 = vtanh.pop %v7706
    %7709 = vrot.lane.b32.xlu0 %v7707, 64
    %v7710 = vpop.permute.xlu0 %7709
    %v7712 = vmul.f32 %v7694, %v7710
    %v7713 = vpack.c.bf16 %v7712, %v7712
    %v7714 = vld [vmem:[%s9] sm:$0xf]
    %v7715 = vld [vmem:[%s9 + $0x4] sm:$0xf]
    %v7716 = vld [vmem:[%s9 + $0x8] sm:$0xf]
    %v7717 = vld [vmem:[%s9 + $0xc] sm:$0xf]
    %v7718 = vld [vmem:[%s9 + $0x10] sm:$0xf]
    %v7719 = vld [vmem:[%s9 + $0x14] sm:$0xf]
    %v7720 = vld [vmem:[%s9 + $0x18] sm:$0xf]
    %v7721 = vld [vmem:[%s9 + $0x1c] sm:$0xf]
    %v7730 = vunpack.c.l.b16 %v7714
    %v7731 = vunpack.c.l.b16 %v7715
    %v7732 = vunpack.c.l.b16 %v7716
    %v7733 = vunpack.c.l.b16 %v7717
    %v7734 = vunpack.c.l.b16 %v7718
    %v7735 = vunpack.c.l.b16 %v7719
    %v7736 = vunpack.c.l.b16 %v7720
    %v7737 = vunpack.c.l.b16 %v7721
    %v7738 = vpack.c.b16 %v7731, %v7730
    %v7739 = vpack.c.b16 %v7733, %v7732
    %v7740 = vpack.c.b16 %v7735, %v7734
    %v7741 = vpack.c.b16 %v7737, %v7736
    %v7747 = vsel %vm125, %v7713, 0
    %7749 = vmatpush.bf16.msra.mxu0 0
    %7750 = vmatpush.bf16.msra.mxu0 0
    %7751 = vmatpush.bf16.msra.mxu0 0
    %7752 = vmatpush.bf16.msra.mxu0 0
    %7753 = vmatpush.bf16.msra.mxu0 %v7741
    %7754 = vmatpush.bf16.msra.mxu0 %v7740
    %7755 = vmatpush.bf16.msra.mxu0 %v7739
    %7756 = vmatpush.bf16.msra.mxu0 %v7738
    %7757 = vmatmul.bf16.gmra.mxu0 %v7747
    %v7758 = vpop.f32.mrf.mxu0
    %v7759 = vadd.f32 %v256, %v7758
    %v7760 = vpop.f32.mrf.mxu0
    %7761 = vdwg.mxu0
    %7763 = vrot.lane.b32.xlu0 %v7759, 96
    %v7764 = vpop.permute.xlu0 %7763
    %7766 = vst.msk [vmem:[#allocation2 + $0x18] sm:$0xff] %vm2122, %v7764
    %v7767 = vshra.s32 %v7759, 31
    %v7768 = vand.u32 %v7767, 2147483647
    %v7769 = vxor.u32 %v7759, %v7768
    %v7770 = vand.u32 %v7769, 4294967264
    %v7771 = vor.u32 %v7770, %v711
    %v7772 = vsel %vm233, %v7771, 2147483648
    %v7773 = vand.u32 %v7772, 65535
    %v7774 = vshra.s32 %v7772, 16
    %v7775 = vcvt.s32.f32 %v7773
    %v7776 = vcvt.s32.f32 %v7774
    %7777 = vmax.xlane.f32.xlu0 %v7776
    %v7778 = vpop.xlane.xlu0 %7777
    %vm7779 = vcmp.eq.f32.partialorder %v7776, %v7778
    %v7780 = vsel %vm7779, %v7775, -inf
    %7781 = vmax.xlane.f32.xlu0 %v7780
    %v7782 = vpop.xlane.xlu0 %7781
    %v7783 = vcvt.f32.s32 %v7782
    %v7784 = vcvt.f32.s32 %v7778
    %v7785 = vshll.u32 %v7784, 16
    %v7786 = vadd.s32 %v7785, %v7783
    %v7787 = vand.u32 %v7786, 31
    %v7788 = vsub.s32 31, %v7787
    %vm7789 = vcmp.eq.s32.totalorder %v237, %v7788
    %v7790 = vsel %vm7789, 1, 0
    %v7791 = vcvt.s32.f32 %v7790
    %v7792 = vpack.c.bf16 %v7791, %v7791
    %v7793 = vld [vmem:[%s3] sm:$0xff]
    %v7794 = vld [vmem:[%s3 + $0x8] sm:$0xff]
    %v7795 = vld [vmem:[%s3 + $0x10] sm:$0xff]
    %v7796 = vld [vmem:[%s3 + $0x18] sm:$0xff]
    %v7797 = vld [vmem:[%s4] sm:$0xff]
    %v7798 = vld [vmem:[%s4 + $0x8] sm:$0xff]
    %v7799 = vld [vmem:[%s4 + $0x10] sm:$0xff]
    %v7800 = vld [vmem:[%s4 + $0x18] sm:$0xff]
    %v7801 = vld [vmem:[%s4 + $0x20] sm:$0xff]
    %v7802 = vld [vmem:[%s4 + $0x28] sm:$0xff]
    %v7803 = vld [vmem:[%s4 + $0x30] sm:$0xff]
    %v7804 = vld [vmem:[%s4 + $0x38] sm:$0xff]
    %v7813 = vunpack.c.l.b16 %v7797
    %v7814 = vunpack.c.h.b16 %v7797
    %v7815 = vunpack.c.l.b16 %v7798
    %v7816 = vunpack.c.h.b16 %v7798
    %v7817 = vunpack.c.l.b16 %v7799
    %v7818 = vunpack.c.h.b16 %v7799
    %v7819 = vunpack.c.l.b16 %v7800
    %v7820 = vunpack.c.h.b16 %v7800
    %v7821 = vunpack.c.l.b16 %v7801
    %v7822 = vunpack.c.h.b16 %v7801
    %v7823 = vunpack.c.l.b16 %v7802
    %v7824 = vunpack.c.h.b16 %v7802
    %v7825 = vunpack.c.l.b16 %v7803
    %v7826 = vunpack.c.h.b16 %v7803
    %v7827 = vunpack.c.l.b16 %v7804
    %v7828 = vunpack.c.h.b16 %v7804
    %v7829 = vpack.c.b16 %v7815, %v7813
    %v7830 = vpack.c.b16 %v7816, %v7814
    %v7831 = vpack.c.b16 %v7819, %v7817
    %v7832 = vpack.c.b16 %v7820, %v7818
    %v7833 = vpack.c.b16 %v7823, %v7821
    %v7834 = vpack.c.b16 %v7824, %v7822
    %v7835 = vpack.c.b16 %v7827, %v7825
    %v7836 = vpack.c.b16 %v7828, %v7826
    %7845 = vmatpush.bf16.msra.mxu0 0
    %7846 = vmatpush.bf16.msra.mxu0 0
    %7847 = vmatpush.bf16.msra.mxu0 0
    %7848 = vmatpush.bf16.msra.mxu0 0
    %7849 = vmatpush.bf16.msra.mxu0 %v7835
    %7850 = vmatpush.bf16.msra.mxu0 %v7833
    %7851 = vmatpush.bf16.msra.mxu0 %v7831
    %7852 = vmatpush.bf16.msra.mxu0 %v7829
    %7853 = vmatmul.bf16.gmra.mxu0 %v7629
    %v7854 = vpop.f32.mrf.mxu0
    %v7855 = vadd.f32 %v244, %v7854
    %v7856 = vpop.f32.mrf.mxu0
    %7857 = vdwg.mxu0
    %7858 = vmatpush.bf16.msra.mxu0 0
    %7859 = vmatpush.bf16.msra.mxu0 0
    %7860 = vmatpush.bf16.msra.mxu0 0
    %7861 = vmatpush.bf16.msra.mxu0 0
    %7862 = vmatpush.bf16.msra.mxu0 %v7836
    %7863 = vmatpush.bf16.msra.mxu0 %v7834
    %7864 = vmatpush.bf16.msra.mxu0 %v7832
    %7865 = vmatpush.bf16.msra.mxu0 %v7830
    %7866 = vmatmul.bf16.gmra.mxu0 %v7629
    %v7867 = vpop.f32.mrf.mxu0
    %v7868 = vadd.f32 %v245, %v7867
    %v7869 = vpop.f32.mrf.mxu0
    %7870 = vdwg.mxu0
    %v7875 = vunpack.c.l.b16 %v7793
    %v7876 = vunpack.c.h.b16 %v7793
    %v7877 = vunpack.c.l.b16 %v7794
    %v7878 = vunpack.c.h.b16 %v7794
    %v7879 = vunpack.c.l.b16 %v7795
    %v7880 = vunpack.c.h.b16 %v7795
    %v7881 = vunpack.c.l.b16 %v7796
    %v7882 = vunpack.c.h.b16 %v7796
    %v7883 = vpack.c.b16 %v7877, %v7875
    %v7884 = vpack.c.b16 %v7878, %v7876
    %v7885 = vpack.c.b16 %v7881, %v7879
    %v7886 = vpack.c.b16 %v7882, %v7880
    %v7892 = vsel %vm233, %v7792, 0
    %7894 = vmatpush.bf16.msra.mxu0 0
    %7895 = vmatpush.bf16.msra.mxu0 0
    %7896 = vmatpush.bf16.msra.mxu0 0
    %7897 = vmatpush.bf16.msra.mxu0 0
    %7898 = vmatpush.bf16.msra.mxu0 0
    %7899 = vmatpush.bf16.msra.mxu0 0
    %7900 = vmatpush.bf16.msra.mxu0 %v7885
    %7901 = vmatpush.bf16.msra.mxu0 %v7883
    %7902 = vmatmul.bf16.gmra.mxu0 %v7892
    %v7903 = vpop.f32.mrf.mxu0
    %v7904 = vadd.f32 %v7855, %v7903
    %v7905 = vpop.f32.mrf.mxu0
    %7906 = vdwg.mxu0
    %7907 = vmatpush.bf16.msra.mxu0 0
    %7908 = vmatpush.bf16.msra.mxu0 0
    %7909 = vmatpush.bf16.msra.mxu0 0
    %7910 = vmatpush.bf16.msra.mxu0 0
    %7911 = vmatpush.bf16.msra.mxu0 0
    %7912 = vmatpush.bf16.msra.mxu0 0
    %7913 = vmatpush.bf16.msra.mxu0 %v7886
    %7914 = vmatpush.bf16.msra.mxu0 %v7884
    %7915 = vmatmul.bf16.gmra.mxu0 %v7892
    %v7916 = vpop.f32.mrf.mxu0
    %v7917 = vadd.f32 %v7868, %v7916
    %v7918 = vpop.f32.mrf.mxu0
    %7919 = vdwg.mxu0
    %v7920 = vld [vmem:[%s7] sm:$0xff]
    %v7921 = vld [vmem:[%s7 + $0x8] sm:$0xff]
    %v7922 = vld [vmem:[%s7 + $0x10] sm:$0xff]
    %v7923 = vld [vmem:[%s7 + $0x18] sm:$0xff]
    %v7924 = vld [vmem:[%s7 + $0x20] sm:$0xff]
    %v7925 = vld [vmem:[%s7 + $0x28] sm:$0xff]
    %v7926 = vld [vmem:[%s7 + $0x30] sm:$0xff]
    %v7927 = vld [vmem:[%s7 + $0x38] sm:$0xff]
    %v7936 = vunpack.c.l.b16 %v7920
    %v7937 = vunpack.c.h.b16 %v7920
    %v7938 = vunpack.c.l.b16 %v7921
    %v7939 = vunpack.c.h.b16 %v7921
    %v7940 = vunpack.c.l.b16 %v7922
    %v7941 = vunpack.c.h.b16 %v7922
    %v7942 = vunpack.c.l.b16 %v7923
    %v7943 = vunpack.c.h.b16 %v7923
    %v7944 = vunpack.c.l.b16 %v7924
    %v7945 = vunpack.c.h.b16 %v7924
    %v7946 = vunpack.c.l.b16 %v7925
    %v7947 = vunpack.c.h.b16 %v7925
    %v7948 = vunpack.c.l.b16 %v7926
    %v7949 = vunpack.c.h.b16 %v7926
    %v7950 = vunpack.c.l.b16 %v7927
    %v7951 = vunpack.c.h.b16 %v7927
    %v7952 = vpack.c.b16 %v7938, %v7936
    %v7953 = vpack.c.b16 %v7939, %v7937
    %v7954 = vpack.c.b16 %v7942, %v7940
    %v7955 = vpack.c.b16 %v7943, %v7941
    %v7956 = vpack.c.b16 %v7946, %v7944
    %v7957 = vpack.c.b16 %v7947, %v7945
    %v7958 = vpack.c.b16 %v7950, %v7948
    %v7959 = vpack.c.b16 %v7951, %v7949
    %7968 = vmatpush.bf16.msra.mxu0 0
    %7969 = vmatpush.bf16.msra.mxu0 0
    %7970 = vmatpush.bf16.msra.mxu0 0
    %7971 = vmatpush.bf16.msra.mxu0 0
    %7972 = vmatpush.bf16.msra.mxu0 %v7958
    %7973 = vmatpush.bf16.msra.mxu0 %v7956
    %7974 = vmatpush.bf16.msra.mxu0 %v7954
    %7975 = vmatpush.bf16.msra.mxu0 %v7952
    %7976 = vmatmul.bf16.gmra.mxu0 %v7747
    %v7977 = vpop.f32.mrf.mxu0
    %v7978 = vadd.f32 %v250, %v7977
    %v7979 = vpop.f32.mrf.mxu0
    %7980 = vdwg.mxu0
    %7981 = vmatpush.bf16.msra.mxu0 0
    %7982 = vmatpush.bf16.msra.mxu0 0
    %7983 = vmatpush.bf16.msra.mxu0 0
    %7984 = vmatpush.bf16.msra.mxu0 0
    %7985 = vmatpush.bf16.msra.mxu0 %v7959
    %7986 = vmatpush.bf16.msra.mxu0 %v7957
    %7987 = vmatpush.bf16.msra.mxu0 %v7955
    %7988 = vmatpush.bf16.msra.mxu0 %v7953
    %7989 = vmatmul.bf16.gmra.mxu0 %v7747
    %v7990 = vpop.f32.mrf.mxu0
    %v7991 = vadd.f32 %v251, %v7990
    %v7992 = vpop.f32.mrf.mxu0
    %7993 = vdwg.mxu0
    %v7994 = vxor.u32 %v7904, 2147483648
    %v7995 = vxor.u32 %v7917, 2147483648
    %v7996 = vmul.f32 %v7994, 1.442695
    %v7997 = vpow.pop %v7996
    %v7998 = vmul.f32 %v7995, 1.442695
    %v7999 = vpow.pop %v7998
    %v8000 = vadd.f32 %v7997, 1.0
    %v8001 = vadd.f32 %v7999, 1.0
    %v8002 = vrcp.pop %v8000
    %v8003 = vmul.f32 %v8000, %v8002
    %v8004 = vsub.f32 1.0, %v8003
    %v8005 = vmul.f32 %v8002, %v8004
    %v8006 = vadd.f32 %v8002, %v8005
    %vm8007 = vweird.f32 %v8000
    %vm8008 = vweird.f32 %v8002
    %vm8009 = vmor %vm8007, %vm8008
    %v8010 = vsel %vm8009, %v8002, %v8006
    %v8011 = vand.u32 2147483647, %v8000
    %vm8012 = vcmp.eq.f32.partialorder %v8011, 8.507059e+37
    %v8013 = vand.u32 %v8000, 2147483648
    %v8014 = vor.u32 1.1754944e-38, %v8013
    %v8015 = vsel %vm8012, %v8014, %v8010
    %v8016 = vmul.f32 1.0, %v8015
    %v8017 = vrcp.pop %v8001
    %v8018 = vmul.f32 %v8001, %v8017
    %v8019 = vsub.f32 1.0, %v8018
    %v8020 = vmul.f32 %v8017, %v8019
    %v8021 = vadd.f32 %v8017, %v8020
    %vm8022 = vweird.f32 %v8001
    %vm8023 = vweird.f32 %v8017
    %vm8024 = vmor %vm8022, %vm8023
    %v8025 = vsel %vm8024, %v8017, %v8021
    %v8026 = vand.u32 2147483647, %v8001
    %vm8027 = vcmp.eq.f32.partialorder %v8026, 8.507059e+37
    %v8028 = vand.u32 %v8001, 2147483648
    %v8029 = vor.u32 1.1754944e-38, %v8028
    %v8030 = vsel %vm8027, %v8029, %v8025
    %v8031 = vmul.f32 1.0, %v8030
    %v8032 = vtanh.pop %v7917
    %v8033 = vmul.f32 %v8016, %v7572
    %8035 = vrot.lane.b32.xlu0 %v8032, 64
    %v8036 = vpop.permute.xlu0 %8035
    %v8038 = vmul.f32 %v8016, %v8036
    %8040 = vrot.lane.b32.xlu0 %v8038, 64
    %v8041 = vpop.permute.xlu0 %8040
    %v8043 = vadd.f32 %v8033, %v8041
    %v8044 = vtanh.pop %v8043
    %8046 = vrot.lane.b32.xlu0 %v8044, 64
    %v8047 = vpop.permute.xlu0 %8046
    %v8049 = vmul.f32 %v8031, %v8047
    %v8050 = vpack.c.bf16 %v8049, %v8049
    %v8051 = vld [vmem:[%s6] sm:$0xff]
    %v8052 = vld [vmem:[%s6 + $0x8] sm:$0xff]
    %v8053 = vld [vmem:[%s6 + $0x10] sm:$0xff]
    %v8054 = vld [vmem:[%s6 + $0x18] sm:$0xff]
    %v8055 = vld [vmem:[%s6 + $0x20] sm:$0xff]
    %v8056 = vld [vmem:[%s6 + $0x28] sm:$0xff]
    %v8057 = vld [vmem:[%s6 + $0x30] sm:$0xff]
    %v8058 = vld [vmem:[%s6 + $0x38] sm:$0xff]
    %v8067 = vunpack.c.l.b16 %v8051
    %v8068 = vunpack.c.h.b16 %v8051
    %v8069 = vunpack.c.l.b16 %v8052
    %v8070 = vunpack.c.h.b16 %v8052
    %v8071 = vunpack.c.l.b16 %v8053
    %v8072 = vunpack.c.h.b16 %v8053
    %v8073 = vunpack.c.l.b16 %v8054
    %v8074 = vunpack.c.h.b16 %v8054
    %v8075 = vunpack.c.l.b16 %v8055
    %v8076 = vunpack.c.h.b16 %v8055
    %v8077 = vunpack.c.l.b16 %v8056
    %v8078 = vunpack.c.h.b16 %v8056
    %v8079 = vunpack.c.l.b16 %v8057
    %v8080 = vunpack.c.h.b16 %v8057
    %v8081 = vunpack.c.l.b16 %v8058
    %v8082 = vunpack.c.h.b16 %v8058
    %v8083 = vpack.c.b16 %v8069, %v8067
    %v8084 = vpack.c.b16 %v8070, %v8068
    %v8085 = vpack.c.b16 %v8073, %v8071
    %v8086 = vpack.c.b16 %v8074, %v8072
    %v8087 = vpack.c.b16 %v8077, %v8075
    %v8088 = vpack.c.b16 %v8078, %v8076
    %v8089 = vpack.c.b16 %v8081, %v8079
    %v8090 = vpack.c.b16 %v8082, %v8080
    %v8100 = vsel %vm125, %v8050, 0
    %8102 = vmatpush.bf16.msra.mxu0 0
    %8103 = vmatpush.bf16.msra.mxu0 0
    %8104 = vmatpush.bf16.msra.mxu0 0
    %8105 = vmatpush.bf16.msra.mxu0 0
    %8106 = vmatpush.bf16.msra.mxu0 %v8089
    %8107 = vmatpush.bf16.msra.mxu0 %v8087
    %8108 = vmatpush.bf16.msra.mxu0 %v8085
    %8109 = vmatpush.bf16.msra.mxu0 %v8083
    %8110 = vmatmul.bf16.gmra.mxu0 %v8100
    %v8111 = vpop.f32.mrf.mxu0
    %v8112 = vadd.f32 %v7978, %v8111
    %v8113 = vpop.f32.mrf.mxu0
    %8114 = vdwg.mxu0
    %8115 = vmatpush.bf16.msra.mxu0 0
    %8116 = vmatpush.bf16.msra.mxu0 0
    %8117 = vmatpush.bf16.msra.mxu0 0
    %8118 = vmatpush.bf16.msra.mxu0 0
    %8119 = vmatpush.bf16.msra.mxu0 %v8090
    %8120 = vmatpush.bf16.msra.mxu0 %v8088
    %8121 = vmatpush.bf16.msra.mxu0 %v8086
    %8122 = vmatpush.bf16.msra.mxu0 %v8084
    %8123 = vmatmul.bf16.gmra.mxu0 %v8100
    %v8124 = vpop.f32.mrf.mxu0
    %v8125 = vadd.f32 %v7991, %v8124
    %v8126 = vpop.f32.mrf.mxu0
    %8127 = vdwg.mxu0
    %v8128 = vxor.u32 %v8112, 2147483648
    %v8129 = vxor.u32 %v8125, 2147483648
    %v8130 = vmul.f32 %v8128, 1.442695
    %v8131 = vpow.pop %v8130
    %v8132 = vmul.f32 %v8129, 1.442695
    %v8133 = vpow.pop %v8132
    %v8134 = vadd.f32 %v8131, 1.0
    %v8135 = vadd.f32 %v8133, 1.0
    %v8136 = vrcp.pop %v8134
    %v8137 = vmul.f32 %v8134, %v8136
    %v8138 = vsub.f32 1.0, %v8137
    %v8139 = vmul.f32 %v8136, %v8138
    %v8140 = vadd.f32 %v8136, %v8139
    %vm8141 = vweird.f32 %v8134
    %vm8142 = vweird.f32 %v8136
    %vm8143 = vmor %vm8141, %vm8142
    %v8144 = vsel %vm8143, %v8136, %v8140
    %v8145 = vand.u32 2147483647, %v8134
    %vm8146 = vcmp.eq.f32.partialorder %v8145, 8.507059e+37
    %v8147 = vand.u32 %v8134, 2147483648
    %v8148 = vor.u32 1.1754944e-38, %v8147
    %v8149 = vsel %vm8146, %v8148, %v8144
    %v8150 = vmul.f32 1.0, %v8149
    %v8151 = vrcp.pop %v8135
    %v8152 = vmul.f32 %v8135, %v8151
    %v8153 = vsub.f32 1.0, %v8152
    %v8154 = vmul.f32 %v8151, %v8153
    %v8155 = vadd.f32 %v8151, %v8154
    %vm8156 = vweird.f32 %v8135
    %vm8157 = vweird.f32 %v8151
    %vm8158 = vmor %vm8156, %vm8157
    %v8159 = vsel %vm8158, %v8151, %v8155
    %v8160 = vand.u32 2147483647, %v8135
    %vm8161 = vcmp.eq.f32.partialorder %v8160, 8.507059e+37
    %v8162 = vand.u32 %v8135, 2147483648
    %v8163 = vor.u32 1.1754944e-38, %v8162
    %v8164 = vsel %vm8161, %v8163, %v8159
    %v8165 = vmul.f32 1.0, %v8164
    %v8166 = vtanh.pop %v8125
    %v8167 = vmul.f32 %v8150, %v7706
    %8169 = vrot.lane.b32.xlu0 %v8166, 64
    %v8170 = vpop.permute.xlu0 %8169
    %v8172 = vmul.f32 %v8150, %v8170
    %8174 = vrot.lane.b32.xlu0 %v8172, 64
    %v8175 = vpop.permute.xlu0 %8174
    %v8177 = vadd.f32 %v8167, %v8175
    %v8178 = vtanh.pop %v8177
    %8180 = vrot.lane.b32.xlu0 %v8178, 64
    %v8181 = vpop.permute.xlu0 %8180
    %v8183 = vmul.f32 %v8165, %v8181
    %v8184 = vpack.c.bf16 %v8183, %v8183
    %v8185 = vld [vmem:[%s9] sm:$0xf]
    %v8186 = vld [vmem:[%s9 + $0x4] sm:$0xf]
    %v8187 = vld [vmem:[%s9 + $0x8] sm:$0xf]
    %v8188 = vld [vmem:[%s9 + $0xc] sm:$0xf]
    %v8189 = vld [vmem:[%s9 + $0x10] sm:$0xf]
    %v8190 = vld [vmem:[%s9 + $0x14] sm:$0xf]
    %v8191 = vld [vmem:[%s9 + $0x18] sm:$0xf]
    %v8192 = vld [vmem:[%s9 + $0x1c] sm:$0xf]
    %v8201 = vunpack.c.l.b16 %v8185
    %v8202 = vunpack.c.l.b16 %v8186
    %v8203 = vunpack.c.l.b16 %v8187
    %v8204 = vunpack.c.l.b16 %v8188
    %v8205 = vunpack.c.l.b16 %v8189
    %v8206 = vunpack.c.l.b16 %v8190
    %v8207 = vunpack.c.l.b16 %v8191
    %v8208 = vunpack.c.l.b16 %v8192
    %v8209 = vpack.c.b16 %v8202, %v8201
    %v8210 = vpack.c.b16 %v8204, %v8203
    %v8211 = vpack.c.b16 %v8206, %v8205
    %v8212 = vpack.c.b16 %v8208, %v8207
    %v8218 = vsel %vm125, %v8184, 0
    %8220 = vmatpush.bf16.msra.mxu0 0
    %8221 = vmatpush.bf16.msra.mxu0 0
    %8222 = vmatpush.bf16.msra.mxu0 0
    %8223 = vmatpush.bf16.msra.mxu0 0
    %8224 = vmatpush.bf16.msra.mxu0 %v8212
    %8225 = vmatpush.bf16.msra.mxu0 %v8211
    %8226 = vmatpush.bf16.msra.mxu0 %v8210
    %8227 = vmatpush.bf16.msra.mxu0 %v8209
    %8228 = vmatmul.bf16.gmra.mxu0 %v8218
    %v8229 = vpop.f32.mrf.mxu0
    %v8230 = vadd.f32 %v256, %v8229
    %v8231 = vpop.f32.mrf.mxu0
    %8232 = vdwg.mxu0
    %8233 = vst.msk [vmem:[#allocation2 + $0x20] sm:$0xff] %vm233, %v8230
    %8235 = vrot.lane.b32.xlu0 %v8183, 64
    %v8236 = vpop.permute.xlu0 %8235
    %v8238 = vsel %vm125, %v8049, %v8236
    %8239 = vst [vmem:[#allocation4] sm:$0xff] %v8238
    %8241 = vrot.lane.b32.xlu0 %v8043, 64
    %v8242 = vpop.permute.xlu0 %8241
    %v8244 = vsel %vm125, %v8242, %v8177
    %8245 = vst [vmem:[#allocation6] sm:$0xff] %v8244
    // Predicated region
    $region46: #{tpu_custom_call.1} parent=1 // pred_check
      _
    $region47: #{tpu_custom_call.1} parent=1 // pred_check_branch
      %8247 = sbr.rel (0) target = $region49
    $region48: #{tpu_custom_call.1} parent=1 // pred_region
      %8249 = vsyncadd [#allocation3], 0
      %s8251 = sshll.u32 [#allocation2], 4
      %s8252 = int_to_ptr.vmem [resolvable:$true] %s8251
      %s8253 = sshll.u32 %s11, 4
      %s8254 = int_to_ptr.hbm [resolvable:$true] %s8253
      %8256 = dma.vmem_to_hbm [thread:$0]  %s8252, 640, %s8254, [#allocation3]
    $region49: #{tpu_custom_call.1} parent=1 // pred_fallthru
      _
    // Predicated region
    $region50: #{tpu_custom_call.1} parent=1 // pred_check
      _
    $region51: #{tpu_custom_call.1} parent=1 // pred_check_branch
      %8258 = sbr.rel (0) target = $region53
    $region52: #{tpu_custom_call.1} parent=1 // pred_region
      %8260 = vsyncadd [#allocation5], 0
      %s8262 = sshll.u32 [#allocation4], 4
      %s8263 = int_to_ptr.vmem [resolvable:$true] %s8262
      %s8264 = sshll.u32 %s12, 4
      %s8265 = int_to_ptr.hbm [resolvable:$true] %s8264
      %8267 = dma.vmem_to_hbm [thread:$0]  %s8263, 128, %s8265, [#allocation5]
    $region53: #{tpu_custom_call.1} parent=1 // pred_fallthru
      _
    // Predicated region
    $region54: #{tpu_custom_call.1} parent=1 // pred_check
      _
    $region55: #{tpu_custom_call.1} parent=1 // pred_check_branch
      %8269 = sbr.rel (0) target = $region57
    $region56: #{tpu_custom_call.1} parent=1 // pred_region
      %8271 = vsyncadd [#allocation5], 0
      %s8273 = sshll.u32 [#allocation6], 4
      %s8274 = int_to_ptr.vmem [resolvable:$true] %s8273
      %s8275 = sshll.u32 %s13, 4
      %s8276 = int_to_ptr.hbm [resolvable:$true] %s8275
      %8278 = dma.vmem_to_hbm [thread:$0]  %s8274, 128, %s8276, [#allocation5]
    $region57: #{tpu_custom_call.1} parent=1 // pred_fallthru
      _
    // Predicated region
    $region58: #{tpu_custom_call.1} parent=1 // pred_check
      _
    $region59: #{tpu_custom_call.1} parent=1 // pred_check_branch
      %8280 = sbr.rel (0) target = $region61
    $region60: #{tpu_custom_call.1} parent=1 // pred_region
      %8282 = dma.done [#allocation3], 640
    $region61: #{tpu_custom_call.1} parent=1 // pred_fallthru
      _
    // Predicated region
    $region62: #{tpu_custom_call.1} parent=1 // pred_check
      _
    $region63: #{tpu_custom_call.1} parent=1 // pred_check_branch
      %8284 = sbr.rel (0) target = $region65
    $region64: #{tpu_custom_call.1} parent=1 // pred_region
      %8286 = dma.done [#allocation5], 128
    $region65: #{tpu_custom_call.1} parent=1 // pred_fallthru
      _
    // Predicated region
    $region66: #{tpu_custom_call.1} parent=1 // pred_check
      _
    $region67: #{tpu_custom_call.1} parent=1 // pred_check_branch
      %8288 = sbr.rel (0) target = $region69
    $region68: #{tpu_custom_call.1} parent=1 // pred_region
      %8290 = dma.done [#allocation5], 128
    $region69: #{tpu_custom_call.1} parent=1 // pred_fallthru
      _
    %8291 = vsyncpa [#allocation3], 1
    %8292 = vsyncpa [#allocation5], 1

</llo_original>
